<compile_context>
chip_gen: v6e
topology: v6e:2x2x1
jax: 0.10.0
libtpu: 0.0.40
codegen_flags: <defaults>
</compile_context>

<pallas_src>
import jax
import jax.numpy as jnp
import numpy as np
from jax.experimental import pallas as pl
from jax.experimental.pallas import tpu as pltpu

EXPANSION = 4
EPS = 1e-5
CP = 128            # padded channel width == vreg lane width


def _bn_coeffs(y, g, b):
    """Training-mode BatchNorm folded to one per-channel affine (f32 stats).

    Column sums / sums-of-squares via XLU sublane reductions (jnp.sum over the
    row axis) -- rides an otherwise-idle unit and stays true f32 instead of
    running 1-row reduced-precision MXU matmuls."""
    inv_m = 1.0 / y.shape[0]
    mean = jnp.sum(y, axis=0, keepdims=True) * inv_m
    mean_sq = jnp.sum(y * y, axis=0, keepdims=True) * inv_m
    var = jnp.maximum(mean_sq - mean * mean, 0.0)
    a = g * jax.lax.rsqrt(var + EPS)          # (1, CP)
    c = b - mean * a                          # (1, CP)
    return a, c


def bottleneck_kernel(x_ref, w1sc_ref, w2_ref, w3_ref,
                      g1_ref, b1_ref, g2_ref, b2_ref, g3_ref, b3_ref,
                      gsc_ref, bsc_ref, out_ref, pad_ref):
    N, H, W, C = x_ref.shape                  # C == CP (lane-dense)
    M = N * H * W

    x = x_ref[...].reshape(M, C)              # bf16, (M, 128)

    # --- conv1 (1x1) + shortcut (1x1) fused into ONE (M,128)@(128,256) -----
    h = jnp.dot(x, w1sc_ref[...], preferred_element_type=jnp.float32)
    h1 = h[:, :C]                             # conv1 branch (128-lane aligned)
    sc = h[:, C:]                             # shortcut branch

    # --- bn1 + relu -> bf16, written straight into the bf16 pad scratch -----
    # NOTE: padded lanes stay exactly zero only because input/weight pads and
    # beta pads are zero; a = rsqrt(eps) ~ 316 would amplify any nonzero pad,
    # so never introduce nonzero padded weights/biases without masking.
    a1, c1 = _bn_coeffs(h1, g1_ref[...], b1_ref[...])
    h1n = jnp.maximum(h1 * a1 + c1, 0.0).astype(jnp.bfloat16)

    # --- conv2 (3x3, padding=1, stride=1) ------------------------------------
    # Bulk-zero the bf16 pad scratch (unmasked full-tile stores), write the
    # interior once.
    pad_ref[...] = jnp.zeros_like(pad_ref)
    pad_ref[:, 1:H + 1, 1:W + 1, :] = h1n.reshape(N, H, W, C)

    # 9 accumulating K=128 matmuls reading pad_ref directly: no materialized
    # (M, 9*128) im2col temp, no wide f32->bf16 downcast.
    acc = jnp.zeros((M, C), jnp.float32)
    for dy in range(3):
        for dx in range(3):
            tap = pad_ref[:, dy:dy + H, dx:dx + W, :].reshape(M, C)
            wblk = w2_ref[pl.ds(C * (3 * dy + dx), C), :]
            acc = acc + jnp.dot(tap, wblk, preferred_element_type=jnp.float32)

    # --- bn2 + relu -> bf16 operand for conv3 --------------------------------
    a2, c2 = _bn_coeffs(acc, g2_ref[...], b2_ref[...])
    h2 = jnp.maximum(acc * a2 + c2, 0.0).astype(jnp.bfloat16)

    # --- conv3 (1x1) ----------------------------------------------------------
    h3 = jnp.dot(h2, w3_ref[...], preferred_element_type=jnp.float32)

    # --- bn3 + bn_sc + residual add + relu folded into ONE pass --------------
    a3, c3 = _bn_coeffs(h3, g3_ref[...], b3_ref[...])
    asc, csc = _bn_coeffs(sc, gsc_ref[...], bsc_ref[...])
    out = jnp.maximum(h3 * a3 + sc * asc + (c3 + csc), 0.0)

    # Lane-dense (last dim = 128) unmasked store.
    out_ref[...] = out.reshape(N, H, W, C)


def bottleneck_forward(x_nchw, params, stride=1):
    # TODO(synk): stride > 1 (spatial subsampling in conv2 / shortcut) not
    # implemented; the exercised configuration uses the module default stride=1.
    assert stride == 1, "only stride=1 supported in this kernel"
    N, Cin, H, W = x_nchw.shape
    P = params["w1"].shape[1]
    Cout = EXPANSION * P
    M = N * H * W

    # NCHW -> NHWC, pad channels to the full 128-lane width, bf16 MXU operands.
    x = jnp.transpose(x_nchw, (0, 2, 3, 1)).astype(jnp.float32)
    x = jnp.pad(x, ((0, 0), (0, 0), (0, 0), (0, CP - Cin))).astype(jnp.bfloat16)

    def pad_w(w):                      # (cin, cout) -> (CP, CP), bf16
        return jnp.pad(w, ((0, CP - w.shape[0]),
                           (0, CP - w.shape[1]))).astype(jnp.bfloat16)

    # conv1 + shortcut weights lane-concatenated -> one (128, 256) RHS.
    w1sc = jnp.concatenate([pad_w(params["w1"]), pad_w(params["wsc"])], axis=1)
    w3 = pad_w(params["w3"])
    w2 = jnp.pad(params["w2"], ((0, 0), (0, 0), (0, CP - P), (0, CP - P)))
    w2 = w2.reshape(9 * CP, CP).astype(jnp.bfloat16)   # row block k = tap (dy,dx)

    def pad_g(v):                      # gamma padded with 1 (pads stay exactly 0)
        return jnp.pad(v, ((0, 0), (0, CP - v.shape[1])),
                       constant_values=1.0).astype(jnp.float32)

    def pad_b(v):                      # beta padded with 0
        return jnp.pad(v, ((0, 0), (0, CP - v.shape[1]))).astype(jnp.float32)

    args = (x, w1sc, w2, w3,
            pad_g(params["g1"]), pad_b(params["b1"]),
            pad_g(params["g2"]), pad_b(params["b2"]),
            pad_g(params["g3"]), pad_b(params["b3"]),
            pad_g(params["gsc"]), pad_b(params["bsc"]))

    vmem = pl.BlockSpec(memory_space=pltpu.MemorySpace.VMEM)
    flops = (2 * M * CP * (2 * CP)        # fused conv1 + shortcut
             + 9 * 2 * M * CP * CP        # conv2: 9 accumulating matmuls
             + 2 * M * CP * CP)           # conv3
    bytes_accessed = int(sum(int(np.prod(a.shape)) * a.dtype.itemsize
                             for a in args) + M * CP * 4)

    # TODO(synk): real ResNet sizes need a row-block grid ("parallel"
    # dimension_semantics to use the v7x second TensorCore + BlockSpec
    # pipelining) with a two-pass BN-stat-accumulator design; at these toy
    # shapes everything fits in ~1 MiB of VMEM so one un-gridded call is kept.
    out_nhwc = pl.pallas_call(
        bottleneck_kernel,
        out_shape=jax.ShapeDtypeStruct((N, H, W, CP), jnp.float32),
        in_specs=[vmem] * len(args),
        out_specs=vmem,
        scratch_shapes=[pltpu.VMEM((N, H + 2, W + 2, CP), jnp.bfloat16)],
        compiler_params=pltpu.CompilerParams(vmem_limit_bytes=32 << 20),
        cost_estimate=pl.CostEstimate(flops=flops, transcendentals=4 * CP,
                                      bytes_accessed=bytes_accessed),
    )(*args)
    # TODO(synk): if the consumer can take NHWC / bf16, drop this slice +
    # transpose round trip (and only 16 of 128 output lanes are meaningful).
    return jnp.transpose(out_nhwc[..., :Cout], (0, 3, 1, 2))


# ----------------------------------------------------------------------
# Deterministic synthetic parameter init (shapes from Bottleneck.__init__).
# conv weights stored channels-last-for-output: (Cin, Cout) / (3,3,Cin,Cout).
def init_params(key, in_planes, planes):
    P = planes
    Cout = EXPANSION * planes
    ks = jax.random.split(key, 12)

    def nrm(k, shape, scale=0.2):
        return (scale * jax.random.normal(k, shape)).astype(jnp.float32)

    return dict(
        w1=nrm(ks[0], (in_planes, P)),        # conv1: 1x1, in_planes -> planes
        w2=nrm(ks[1], (3, 3, P, P)),          # conv2: 3x3, planes -> planes
        w3=nrm(ks[2], (P, Cout)),             # conv3: 1x1, planes -> 4*planes
        wsc=nrm(ks[3], (in_planes, Cout)),    # shortcut 1x1, in_planes -> 4*planes
        g1=1.0 + nrm(ks[4], (1, P)),  b1=nrm(ks[5], (1, P)),
        g2=1.0 + nrm(ks[6], (1, P)),  b2=nrm(ks[7], (1, P)),
        g3=1.0 + nrm(ks[8], (1, Cout)), b3=nrm(ks[9], (1, Cout)),
        gsc=1.0 + nrm(ks[10], (1, Cout)), bsc=nrm(ks[11], (1, Cout)),
    )


# Pure-JAX f32 reference (same math, no Pallas) for the sanity check.
def bottleneck_ref(x_nchw, p):
    x = jnp.transpose(x_nchw, (0, 2, 3, 1)).astype(jnp.float32)

    def bn(y, g, b):
        mean = jnp.mean(y, axis=(0, 1, 2), keepdims=True)
        var = jnp.mean((y - mean) ** 2, axis=(0, 1, 2), keepdims=True)
        return (y - mean) / jnp.sqrt(var + EPS) * g.reshape(1, 1, 1, -1) \
            + b.reshape(1, 1, 1, -1)

    h1 = jax.nn.relu(bn(jnp.einsum('nhwc,co->nhwo', x, p["w1"]), p["g1"], p["b1"]))
    N, H, W, _ = x.shape
    hp = jnp.pad(h1, ((0, 0), (1, 1), (1, 1), (0, 0)))
    acc = jnp.zeros((N, H, W, p["w2"].shape[-1]), jnp.float32)
    for dy in range(3):
        for dx in range(3):
            acc = acc + jnp.einsum('nhwc,co->nhwo',
                                   hp[:, dy:dy + H, dx:dx + W, :], p["w2"][dy, dx])
    h2 = jax.nn.relu(bn(acc, p["g2"], p["b2"]))
    h3 = bn(jnp.einsum('nhwc,co->nhwo', h2, p["w3"]), p["g3"], p["b3"])
    sc = bn(jnp.einsum('nhwc,co->nhwo', x, p["wsc"]), p["gsc"], p["bsc"])
    out = jax.nn.relu(h3 + sc)
    return jnp.transpose(out, (0, 3, 1, 2))


if __name__ == "__main__":
    key = jax.random.PRNGKey(0)
    k_x, k_p = jax.random.split(key)

    in_planes, planes = 4, 4            # shortcut path active (4 != 16)
    N, H, W = 2, 16, 16
    x = jax.random.normal(k_x, (N, in_planes, H, W), jnp.float32)
    params = init_params(k_p, in_planes, planes)

    out = bottleneck_forward(x, params, stride=1)
    out = jax.block_until_ready(out)

    ref = jax.block_until_ready(bottleneck_ref(x, params))
    # bf16 MXU operands slightly loosen agreement vs the f32 reference;
    # real bugs would produce O(1) discrepancies.
    np.testing.assert_allclose(np.asarray(out), np.asarray(ref),
                               rtol=5e-2, atol=5e-2)
    assert out.shape == (N, EXPANSION * planes, H, W)
    print("KERNEL_OK")
</pallas_src>

<mosaic_0001>
module attributes {stable_mosaic.version = 11 : i64} {
  func.func @bottleneck_kernel(%arg0: memref<2x16x16x128xbf16, #tpu.memory_space<vmem>>, %arg1: memref<128x256xbf16, #tpu.memory_space<vmem>>, %arg2: memref<1152x128xbf16, #tpu.memory_space<vmem>>, %arg3: memref<128x128xbf16, #tpu.memory_space<vmem>>, %arg4: memref<1x128xf32, #tpu.memory_space<vmem>>, %arg5: memref<1x128xf32, #tpu.memory_space<vmem>>, %arg6: memref<1x128xf32, #tpu.memory_space<vmem>>, %arg7: memref<1x128xf32, #tpu.memory_space<vmem>>, %arg8: memref<1x128xf32, #tpu.memory_space<vmem>>, %arg9: memref<1x128xf32, #tpu.memory_space<vmem>>, %arg10: memref<1x128xf32, #tpu.memory_space<vmem>>, %arg11: memref<1x128xf32, #tpu.memory_space<vmem>>, %arg12: memref<2x16x16x128xf32, #tpu.memory_space<vmem>>, %arg13: memref<2x18x18x128xbf16, #tpu.memory_space<vmem>>) attributes {dimension_semantics = [], scalar_prefetch = 0 : i64, scratch_operands = 1 : i64, tpu.core_type = #tpu.core_type<tc>} {
    %c0 = arith.constant 0 : index
    %c0_0 = arith.constant 0 : index
    %c0_1 = arith.constant 0 : index
    %c0_2 = arith.constant 0 : index
    %0 = vector.load %arg0[%c0, %c0_0, %c0_1, %c0_2] : memref<2x16x16x128xbf16, #tpu.memory_space<vmem>>, vector<2x16x16x128xbf16>
    %1 = vector.shape_cast %0 : vector<2x16x16x128xbf16> to vector<512x128xbf16>
    %c0_3 = arith.constant 0 : index
    %c0_4 = arith.constant 0 : index
    %2 = vector.load %arg1[%c0_3, %c0_4] : memref<128x256xbf16, #tpu.memory_space<vmem>>, vector<128x256xbf16>
    %cst = arith.constant dense<0.000000e+00> : vector<512x256xf32>
    %3 = tpu.matmul %1, %2, %cst {dimension_numbers = #tpu.dot_dimension_numbers<[1], [0], [0], [1], [0, 0, 1, 1], [], []>} : vector<512x128xbf16>, vector<128x256xbf16>, vector<512x256xf32> -> vector<512x256xf32>
    %4 = vector.extract_strided_slice %3 {offsets = [0, 0], sizes = [512, 128], strides = [1, 1]} : vector<512x256xf32> to vector<512x128xf32>
    %5 = vector.extract_strided_slice %3 {offsets = [0, 128], sizes = [512, 128], strides = [1, 1]} : vector<512x256xf32> to vector<512x128xf32>
    %c0_5 = arith.constant 0 : index
    %c0_6 = arith.constant 0 : index
    %6 = vector.load %arg4[%c0_5, %c0_6] : memref<1x128xf32, #tpu.memory_space<vmem>>, vector<1x128xf32>
    %c0_7 = arith.constant 0 : index
    %c0_8 = arith.constant 0 : index
    %7 = vector.load %arg5[%c0_7, %c0_8] : memref<1x128xf32, #tpu.memory_space<vmem>>, vector<1x128xf32>
    %cst_9 = arith.constant dense<0.000000e+00> : vector<128xf32>
    %8 = vector.multi_reduction <add>, %4, %cst_9 [0] : vector<512x128xf32> to vector<128xf32>
    %9 = vector.shape_cast %8 : vector<128xf32> to vector<1x128xf32>
    %cst_10 = arith.constant 0.001953125 : f32
    %10 = vector.broadcast %cst_10 : f32 to vector<1x128xf32>
    %11 = arith.mulf %9, %10 : vector<1x128xf32>
    %12 = arith.mulf %4, %4 : vector<512x128xf32>
    %cst_11 = arith.constant dense<0.000000e+00> : vector<128xf32>
    %13 = vector.multi_reduction <add>, %12, %cst_11 [0] : vector<512x128xf32> to vector<128xf32>
    %14 = vector.shape_cast %13 : vector<128xf32> to vector<1x128xf32>
    %cst_12 = arith.constant 0.001953125 : f32
    %15 = vector.broadcast %cst_12 : f32 to vector<1x128xf32>
    %16 = arith.mulf %14, %15 : vector<1x128xf32>
    %17 = arith.mulf %11, %11 : vector<1x128xf32>
    %18 = arith.subf %16, %17 : vector<1x128xf32>
    %cst_13 = arith.constant 0.000000e+00 : f32
    %19 = vector.broadcast %cst_13 : f32 to vector<1x128xf32>
    %20 = arith.maximumf %18, %19 : vector<1x128xf32>
    %cst_14 = arith.constant 9.99999974E-6 : f32
    %21 = vector.broadcast %cst_14 : f32 to vector<1x128xf32>
    %22 = arith.addf %20, %21 : vector<1x128xf32>
    %23 = math.rsqrt %22 : vector<1x128xf32>
    %24 = arith.mulf %6, %23 : vector<1x128xf32>
    %25 = arith.mulf %11, %24 : vector<1x128xf32>
    %26 = arith.subf %7, %25 : vector<1x128xf32>
    %27 = vector.broadcast %24 : vector<1x128xf32> to vector<512x128xf32>
    %28 = arith.mulf %4, %27 : vector<512x128xf32>
    %29 = vector.broadcast %26 : vector<1x128xf32> to vector<512x128xf32>
    %30 = arith.addf %28, %29 : vector<512x128xf32>
    %cst_15 = arith.constant 0.000000e+00 : f32
    %31 = vector.broadcast %cst_15 : f32 to vector<512x128xf32>
    %32 = arith.maximumf %30, %31 : vector<512x128xf32>
    %33 = arith.truncf %32 : vector<512x128xf32> to vector<512x128xbf16>
    %cst_16 = arith.constant 0.000000e+00 : bf16
    %34 = vector.broadcast %cst_16 : bf16 to vector<2x18x18x128xbf16>
    %c0_17 = arith.constant 0 : index
    %c0_18 = arith.constant 0 : index
    %c0_19 = arith.constant 0 : index
    %c0_20 = arith.constant 0 : index
    %35 = vector.load %arg13[%c0_17, %c0_18, %c0_19, %c0_20] : memref<2x18x18x128xbf16, #tpu.memory_space<vmem>>, vector<2x18x18x128xbf16>
    tpu.vector_store %arg13[%c0_17, %c0_18, %c0_19, %c0_20], %34 {strides = array<i32>} : memref<2x18x18x128xbf16, #tpu.memory_space<vmem>>, vector<2x18x18x128xbf16>,
    %36 = vector.shape_cast %33 : vector<512x128xbf16> to vector<2x16x16x128xbf16>
    %c0_21 = arith.constant 0 : index
    %c1 = arith.constant 1 : index
    %c1_22 = arith.constant 1 : index
    %c0_23 = arith.constant 0 : index
    %37 = vector.load %arg13[%c0_21, %c1, %c1_22, %c0_23] : memref<2x18x18x128xbf16, #tpu.memory_space<vmem>>, vector<2x16x16x128xbf16>
    tpu.vector_store %arg13[%c0_21, %c1, %c1_22, %c0_23], %36 {strides = array<i32>} : memref<2x18x18x128xbf16, #tpu.memory_space<vmem>>, vector<2x16x16x128xbf16>,
    %cst_24 = arith.constant 0.000000e+00 : f32
    %38 = vector.broadcast %cst_24 : f32 to vector<512x128xf32>
    %c0_25 = arith.constant 0 : index
    %c0_26 = arith.constant 0 : index
    %c0_27 = arith.constant 0 : index
    %c0_28 = arith.constant 0 : index
    %39 = vector.load %arg13[%c0_25, %c0_26, %c0_27, %c0_28] : memref<2x18x18x128xbf16, #tpu.memory_space<vmem>>, vector<2x16x16x128xbf16>
    %40 = vector.shape_cast %39 : vector<2x16x16x128xbf16> to vector<512x128xbf16>
    %c0_29 = arith.constant 0 : index
    %c0_30 = arith.constant 0 : index
    %41 = vector.load %arg2[%c0_29, %c0_30] : memref<1152x128xbf16, #tpu.memory_space<vmem>>, vector<128x128xbf16>
    %cst_31 = arith.constant dense<0.000000e+00> : vector<512x128xf32>
    %42 = tpu.matmul %40, %41, %cst_31 {dimension_numbers = #tpu.dot_dimension_numbers<[1], [0], [0], [1], [0, 0, 1, 1], [], []>} : vector<512x128xbf16>, vector<128x128xbf16>, vector<512x128xf32> -> vector<512x128xf32>
    %43 = arith.addf %38, %42 : vector<512x128xf32>
    %c0_32 = arith.constant 0 : index
    %c0_33 = arith.constant 0 : index
    %c1_34 = arith.constant 1 : index
    %c0_35 = arith.constant 0 : index
    %44 = vector.load %arg13[%c0_32, %c0_33, %c1_34, %c0_35] : memref<2x18x18x128xbf16, #tpu.memory_space<vmem>>, vector<2x16x16x128xbf16>
    %45 = vector.shape_cast %44 : vector<2x16x16x128xbf16> to vector<512x128xbf16>
    %c128 = arith.constant 128 : index
    %c0_36 = arith.constant 0 : index
    %46 = vector.load %arg2[%c128, %c0_36] : memref<1152x128xbf16, #tpu.memory_space<vmem>>, vector<128x128xbf16>
    %cst_37 = arith.constant dense<0.000000e+00> : vector<512x128xf32>
    %47 = tpu.matmul %45, %46, %cst_37 {dimension_numbers = #tpu.dot_dimension_numbers<[1], [0], [0], [1], [0, 0, 1, 1], [], []>} : vector<512x128xbf16>, vector<128x128xbf16>, vector<512x128xf32> -> vector<512x128xf32>
    %48 = arith.addf %43, %47 : vector<512x128xf32>
    %c0_38 = arith.constant 0 : index
    %c0_39 = arith.constant 0 : index
    %c2 = arith.constant 2 : index
    %c0_40 = arith.constant 0 : index
    %49 = vector.load %arg13[%c0_38, %c0_39, %c2, %c0_40] : memref<2x18x18x128xbf16, #tpu.memory_space<vmem>>, vector<2x16x16x128xbf16>
    %50 = vector.shape_cast %49 : vector<2x16x16x128xbf16> to vector<512x128xbf16>
    %c256 = arith.constant 256 : index
    %c0_41 = arith.constant 0 : index
    %51 = vector.load %arg2[%c256, %c0_41] : memref<1152x128xbf16, #tpu.memory_space<vmem>>, vector<128x128xbf16>
    %cst_42 = arith.constant dense<0.000000e+00> : vector<512x128xf32>
    %52 = tpu.matmul %50, %51, %cst_42 {dimension_numbers = #tpu.dot_dimension_numbers<[1], [0], [0], [1], [0, 0, 1, 1], [], []>} : vector<512x128xbf16>, vector<128x128xbf16>, vector<512x128xf32> -> vector<512x128xf32>
    %53 = arith.addf %48, %52 : vector<512x128xf32>
    %c0_43 = arith.constant 0 : index
    %c1_44 = arith.constant 1 : index
    %c0_45 = arith.constant 0 : index
    %c0_46 = arith.constant 0 : index
    %54 = vector.load %arg13[%c0_43, %c1_44, %c0_45, %c0_46] : memref<2x18x18x128xbf16, #tpu.memory_space<vmem>>, vector<2x16x16x128xbf16>
    %55 = vector.shape_cast %54 : vector<2x16x16x128xbf16> to vector<512x128xbf16>
    %c384 = arith.constant 384 : index
    %c0_47 = arith.constant 0 : index
    %56 = vector.load %arg2[%c384, %c0_47] : memref<1152x128xbf16, #tpu.memory_space<vmem>>, vector<128x128xbf16>
    %cst_48 = arith.constant dense<0.000000e+00> : vector<512x128xf32>
    %57 = tpu.matmul %55, %56, %cst_48 {dimension_numbers = #tpu.dot_dimension_numbers<[1], [0], [0], [1], [0, 0, 1, 1], [], []>} : vector<512x128xbf16>, vector<128x128xbf16>, vector<512x128xf32> -> vector<512x128xf32>
    %58 = arith.addf %53, %57 : vector<512x128xf32>
    %c0_49 = arith.constant 0 : index
    %c1_50 = arith.constant 1 : index
    %c1_51 = arith.constant 1 : index
    %c0_52 = arith.constant 0 : index
    %59 = vector.load %arg13[%c0_49, %c1_50, %c1_51, %c0_52] : memref<2x18x18x128xbf16, #tpu.memory_space<vmem>>, vector<2x16x16x128xbf16>
    %60 = vector.shape_cast %59 : vector<2x16x16x128xbf16> to vector<512x128xbf16>
    %c512 = arith.constant 512 : index
    %c0_53 = arith.constant 0 : index
    %61 = vector.load %arg2[%c512, %c0_53] : memref<1152x128xbf16, #tpu.memory_space<vmem>>, vector<128x128xbf16>
    %cst_54 = arith.constant dense<0.000000e+00> : vector<512x128xf32>
    %62 = tpu.matmul %60, %61, %cst_54 {dimension_numbers = #tpu.dot_dimension_numbers<[1], [0], [0], [1], [0, 0, 1, 1], [], []>} : vector<512x128xbf16>, vector<128x128xbf16>, vector<512x128xf32> -> vector<512x128xf32>
    %63 = arith.addf %58, %62 : vector<512x128xf32>
    %c0_55 = arith.constant 0 : index
    %c1_56 = arith.constant 1 : index
    %c2_57 = arith.constant 2 : index
    %c0_58 = arith.constant 0 : index
    %64 = vector.load %arg13[%c0_55, %c1_56, %c2_57, %c0_58] : memref<2x18x18x128xbf16, #tpu.memory_space<vmem>>, vector<2x16x16x128xbf16>
    %65 = vector.shape_cast %64 : vector<2x16x16x128xbf16> to vector<512x128xbf16>
    %c640 = arith.constant 640 : index
    %c0_59 = arith.constant 0 : index
    %66 = vector.load %arg2[%c640, %c0_59] : memref<1152x128xbf16, #tpu.memory_space<vmem>>, vector<128x128xbf16>
    %cst_60 = arith.constant dense<0.000000e+00> : vector<512x128xf32>
    %67 = tpu.matmul %65, %66, %cst_60 {dimension_numbers = #tpu.dot_dimension_numbers<[1], [0], [0], [1], [0, 0, 1, 1], [], []>} : vector<512x128xbf16>, vector<128x128xbf16>, vector<512x128xf32> -> vector<512x128xf32>
    %68 = arith.addf %63, %67 : vector<512x128xf32>
    %c0_61 = arith.constant 0 : index
    %c2_62 = arith.constant 2 : index
    %c0_63 = arith.constant 0 : index
    %c0_64 = arith.constant 0 : index
    %69 = vector.load %arg13[%c0_61, %c2_62, %c0_63, %c0_64] : memref<2x18x18x128xbf16, #tpu.memory_space<vmem>>, vector<2x16x16x128xbf16>
    %70 = vector.shape_cast %69 : vector<2x16x16x128xbf16> to vector<512x128xbf16>
    %c768 = arith.constant 768 : index
    %c0_65 = arith.constant 0 : index
    %71 = vector.load %arg2[%c768, %c0_65] : memref<1152x128xbf16, #tpu.memory_space<vmem>>, vector<128x128xbf16>
    %cst_66 = arith.constant dense<0.000000e+00> : vector<512x128xf32>
    %72 = tpu.matmul %70, %71, %cst_66 {dimension_numbers = #tpu.dot_dimension_numbers<[1], [0], [0], [1], [0, 0, 1, 1], [], []>} : vector<512x128xbf16>, vector<128x128xbf16>, vector<512x128xf32> -> vector<512x128xf32>
    %73 = arith.addf %68, %72 : vector<512x128xf32>
    %c0_67 = arith.constant 0 : index
    %c2_68 = arith.constant 2 : index
    %c1_69 = arith.constant 1 : index
    %c0_70 = arith.constant 0 : index
    %74 = vector.load %arg13[%c0_67, %c2_68, %c1_69, %c0_70] : memref<2x18x18x128xbf16, #tpu.memory_space<vmem>>, vector<2x16x16x128xbf16>
    %75 = vector.shape_cast %74 : vector<2x16x16x128xbf16> to vector<512x128xbf16>
    %c896 = arith.constant 896 : index
    %c0_71 = arith.constant 0 : index
    %76 = vector.load %arg2[%c896, %c0_71] : memref<1152x128xbf16, #tpu.memory_space<vmem>>, vector<128x128xbf16>
    %cst_72 = arith.constant dense<0.000000e+00> : vector<512x128xf32>
    %77 = tpu.matmul %75, %76, %cst_72 {dimension_numbers = #tpu.dot_dimension_numbers<[1], [0], [0], [1], [0, 0, 1, 1], [], []>} : vector<512x128xbf16>, vector<128x128xbf16>, vector<512x128xf32> -> vector<512x128xf32>
    %78 = arith.addf %73, %77 : vector<512x128xf32>
    %c0_73 = arith.constant 0 : index
    %c2_74 = arith.constant 2 : index
    %c2_75 = arith.constant 2 : index
    %c0_76 = arith.constant 0 : index
    %79 = vector.load %arg13[%c0_73, %c2_74, %c2_75, %c0_76] : memref<2x18x18x128xbf16, #tpu.memory_space<vmem>>, vector<2x16x16x128xbf16>
    %80 = vector.shape_cast %79 : vector<2x16x16x128xbf16> to vector<512x128xbf16>
    %c1024 = arith.constant 1024 : index
    %c0_77 = arith.constant 0 : index
    %81 = vector.load %arg2[%c1024, %c0_77] : memref<1152x128xbf16, #tpu.memory_space<vmem>>, vector<128x128xbf16>
    %cst_78 = arith.constant dense<0.000000e+00> : vector<512x128xf32>
    %82 = tpu.matmul %80, %81, %cst_78 {dimension_numbers = #tpu.dot_dimension_numbers<[1], [0], [0], [1], [0, 0, 1, 1], [], []>} : vector<512x128xbf16>, vector<128x128xbf16>, vector<512x128xf32> -> vector<512x128xf32>
    %83 = arith.addf %78, %82 : vector<512x128xf32>
    %c0_79 = arith.constant 0 : index
    %c0_80 = arith.constant 0 : index
    %84 = vector.load %arg6[%c0_79, %c0_80] : memref<1x128xf32, #tpu.memory_space<vmem>>, vector<1x128xf32>
    %c0_81 = arith.constant 0 : index
    %c0_82 = arith.constant 0 : index
    %85 = vector.load %arg7[%c0_81, %c0_82] : memref<1x128xf32, #tpu.memory_space<vmem>>, vector<1x128xf32>
    %cst_83 = arith.constant dense<0.000000e+00> : vector<128xf32>
    %86 = vector.multi_reduction <add>, %83, %cst_83 [0] : vector<512x128xf32> to vector<128xf32>
    %87 = vector.shape_cast %86 : vector<128xf32> to vector<1x128xf32>
    %cst_84 = arith.constant 0.001953125 : f32
    %88 = vector.broadcast %cst_84 : f32 to vector<1x128xf32>
    %89 = arith.mulf %87, %88 : vector<1x128xf32>
    %90 = arith.mulf %83, %83 : vector<512x128xf32>
    %cst_85 = arith.constant dense<0.000000e+00> : vector<128xf32>
    %91 = vector.multi_reduction <add>, %90, %cst_85 [0] : vector<512x128xf32> to vector<128xf32>
    %92 = vector.shape_cast %91 : vector<128xf32> to vector<1x128xf32>
    %cst_86 = arith.constant 0.001953125 : f32
    %93 = vector.broadcast %cst_86 : f32 to vector<1x128xf32>
    %94 = arith.mulf %92, %93 : vector<1x128xf32>
    %95 = arith.mulf %89, %89 : vector<1x128xf32>
    %96 = arith.subf %94, %95 : vector<1x128xf32>
    %cst_87 = arith.constant 0.000000e+00 : f32
    %97 = vector.broadcast %cst_87 : f32 to vector<1x128xf32>
    %98 = arith.maximumf %96, %97 : vector<1x128xf32>
    %cst_88 = arith.constant 9.99999974E-6 : f32
    %99 = vector.broadcast %cst_88 : f32 to vector<1x128xf32>
    %100 = arith.addf %98, %99 : vector<1x128xf32>
    %101 = math.rsqrt %100 : vector<1x128xf32>
    %102 = arith.mulf %84, %101 : vector<1x128xf32>
    %103 = arith.mulf %89, %102 : vector<1x128xf32>
    %104 = arith.subf %85, %103 : vector<1x128xf32>
    %105 = vector.broadcast %102 : vector<1x128xf32> to vector<512x128xf32>
    %106 = arith.mulf %83, %105 : vector<512x128xf32>
    %107 = vector.broadcast %104 : vector<1x128xf32> to vector<512x128xf32>
    %108 = arith.addf %106, %107 : vector<512x128xf32>
    %cst_89 = arith.constant 0.000000e+00 : f32
    %109 = vector.broadcast %cst_89 : f32 to vector<512x128xf32>
    %110 = arith.maximumf %108, %109 : vector<512x128xf32>
    %111 = arith.truncf %110 : vector<512x128xf32> to vector<512x128xbf16>
    %c0_90 = arith.constant 0 : index
    %c0_91 = arith.constant 0 : index
    %112 = vector.load %arg3[%c0_90, %c0_91] : memref<128x128xbf16, #tpu.memory_space<vmem>>, vector<128x128xbf16>
    %cst_92 = arith.constant dense<0.000000e+00> : vector<512x128xf32>
    %113 = tpu.matmul %111, %112, %cst_92 {dimension_numbers = #tpu.dot_dimension_numbers<[1], [0], [0], [1], [0, 0, 1, 1], [], []>} : vector<512x128xbf16>, vector<128x128xbf16>, vector<512x128xf32> -> vector<512x128xf32>
    %c0_93 = arith.constant 0 : index
    %c0_94 = arith.constant 0 : index
    %114 = vector.load %arg8[%c0_93, %c0_94] : memref<1x128xf32, #tpu.memory_space<vmem>>, vector<1x128xf32>
    %c0_95 = arith.constant 0 : index
    %c0_96 = arith.constant 0 : index
    %115 = vector.load %arg9[%c0_95, %c0_96] : memref<1x128xf32, #tpu.memory_space<vmem>>, vector<1x128xf32>
    %cst_97 = arith.constant dense<0.000000e+00> : vector<128xf32>
    %116 = vector.multi_reduction <add>, %113, %cst_97 [0] : vector<512x128xf32> to vector<128xf32>
    %117 = vector.shape_cast %116 : vector<128xf32> to vector<1x128xf32>
    %cst_98 = arith.constant 0.001953125 : f32
    %118 = vector.broadcast %cst_98 : f32 to vector<1x128xf32>
    %119 = arith.mulf %117, %118 : vector<1x128xf32>
    %120 = arith.mulf %113, %113 : vector<512x128xf32>
    %cst_99 = arith.constant dense<0.000000e+00> : vector<128xf32>
    %121 = vector.multi_reduction <add>, %120, %cst_99 [0] : vector<512x128xf32> to vector<128xf32>
    %122 = vector.shape_cast %121 : vector<128xf32> to vector<1x128xf32>
    %cst_100 = arith.constant 0.001953125 : f32
    %123 = vector.broadcast %cst_100 : f32 to vector<1x128xf32>
    %124 = arith.mulf %122, %123 : vector<1x128xf32>
    %125 = arith.mulf %119, %119 : vector<1x128xf32>
    %126 = arith.subf %124, %125 : vector<1x128xf32>
    %cst_101 = arith.constant 0.000000e+00 : f32
    %127 = vector.broadcast %cst_101 : f32 to vector<1x128xf32>
    %128 = arith.maximumf %126, %127 : vector<1x128xf32>
    %cst_102 = arith.constant 9.99999974E-6 : f32
    %129 = vector.broadcast %cst_102 : f32 to vector<1x128xf32>
    %130 = arith.addf %128, %129 : vector<1x128xf32>
    %131 = math.rsqrt %130 : vector<1x128xf32>
    %132 = arith.mulf %114, %131 : vector<1x128xf32>
    %133 = arith.mulf %119, %132 : vector<1x128xf32>
    %134 = arith.subf %115, %133 : vector<1x128xf32>
    %c0_103 = arith.constant 0 : index
    %c0_104 = arith.constant 0 : index
    %135 = vector.load %arg10[%c0_103, %c0_104] : memref<1x128xf32, #tpu.memory_space<vmem>>, vector<1x128xf32>
    %c0_105 = arith.constant 0 : index
    %c0_106 = arith.constant 0 : index
    %136 = vector.load %arg11[%c0_105, %c0_106] : memref<1x128xf32, #tpu.memory_space<vmem>>, vector<1x128xf32>
    %cst_107 = arith.constant dense<0.000000e+00> : vector<128xf32>
    %137 = vector.multi_reduction <add>, %5, %cst_107 [0] : vector<512x128xf32> to vector<128xf32>
    %138 = vector.shape_cast %137 : vector<128xf32> to vector<1x128xf32>
    %cst_108 = arith.constant 0.001953125 : f32
    %139 = vector.broadcast %cst_108 : f32 to vector<1x128xf32>
    %140 = arith.mulf %138, %139 : vector<1x128xf32>
    %141 = arith.mulf %5, %5 : vector<512x128xf32>
    %cst_109 = arith.constant dense<0.000000e+00> : vector<128xf32>
    %142 = vector.multi_reduction <add>, %141, %cst_109 [0] : vector<512x128xf32> to vector<128xf32>
    %143 = vector.shape_cast %142 : vector<128xf32> to vector<1x128xf32>
    %cst_110 = arith.constant 0.001953125 : f32
    %144 = vector.broadcast %cst_110 : f32 to vector<1x128xf32>
    %145 = arith.mulf %143, %144 : vector<1x128xf32>
    %146 = arith.mulf %140, %140 : vector<1x128xf32>
    %147 = arith.subf %145, %146 : vector<1x128xf32>
    %cst_111 = arith.constant 0.000000e+00 : f32
    %148 = vector.broadcast %cst_111 : f32 to vector<1x128xf32>
    %149 = arith.maximumf %147, %148 : vector<1x128xf32>
    %cst_112 = arith.constant 9.99999974E-6 : f32
    %150 = vector.broadcast %cst_112 : f32 to vector<1x128xf32>
    %151 = arith.addf %149, %150 : vector<1x128xf32>
    %152 = math.rsqrt %151 : vector<1x128xf32>
    %153 = arith.mulf %135, %152 : vector<1x128xf32>
    %154 = arith.mulf %140, %153 : vector<1x128xf32>
    %155 = arith.subf %136, %154 : vector<1x128xf32>
    %156 = vector.broadcast %132 : vector<1x128xf32> to vector<512x128xf32>
    %157 = arith.mulf %113, %156 : vector<512x128xf32>
    %158 = vector.broadcast %153 : vector<1x128xf32> to vector<512x128xf32>
    %159 = arith.mulf %5, %158 : vector<512x128xf32>
    %160 = arith.addf %157, %159 : vector<512x128xf32>
    %161 = arith.addf %134, %155 : vector<1x128xf32>
    %162 = vector.broadcast %161 : vector<1x128xf32> to vector<512x128xf32>
    %163 = arith.addf %160, %162 : vector<512x128xf32>
    %cst_113 = arith.constant 0.000000e+00 : f32
    %164 = vector.broadcast %cst_113 : f32 to vector<512x128xf32>
    %165 = arith.maximumf %163, %164 : vector<512x128xf32>
    %166 = vector.shape_cast %165 : vector<512x128xf32> to vector<2x16x16x128xf32>
    %c0_114 = arith.constant 0 : index
    %c0_115 = arith.constant 0 : index
    %c0_116 = arith.constant 0 : index
    %c0_117 = arith.constant 0 : index
    %167 = vector.load %arg12[%c0_114, %c0_115, %c0_116, %c0_117] : memref<2x16x16x128xf32, #tpu.memory_space<vmem>>, vector<2x16x16x128xf32>
    tpu.vector_store %arg12[%c0_114, %c0_115, %c0_116, %c0_117], %166 {strides = array<i32>} : memref<2x16x16x128xf32, #tpu.memory_space<vmem>>, vector<2x16x16x128xf32>,
    return
  }
}

</mosaic_0001>

<llo_original>
// kernel: tpu_custom_call.1
$region0: #{tpu_custom_call.1}
  #allocation0 [shape = 'u32[]', space=smem, size = 0x4, offset = 0x4, fixed_abs, tag = 'smem constant byte address 0x4 - core index']
  #allocation1 [shape = 'u32[144,128]{1,0:T(1,128)}', space=vmem, size = 0x12000, scoped, tag = 'internal scratch']
  #allocation2 [shape = 'bf16[2,18,18,128]{3,2,1,0:T(8,128)(2,1)}', space=vmem, size = 0x36000, scoped, tag = 'scratch operand']
  %s0 = inlined_call_operand.hbm [shape: bf16[2,16,16,128], index: 0, kind: input, shape index: {}]
  %s1 = inlined_call_operand.hbm [shape: bf16[128,256], index: 1, kind: input, shape index: {}]
  %s2 = inlined_call_operand.hbm [shape: bf16[1152,128], index: 2, kind: input, shape index: {}]
  %s3 = inlined_call_operand.hbm [shape: bf16[128,128], index: 3, kind: input, shape index: {}]
  %s4 = inlined_call_operand.vmem [shape: f32[1,128], index: 4, kind: input, shape index: {}]
  %s5 = inlined_call_operand.vmem [shape: f32[1,128], index: 5, kind: input, shape index: {}]
  %s6 = inlined_call_operand.vmem [shape: f32[1,128], index: 6, kind: input, shape index: {}]
  %s7 = inlined_call_operand.vmem [shape: f32[1,128], index: 7, kind: input, shape index: {}]
  %s8 = inlined_call_operand.vmem [shape: f32[1,128], index: 8, kind: input, shape index: {}]
  %s9 = inlined_call_operand.vmem [shape: f32[1,128], index: 9, kind: input, shape index: {}]
  %s10 = inlined_call_operand.vmem [shape: f32[1,128], index: 10, kind: input, shape index: {}]
  %s11 = inlined_call_operand.vmem [shape: f32[1,128], index: 11, kind: input, shape index: {}]
  %s12 = inlined_call_operand.hbm [shape: f32[2,16,16,128], index: 12, kind: output, shape index: {}]
  %s13 = sld [smem:[#allocation0]]
  $region74: #{tpu_custom_call.1} parent=0
    _
  %s15 = ssub.s32 1, %s13
  %s16 = scalar_select 0, %s15, %s13
  $region1: #{tpu_custom_call.1} parent=0
    #allocation3 [shape = 'u8[131072]{0}', space=vmem, size = 0x20000, scoped, tag = 'input window, operand 0, single buffered']
    #allocation4 [shape = 's32[1]{0}', space=sflag, size = 0x4, scoped, tag = 'scoped memory for tpu_custom_call.1']
    #allocation5 [shape = 's32[1]{0}', space=sflag, size = 0x4, scoped, tag = 'scoped memory for tpu_custom_call.1']
    #allocation6 [shape = 'u8[65536]{0}', space=vmem, size = 0x10000, scoped, tag = 'input window, operand 1, single buffered']
    #allocation7 [shape = 's32[1]{0}', space=sflag, size = 0x4, scoped, tag = 'scoped memory for tpu_custom_call.1']
    #allocation8 [shape = 'u8[294912]{0}', space=vmem, size = 0x48000, scoped, tag = 'input window, operand 2, single buffered']
    #allocation9 [shape = 'u8[32768]{0}', space=vmem, size = 0x8000, scoped, tag = 'input window, operand 3, single buffered']
    #allocation10 [shape = 's32[1]{0}', space=sflag, size = 0x4, scoped, tag = 'scoped memory for tpu_custom_call.1']
    #allocation11 [shape = 'u8[262144]{0}', space=vmem, size = 0x40000, scoped, tag = 'output window, operand 0, single buffered']
    %17 = vsyncpa [#allocation4], 0
    %18 = vsyncpa [#allocation7], 0
    %19 = vsyncpa [#allocation10], 0
    %20 = vsyncpa [#allocation5], 0
    // Predicated region
    $region2: #{tpu_custom_call.1} parent=1 // pred_check
      _
    $region3: #{tpu_custom_call.1} parent=1 // pred_check_branch
      %22 = sbr.rel (0) target = $region5
    $region4: #{tpu_custom_call.1} parent=1 // pred_region
      %s24 = ssub.s32 4096, 4096
      %25 = vsyncadd [#allocation4], %s24
      %s26 = sshll.u32 [#allocation3], 4
      %s27 = int_to_ptr.vmem [resolvable:$true] %s26
      %32 = dma.hbm_to_vmem [thread:$0]  %s0, 4096, %s27, [#allocation4], 64, 64, 4
    $region5: #{tpu_custom_call.1} parent=1 // pred_fallthru
      _
    // Predicated region
    $region6: #{tpu_custom_call.1} parent=1 // pred_check
      _
    $region7: #{tpu_custom_call.1} parent=1 // pred_check_branch
      %34 = sbr.rel (0) target = $region9
    $region8: #{tpu_custom_call.1} parent=1 // pred_region
      %s36 = ssub.s32 2048, 2048
      %37 = vsyncadd [#allocation7], %s36
      %s38 = sshll.u32 [#allocation6], 4
      %s39 = int_to_ptr.vmem [resolvable:$true] %s38
      %44 = dma.hbm_to_vmem [thread:$0]  %s1, 2048, %s39, [#allocation7], 128, 128, 8
    $region9: #{tpu_custom_call.1} parent=1 // pred_fallthru
      _
    // Predicated region
    $region10: #{tpu_custom_call.1} parent=1 // pred_check
      _
    $region11: #{tpu_custom_call.1} parent=1 // pred_check_branch
      %46 = sbr.rel (0) target = $region13
    $region12: #{tpu_custom_call.1} parent=1 // pred_region
      %s48 = ssub.s32 9216, 9216
      %49 = vsyncadd [#allocation7], %s48
      %s50 = sshll.u32 [#allocation8], 4
      %s51 = int_to_ptr.vmem [resolvable:$true] %s50
      %56 = dma.hbm_to_vmem [thread:$0]  %s2, 9216, %s51, [#allocation7], 64, 64, 4
    $region13: #{tpu_custom_call.1} parent=1 // pred_fallthru
      _
    // Predicated region
    $region14: #{tpu_custom_call.1} parent=1 // pred_check
      _
    $region15: #{tpu_custom_call.1} parent=1 // pred_check_branch
      %58 = sbr.rel (0) target = $region17
    $region16: #{tpu_custom_call.1} parent=1 // pred_region
      %s60 = ssub.s32 1024, 1024
      %61 = vsyncadd [#allocation10], %s60
      %s62 = sshll.u32 [#allocation9], 4
      %s63 = int_to_ptr.vmem [resolvable:$true] %s62
      %68 = dma.hbm_to_vmem [thread:$0]  %s3, 1024, %s63, [#allocation10], 64, 64, 4
    $region17: #{tpu_custom_call.1} parent=1 // pred_fallthru
      _
    // Predicated region
    $region18: #{tpu_custom_call.1} parent=1 // pred_check
      _
    $region19: #{tpu_custom_call.1} parent=1 // pred_check_branch
      %70 = sbr.rel (0) target = $region21
    $region20: #{tpu_custom_call.1} parent=1 // pred_region
      _
    $region21: #{tpu_custom_call.1} parent=1 // pred_fallthru
      _
    // Predicated region
    $region22: #{tpu_custom_call.1} parent=1 // pred_check
      _
    $region23: #{tpu_custom_call.1} parent=1 // pred_check_branch
      %72 = sbr.rel (0) target = $region25
    $region24: #{tpu_custom_call.1} parent=1 // pred_region
      _
    $region25: #{tpu_custom_call.1} parent=1 // pred_fallthru
      _
    // Predicated region
    $region26: #{tpu_custom_call.1} parent=1 // pred_check
      _
    $region27: #{tpu_custom_call.1} parent=1 // pred_check_branch
      %74 = sbr.rel (0) target = $region29
    $region28: #{tpu_custom_call.1} parent=1 // pred_region
      _
    $region29: #{tpu_custom_call.1} parent=1 // pred_fallthru
      _
    // Predicated region
    $region30: #{tpu_custom_call.1} parent=1 // pred_check
      _
    $region31: #{tpu_custom_call.1} parent=1 // pred_check_branch
      %76 = sbr.rel (0) target = $region33
    $region32: #{tpu_custom_call.1} parent=1 // pred_region
      _
    $region33: #{tpu_custom_call.1} parent=1 // pred_fallthru
      _
    // Predicated region
    $region34: #{tpu_custom_call.1} parent=1 // pred_check
      _
    $region35: #{tpu_custom_call.1} parent=1 // pred_check_branch
      %78 = sbr.rel (0) target = $region37
    $region36: #{tpu_custom_call.1} parent=1 // pred_region
      _
    $region37: #{tpu_custom_call.1} parent=1 // pred_fallthru
      _
    // Predicated region
    $region38: #{tpu_custom_call.1} parent=1 // pred_check
      _
    $region39: #{tpu_custom_call.1} parent=1 // pred_check_branch
      %80 = sbr.rel (0) target = $region41
    $region40: #{tpu_custom_call.1} parent=1 // pred_region
      _
    $region41: #{tpu_custom_call.1} parent=1 // pred_fallthru
      _
    // Predicated region
    $region42: #{tpu_custom_call.1} parent=1 // pred_check
      _
    $region43: #{tpu_custom_call.1} parent=1 // pred_check_branch
      %82 = sbr.rel (0) target = $region45
    $region44: #{tpu_custom_call.1} parent=1 // pred_region
      _
    $region45: #{tpu_custom_call.1} parent=1 // pred_fallthru
      _
    // Predicated region
    $region46: #{tpu_custom_call.1} parent=1 // pred_check
      _
    $region47: #{tpu_custom_call.1} parent=1 // pred_check_branch
      %84 = sbr.rel (0) target = $region49
    $region48: #{tpu_custom_call.1} parent=1 // pred_region
      _
    $region49: #{tpu_custom_call.1} parent=1 // pred_fallthru
      _
    // Predicated region
    $region50: #{tpu_custom_call.1} parent=1 // pred_check
      _
    $region51: #{tpu_custom_call.1} parent=1 // pred_check_branch
      %86 = sbr.rel (0) target = $region53
    $region52: #{tpu_custom_call.1} parent=1 // pred_region
      %87 = dma.done [#allocation4], 4096
    $region53: #{tpu_custom_call.1} parent=1 // pred_fallthru
      _
    // Predicated region
    $region54: #{tpu_custom_call.1} parent=1 // pred_check
      _
    $region55: #{tpu_custom_call.1} parent=1 // pred_check_branch
      %89 = sbr.rel (0) target = $region57
    $region56: #{tpu_custom_call.1} parent=1 // pred_region
      %90 = dma.done [#allocation7], 2048
    $region57: #{tpu_custom_call.1} parent=1 // pred_fallthru
      _
    // Predicated region
    $region58: #{tpu_custom_call.1} parent=1 // pred_check
      _
    $region59: #{tpu_custom_call.1} parent=1 // pred_check_branch
      %92 = sbr.rel (0) target = $region61
    $region60: #{tpu_custom_call.1} parent=1 // pred_region
      %93 = dma.done [#allocation7], 9216
    $region61: #{tpu_custom_call.1} parent=1 // pred_fallthru
      _
    // Predicated region
    $region62: #{tpu_custom_call.1} parent=1 // pred_check
      _
    $region63: #{tpu_custom_call.1} parent=1 // pred_check_branch
      %95 = sbr.rel (0) target = $region65
    $region64: #{tpu_custom_call.1} parent=1 // pred_region
      %96 = dma.done [#allocation10], 1024
    $region65: #{tpu_custom_call.1} parent=1 // pred_fallthru
      _
    %v98 = vld [vmem:[#allocation3] sm:$0xf]
    %v99 = vld [vmem:[#allocation3 + $0x4] sm:$0xf]
    %v100 = vld [vmem:[#allocation3 + $0x8] sm:$0xf]
    %v101 = vld [vmem:[#allocation3 + $0xc] sm:$0xf]
    %v102 = vld [vmem:[#allocation3 + $0x10] sm:$0xf]
    %v103 = vld [vmem:[#allocation3 + $0x14] sm:$0xf]
    %v104 = vld [vmem:[#allocation3 + $0x18] sm:$0xf]
    %v105 = vld [vmem:[#allocation3 + $0x1c] sm:$0xf]
    %v106 = vld [vmem:[#allocation3 + $0x20] sm:$0xf]
    %v107 = vld [vmem:[#allocation3 + $0x24] sm:$0xf]
    %v108 = vld [vmem:[#allocation3 + $0x28] sm:$0xf]
    %v109 = vld [vmem:[#allocation3 + $0x2c] sm:$0xf]
    %v110 = vld [vmem:[#allocation3 + $0x30] sm:$0xf]
    %v111 = vld [vmem:[#allocation3 + $0x34] sm:$0xf]
    %v112 = vld [vmem:[#allocation3 + $0x38] sm:$0xf]
    %v113 = vld [vmem:[#allocation3 + $0x3c] sm:$0xf]
    %v114 = vld [vmem:[#allocation3 + $0x40] sm:$0xf]
    %v115 = vld [vmem:[#allocation3 + $0x44] sm:$0xf]
    %v116 = vld [vmem:[#allocation3 + $0x48] sm:$0xf]
    %v117 = vld [vmem:[#allocation3 + $0x4c] sm:$0xf]
    %v118 = vld [vmem:[#allocation3 + $0x50] sm:$0xf]
    %v119 = vld [vmem:[#allocation3 + $0x54] sm:$0xf]
    %v120 = vld [vmem:[#allocation3 + $0x58] sm:$0xf]
    %v121 = vld [vmem:[#allocation3 + $0x5c] sm:$0xf]
    %v122 = vld [vmem:[#allocation3 + $0x60] sm:$0xf]
    %v123 = vld [vmem:[#allocation3 + $0x64] sm:$0xf]
    %v124 = vld [vmem:[#allocation3 + $0x68] sm:$0xf]
    %v125 = vld [vmem:[#allocation3 + $0x6c] sm:$0xf]
    %v126 = vld [vmem:[#allocation3 + $0x70] sm:$0xf]
    %v127 = vld [vmem:[#allocation3 + $0x74] sm:$0xf]
    %v128 = vld [vmem:[#allocation3 + $0x78] sm:$0xf]
    %v129 = vld [vmem:[#allocation3 + $0x7c] sm:$0xf]
    %v130 = vld [vmem:[#allocation3 + $0x80] sm:$0xf]
    %v131 = vld [vmem:[#allocation3 + $0x84] sm:$0xf]
    %v132 = vld [vmem:[#allocation3 + $0x88] sm:$0xf]
    %v133 = vld [vmem:[#allocation3 + $0x8c] sm:$0xf]
    %v134 = vld [vmem:[#allocation3 + $0x90] sm:$0xf]
    %v135 = vld [vmem:[#allocation3 + $0x94] sm:$0xf]
    %v136 = vld [vmem:[#allocation3 + $0x98] sm:$0xf]
    %v137 = vld [vmem:[#allocation3 + $0x9c] sm:$0xf]
    %v138 = vld [vmem:[#allocation3 + $0xa0] sm:$0xf]
    %v139 = vld [vmem:[#allocation3 + $0xa4] sm:$0xf]
    %v140 = vld [vmem:[#allocation3 + $0xa8] sm:$0xf]
    %v141 = vld [vmem:[#allocation3 + $0xac] sm:$0xf]
    %v142 = vld [vmem:[#allocation3 + $0xb0] sm:$0xf]
    %v143 = vld [vmem:[#allocation3 + $0xb4] sm:$0xf]
    %v144 = vld [vmem:[#allocation3 + $0xb8] sm:$0xf]
    %v145 = vld [vmem:[#allocation3 + $0xbc] sm:$0xf]
    %v146 = vld [vmem:[#allocation3 + $0xc0] sm:$0xf]
    %v147 = vld [vmem:[#allocation3 + $0xc4] sm:$0xf]
    %v148 = vld [vmem:[#allocation3 + $0xc8] sm:$0xf]
    %v149 = vld [vmem:[#allocation3 + $0xcc] sm:$0xf]
    %v150 = vld [vmem:[#allocation3 + $0xd0] sm:$0xf]
    %v151 = vld [vmem:[#allocation3 + $0xd4] sm:$0xf]
    %v152 = vld [vmem:[#allocation3 + $0xd8] sm:$0xf]
    %v153 = vld [vmem:[#allocation3 + $0xdc] sm:$0xf]
    %v154 = vld [vmem:[#allocation3 + $0xe0] sm:$0xf]
    %v155 = vld [vmem:[#allocation3 + $0xe4] sm:$0xf]
    %v156 = vld [vmem:[#allocation3 + $0xe8] sm:$0xf]
    %v157 = vld [vmem:[#allocation3 + $0xec] sm:$0xf]
    %v158 = vld [vmem:[#allocation3 + $0xf0] sm:$0xf]
    %v159 = vld [vmem:[#allocation3 + $0xf4] sm:$0xf]
    %v160 = vld [vmem:[#allocation3 + $0xf8] sm:$0xf]
    %v161 = vld [vmem:[#allocation3 + $0xfc] sm:$0xf]
    %v162 = vld [vmem:[#allocation6] sm:$0xff]
    %v163 = vld [vmem:[#allocation6 + $0x8] sm:$0xff]
    %v164 = vld [vmem:[#allocation6 + $0x10] sm:$0xff]
    %v165 = vld [vmem:[#allocation6 + $0x18] sm:$0xff]
    %v166 = vld [vmem:[#allocation6 + $0x20] sm:$0xff]
    %v167 = vld [vmem:[#allocation6 + $0x28] sm:$0xff]
    %v168 = vld [vmem:[#allocation6 + $0x30] sm:$0xff]
    %v169 = vld [vmem:[#allocation6 + $0x38] sm:$0xff]
    %v170 = vld [vmem:[#allocation6 + $0x40] sm:$0xff]
    %v171 = vld [vmem:[#allocation6 + $0x48] sm:$0xff]
    %v172 = vld [vmem:[#allocation6 + $0x50] sm:$0xff]
    %v173 = vld [vmem:[#allocation6 + $0x58] sm:$0xff]
    %v174 = vld [vmem:[#allocation6 + $0x60] sm:$0xff]
    %v175 = vld [vmem:[#allocation6 + $0x68] sm:$0xff]
    %v176 = vld [vmem:[#allocation6 + $0x70] sm:$0xff]
    %v177 = vld [vmem:[#allocation6 + $0x78] sm:$0xff]
    %v242 = vunpack.c.l.b16 %v98
    %v243 = vunpack.c.l.b16 %v99
    %v244 = vunpack.c.l.b16 %v100
    %v245 = vunpack.c.l.b16 %v101
    %v246 = vunpack.c.l.b16 %v102
    %v247 = vunpack.c.l.b16 %v103
    %v248 = vunpack.c.l.b16 %v104
    %v249 = vunpack.c.l.b16 %v105
    %v250 = vunpack.c.l.b16 %v106
    %v251 = vunpack.c.l.b16 %v107
    %v252 = vunpack.c.l.b16 %v108
    %v253 = vunpack.c.l.b16 %v109
    %v254 = vunpack.c.l.b16 %v110
    %v255 = vunpack.c.l.b16 %v111
    %v256 = vunpack.c.l.b16 %v112
    %v257 = vunpack.c.l.b16 %v113
    %v258 = vunpack.c.l.b16 %v114
    %v259 = vunpack.c.l.b16 %v115
    %v260 = vunpack.c.l.b16 %v116
    %v261 = vunpack.c.l.b16 %v117
    %v262 = vunpack.c.l.b16 %v118
    %v263 = vunpack.c.l.b16 %v119
    %v264 = vunpack.c.l.b16 %v120
    %v265 = vunpack.c.l.b16 %v121
    %v266 = vunpack.c.l.b16 %v122
    %v267 = vunpack.c.l.b16 %v123
    %v268 = vunpack.c.l.b16 %v124
    %v269 = vunpack.c.l.b16 %v125
    %v270 = vunpack.c.l.b16 %v126
    %v271 = vunpack.c.l.b16 %v127
    %v272 = vunpack.c.l.b16 %v128
    %v273 = vunpack.c.l.b16 %v129
    %v274 = vunpack.c.l.b16 %v130
    %v275 = vunpack.c.l.b16 %v131
    %v276 = vunpack.c.l.b16 %v132
    %v277 = vunpack.c.l.b16 %v133
    %v278 = vunpack.c.l.b16 %v134
    %v279 = vunpack.c.l.b16 %v135
    %v280 = vunpack.c.l.b16 %v136
    %v281 = vunpack.c.l.b16 %v137
    %v282 = vunpack.c.l.b16 %v138
    %v283 = vunpack.c.l.b16 %v139
    %v284 = vunpack.c.l.b16 %v140
    %v285 = vunpack.c.l.b16 %v141
    %v286 = vunpack.c.l.b16 %v142
    %v287 = vunpack.c.l.b16 %v143
    %v288 = vunpack.c.l.b16 %v144
    %v289 = vunpack.c.l.b16 %v145
    %v290 = vunpack.c.l.b16 %v146
    %v291 = vunpack.c.l.b16 %v147
    %v292 = vunpack.c.l.b16 %v148
    %v293 = vunpack.c.l.b16 %v149
    %v294 = vunpack.c.l.b16 %v150
    %v295 = vunpack.c.l.b16 %v151
    %v296 = vunpack.c.l.b16 %v152
    %v297 = vunpack.c.l.b16 %v153
    %v298 = vunpack.c.l.b16 %v154
    %v299 = vunpack.c.l.b16 %v155
    %v300 = vunpack.c.l.b16 %v156
    %v301 = vunpack.c.l.b16 %v157
    %v302 = vunpack.c.l.b16 %v158
    %v303 = vunpack.c.l.b16 %v159
    %v304 = vunpack.c.l.b16 %v160
    %v305 = vunpack.c.l.b16 %v161
    %v306 = vpack.c.b16 %v243, %v242
    %v307 = vpack.c.b16 %v245, %v244
    %v308 = vpack.c.b16 %v247, %v246
    %v309 = vpack.c.b16 %v249, %v248
    %v310 = vpack.c.b16 %v251, %v250
    %v311 = vpack.c.b16 %v253, %v252
    %v312 = vpack.c.b16 %v255, %v254
    %v313 = vpack.c.b16 %v257, %v256
    %v314 = vpack.c.b16 %v259, %v258
    %v315 = vpack.c.b16 %v261, %v260
    %v316 = vpack.c.b16 %v263, %v262
    %v317 = vpack.c.b16 %v265, %v264
    %v318 = vpack.c.b16 %v267, %v266
    %v319 = vpack.c.b16 %v269, %v268
    %v320 = vpack.c.b16 %v271, %v270
    %v321 = vpack.c.b16 %v273, %v272
    %v322 = vpack.c.b16 %v275, %v274
    %v323 = vpack.c.b16 %v277, %v276
    %v324 = vpack.c.b16 %v279, %v278
    %v325 = vpack.c.b16 %v281, %v280
    %v326 = vpack.c.b16 %v283, %v282
    %v327 = vpack.c.b16 %v285, %v284
    %v328 = vpack.c.b16 %v287, %v286
    %v329 = vpack.c.b16 %v289, %v288
    %v330 = vpack.c.b16 %v291, %v290
    %v331 = vpack.c.b16 %v293, %v292
    %v332 = vpack.c.b16 %v295, %v294
    %v333 = vpack.c.b16 %v297, %v296
    %v334 = vpack.c.b16 %v299, %v298
    %v335 = vpack.c.b16 %v301, %v300
    %v336 = vpack.c.b16 %v303, %v302
    %v337 = vpack.c.b16 %v305, %v304
    %v386 = vunpack.c.l.b16 %v162
    %v387 = vunpack.c.h.b16 %v162
    %v388 = vunpack.c.l.b16 %v163
    %v389 = vunpack.c.h.b16 %v163
    %v390 = vunpack.c.l.b16 %v164
    %v391 = vunpack.c.h.b16 %v164
    %v392 = vunpack.c.l.b16 %v165
    %v393 = vunpack.c.h.b16 %v165
    %v394 = vunpack.c.l.b16 %v166
    %v395 = vunpack.c.h.b16 %v166
    %v396 = vunpack.c.l.b16 %v167
    %v397 = vunpack.c.h.b16 %v167
    %v398 = vunpack.c.l.b16 %v168
    %v399 = vunpack.c.h.b16 %v168
    %v400 = vunpack.c.l.b16 %v169
    %v401 = vunpack.c.h.b16 %v169
    %v402 = vunpack.c.l.b16 %v170
    %v403 = vunpack.c.h.b16 %v170
    %v404 = vunpack.c.l.b16 %v171
    %v405 = vunpack.c.h.b16 %v171
    %v406 = vunpack.c.l.b16 %v172
    %v407 = vunpack.c.h.b16 %v172
    %v408 = vunpack.c.l.b16 %v173
    %v409 = vunpack.c.h.b16 %v173
    %v410 = vunpack.c.l.b16 %v174
    %v411 = vunpack.c.h.b16 %v174
    %v412 = vunpack.c.l.b16 %v175
    %v413 = vunpack.c.h.b16 %v175
    %v414 = vunpack.c.l.b16 %v176
    %v415 = vunpack.c.h.b16 %v176
    %v416 = vunpack.c.l.b16 %v177
    %v417 = vunpack.c.h.b16 %v177
    %v418 = vpack.c.b16 %v388, %v386
    %v419 = vpack.c.b16 %v389, %v387
    %v420 = vpack.c.b16 %v392, %v390
    %v421 = vpack.c.b16 %v393, %v391
    %v422 = vpack.c.b16 %v396, %v394
    %v423 = vpack.c.b16 %v397, %v395
    %v424 = vpack.c.b16 %v400, %v398
    %v425 = vpack.c.b16 %v401, %v399
    %v426 = vpack.c.b16 %v404, %v402
    %v427 = vpack.c.b16 %v405, %v403
    %v428 = vpack.c.b16 %v408, %v406
    %v429 = vpack.c.b16 %v409, %v407
    %v430 = vpack.c.b16 %v412, %v410
    %v431 = vpack.c.b16 %v413, %v411
    %v432 = vpack.c.b16 %v416, %v414
    %v433 = vpack.c.b16 %v417, %v415
    %450 = vmatprep.subr.bf16.mxu0 %v433
    %451 = vmatpush1.bf16.msra.mxu0 %v432
    %452 = vmatprep.subr.bf16.mxu0 %v431
    %453 = vmatpush1.bf16.msra.mxu0 %v430
    %454 = vmatprep.subr.bf16.mxu0 %v429
    %455 = vmatpush1.bf16.msra.mxu0 %v428
    %456 = vmatprep.subr.bf16.mxu0 %v427
    %457 = vmatpush1.bf16.msra.mxu0 %v426
    %458 = vmatprep.subr.bf16.mxu0 %v425
    %459 = vmatpush1.bf16.msra.mxu0 %v424
    %460 = vmatprep.subr.bf16.mxu0 %v423
    %461 = vmatpush1.bf16.msra.mxu0 %v422
    %462 = vmatprep.subr.bf16.mxu0 %v421
    %463 = vmatpush1.bf16.msra.mxu0 %v420
    %464 = vmatprep.subr.bf16.mxu0 %v419
    %465 = vmatpush1.bf16.msra.mxu0 %v418
    %466 = vmatprep.subr.bf16.mxu0 0
    %467 = vmatpush2.bf16.msra.mxu0 0
    %468 = vmatprep.subr.bf16.mxu0 0
    %469 = vmatpush2.bf16.msra.mxu0 0
    %470 = vmatprep.subr.bf16.mxu0 0
    %471 = vmatpush2.bf16.msra.mxu0 0
    %472 = vmatprep.subr.bf16.mxu0 0
    %473 = vmatpush2.bf16.msra.mxu0 0
    %474 = vmatprep.subr.bf16.mxu0 0
    %475 = vmatpush2.bf16.msra.mxu0 0
    %476 = vmatprep.subr.bf16.mxu0 0
    %477 = vmatpush2.bf16.msra.mxu0 0
    %478 = vmatprep.subr.bf16.mxu0 0
    %479 = vmatpush2.bf16.msra.mxu0 0
    %480 = vmatprep.subr.bf16.mxu0 0
    %481 = vmatpush2.bf16.msra.mxu0 0
    %482 = vmatprep.mubr.bf16.mxu0 0
    %483 = vmatmul.mubr.bf16.gmra.mxu0 %v306
    %v484 = vpop.f32.mrf.mxu0
    %v485 = vadd.f32 0.0, %v484
    %v486 = vpop.f32.mrf.mxu0
    %v487 = vadd.f32 0.0, %v486
    %v488 = vpop.f32.mrf.mxu0
    %v489 = vadd.f32 0.0, %v488
    %v490 = vpop.f32.mrf.mxu0
    %v491 = vadd.f32 0.0, %v490
    %492 = vmatprep.mubr.bf16.mxu0 0
    %493 = vmatmul.mubr.bf16.gmra.mxu0 %v307
    %v494 = vpop.f32.mrf.mxu0
    %v495 = vadd.f32 0.0, %v494
    %v496 = vpop.f32.mrf.mxu0
    %v497 = vadd.f32 0.0, %v496
    %v498 = vpop.f32.mrf.mxu0
    %v499 = vadd.f32 0.0, %v498
    %v500 = vpop.f32.mrf.mxu0
    %v501 = vadd.f32 0.0, %v500
    %502 = vmatprep.mubr.bf16.mxu0 0
    %503 = vmatmul.mubr.bf16.gmra.mxu0 %v308
    %v504 = vpop.f32.mrf.mxu0
    %v505 = vadd.f32 0.0, %v504
    %v506 = vpop.f32.mrf.mxu0
    %v507 = vadd.f32 0.0, %v506
    %v508 = vpop.f32.mrf.mxu0
    %v509 = vadd.f32 0.0, %v508
    %v510 = vpop.f32.mrf.mxu0
    %v511 = vadd.f32 0.0, %v510
    %512 = vmatprep.mubr.bf16.mxu0 0
    %513 = vmatmul.mubr.bf16.gmra.mxu0 %v309
    %v514 = vpop.f32.mrf.mxu0
    %v515 = vadd.f32 0.0, %v514
    %v516 = vpop.f32.mrf.mxu0
    %v517 = vadd.f32 0.0, %v516
    %v518 = vpop.f32.mrf.mxu0
    %v519 = vadd.f32 0.0, %v518
    %v520 = vpop.f32.mrf.mxu0
    %v521 = vadd.f32 0.0, %v520
    %522 = vmatprep.mubr.bf16.mxu0 0
    %523 = vmatmul.mubr.bf16.gmra.mxu0 %v310
    %v524 = vpop.f32.mrf.mxu0
    %v525 = vadd.f32 0.0, %v524
    %v526 = vpop.f32.mrf.mxu0
    %v527 = vadd.f32 0.0, %v526
    %v528 = vpop.f32.mrf.mxu0
    %v529 = vadd.f32 0.0, %v528
    %v530 = vpop.f32.mrf.mxu0
    %v531 = vadd.f32 0.0, %v530
    %532 = vmatprep.mubr.bf16.mxu0 0
    %533 = vmatmul.mubr.bf16.gmra.mxu0 %v311
    %v534 = vpop.f32.mrf.mxu0
    %v535 = vadd.f32 0.0, %v534
    %v536 = vpop.f32.mrf.mxu0
    %v537 = vadd.f32 0.0, %v536
    %v538 = vpop.f32.mrf.mxu0
    %v539 = vadd.f32 0.0, %v538
    %v540 = vpop.f32.mrf.mxu0
    %v541 = vadd.f32 0.0, %v540
    %542 = vmatprep.mubr.bf16.mxu0 0
    %543 = vmatmul.mubr.bf16.gmra.mxu0 %v312
    %v544 = vpop.f32.mrf.mxu0
    %v545 = vadd.f32 0.0, %v544
    %v546 = vpop.f32.mrf.mxu0
    %v547 = vadd.f32 0.0, %v546
    %v548 = vpop.f32.mrf.mxu0
    %v549 = vadd.f32 0.0, %v548
    %v550 = vpop.f32.mrf.mxu0
    %v551 = vadd.f32 0.0, %v550
    %552 = vmatprep.mubr.bf16.mxu0 0
    %553 = vmatmul.mubr.bf16.gmra.mxu0 %v313
    %v554 = vpop.f32.mrf.mxu0
    %v555 = vadd.f32 0.0, %v554
    %v556 = vpop.f32.mrf.mxu0
    %v557 = vadd.f32 0.0, %v556
    %v558 = vpop.f32.mrf.mxu0
    %v559 = vadd.f32 0.0, %v558
    %v560 = vpop.f32.mrf.mxu0
    %v561 = vadd.f32 0.0, %v560
    %562 = vmatprep.mubr.bf16.mxu0 0
    %563 = vmatmul.mubr.bf16.gmra.mxu0 %v314
    %v564 = vpop.f32.mrf.mxu0
    %v565 = vadd.f32 0.0, %v564
    %v566 = vpop.f32.mrf.mxu0
    %v567 = vadd.f32 0.0, %v566
    %v568 = vpop.f32.mrf.mxu0
    %v569 = vadd.f32 0.0, %v568
    %v570 = vpop.f32.mrf.mxu0
    %v571 = vadd.f32 0.0, %v570
    %572 = vmatprep.mubr.bf16.mxu0 0
    %573 = vmatmul.mubr.bf16.gmra.mxu0 %v315
    %v574 = vpop.f32.mrf.mxu0
    %v575 = vadd.f32 0.0, %v574
    %v576 = vpop.f32.mrf.mxu0
    %v577 = vadd.f32 0.0, %v576
    %v578 = vpop.f32.mrf.mxu0
    %v579 = vadd.f32 0.0, %v578
    %v580 = vpop.f32.mrf.mxu0
    %v581 = vadd.f32 0.0, %v580
    %582 = vmatprep.mubr.bf16.mxu0 0
    %583 = vmatmul.mubr.bf16.gmra.mxu0 %v316
    %v584 = vpop.f32.mrf.mxu0
    %v585 = vadd.f32 0.0, %v584
    %v586 = vpop.f32.mrf.mxu0
    %v587 = vadd.f32 0.0, %v586
    %v588 = vpop.f32.mrf.mxu0
    %v589 = vadd.f32 0.0, %v588
    %v590 = vpop.f32.mrf.mxu0
    %v591 = vadd.f32 0.0, %v590
    %592 = vmatprep.mubr.bf16.mxu0 0
    %593 = vmatmul.mubr.bf16.gmra.mxu0 %v317
    %v594 = vpop.f32.mrf.mxu0
    %v595 = vadd.f32 0.0, %v594
    %v596 = vpop.f32.mrf.mxu0
    %v597 = vadd.f32 0.0, %v596
    %v598 = vpop.f32.mrf.mxu0
    %v599 = vadd.f32 0.0, %v598
    %v600 = vpop.f32.mrf.mxu0
    %v601 = vadd.f32 0.0, %v600
    %602 = vmatprep.mubr.bf16.mxu0 0
    %603 = vmatmul.mubr.bf16.gmra.mxu0 %v318
    %v604 = vpop.f32.mrf.mxu0
    %v605 = vadd.f32 0.0, %v604
    %v606 = vpop.f32.mrf.mxu0
    %v607 = vadd.f32 0.0, %v606
    %v608 = vpop.f32.mrf.mxu0
    %v609 = vadd.f32 0.0, %v608
    %v610 = vpop.f32.mrf.mxu0
    %v611 = vadd.f32 0.0, %v610
    %612 = vmatprep.mubr.bf16.mxu0 0
    %613 = vmatmul.mubr.bf16.gmra.mxu0 %v319
    %v614 = vpop.f32.mrf.mxu0
    %v615 = vadd.f32 0.0, %v614
    %v616 = vpop.f32.mrf.mxu0
    %v617 = vadd.f32 0.0, %v616
    %v618 = vpop.f32.mrf.mxu0
    %v619 = vadd.f32 0.0, %v618
    %v620 = vpop.f32.mrf.mxu0
    %v621 = vadd.f32 0.0, %v620
    %622 = vmatprep.mubr.bf16.mxu0 0
    %623 = vmatmul.mubr.bf16.gmra.mxu0 %v320
    %v624 = vpop.f32.mrf.mxu0
    %v625 = vadd.f32 0.0, %v624
    %v626 = vpop.f32.mrf.mxu0
    %v627 = vadd.f32 0.0, %v626
    %v628 = vpop.f32.mrf.mxu0
    %v629 = vadd.f32 0.0, %v628
    %v630 = vpop.f32.mrf.mxu0
    %v631 = vadd.f32 0.0, %v630
    %632 = vmatprep.mubr.bf16.mxu0 0
    %633 = vmatmul.mubr.bf16.gmra.mxu0 %v321
    %v634 = vpop.f32.mrf.mxu0
    %v635 = vadd.f32 0.0, %v634
    %v636 = vpop.f32.mrf.mxu0
    %v637 = vadd.f32 0.0, %v636
    %v638 = vpop.f32.mrf.mxu0
    %v639 = vadd.f32 0.0, %v638
    %v640 = vpop.f32.mrf.mxu0
    %v641 = vadd.f32 0.0, %v640
    %642 = vmatprep.mubr.bf16.mxu0 0
    %643 = vmatmul.mubr.bf16.gmra.mxu0 %v322
    %v644 = vpop.f32.mrf.mxu0
    %v645 = vadd.f32 0.0, %v644
    %v646 = vpop.f32.mrf.mxu0
    %v647 = vadd.f32 0.0, %v646
    %v648 = vpop.f32.mrf.mxu0
    %v649 = vadd.f32 0.0, %v648
    %v650 = vpop.f32.mrf.mxu0
    %v651 = vadd.f32 0.0, %v650
    %652 = vmatprep.mubr.bf16.mxu0 0
    %653 = vmatmul.mubr.bf16.gmra.mxu0 %v323
    %v654 = vpop.f32.mrf.mxu0
    %v655 = vadd.f32 0.0, %v654
    %v656 = vpop.f32.mrf.mxu0
    %v657 = vadd.f32 0.0, %v656
    %v658 = vpop.f32.mrf.mxu0
    %v659 = vadd.f32 0.0, %v658
    %v660 = vpop.f32.mrf.mxu0
    %v661 = vadd.f32 0.0, %v660
    %662 = vmatprep.mubr.bf16.mxu0 0
    %663 = vmatmul.mubr.bf16.gmra.mxu0 %v324
    %v664 = vpop.f32.mrf.mxu0
    %v665 = vadd.f32 0.0, %v664
    %v666 = vpop.f32.mrf.mxu0
    %v667 = vadd.f32 0.0, %v666
    %v668 = vpop.f32.mrf.mxu0
    %v669 = vadd.f32 0.0, %v668
    %v670 = vpop.f32.mrf.mxu0
    %v671 = vadd.f32 0.0, %v670
    %672 = vmatprep.mubr.bf16.mxu0 0
    %673 = vmatmul.mubr.bf16.gmra.mxu0 %v325
    %v674 = vpop.f32.mrf.mxu0
    %v675 = vadd.f32 0.0, %v674
    %v676 = vpop.f32.mrf.mxu0
    %v677 = vadd.f32 0.0, %v676
    %v678 = vpop.f32.mrf.mxu0
    %v679 = vadd.f32 0.0, %v678
    %v680 = vpop.f32.mrf.mxu0
    %v681 = vadd.f32 0.0, %v680
    %682 = vmatprep.mubr.bf16.mxu0 0
    %683 = vmatmul.mubr.bf16.gmra.mxu0 %v326
    %v684 = vpop.f32.mrf.mxu0
    %v685 = vadd.f32 0.0, %v684
    %v686 = vpop.f32.mrf.mxu0
    %v687 = vadd.f32 0.0, %v686
    %v688 = vpop.f32.mrf.mxu0
    %v689 = vadd.f32 0.0, %v688
    %v690 = vpop.f32.mrf.mxu0
    %v691 = vadd.f32 0.0, %v690
    %692 = vmatprep.mubr.bf16.mxu0 0
    %693 = vmatmul.mubr.bf16.gmra.mxu0 %v327
    %v694 = vpop.f32.mrf.mxu0
    %v695 = vadd.f32 0.0, %v694
    %v696 = vpop.f32.mrf.mxu0
    %v697 = vadd.f32 0.0, %v696
    %v698 = vpop.f32.mrf.mxu0
    %v699 = vadd.f32 0.0, %v698
    %v700 = vpop.f32.mrf.mxu0
    %v701 = vadd.f32 0.0, %v700
    %702 = vmatprep.mubr.bf16.mxu0 0
    %703 = vmatmul.mubr.bf16.gmra.mxu0 %v328
    %v704 = vpop.f32.mrf.mxu0
    %v705 = vadd.f32 0.0, %v704
    %v706 = vpop.f32.mrf.mxu0
    %v707 = vadd.f32 0.0, %v706
    %v708 = vpop.f32.mrf.mxu0
    %v709 = vadd.f32 0.0, %v708
    %v710 = vpop.f32.mrf.mxu0
    %v711 = vadd.f32 0.0, %v710
    %712 = vmatprep.mubr.bf16.mxu0 0
    %713 = vmatmul.mubr.bf16.gmra.mxu0 %v329
    %v714 = vpop.f32.mrf.mxu0
    %v715 = vadd.f32 0.0, %v714
    %v716 = vpop.f32.mrf.mxu0
    %v717 = vadd.f32 0.0, %v716
    %v718 = vpop.f32.mrf.mxu0
    %v719 = vadd.f32 0.0, %v718
    %v720 = vpop.f32.mrf.mxu0
    %v721 = vadd.f32 0.0, %v720
    %722 = vmatprep.mubr.bf16.mxu0 0
    %723 = vmatmul.mubr.bf16.gmra.mxu0 %v330
    %v724 = vpop.f32.mrf.mxu0
    %v725 = vadd.f32 0.0, %v724
    %v726 = vpop.f32.mrf.mxu0
    %v727 = vadd.f32 0.0, %v726
    %v728 = vpop.f32.mrf.mxu0
    %v729 = vadd.f32 0.0, %v728
    %v730 = vpop.f32.mrf.mxu0
    %v731 = vadd.f32 0.0, %v730
    %732 = vmatprep.mubr.bf16.mxu0 0
    %733 = vmatmul.mubr.bf16.gmra.mxu0 %v331
    %v734 = vpop.f32.mrf.mxu0
    %v735 = vadd.f32 0.0, %v734
    %v736 = vpop.f32.mrf.mxu0
    %v737 = vadd.f32 0.0, %v736
    %v738 = vpop.f32.mrf.mxu0
    %v739 = vadd.f32 0.0, %v738
    %v740 = vpop.f32.mrf.mxu0
    %v741 = vadd.f32 0.0, %v740
    %742 = vmatprep.mubr.bf16.mxu0 0
    %743 = vmatmul.mubr.bf16.gmra.mxu0 %v332
    %v744 = vpop.f32.mrf.mxu0
    %v745 = vadd.f32 0.0, %v744
    %v746 = vpop.f32.mrf.mxu0
    %v747 = vadd.f32 0.0, %v746
    %v748 = vpop.f32.mrf.mxu0
    %v749 = vadd.f32 0.0, %v748
    %v750 = vpop.f32.mrf.mxu0
    %v751 = vadd.f32 0.0, %v750
    %752 = vmatprep.mubr.bf16.mxu0 0
    %753 = vmatmul.mubr.bf16.gmra.mxu0 %v333
    %v754 = vpop.f32.mrf.mxu0
    %v755 = vadd.f32 0.0, %v754
    %v756 = vpop.f32.mrf.mxu0
    %v757 = vadd.f32 0.0, %v756
    %v758 = vpop.f32.mrf.mxu0
    %v759 = vadd.f32 0.0, %v758
    %v760 = vpop.f32.mrf.mxu0
    %v761 = vadd.f32 0.0, %v760
    %762 = vmatprep.mubr.bf16.mxu0 0
    %763 = vmatmul.mubr.bf16.gmra.mxu0 %v334
    %v764 = vpop.f32.mrf.mxu0
    %v765 = vadd.f32 0.0, %v764
    %v766 = vpop.f32.mrf.mxu0
    %v767 = vadd.f32 0.0, %v766
    %v768 = vpop.f32.mrf.mxu0
    %v769 = vadd.f32 0.0, %v768
    %v770 = vpop.f32.mrf.mxu0
    %v771 = vadd.f32 0.0, %v770
    %772 = vmatprep.mubr.bf16.mxu0 0
    %773 = vmatmul.mubr.bf16.gmra.mxu0 %v335
    %v774 = vpop.f32.mrf.mxu0
    %v775 = vadd.f32 0.0, %v774
    %v776 = vpop.f32.mrf.mxu0
    %v777 = vadd.f32 0.0, %v776
    %v778 = vpop.f32.mrf.mxu0
    %v779 = vadd.f32 0.0, %v778
    %v780 = vpop.f32.mrf.mxu0
    %v781 = vadd.f32 0.0, %v780
    %782 = vmatprep.mubr.bf16.mxu0 0
    %783 = vmatmul.mubr.bf16.gmra.mxu0 %v336
    %v784 = vpop.f32.mrf.mxu0
    %v785 = vadd.f32 0.0, %v784
    %v786 = vpop.f32.mrf.mxu0
    %v787 = vadd.f32 0.0, %v786
    %v788 = vpop.f32.mrf.mxu0
    %v789 = vadd.f32 0.0, %v788
    %v790 = vpop.f32.mrf.mxu0
    %v791 = vadd.f32 0.0, %v790
    %792 = vmatprep.mubr.bf16.mxu0 0
    %793 = vmatmul.mubr.bf16.gmra.mxu0 %v337
    %v794 = vpop.f32.mrf.mxu0
    %v795 = vadd.f32 0.0, %v794
    %v796 = vpop.f32.mrf.mxu0
    %v797 = vadd.f32 0.0, %v796
    %v798 = vpop.f32.mrf.mxu0
    %v799 = vadd.f32 0.0, %v798
    %v800 = vpop.f32.mrf.mxu0
    %v801 = vadd.f32 0.0, %v800
    %802 = vdwg.mxu0
    %v803 = vld [vmem:[%s4] sm:$0x1]
    %v804 = vld [vmem:[%s5] sm:$0x1]
    %v805 = vadd.f32 %v485, %v489
    %v806 = vadd.f32 %v805, %v495
    %v807 = vadd.f32 %v806, %v499
    %v808 = vadd.f32 %v807, %v505
    %v809 = vadd.f32 %v808, %v509
    %v810 = vadd.f32 %v809, %v515
    %v811 = vadd.f32 %v810, %v519
    %v812 = vadd.f32 %v811, %v525
    %v813 = vadd.f32 %v812, %v529
    %v814 = vadd.f32 %v813, %v535
    %v815 = vadd.f32 %v814, %v539
    %v816 = vadd.f32 %v815, %v545
    %v817 = vadd.f32 %v816, %v549
    %v818 = vadd.f32 %v817, %v555
    %v819 = vadd.f32 %v818, %v559
    %v820 = vadd.f32 %v819, %v565
    %v821 = vadd.f32 %v820, %v569
    %v822 = vadd.f32 %v821, %v575
    %v823 = vadd.f32 %v822, %v579
    %v824 = vadd.f32 %v823, %v585
    %v825 = vadd.f32 %v824, %v589
    %v826 = vadd.f32 %v825, %v595
    %v827 = vadd.f32 %v826, %v599
    %v828 = vadd.f32 %v827, %v605
    %v829 = vadd.f32 %v828, %v609
    %v830 = vadd.f32 %v829, %v615
    %v831 = vadd.f32 %v830, %v619
    %v832 = vadd.f32 %v831, %v625
    %v833 = vadd.f32 %v832, %v629
    %v834 = vadd.f32 %v833, %v635
    %v835 = vadd.f32 %v834, %v639
    %v836 = vadd.f32 %v835, %v645
    %v837 = vadd.f32 %v836, %v649
    %v838 = vadd.f32 %v837, %v655
    %v839 = vadd.f32 %v838, %v659
    %v840 = vadd.f32 %v839, %v665
    %v841 = vadd.f32 %v840, %v669
    %v842 = vadd.f32 %v841, %v675
    %v843 = vadd.f32 %v842, %v679
    %v844 = vadd.f32 %v843, %v685
    %v845 = vadd.f32 %v844, %v689
    %v846 = vadd.f32 %v845, %v695
    %v847 = vadd.f32 %v846, %v699
    %v848 = vadd.f32 %v847, %v705
    %v849 = vadd.f32 %v848, %v709
    %v850 = vadd.f32 %v849, %v715
    %v851 = vadd.f32 %v850, %v719
    %v852 = vadd.f32 %v851, %v725
    %v853 = vadd.f32 %v852, %v729
    %v854 = vadd.f32 %v853, %v735
    %v855 = vadd.f32 %v854, %v739
    %v856 = vadd.f32 %v855, %v745
    %v857 = vadd.f32 %v856, %v749
    %v858 = vadd.f32 %v857, %v755
    %v859 = vadd.f32 %v858, %v759
    %v860 = vadd.f32 %v859, %v765
    %v861 = vadd.f32 %v860, %v769
    %v862 = vadd.f32 %v861, %v775
    %v863 = vadd.f32 %v862, %v779
    %v864 = vadd.f32 %v863, %v785
    %v865 = vadd.f32 %v864, %v789
    %v866 = vadd.f32 %v865, %v795
    %v867 = vadd.f32 %v866, %v799
    %v868 = vrot.slane %v867, 4
    %v869 = vadd.f32 %v867, %v868
    %v870 = vrot.slane %v869, 2
    %v871 = vadd.f32 %v869, %v870
    %v872 = vrot.slane %v871, 1
    %v873 = vadd.f32 %v871, %v872
    %v874 = vmul.f32 %v873, 0.001953125
    %v875 = vmul.f32 %v485, %v485
    %v876 = vmul.f32 %v489, %v489
    %v877 = vmul.f32 %v495, %v495
    %v878 = vmul.f32 %v499, %v499
    %v879 = vmul.f32 %v505, %v505
    %v880 = vmul.f32 %v509, %v509
    %v881 = vmul.f32 %v515, %v515
    %v882 = vmul.f32 %v519, %v519
    %v883 = vmul.f32 %v525, %v525
    %v884 = vmul.f32 %v529, %v529
    %v885 = vmul.f32 %v535, %v535
    %v886 = vmul.f32 %v539, %v539
    %v887 = vmul.f32 %v545, %v545
    %v888 = vmul.f32 %v549, %v549
    %v889 = vmul.f32 %v555, %v555
    %v890 = vmul.f32 %v559, %v559
    %v891 = vmul.f32 %v565, %v565
    %v892 = vmul.f32 %v569, %v569
    %v893 = vmul.f32 %v575, %v575
    %v894 = vmul.f32 %v579, %v579
    %v895 = vmul.f32 %v585, %v585
    %v896 = vmul.f32 %v589, %v589
    %v897 = vmul.f32 %v595, %v595
    %v898 = vmul.f32 %v599, %v599
    %v899 = vmul.f32 %v605, %v605
    %v900 = vmul.f32 %v609, %v609
    %v901 = vmul.f32 %v615, %v615
    %v902 = vmul.f32 %v619, %v619
    %v903 = vmul.f32 %v625, %v625
    %v904 = vmul.f32 %v629, %v629
    %v905 = vmul.f32 %v635, %v635
    %v906 = vmul.f32 %v639, %v639
    %v907 = vmul.f32 %v645, %v645
    %v908 = vmul.f32 %v649, %v649
    %v909 = vmul.f32 %v655, %v655
    %v910 = vmul.f32 %v659, %v659
    %v911 = vmul.f32 %v665, %v665
    %v912 = vmul.f32 %v669, %v669
    %v913 = vmul.f32 %v675, %v675
    %v914 = vmul.f32 %v679, %v679
    %v915 = vmul.f32 %v685, %v685
    %v916 = vmul.f32 %v689, %v689
    %v917 = vmul.f32 %v695, %v695
    %v918 = vmul.f32 %v699, %v699
    %v919 = vmul.f32 %v705, %v705
    %v920 = vmul.f32 %v709, %v709
    %v921 = vmul.f32 %v715, %v715
    %v922 = vmul.f32 %v719, %v719
    %v923 = vmul.f32 %v725, %v725
    %v924 = vmul.f32 %v729, %v729
    %v925 = vmul.f32 %v735, %v735
    %v926 = vmul.f32 %v739, %v739
    %v927 = vmul.f32 %v745, %v745
    %v928 = vmul.f32 %v749, %v749
    %v929 = vmul.f32 %v755, %v755
    %v930 = vmul.f32 %v759, %v759
    %v931 = vmul.f32 %v765, %v765
    %v932 = vmul.f32 %v769, %v769
    %v933 = vmul.f32 %v775, %v775
    %v934 = vmul.f32 %v779, %v779
    %v935 = vmul.f32 %v785, %v785
    %v936 = vmul.f32 %v789, %v789
    %v937 = vmul.f32 %v795, %v795
    %v938 = vmul.f32 %v799, %v799
    %v939 = vadd.f32 %v875, %v876
    %v940 = vadd.f32 %v939, %v877
    %v941 = vadd.f32 %v940, %v878
    %v942 = vadd.f32 %v941, %v879
    %v943 = vadd.f32 %v942, %v880
    %v944 = vadd.f32 %v943, %v881
    %v945 = vadd.f32 %v944, %v882
    %v946 = vadd.f32 %v945, %v883
    %v947 = vadd.f32 %v946, %v884
    %v948 = vadd.f32 %v947, %v885
    %v949 = vadd.f32 %v948, %v886
    %v950 = vadd.f32 %v949, %v887
    %v951 = vadd.f32 %v950, %v888
    %v952 = vadd.f32 %v951, %v889
    %v953 = vadd.f32 %v952, %v890
    %v954 = vadd.f32 %v953, %v891
    %v955 = vadd.f32 %v954, %v892
    %v956 = vadd.f32 %v955, %v893
    %v957 = vadd.f32 %v956, %v894
    %v958 = vadd.f32 %v957, %v895
    %v959 = vadd.f32 %v958, %v896
    %v960 = vadd.f32 %v959, %v897
    %v961 = vadd.f32 %v960, %v898
    %v962 = vadd.f32 %v961, %v899
    %v963 = vadd.f32 %v962, %v900
    %v964 = vadd.f32 %v963, %v901
    %v965 = vadd.f32 %v964, %v902
    %v966 = vadd.f32 %v965, %v903
    %v967 = vadd.f32 %v966, %v904
    %v968 = vadd.f32 %v967, %v905
    %v969 = vadd.f32 %v968, %v906
    %v970 = vadd.f32 %v969, %v907
    %v971 = vadd.f32 %v970, %v908
    %v972 = vadd.f32 %v971, %v909
    %v973 = vadd.f32 %v972, %v910
    %v974 = vadd.f32 %v973, %v911
    %v975 = vadd.f32 %v974, %v912
    %v976 = vadd.f32 %v975, %v913
    %v977 = vadd.f32 %v976, %v914
    %v978 = vadd.f32 %v977, %v915
    %v979 = vadd.f32 %v978, %v916
    %v980 = vadd.f32 %v979, %v917
    %v981 = vadd.f32 %v980, %v918
    %v982 = vadd.f32 %v981, %v919
    %v983 = vadd.f32 %v982, %v920
    %v984 = vadd.f32 %v983, %v921
    %v985 = vadd.f32 %v984, %v922
    %v986 = vadd.f32 %v985, %v923
    %v987 = vadd.f32 %v986, %v924
    %v988 = vadd.f32 %v987, %v925
    %v989 = vadd.f32 %v988, %v926
    %v990 = vadd.f32 %v989, %v927
    %v991 = vadd.f32 %v990, %v928
    %v992 = vadd.f32 %v991, %v929
    %v993 = vadd.f32 %v992, %v930
    %v994 = vadd.f32 %v993, %v931
    %v995 = vadd.f32 %v994, %v932
    %v996 = vadd.f32 %v995, %v933
    %v997 = vadd.f32 %v996, %v934
    %v998 = vadd.f32 %v997, %v935
    %v999 = vadd.f32 %v998, %v936
    %v1000 = vadd.f32 %v999, %v937
    %v1001 = vadd.f32 %v1000, %v938
    %v1002 = vrot.slane %v1001, 4
    %v1003 = vadd.f32 %v1001, %v1002
    %v1004 = vrot.slane %v1003, 2
    %v1005 = vadd.f32 %v1003, %v1004
    %v1006 = vrot.slane %v1005, 1
    %v1007 = vadd.f32 %v1005, %v1006
    %v1008 = vmul.f32 %v1007, 0.001953125
    %v1009 = vmul.f32 %v874, %v874
    %v1010 = vsub.f32 %v1008, %v1009
    %v1011 = vmax.f32 %v1010, 0.0
    %v1012 = vadd.f32 %v1011, 1e-05
    %v1013 = vrsqrt.pop %v1012
    %v1014 = vmul.f32 %v803, %v1013
    %v1015 = vmul.f32 %v874, %v1014
    %v1016 = vsub.f32 %v804, %v1015
    %v1018 = vlaneseq
    %v1019 = vshrl.u32 %v1018, 7
    %v1020 = vsub.s32 0, %v1019
    %v1021 = vrot.slane %v1014, %v1020
    %v1023 = vmul.f32 %v485, %v1021
    %v1024 = vmul.f32 %v489, %v1021
    %v1025 = vmul.f32 %v495, %v1021
    %v1026 = vmul.f32 %v499, %v1021
    %v1027 = vmul.f32 %v505, %v1021
    %v1028 = vmul.f32 %v509, %v1021
    %v1029 = vmul.f32 %v515, %v1021
    %v1030 = vmul.f32 %v519, %v1021
    %v1031 = vmul.f32 %v525, %v1021
    %v1032 = vmul.f32 %v529, %v1021
    %v1033 = vmul.f32 %v535, %v1021
    %v1034 = vmul.f32 %v539, %v1021
    %v1035 = vmul.f32 %v545, %v1021
    %v1036 = vmul.f32 %v549, %v1021
    %v1037 = vmul.f32 %v555, %v1021
    %v1038 = vmul.f32 %v559, %v1021
    %v1039 = vmul.f32 %v565, %v1021
    %v1040 = vmul.f32 %v569, %v1021
    %v1041 = vmul.f32 %v575, %v1021
    %v1042 = vmul.f32 %v579, %v1021
    %v1043 = vmul.f32 %v585, %v1021
    %v1044 = vmul.f32 %v589, %v1021
    %v1045 = vmul.f32 %v595, %v1021
    %v1046 = vmul.f32 %v599, %v1021
    %v1047 = vmul.f32 %v605, %v1021
    %v1048 = vmul.f32 %v609, %v1021
    %v1049 = vmul.f32 %v615, %v1021
    %v1050 = vmul.f32 %v619, %v1021
    %v1051 = vmul.f32 %v625, %v1021
    %v1052 = vmul.f32 %v629, %v1021
    %v1053 = vmul.f32 %v635, %v1021
    %v1054 = vmul.f32 %v639, %v1021
    %v1055 = vmul.f32 %v645, %v1021
    %v1056 = vmul.f32 %v649, %v1021
    %v1057 = vmul.f32 %v655, %v1021
    %v1058 = vmul.f32 %v659, %v1021
    %v1059 = vmul.f32 %v665, %v1021
    %v1060 = vmul.f32 %v669, %v1021
    %v1061 = vmul.f32 %v675, %v1021
    %v1062 = vmul.f32 %v679, %v1021
    %v1063 = vmul.f32 %v685, %v1021
    %v1064 = vmul.f32 %v689, %v1021
    %v1065 = vmul.f32 %v695, %v1021
    %v1066 = vmul.f32 %v699, %v1021
    %v1067 = vmul.f32 %v705, %v1021
    %v1068 = vmul.f32 %v709, %v1021
    %v1069 = vmul.f32 %v715, %v1021
    %v1070 = vmul.f32 %v719, %v1021
    %v1071 = vmul.f32 %v725, %v1021
    %v1072 = vmul.f32 %v729, %v1021
    %v1073 = vmul.f32 %v735, %v1021
    %v1074 = vmul.f32 %v739, %v1021
    %v1075 = vmul.f32 %v745, %v1021
    %v1076 = vmul.f32 %v749, %v1021
    %v1077 = vmul.f32 %v755, %v1021
    %v1078 = vmul.f32 %v759, %v1021
    %v1079 = vmul.f32 %v765, %v1021
    %v1080 = vmul.f32 %v769, %v1021
    %v1081 = vmul.f32 %v775, %v1021
    %v1082 = vmul.f32 %v779, %v1021
    %v1083 = vmul.f32 %v785, %v1021
    %v1084 = vmul.f32 %v789, %v1021
    %v1085 = vmul.f32 %v795, %v1021
    %v1086 = vmul.f32 %v799, %v1021
    %v1088 = vlaneseq
    %v1089 = vshrl.u32 %v1088, 7
    %v1090 = vsub.s32 0, %v1089
    %v1091 = vrot.slane %v1016, %v1090
    %v1093 = vadd.f32 %v1023, %v1091
    %v1094 = vadd.f32 %v1024, %v1091
    %v1095 = vadd.f32 %v1025, %v1091
    %v1096 = vadd.f32 %v1026, %v1091
    %v1097 = vadd.f32 %v1027, %v1091
    %v1098 = vadd.f32 %v1028, %v1091
    %v1099 = vadd.f32 %v1029, %v1091
    %v1100 = vadd.f32 %v1030, %v1091
    %v1101 = vadd.f32 %v1031, %v1091
    %v1102 = vadd.f32 %v1032, %v1091
    %v1103 = vadd.f32 %v1033, %v1091
    %v1104 = vadd.f32 %v1034, %v1091
    %v1105 = vadd.f32 %v1035, %v1091
    %v1106 = vadd.f32 %v1036, %v1091
    %v1107 = vadd.f32 %v1037, %v1091
    %v1108 = vadd.f32 %v1038, %v1091
    %v1109 = vadd.f32 %v1039, %v1091
    %v1110 = vadd.f32 %v1040, %v1091
    %v1111 = vadd.f32 %v1041, %v1091
    %v1112 = vadd.f32 %v1042, %v1091
    %v1113 = vadd.f32 %v1043, %v1091
    %v1114 = vadd.f32 %v1044, %v1091
    %v1115 = vadd.f32 %v1045, %v1091
    %v1116 = vadd.f32 %v1046, %v1091
    %v1117 = vadd.f32 %v1047, %v1091
    %v1118 = vadd.f32 %v1048, %v1091
    %v1119 = vadd.f32 %v1049, %v1091
    %v1120 = vadd.f32 %v1050, %v1091
    %v1121 = vadd.f32 %v1051, %v1091
    %v1122 = vadd.f32 %v1052, %v1091
    %v1123 = vadd.f32 %v1053, %v1091
    %v1124 = vadd.f32 %v1054, %v1091
    %v1125 = vadd.f32 %v1055, %v1091
    %v1126 = vadd.f32 %v1056, %v1091
    %v1127 = vadd.f32 %v1057, %v1091
    %v1128 = vadd.f32 %v1058, %v1091
    %v1129 = vadd.f32 %v1059, %v1091
    %v1130 = vadd.f32 %v1060, %v1091
    %v1131 = vadd.f32 %v1061, %v1091
    %v1132 = vadd.f32 %v1062, %v1091
    %v1133 = vadd.f32 %v1063, %v1091
    %v1134 = vadd.f32 %v1064, %v1091
    %v1135 = vadd.f32 %v1065, %v1091
    %v1136 = vadd.f32 %v1066, %v1091
    %v1137 = vadd.f32 %v1067, %v1091
    %v1138 = vadd.f32 %v1068, %v1091
    %v1139 = vadd.f32 %v1069, %v1091
    %v1140 = vadd.f32 %v1070, %v1091
    %v1141 = vadd.f32 %v1071, %v1091
    %v1142 = vadd.f32 %v1072, %v1091
    %v1143 = vadd.f32 %v1073, %v1091
    %v1144 = vadd.f32 %v1074, %v1091
    %v1145 = vadd.f32 %v1075, %v1091
    %v1146 = vadd.f32 %v1076, %v1091
    %v1147 = vadd.f32 %v1077, %v1091
    %v1148 = vadd.f32 %v1078, %v1091
    %v1149 = vadd.f32 %v1079, %v1091
    %v1150 = vadd.f32 %v1080, %v1091
    %v1151 = vadd.f32 %v1081, %v1091
    %v1152 = vadd.f32 %v1082, %v1091
    %v1153 = vadd.f32 %v1083, %v1091
    %v1154 = vadd.f32 %v1084, %v1091
    %v1155 = vadd.f32 %v1085, %v1091
    %v1156 = vadd.f32 %v1086, %v1091
    %v1157 = vmax.f32 %v1093, 0.0
    %v1158 = vmax.f32 %v1094, 0.0
    %v1159 = vmax.f32 %v1095, 0.0
    %v1160 = vmax.f32 %v1096, 0.0
    %v1161 = vmax.f32 %v1097, 0.0
    %v1162 = vmax.f32 %v1098, 0.0
    %v1163 = vmax.f32 %v1099, 0.0
    %v1164 = vmax.f32 %v1100, 0.0
    %v1165 = vmax.f32 %v1101, 0.0
    %v1166 = vmax.f32 %v1102, 0.0
    %v1167 = vmax.f32 %v1103, 0.0
    %v1168 = vmax.f32 %v1104, 0.0
    %v1169 = vmax.f32 %v1105, 0.0
    %v1170 = vmax.f32 %v1106, 0.0
    %v1171 = vmax.f32 %v1107, 0.0
    %v1172 = vmax.f32 %v1108, 0.0
    %v1173 = vmax.f32 %v1109, 0.0
    %v1174 = vmax.f32 %v1110, 0.0
    %v1175 = vmax.f32 %v1111, 0.0
    %v1176 = vmax.f32 %v1112, 0.0
    %v1177 = vmax.f32 %v1113, 0.0
    %v1178 = vmax.f32 %v1114, 0.0
    %v1179 = vmax.f32 %v1115, 0.0
    %v1180 = vmax.f32 %v1116, 0.0
    %v1181 = vmax.f32 %v1117, 0.0
    %v1182 = vmax.f32 %v1118, 0.0
    %v1183 = vmax.f32 %v1119, 0.0
    %v1184 = vmax.f32 %v1120, 0.0
    %v1185 = vmax.f32 %v1121, 0.0
    %v1186 = vmax.f32 %v1122, 0.0
    %v1187 = vmax.f32 %v1123, 0.0
    %v1188 = vmax.f32 %v1124, 0.0
    %v1189 = vmax.f32 %v1125, 0.0
    %v1190 = vmax.f32 %v1126, 0.0
    %v1191 = vmax.f32 %v1127, 0.0
    %v1192 = vmax.f32 %v1128, 0.0
    %v1193 = vmax.f32 %v1129, 0.0
    %v1194 = vmax.f32 %v1130, 0.0
    %v1195 = vmax.f32 %v1131, 0.0
    %v1196 = vmax.f32 %v1132, 0.0
    %v1197 = vmax.f32 %v1133, 0.0
    %v1198 = vmax.f32 %v1134, 0.0
    %v1199 = vmax.f32 %v1135, 0.0
    %v1200 = vmax.f32 %v1136, 0.0
    %v1201 = vmax.f32 %v1137, 0.0
    %v1202 = vmax.f32 %v1138, 0.0
    %v1203 = vmax.f32 %v1139, 0.0
    %v1204 = vmax.f32 %v1140, 0.0
    %v1205 = vmax.f32 %v1141, 0.0
    %v1206 = vmax.f32 %v1142, 0.0
    %v1207 = vmax.f32 %v1143, 0.0
    %v1208 = vmax.f32 %v1144, 0.0
    %v1209 = vmax.f32 %v1145, 0.0
    %v1210 = vmax.f32 %v1146, 0.0
    %v1211 = vmax.f32 %v1147, 0.0
    %v1212 = vmax.f32 %v1148, 0.0
    %v1213 = vmax.f32 %v1149, 0.0
    %v1214 = vmax.f32 %v1150, 0.0
    %v1215 = vmax.f32 %v1151, 0.0
    %v1216 = vmax.f32 %v1152, 0.0
    %v1217 = vmax.f32 %v1153, 0.0
    %v1218 = vmax.f32 %v1154, 0.0
    %v1219 = vmax.f32 %v1155, 0.0
    %v1220 = vmax.f32 %v1156, 0.0
    %v1221 = vpack.c.bf16 %v1158, %v1157
    %v1222 = vpack.c.bf16 %v1160, %v1159
    %v1223 = vpack.c.bf16 %v1162, %v1161
    %v1224 = vpack.c.bf16 %v1164, %v1163
    %v1225 = vpack.c.bf16 %v1166, %v1165
    %v1226 = vpack.c.bf16 %v1168, %v1167
    %v1227 = vpack.c.bf16 %v1170, %v1169
    %v1228 = vpack.c.bf16 %v1172, %v1171
    %v1229 = vpack.c.bf16 %v1174, %v1173
    %v1230 = vpack.c.bf16 %v1176, %v1175
    %v1231 = vpack.c.bf16 %v1178, %v1177
    %v1232 = vpack.c.bf16 %v1180, %v1179
    %v1233 = vpack.c.bf16 %v1182, %v1181
    %v1234 = vpack.c.bf16 %v1184, %v1183
    %v1235 = vpack.c.bf16 %v1186, %v1185
    %v1236 = vpack.c.bf16 %v1188, %v1187
    %v1237 = vpack.c.bf16 %v1190, %v1189
    %v1238 = vpack.c.bf16 %v1192, %v1191
    %v1239 = vpack.c.bf16 %v1194, %v1193
    %v1240 = vpack.c.bf16 %v1196, %v1195
    %v1241 = vpack.c.bf16 %v1198, %v1197
    %v1242 = vpack.c.bf16 %v1200, %v1199
    %v1243 = vpack.c.bf16 %v1202, %v1201
    %v1244 = vpack.c.bf16 %v1204, %v1203
    %v1245 = vpack.c.bf16 %v1206, %v1205
    %v1246 = vpack.c.bf16 %v1208, %v1207
    %v1247 = vpack.c.bf16 %v1210, %v1209
    %v1248 = vpack.c.bf16 %v1212, %v1211
    %v1249 = vpack.c.bf16 %v1214, %v1213
    %v1250 = vpack.c.bf16 %v1216, %v1215
    %v1251 = vpack.c.bf16 %v1218, %v1217
    %v1252 = vpack.c.bf16 %v1220, %v1219
    %1253 = vst [vmem:[#allocation2] sm:$0xf] 0
    %1254 = vst [vmem:[#allocation2 + $0x4] sm:$0xf] 0
    %1255 = vst [vmem:[#allocation2 + $0x8] sm:$0x1] 0
    %1256 = vst [vmem:[#allocation2 + $0xc] sm:$0xf] 0
    %1257 = vst [vmem:[#allocation2 + $0x10] sm:$0xf] 0
    %1258 = vst [vmem:[#allocation2 + $0x14] sm:$0x1] 0
    %1259 = vst [vmem:[#allocation2 + $0x18] sm:$0xf] 0
    %1260 = vst [vmem:[#allocation2 + $0x1c] sm:$0xf] 0
    %1261 = vst [vmem:[#allocation2 + $0x20] sm:$0x1] 0
    %1262 = vst [vmem:[#allocation2 + $0x24] sm:$0xf] 0
    %1263 = vst [vmem:[#allocation2 + $0x28] sm:$0xf] 0
    %1264 = vst [vmem:[#allocation2 + $0x2c] sm:$0x1] 0
    %1265 = vst [vmem:[#allocation2 + $0x30] sm:$0xf] 0
    %1266 = vst [vmem:[#allocation2 + $0x34] sm:$0xf] 0
    %1267 = vst [vmem:[#allocation2 + $0x38] sm:$0x1] 0
    %1268 = vst [vmem:[#allocation2 + $0x3c] sm:$0xf] 0
    %1269 = vst [vmem:[#allocation2 + $0x40] sm:$0xf] 0
    %1270 = vst [vmem:[#allocation2 + $0x44] sm:$0x1] 0
    %1271 = vst [vmem:[#allocation2 + $0x48] sm:$0xf] 0
    %1272 = vst [vmem:[#allocation2 + $0x4c] sm:$0xf] 0
    %1273 = vst [vmem:[#allocation2 + $0x50] sm:$0x1] 0
    %1274 = vst [vmem:[#allocation2 + $0x54] sm:$0xf] 0
    %1275 = vst [vmem:[#allocation2 + $0x58] sm:$0xf] 0
    %1276 = vst [vmem:[#allocation2 + $0x5c] sm:$0x1] 0
    %1277 = vst [vmem:[#allocation2 + $0x60] sm:$0xf] 0
    %1278 = vst [vmem:[#allocation2 + $0x64] sm:$0xf] 0
    %1279 = vst [vmem:[#allocation2 + $0x68] sm:$0x1] 0
    %1280 = vst [vmem:[#allocation2 + $0x6c] sm:$0xf] 0
    %1281 = vst [vmem:[#allocation2 + $0x70] sm:$0xf] 0
    %1282 = vst [vmem:[#allocation2 + $0x74] sm:$0x1] 0
    %1283 = vst [vmem:[#allocation2 + $0x78] sm:$0xf] 0
    %1284 = vst [vmem:[#allocation2 + $0x7c] sm:$0xf] 0
    %1285 = vst [vmem:[#allocation2 + $0x80] sm:$0x1] 0
    %1286 = vst [vmem:[#allocation2 + $0x84] sm:$0xf] 0
    %1287 = vst [vmem:[#allocation2 + $0x88] sm:$0xf] 0
    %1288 = vst [vmem:[#allocation2 + $0x8c] sm:$0x1] 0
    %1289 = vst [vmem:[#allocation2 + $0x90] sm:$0xf] 0
    %1290 = vst [vmem:[#allocation2 + $0x94] sm:$0xf] 0
    %1291 = vst [vmem:[#allocation2 + $0x98] sm:$0x1] 0
    %1292 = vst [vmem:[#allocation2 + $0x9c] sm:$0xf] 0
    %1293 = vst [vmem:[#allocation2 + $0xa0] sm:$0xf] 0
    %1294 = vst [vmem:[#allocation2 + $0xa4] sm:$0x1] 0
    %1295 = vst [vmem:[#allocation2 + $0xa8] sm:$0xf] 0
    %1296 = vst [vmem:[#allocation2 + $0xac] sm:$0xf] 0
    %1297 = vst [vmem:[#allocation2 + $0xb0] sm:$0x1] 0
    %1298 = vst [vmem:[#allocation2 + $0xb4] sm:$0xf] 0
    %1299 = vst [vmem:[#allocation2 + $0xb8] sm:$0xf] 0
    %1300 = vst [vmem:[#allocation2 + $0xbc] sm:$0x1] 0
    %1301 = vst [vmem:[#allocation2 + $0xc0] sm:$0xf] 0
    %1302 = vst [vmem:[#allocation2 + $0xc4] sm:$0xf] 0
    %1303 = vst [vmem:[#allocation2 + $0xc8] sm:$0x1] 0
    %1304 = vst [vmem:[#allocation2 + $0xcc] sm:$0xf] 0
    %1305 = vst [vmem:[#allocation2 + $0xd0] sm:$0xf] 0
    %1306 = vst [vmem:[#allocation2 + $0xd4] sm:$0x1] 0
    %1307 = vst [vmem:[#allocation2 + $0xd8] sm:$0xf] 0
    %1308 = vst [vmem:[#allocation2 + $0xdc] sm:$0xf] 0
    %1309 = vst [vmem:[#allocation2 + $0xe0] sm:$0x1] 0
    %1310 = vst [vmem:[#allocation2 + $0xe4] sm:$0xf] 0
    %1311 = vst [vmem:[#allocation2 + $0xe8] sm:$0xf] 0
    %1312 = vst [vmem:[#allocation2 + $0xec] sm:$0x1] 0
    %1313 = vst [vmem:[#allocation2 + $0xf0] sm:$0xf] 0
    %1314 = vst [vmem:[#allocation2 + $0xf4] sm:$0xf] 0
    %1315 = vst [vmem:[#allocation2 + $0xf8] sm:$0x1] 0
    %1316 = vst [vmem:[#allocation2 + $0xfc] sm:$0xf] 0
    %1317 = vst [vmem:[#allocation2 + $0x100] sm:$0xf] 0
    %1318 = vst [vmem:[#allocation2 + $0x104] sm:$0x1] 0
    %1319 = vst [vmem:[#allocation2 + $0x108] sm:$0xf] 0
    %1320 = vst [vmem:[#allocation2 + $0x10c] sm:$0xf] 0
    %1321 = vst [vmem:[#allocation2 + $0x110] sm:$0x1] 0
    %1322 = vst [vmem:[#allocation2 + $0x114] sm:$0xf] 0
    %1323 = vst [vmem:[#allocation2 + $0x118] sm:$0xf] 0
    %1324 = vst [vmem:[#allocation2 + $0x11c] sm:$0x1] 0
    %1325 = vst [vmem:[#allocation2 + $0x120] sm:$0xf] 0
    %1326 = vst [vmem:[#allocation2 + $0x124] sm:$0xf] 0
    %1327 = vst [vmem:[#allocation2 + $0x128] sm:$0x1] 0
    %1328 = vst [vmem:[#allocation2 + $0x12c] sm:$0xf] 0
    %1329 = vst [vmem:[#allocation2 + $0x130] sm:$0xf] 0
    %1330 = vst [vmem:[#allocation2 + $0x134] sm:$0x1] 0
    %1331 = vst [vmem:[#allocation2 + $0x138] sm:$0xf] 0
    %1332 = vst [vmem:[#allocation2 + $0x13c] sm:$0xf] 0
    %1333 = vst [vmem:[#allocation2 + $0x140] sm:$0x1] 0
    %1334 = vst [vmem:[#allocation2 + $0x144] sm:$0xf] 0
    %1335 = vst [vmem:[#allocation2 + $0x148] sm:$0xf] 0
    %1336 = vst [vmem:[#allocation2 + $0x14c] sm:$0x1] 0
    %1337 = vst [vmem:[#allocation2 + $0x150] sm:$0xf] 0
    %1338 = vst [vmem:[#allocation2 + $0x154] sm:$0xf] 0
    %1339 = vst [vmem:[#allocation2 + $0x158] sm:$0x1] 0
    %1340 = vst [vmem:[#allocation2 + $0x15c] sm:$0xf] 0
    %1341 = vst [vmem:[#allocation2 + $0x160] sm:$0xf] 0
    %1342 = vst [vmem:[#allocation2 + $0x164] sm:$0x1] 0
    %1343 = vst [vmem:[#allocation2 + $0x168] sm:$0xf] 0
    %1344 = vst [vmem:[#allocation2 + $0x16c] sm:$0xf] 0
    %1345 = vst [vmem:[#allocation2 + $0x170] sm:$0x1] 0
    %1346 = vst [vmem:[#allocation2 + $0x174] sm:$0xf] 0
    %1347 = vst [vmem:[#allocation2 + $0x178] sm:$0xf] 0
    %1348 = vst [vmem:[#allocation2 + $0x17c] sm:$0x1] 0
    %1349 = vst [vmem:[#allocation2 + $0x180] sm:$0xf] 0
    %1350 = vst [vmem:[#allocation2 + $0x184] sm:$0xf] 0
    %1351 = vst [vmem:[#allocation2 + $0x188] sm:$0x1] 0
    %1352 = vst [vmem:[#allocation2 + $0x18c] sm:$0xf] 0
    %1353 = vst [vmem:[#allocation2 + $0x190] sm:$0xf] 0
    %1354 = vst [vmem:[#allocation2 + $0x194] sm:$0x1] 0
    %1355 = vst [vmem:[#allocation2 + $0x198] sm:$0xf] 0
    %1356 = vst [vmem:[#allocation2 + $0x19c] sm:$0xf] 0
    %1357 = vst [vmem:[#allocation2 + $0x1a0] sm:$0x1] 0
    %1358 = vst [vmem:[#allocation2 + $0x1a4] sm:$0xf] 0
    %1359 = vst [vmem:[#allocation2 + $0x1a8] sm:$0xf] 0
    %1360 = vst [vmem:[#allocation2 + $0x1ac] sm:$0x1] 0
    %v1393 = vunpack.c.l.b16 %v1221
    %v1394 = vunpack.c.h.b16 %v1221
    %v1395 = vunpack.c.l.b16 %v1222
    %v1396 = vunpack.c.h.b16 %v1222
    %v1397 = vunpack.c.l.b16 %v1223
    %v1398 = vunpack.c.h.b16 %v1223
    %v1399 = vunpack.c.l.b16 %v1224
    %v1400 = vunpack.c.h.b16 %v1224
    %v1401 = vunpack.c.l.b16 %v1225
    %v1402 = vunpack.c.h.b16 %v1225
    %v1403 = vunpack.c.l.b16 %v1226
    %v1404 = vunpack.c.h.b16 %v1226
    %v1405 = vunpack.c.l.b16 %v1227
    %v1406 = vunpack.c.h.b16 %v1227
    %v1407 = vunpack.c.l.b16 %v1228
    %v1408 = vunpack.c.h.b16 %v1228
    %v1409 = vunpack.c.l.b16 %v1229
    %v1410 = vunpack.c.h.b16 %v1229
    %v1411 = vunpack.c.l.b16 %v1230
    %v1412 = vunpack.c.h.b16 %v1230
    %v1413 = vunpack.c.l.b16 %v1231
    %v1414 = vunpack.c.h.b16 %v1231
    %v1415 = vunpack.c.l.b16 %v1232
    %v1416 = vunpack.c.h.b16 %v1232
    %v1417 = vunpack.c.l.b16 %v1233
    %v1418 = vunpack.c.h.b16 %v1233
    %v1419 = vunpack.c.l.b16 %v1234
    %v1420 = vunpack.c.h.b16 %v1234
    %v1421 = vunpack.c.l.b16 %v1235
    %v1422 = vunpack.c.h.b16 %v1235
    %v1423 = vunpack.c.l.b16 %v1236
    %v1424 = vunpack.c.h.b16 %v1236
    %v1425 = vunpack.c.l.b16 %v1237
    %v1426 = vunpack.c.h.b16 %v1237
    %v1427 = vunpack.c.l.b16 %v1238
    %v1428 = vunpack.c.h.b16 %v1238
    %v1429 = vunpack.c.l.b16 %v1239
    %v1430 = vunpack.c.h.b16 %v1239
    %v1431 = vunpack.c.l.b16 %v1240
    %v1432 = vunpack.c.h.b16 %v1240
    %v1433 = vunpack.c.l.b16 %v1241
    %v1434 = vunpack.c.h.b16 %v1241
    %v1435 = vunpack.c.l.b16 %v1242
    %v1436 = vunpack.c.h.b16 %v1242
    %v1437 = vunpack.c.l.b16 %v1243
    %v1438 = vunpack.c.h.b16 %v1243
    %v1439 = vunpack.c.l.b16 %v1244
    %v1440 = vunpack.c.h.b16 %v1244
    %v1441 = vunpack.c.l.b16 %v1245
    %v1442 = vunpack.c.h.b16 %v1245
    %v1443 = vunpack.c.l.b16 %v1246
    %v1444 = vunpack.c.h.b16 %v1246
    %v1445 = vunpack.c.l.b16 %v1247
    %v1446 = vunpack.c.h.b16 %v1247
    %v1447 = vunpack.c.l.b16 %v1248
    %v1448 = vunpack.c.h.b16 %v1248
    %v1449 = vunpack.c.l.b16 %v1249
    %v1450 = vunpack.c.h.b16 %v1249
    %v1451 = vunpack.c.l.b16 %v1250
    %v1452 = vunpack.c.h.b16 %v1250
    %v1453 = vunpack.c.l.b16 %v1251
    %v1454 = vunpack.c.h.b16 %v1251
    %v1455 = vunpack.c.l.b16 %v1252
    %v1456 = vunpack.c.h.b16 %v1252
    %v1457 = vpack.c.b16 %v1393, %v1393
    %v1458 = vpack.c.b16 %v1394, %v1394
    %v1459 = vpack.c.b16 %v1395, %v1395
    %v1460 = vpack.c.b16 %v1396, %v1396
    %v1461 = vpack.c.b16 %v1397, %v1397
    %v1462 = vpack.c.b16 %v1398, %v1398
    %v1463 = vpack.c.b16 %v1399, %v1399
    %v1464 = vpack.c.b16 %v1400, %v1400
    %v1465 = vpack.c.b16 %v1401, %v1401
    %v1466 = vpack.c.b16 %v1402, %v1402
    %v1467 = vpack.c.b16 %v1403, %v1403
    %v1468 = vpack.c.b16 %v1404, %v1404
    %v1469 = vpack.c.b16 %v1405, %v1405
    %v1470 = vpack.c.b16 %v1406, %v1406
    %v1471 = vpack.c.b16 %v1407, %v1407
    %v1472 = vpack.c.b16 %v1408, %v1408
    %v1473 = vpack.c.b16 %v1409, %v1409
    %v1474 = vpack.c.b16 %v1410, %v1410
    %v1475 = vpack.c.b16 %v1411, %v1411
    %v1476 = vpack.c.b16 %v1412, %v1412
    %v1477 = vpack.c.b16 %v1413, %v1413
    %v1478 = vpack.c.b16 %v1414, %v1414
    %v1479 = vpack.c.b16 %v1415, %v1415
    %v1480 = vpack.c.b16 %v1416, %v1416
    %v1481 = vpack.c.b16 %v1417, %v1417
    %v1482 = vpack.c.b16 %v1418, %v1418
    %v1483 = vpack.c.b16 %v1419, %v1419
    %v1484 = vpack.c.b16 %v1420, %v1420
    %v1485 = vpack.c.b16 %v1421, %v1421
    %v1486 = vpack.c.b16 %v1422, %v1422
    %v1487 = vpack.c.b16 %v1423, %v1423
    %v1488 = vpack.c.b16 %v1424, %v1424
    %v1489 = vpack.c.b16 %v1425, %v1425
    %v1490 = vpack.c.b16 %v1426, %v1426
    %v1491 = vpack.c.b16 %v1427, %v1427
    %v1492 = vpack.c.b16 %v1428, %v1428
    %v1493 = vpack.c.b16 %v1429, %v1429
    %v1494 = vpack.c.b16 %v1430, %v1430
    %v1495 = vpack.c.b16 %v1431, %v1431
    %v1496 = vpack.c.b16 %v1432, %v1432
    %v1497 = vpack.c.b16 %v1433, %v1433
    %v1498 = vpack.c.b16 %v1434, %v1434
    %v1499 = vpack.c.b16 %v1435, %v1435
    %v1500 = vpack.c.b16 %v1436, %v1436
    %v1501 = vpack.c.b16 %v1437, %v1437
    %v1502 = vpack.c.b16 %v1438, %v1438
    %v1503 = vpack.c.b16 %v1439, %v1439
    %v1504 = vpack.c.b16 %v1440, %v1440
    %v1505 = vpack.c.b16 %v1441, %v1441
    %v1506 = vpack.c.b16 %v1442, %v1442
    %v1507 = vpack.c.b16 %v1443, %v1443
    %v1508 = vpack.c.b16 %v1444, %v1444
    %v1509 = vpack.c.b16 %v1445, %v1445
    %v1510 = vpack.c.b16 %v1446, %v1446
    %v1511 = vpack.c.b16 %v1447, %v1447
    %v1512 = vpack.c.b16 %v1448, %v1448
    %v1513 = vpack.c.b16 %v1449, %v1449
    %v1514 = vpack.c.b16 %v1450, %v1450
    %v1515 = vpack.c.b16 %v1451, %v1451
    %v1516 = vpack.c.b16 %v1452, %v1452
    %v1517 = vpack.c.b16 %v1453, %v1453
    %v1518 = vpack.c.b16 %v1454, %v1454
    %v1519 = vpack.c.b16 %v1455, %v1455
    %v1520 = vpack.c.b16 %v1456, %v1456
    %vm1521 = vsmask.f32 256
    %vm1522 = vsmask.f32 4368
    %vm1523 = vmor %vm1521, %vm1522
    %v1525 = vshrl.u32 %v1457, 16
    %v1527 = vrot.slane %v1525, 7
    %v1528 = vshll.u32 %v1457, 16
    %v1530 = vor.u32 %v1527, %v1528
    %v1531 = vrot.slane %v1527, 4
    %v1533 = vshrl.u32 %v1458, 16
    %v1535 = vrot.slane %v1533, 7
    %v1536 = vshll.u32 %v1458, 16
    %v1538 = vor.u32 %v1535, %v1536
    %v1539 = vsel %vm1523, %v1531, %v1538
    %v1540 = vrot.slane %v1535, 4
    %v1542 = vshrl.u32 %v1459, 16
    %v1544 = vrot.slane %v1542, 7
    %v1545 = vshll.u32 %v1459, 16
    %v1547 = vor.u32 %v1544, %v1545
    %v1548 = vrot.slane %v1544, 4
    %v1550 = vshrl.u32 %v1460, 16
    %v1552 = vrot.slane %v1550, 7
    %v1553 = vshll.u32 %v1460, 16
    %v1555 = vor.u32 %v1552, %v1553
    %v1556 = vsel %vm1523, %v1548, %v1555
    %v1557 = vrot.slane %v1552, 4
    %v1559 = vshrl.u32 %v1461, 16
    %v1561 = vrot.slane %v1559, 7
    %v1562 = vshll.u32 %v1461, 16
    %v1564 = vor.u32 %v1561, %v1562
    %v1565 = vrot.slane %v1561, 4
    %v1567 = vshrl.u32 %v1462, 16
    %v1569 = vrot.slane %v1567, 7
    %v1570 = vshll.u32 %v1462, 16
    %v1572 = vor.u32 %v1569, %v1570
    %v1573 = vsel %vm1523, %v1565, %v1572
    %v1574 = vrot.slane %v1569, 4
    %v1576 = vshrl.u32 %v1463, 16
    %v1578 = vrot.slane %v1576, 7
    %v1579 = vshll.u32 %v1463, 16
    %v1581 = vor.u32 %v1578, %v1579
    %v1582 = vrot.slane %v1578, 4
    %v1584 = vshrl.u32 %v1464, 16
    %v1586 = vrot.slane %v1584, 7
    %v1587 = vshll.u32 %v1464, 16
    %v1589 = vor.u32 %v1586, %v1587
    %v1590 = vsel %vm1523, %v1582, %v1589
    %v1591 = vrot.slane %v1586, 4
    %v1593 = vshrl.u32 %v1465, 16
    %v1595 = vrot.slane %v1593, 7
    %v1596 = vshll.u32 %v1465, 16
    %v1598 = vor.u32 %v1595, %v1596
    %v1599 = vrot.slane %v1595, 4
    %v1601 = vshrl.u32 %v1466, 16
    %v1603 = vrot.slane %v1601, 7
    %v1604 = vshll.u32 %v1466, 16
    %v1606 = vor.u32 %v1603, %v1604
    %v1607 = vsel %vm1523, %v1599, %v1606
    %v1608 = vrot.slane %v1603, 4
    %v1610 = vshrl.u32 %v1467, 16
    %v1612 = vrot.slane %v1610, 7
    %v1613 = vshll.u32 %v1467, 16
    %v1615 = vor.u32 %v1612, %v1613
    %v1616 = vrot.slane %v1612, 4
    %v1618 = vshrl.u32 %v1468, 16
    %v1620 = vrot.slane %v1618, 7
    %v1621 = vshll.u32 %v1468, 16
    %v1623 = vor.u32 %v1620, %v1621
    %v1624 = vsel %vm1523, %v1616, %v1623
    %v1625 = vrot.slane %v1620, 4
    %v1627 = vshrl.u32 %v1469, 16
    %v1629 = vrot.slane %v1627, 7
    %v1630 = vshll.u32 %v1469, 16
    %v1632 = vor.u32 %v1629, %v1630
    %v1633 = vrot.slane %v1629, 4
    %v1635 = vshrl.u32 %v1470, 16
    %v1637 = vrot.slane %v1635, 7
    %v1638 = vshll.u32 %v1470, 16
    %v1640 = vor.u32 %v1637, %v1638
    %v1641 = vsel %vm1523, %v1633, %v1640
    %v1642 = vrot.slane %v1637, 4
    %v1644 = vshrl.u32 %v1471, 16
    %v1646 = vrot.slane %v1644, 7
    %v1647 = vshll.u32 %v1471, 16
    %v1649 = vor.u32 %v1646, %v1647
    %v1650 = vrot.slane %v1646, 4
    %v1652 = vshrl.u32 %v1472, 16
    %v1654 = vrot.slane %v1652, 7
    %v1655 = vshll.u32 %v1472, 16
    %v1657 = vor.u32 %v1654, %v1655
    %v1658 = vsel %vm1523, %v1650, %v1657
    %v1659 = vrot.slane %v1654, 4
    %v1661 = vshrl.u32 %v1473, 16
    %v1663 = vrot.slane %v1661, 7
    %v1664 = vshll.u32 %v1473, 16
    %v1666 = vor.u32 %v1663, %v1664
    %v1667 = vrot.slane %v1663, 4
    %v1669 = vshrl.u32 %v1474, 16
    %v1671 = vrot.slane %v1669, 7
    %v1672 = vshll.u32 %v1474, 16
    %v1674 = vor.u32 %v1671, %v1672
    %v1675 = vsel %vm1523, %v1667, %v1674
    %v1676 = vrot.slane %v1671, 4
    %v1678 = vshrl.u32 %v1475, 16
    %v1680 = vrot.slane %v1678, 7
    %v1681 = vshll.u32 %v1475, 16
    %v1683 = vor.u32 %v1680, %v1681
    %v1684 = vrot.slane %v1680, 4
    %v1686 = vshrl.u32 %v1476, 16
    %v1688 = vrot.slane %v1686, 7
    %v1689 = vshll.u32 %v1476, 16
    %v1691 = vor.u32 %v1688, %v1689
    %v1692 = vsel %vm1523, %v1684, %v1691
    %v1693 = vrot.slane %v1688, 4
    %v1695 = vshrl.u32 %v1477, 16
    %v1697 = vrot.slane %v1695, 7
    %v1698 = vshll.u32 %v1477, 16
    %v1700 = vor.u32 %v1697, %v1698
    %v1701 = vrot.slane %v1697, 4
    %v1703 = vshrl.u32 %v1478, 16
    %v1705 = vrot.slane %v1703, 7
    %v1706 = vshll.u32 %v1478, 16
    %v1708 = vor.u32 %v1705, %v1706
    %v1709 = vsel %vm1523, %v1701, %v1708
    %v1710 = vrot.slane %v1705, 4
    %v1712 = vshrl.u32 %v1479, 16
    %v1714 = vrot.slane %v1712, 7
    %v1715 = vshll.u32 %v1479, 16
    %v1717 = vor.u32 %v1714, %v1715
    %v1718 = vrot.slane %v1714, 4
    %v1720 = vshrl.u32 %v1480, 16
    %v1722 = vrot.slane %v1720, 7
    %v1723 = vshll.u32 %v1480, 16
    %v1725 = vor.u32 %v1722, %v1723
    %v1726 = vsel %vm1523, %v1718, %v1725
    %v1727 = vrot.slane %v1722, 4
    %v1729 = vshrl.u32 %v1481, 16
    %v1731 = vrot.slane %v1729, 7
    %v1732 = vshll.u32 %v1481, 16
    %v1734 = vor.u32 %v1731, %v1732
    %v1735 = vrot.slane %v1731, 4
    %v1737 = vshrl.u32 %v1482, 16
    %v1739 = vrot.slane %v1737, 7
    %v1740 = vshll.u32 %v1482, 16
    %v1742 = vor.u32 %v1739, %v1740
    %v1743 = vsel %vm1523, %v1735, %v1742
    %v1744 = vrot.slane %v1739, 4
    %v1746 = vshrl.u32 %v1483, 16
    %v1748 = vrot.slane %v1746, 7
    %v1749 = vshll.u32 %v1483, 16
    %v1751 = vor.u32 %v1748, %v1749
    %v1752 = vrot.slane %v1748, 4
    %v1754 = vshrl.u32 %v1484, 16
    %v1756 = vrot.slane %v1754, 7
    %v1757 = vshll.u32 %v1484, 16
    %v1759 = vor.u32 %v1756, %v1757
    %v1760 = vsel %vm1523, %v1752, %v1759
    %v1761 = vrot.slane %v1756, 4
    %v1763 = vshrl.u32 %v1485, 16
    %v1765 = vrot.slane %v1763, 7
    %v1766 = vshll.u32 %v1485, 16
    %v1768 = vor.u32 %v1765, %v1766
    %v1769 = vrot.slane %v1765, 4
    %v1771 = vshrl.u32 %v1486, 16
    %v1773 = vrot.slane %v1771, 7
    %v1774 = vshll.u32 %v1486, 16
    %v1776 = vor.u32 %v1773, %v1774
    %v1777 = vsel %vm1523, %v1769, %v1776
    %v1778 = vrot.slane %v1773, 4
    %v1780 = vshrl.u32 %v1487, 16
    %v1782 = vrot.slane %v1780, 7
    %v1783 = vshll.u32 %v1487, 16
    %v1785 = vor.u32 %v1782, %v1783
    %v1786 = vrot.slane %v1782, 4
    %v1788 = vshrl.u32 %v1488, 16
    %v1790 = vrot.slane %v1788, 7
    %v1791 = vshll.u32 %v1488, 16
    %v1793 = vor.u32 %v1790, %v1791
    %v1794 = vsel %vm1523, %v1786, %v1793
    %v1795 = vrot.slane %v1790, 4
    %v1797 = vshrl.u32 %v1489, 16
    %v1799 = vrot.slane %v1797, 7
    %v1800 = vshll.u32 %v1489, 16
    %v1802 = vor.u32 %v1799, %v1800
    %v1803 = vrot.slane %v1799, 4
    %v1805 = vshrl.u32 %v1490, 16
    %v1807 = vrot.slane %v1805, 7
    %v1808 = vshll.u32 %v1490, 16
    %v1810 = vor.u32 %v1807, %v1808
    %v1811 = vsel %vm1523, %v1803, %v1810
    %v1812 = vrot.slane %v1807, 4
    %v1814 = vshrl.u32 %v1491, 16
    %v1816 = vrot.slane %v1814, 7
    %v1817 = vshll.u32 %v1491, 16
    %v1819 = vor.u32 %v1816, %v1817
    %v1820 = vrot.slane %v1816, 4
    %v1822 = vshrl.u32 %v1492, 16
    %v1824 = vrot.slane %v1822, 7
    %v1825 = vshll.u32 %v1492, 16
    %v1827 = vor.u32 %v1824, %v1825
    %v1828 = vsel %vm1523, %v1820, %v1827
    %v1829 = vrot.slane %v1824, 4
    %v1831 = vshrl.u32 %v1493, 16
    %v1833 = vrot.slane %v1831, 7
    %v1834 = vshll.u32 %v1493, 16
    %v1836 = vor.u32 %v1833, %v1834
    %v1837 = vrot.slane %v1833, 4
    %v1839 = vshrl.u32 %v1494, 16
    %v1841 = vrot.slane %v1839, 7
    %v1842 = vshll.u32 %v1494, 16
    %v1844 = vor.u32 %v1841, %v1842
    %v1845 = vsel %vm1523, %v1837, %v1844
    %v1846 = vrot.slane %v1841, 4
    %v1848 = vshrl.u32 %v1495, 16
    %v1850 = vrot.slane %v1848, 7
    %v1851 = vshll.u32 %v1495, 16
    %v1853 = vor.u32 %v1850, %v1851
    %v1854 = vrot.slane %v1850, 4
    %v1856 = vshrl.u32 %v1496, 16
    %v1858 = vrot.slane %v1856, 7
    %v1859 = vshll.u32 %v1496, 16
    %v1861 = vor.u32 %v1858, %v1859
    %v1862 = vsel %vm1523, %v1854, %v1861
    %v1863 = vrot.slane %v1858, 4
    %v1865 = vshrl.u32 %v1497, 16
    %v1867 = vrot.slane %v1865, 7
    %v1868 = vshll.u32 %v1497, 16
    %v1870 = vor.u32 %v1867, %v1868
    %v1871 = vrot.slane %v1867, 4
    %v1873 = vshrl.u32 %v1498, 16
    %v1875 = vrot.slane %v1873, 7
    %v1876 = vshll.u32 %v1498, 16
    %v1878 = vor.u32 %v1875, %v1876
    %v1879 = vsel %vm1523, %v1871, %v1878
    %v1880 = vrot.slane %v1875, 4
    %v1882 = vshrl.u32 %v1499, 16
    %v1884 = vrot.slane %v1882, 7
    %v1885 = vshll.u32 %v1499, 16
    %v1887 = vor.u32 %v1884, %v1885
    %v1888 = vrot.slane %v1884, 4
    %v1890 = vshrl.u32 %v1500, 16
    %v1892 = vrot.slane %v1890, 7
    %v1893 = vshll.u32 %v1500, 16
    %v1895 = vor.u32 %v1892, %v1893
    %v1896 = vsel %vm1523, %v1888, %v1895
    %v1897 = vrot.slane %v1892, 4
    %v1899 = vshrl.u32 %v1501, 16
    %v1901 = vrot.slane %v1899, 7
    %v1902 = vshll.u32 %v1501, 16
    %v1904 = vor.u32 %v1901, %v1902
    %v1905 = vrot.slane %v1901, 4
    %v1907 = vshrl.u32 %v1502, 16
    %v1909 = vrot.slane %v1907, 7
    %v1910 = vshll.u32 %v1502, 16
    %v1912 = vor.u32 %v1909, %v1910
    %v1913 = vsel %vm1523, %v1905, %v1912
    %v1914 = vrot.slane %v1909, 4
    %v1916 = vshrl.u32 %v1503, 16
    %v1918 = vrot.slane %v1916, 7
    %v1919 = vshll.u32 %v1503, 16
    %v1921 = vor.u32 %v1918, %v1919
    %v1922 = vrot.slane %v1918, 4
    %v1924 = vshrl.u32 %v1504, 16
    %v1926 = vrot.slane %v1924, 7
    %v1927 = vshll.u32 %v1504, 16
    %v1929 = vor.u32 %v1926, %v1927
    %v1930 = vsel %vm1523, %v1922, %v1929
    %v1931 = vrot.slane %v1926, 4
    %v1933 = vshrl.u32 %v1505, 16
    %v1935 = vrot.slane %v1933, 7
    %v1936 = vshll.u32 %v1505, 16
    %v1938 = vor.u32 %v1935, %v1936
    %v1939 = vrot.slane %v1935, 4
    %v1941 = vshrl.u32 %v1506, 16
    %v1943 = vrot.slane %v1941, 7
    %v1944 = vshll.u32 %v1506, 16
    %v1946 = vor.u32 %v1943, %v1944
    %v1947 = vsel %vm1523, %v1939, %v1946
    %v1948 = vrot.slane %v1943, 4
    %v1950 = vshrl.u32 %v1507, 16
    %v1952 = vrot.slane %v1950, 7
    %v1953 = vshll.u32 %v1507, 16
    %v1955 = vor.u32 %v1952, %v1953
    %v1956 = vrot.slane %v1952, 4
    %v1958 = vshrl.u32 %v1508, 16
    %v1960 = vrot.slane %v1958, 7
    %v1961 = vshll.u32 %v1508, 16
    %v1963 = vor.u32 %v1960, %v1961
    %v1964 = vsel %vm1523, %v1956, %v1963
    %v1965 = vrot.slane %v1960, 4
    %v1967 = vshrl.u32 %v1509, 16
    %v1969 = vrot.slane %v1967, 7
    %v1970 = vshll.u32 %v1509, 16
    %v1972 = vor.u32 %v1969, %v1970
    %v1973 = vrot.slane %v1969, 4
    %v1975 = vshrl.u32 %v1510, 16
    %v1977 = vrot.slane %v1975, 7
    %v1978 = vshll.u32 %v1510, 16
    %v1980 = vor.u32 %v1977, %v1978
    %v1981 = vsel %vm1523, %v1973, %v1980
    %v1982 = vrot.slane %v1977, 4
    %v1984 = vshrl.u32 %v1511, 16
    %v1986 = vrot.slane %v1984, 7
    %v1987 = vshll.u32 %v1511, 16
    %v1989 = vor.u32 %v1986, %v1987
    %v1990 = vrot.slane %v1986, 4
    %v1992 = vshrl.u32 %v1512, 16
    %v1994 = vrot.slane %v1992, 7
    %v1995 = vshll.u32 %v1512, 16
    %v1997 = vor.u32 %v1994, %v1995
    %v1998 = vsel %vm1523, %v1990, %v1997
    %v1999 = vrot.slane %v1994, 4
    %v2001 = vshrl.u32 %v1513, 16
    %v2003 = vrot.slane %v2001, 7
    %v2004 = vshll.u32 %v1513, 16
    %v2006 = vor.u32 %v2003, %v2004
    %v2007 = vrot.slane %v2003, 4
    %v2009 = vshrl.u32 %v1514, 16
    %v2011 = vrot.slane %v2009, 7
    %v2012 = vshll.u32 %v1514, 16
    %v2014 = vor.u32 %v2011, %v2012
    %v2015 = vsel %vm1523, %v2007, %v2014
    %v2016 = vrot.slane %v2011, 4
    %v2018 = vshrl.u32 %v1515, 16
    %v2020 = vrot.slane %v2018, 7
    %v2021 = vshll.u32 %v1515, 16
    %v2023 = vor.u32 %v2020, %v2021
    %v2024 = vrot.slane %v2020, 4
    %v2026 = vshrl.u32 %v1516, 16
    %v2028 = vrot.slane %v2026, 7
    %v2029 = vshll.u32 %v1516, 16
    %v2031 = vor.u32 %v2028, %v2029
    %v2032 = vsel %vm1523, %v2024, %v2031
    %v2033 = vrot.slane %v2028, 4
    %v2035 = vshrl.u32 %v1517, 16
    %v2037 = vrot.slane %v2035, 7
    %v2038 = vshll.u32 %v1517, 16
    %v2040 = vor.u32 %v2037, %v2038
    %v2041 = vrot.slane %v2037, 4
    %v2043 = vshrl.u32 %v1518, 16
    %v2045 = vrot.slane %v2043, 7
    %v2046 = vshll.u32 %v1518, 16
    %v2048 = vor.u32 %v2045, %v2046
    %v2049 = vsel %vm1523, %v2041, %v2048
    %v2050 = vrot.slane %v2045, 4
    %v2052 = vshrl.u32 %v1519, 16
    %v2054 = vrot.slane %v2052, 7
    %v2055 = vshll.u32 %v1519, 16
    %v2057 = vor.u32 %v2054, %v2055
    %v2058 = vrot.slane %v2054, 4
    %v2060 = vshrl.u32 %v1520, 16
    %v2062 = vrot.slane %v2060, 7
    %v2063 = vshll.u32 %v1520, 16
    %v2065 = vor.u32 %v2062, %v2063
    %v2066 = vsel %vm1523, %v2058, %v2065
    %v2067 = vrot.slane %v2062, 4
    %s2164 = scalar_lea.vmem [#allocation2], 12
    %vm2165 = vcmask 1043456
    %vm2166 = vsmask.f32 7938
    %vm2167 = vmand %vm2165, %vm2166
    %v2168 = vld [vmem:[%s2164] sm:$0xf]
    %v2169 = vsel %vm2167, %v1530, %v2168
    %2170 = vst [vmem:[%s2164] sm:$0xf] %v2169
    %2171 = vst [vmem:[%s2164 + $0x4] sm:$0xf] %v1539
    %vm2172 = vcmask 1040384
    %vm2173 = vmand %vm2172, %vm1521
    %v2174 = vld [vmem:[%s2164 + $0x8] sm:$0x1]
    %v2175 = vsel %vm2173, %v1540, %v2174
    %2176 = vst [vmem:[%s2164 + $0x8] sm:$0x1] %v2175
    %v2177 = vld [vmem:[%s2164 + $0xc] sm:$0xf]
    %v2178 = vsel %vm2167, %v1547, %v2177
    %2179 = vst [vmem:[%s2164 + $0xc] sm:$0xf] %v2178
    %2180 = vst [vmem:[%s2164 + $0x10] sm:$0xf] %v1556
    %v2181 = vld [vmem:[%s2164 + $0x14] sm:$0x1]
    %v2182 = vsel %vm2173, %v1557, %v2181
    %2183 = vst [vmem:[%s2164 + $0x14] sm:$0x1] %v2182
    %v2184 = vld [vmem:[%s2164 + $0x18] sm:$0xf]
    %v2185 = vsel %vm2167, %v1564, %v2184
    %2186 = vst [vmem:[%s2164 + $0x18] sm:$0xf] %v2185
    %2187 = vst [vmem:[%s2164 + $0x1c] sm:$0xf] %v1573
    %v2188 = vld [vmem:[%s2164 + $0x20] sm:$0x1]
    %v2189 = vsel %vm2173, %v1574, %v2188
    %2190 = vst [vmem:[%s2164 + $0x20] sm:$0x1] %v2189
    %v2191 = vld [vmem:[%s2164 + $0x24] sm:$0xf]
    %v2192 = vsel %vm2167, %v1581, %v2191
    %2193 = vst [vmem:[%s2164 + $0x24] sm:$0xf] %v2192
    %2194 = vst [vmem:[%s2164 + $0x28] sm:$0xf] %v1590
    %v2195 = vld [vmem:[%s2164 + $0x2c] sm:$0x1]
    %v2196 = vsel %vm2173, %v1591, %v2195
    %2197 = vst [vmem:[%s2164 + $0x2c] sm:$0x1] %v2196
    %v2198 = vld [vmem:[%s2164 + $0x30] sm:$0xf]
    %v2199 = vsel %vm2167, %v1598, %v2198
    %2200 = vst [vmem:[%s2164 + $0x30] sm:$0xf] %v2199
    %2201 = vst [vmem:[%s2164 + $0x34] sm:$0xf] %v1607
    %v2202 = vld [vmem:[%s2164 + $0x38] sm:$0x1]
    %v2203 = vsel %vm2173, %v1608, %v2202
    %2204 = vst [vmem:[%s2164 + $0x38] sm:$0x1] %v2203
    %v2205 = vld [vmem:[%s2164 + $0x3c] sm:$0xf]
    %v2206 = vsel %vm2167, %v1615, %v2205
    %2207 = vst [vmem:[%s2164 + $0x3c] sm:$0xf] %v2206
    %2208 = vst [vmem:[%s2164 + $0x40] sm:$0xf] %v1624
    %v2209 = vld [vmem:[%s2164 + $0x44] sm:$0x1]
    %v2210 = vsel %vm2173, %v1625, %v2209
    %2211 = vst [vmem:[%s2164 + $0x44] sm:$0x1] %v2210
    %v2212 = vld [vmem:[%s2164 + $0x48] sm:$0xf]
    %v2213 = vsel %vm2167, %v1632, %v2212
    %2214 = vst [vmem:[%s2164 + $0x48] sm:$0xf] %v2213
    %2215 = vst [vmem:[%s2164 + $0x4c] sm:$0xf] %v1641
    %v2216 = vld [vmem:[%s2164 + $0x50] sm:$0x1]
    %v2217 = vsel %vm2173, %v1642, %v2216
    %2218 = vst [vmem:[%s2164 + $0x50] sm:$0x1] %v2217
    %v2219 = vld [vmem:[%s2164 + $0x54] sm:$0xf]
    %v2220 = vsel %vm2167, %v1649, %v2219
    %2221 = vst [vmem:[%s2164 + $0x54] sm:$0xf] %v2220
    %2222 = vst [vmem:[%s2164 + $0x58] sm:$0xf] %v1658
    %v2223 = vld [vmem:[%s2164 + $0x5c] sm:$0x1]
    %v2224 = vsel %vm2173, %v1659, %v2223
    %2225 = vst [vmem:[%s2164 + $0x5c] sm:$0x1] %v2224
    %v2226 = vld [vmem:[%s2164 + $0x60] sm:$0xf]
    %v2227 = vsel %vm2167, %v1666, %v2226
    %2228 = vst [vmem:[%s2164 + $0x60] sm:$0xf] %v2227
    %2229 = vst [vmem:[%s2164 + $0x64] sm:$0xf] %v1675
    %v2230 = vld [vmem:[%s2164 + $0x68] sm:$0x1]
    %v2231 = vsel %vm2173, %v1676, %v2230
    %2232 = vst [vmem:[%s2164 + $0x68] sm:$0x1] %v2231
    %v2233 = vld [vmem:[%s2164 + $0x6c] sm:$0xf]
    %v2234 = vsel %vm2167, %v1683, %v2233
    %2235 = vst [vmem:[%s2164 + $0x6c] sm:$0xf] %v2234
    %2236 = vst [vmem:[%s2164 + $0x70] sm:$0xf] %v1692
    %v2237 = vld [vmem:[%s2164 + $0x74] sm:$0x1]
    %v2238 = vsel %vm2173, %v1693, %v2237
    %2239 = vst [vmem:[%s2164 + $0x74] sm:$0x1] %v2238
    %v2240 = vld [vmem:[%s2164 + $0x78] sm:$0xf]
    %v2241 = vsel %vm2167, %v1700, %v2240
    %2242 = vst [vmem:[%s2164 + $0x78] sm:$0xf] %v2241
    %2243 = vst [vmem:[%s2164 + $0x7c] sm:$0xf] %v1709
    %v2244 = vld [vmem:[%s2164 + $0x80] sm:$0x1]
    %v2245 = vsel %vm2173, %v1710, %v2244
    %2246 = vst [vmem:[%s2164 + $0x80] sm:$0x1] %v2245
    %v2247 = vld [vmem:[%s2164 + $0x84] sm:$0xf]
    %v2248 = vsel %vm2167, %v1717, %v2247
    %2249 = vst [vmem:[%s2164 + $0x84] sm:$0xf] %v2248
    %2250 = vst [vmem:[%s2164 + $0x88] sm:$0xf] %v1726
    %v2251 = vld [vmem:[%s2164 + $0x8c] sm:$0x1]
    %v2252 = vsel %vm2173, %v1727, %v2251
    %2253 = vst [vmem:[%s2164 + $0x8c] sm:$0x1] %v2252
    %v2254 = vld [vmem:[%s2164 + $0x90] sm:$0xf]
    %v2255 = vsel %vm2167, %v1734, %v2254
    %2256 = vst [vmem:[%s2164 + $0x90] sm:$0xf] %v2255
    %2257 = vst [vmem:[%s2164 + $0x94] sm:$0xf] %v1743
    %v2258 = vld [vmem:[%s2164 + $0x98] sm:$0x1]
    %v2259 = vsel %vm2173, %v1744, %v2258
    %2260 = vst [vmem:[%s2164 + $0x98] sm:$0x1] %v2259
    %v2261 = vld [vmem:[%s2164 + $0x9c] sm:$0xf]
    %v2262 = vsel %vm2167, %v1751, %v2261
    %2263 = vst [vmem:[%s2164 + $0x9c] sm:$0xf] %v2262
    %2264 = vst [vmem:[%s2164 + $0xa0] sm:$0xf] %v1760
    %v2265 = vld [vmem:[%s2164 + $0xa4] sm:$0x1]
    %v2266 = vsel %vm2173, %v1761, %v2265
    %2267 = vst [vmem:[%s2164 + $0xa4] sm:$0x1] %v2266
    %v2268 = vld [vmem:[%s2164 + $0xa8] sm:$0xf]
    %v2269 = vsel %vm2167, %v1768, %v2268
    %2270 = vst [vmem:[%s2164 + $0xa8] sm:$0xf] %v2269
    %2271 = vst [vmem:[%s2164 + $0xac] sm:$0xf] %v1777
    %v2272 = vld [vmem:[%s2164 + $0xb0] sm:$0x1]
    %v2273 = vsel %vm2173, %v1778, %v2272
    %2274 = vst [vmem:[%s2164 + $0xb0] sm:$0x1] %v2273
    %v2275 = vld [vmem:[%s2164 + $0xb4] sm:$0xf]
    %v2276 = vsel %vm2167, %v1785, %v2275
    %2277 = vst [vmem:[%s2164 + $0xb4] sm:$0xf] %v2276
    %2278 = vst [vmem:[%s2164 + $0xb8] sm:$0xf] %v1794
    %v2279 = vld [vmem:[%s2164 + $0xbc] sm:$0x1]
    %v2280 = vsel %vm2173, %v1795, %v2279
    %2281 = vst [vmem:[%s2164 + $0xbc] sm:$0x1] %v2280
    %v2282 = vld [vmem:[%s2164 + $0xd8] sm:$0xf]
    %v2283 = vsel %vm2167, %v1802, %v2282
    %2284 = vst [vmem:[%s2164 + $0xd8] sm:$0xf] %v2283
    %2285 = vst [vmem:[%s2164 + $0xdc] sm:$0xf] %v1811
    %v2286 = vld [vmem:[%s2164 + $0xe0] sm:$0x1]
    %v2287 = vsel %vm2173, %v1812, %v2286
    %2288 = vst [vmem:[%s2164 + $0xe0] sm:$0x1] %v2287
    %v2289 = vld [vmem:[%s2164 + $0xe4] sm:$0xf]
    %v2290 = vsel %vm2167, %v1819, %v2289
    %2291 = vst [vmem:[%s2164 + $0xe4] sm:$0xf] %v2290
    %2292 = vst [vmem:[%s2164 + $0xe8] sm:$0xf] %v1828
    %v2293 = vld [vmem:[%s2164 + $0xec] sm:$0x1]
    %v2294 = vsel %vm2173, %v1829, %v2293
    %2295 = vst [vmem:[%s2164 + $0xec] sm:$0x1] %v2294
    %v2296 = vld [vmem:[%s2164 + $0xf0] sm:$0xf]
    %v2297 = vsel %vm2167, %v1836, %v2296
    %2298 = vst [vmem:[%s2164 + $0xf0] sm:$0xf] %v2297
    %2299 = vst [vmem:[%s2164 + $0xf4] sm:$0xf] %v1845
    %v2300 = vld [vmem:[%s2164 + $0xf8] sm:$0x1]
    %v2301 = vsel %vm2173, %v1846, %v2300
    %2302 = vst [vmem:[%s2164 + $0xf8] sm:$0x1] %v2301
    %v2303 = vld [vmem:[%s2164 + $0xfc] sm:$0xf]
    %v2304 = vsel %vm2167, %v1853, %v2303
    %2305 = vst [vmem:[%s2164 + $0xfc] sm:$0xf] %v2304
    %2306 = vst [vmem:[%s2164 + $0x100] sm:$0xf] %v1862
    %v2307 = vld [vmem:[%s2164 + $0x104] sm:$0x1]
    %v2308 = vsel %vm2173, %v1863, %v2307
    %2309 = vst [vmem:[%s2164 + $0x104] sm:$0x1] %v2308
    %v2310 = vld [vmem:[%s2164 + $0x108] sm:$0xf]
    %v2311 = vsel %vm2167, %v1870, %v2310
    %2312 = vst [vmem:[%s2164 + $0x108] sm:$0xf] %v2311
    %2313 = vst [vmem:[%s2164 + $0x10c] sm:$0xf] %v1879
    %v2314 = vld [vmem:[%s2164 + $0x110] sm:$0x1]
    %v2315 = vsel %vm2173, %v1880, %v2314
    %2316 = vst [vmem:[%s2164 + $0x110] sm:$0x1] %v2315
    %v2317 = vld [vmem:[%s2164 + $0x114] sm:$0xf]
    %v2318 = vsel %vm2167, %v1887, %v2317
    %2319 = vst [vmem:[%s2164 + $0x114] sm:$0xf] %v2318
    %2320 = vst [vmem:[%s2164 + $0x118] sm:$0xf] %v1896
    %v2321 = vld [vmem:[%s2164 + $0x11c] sm:$0x1]
    %v2322 = vsel %vm2173, %v1897, %v2321
    %2323 = vst [vmem:[%s2164 + $0x11c] sm:$0x1] %v2322
    %v2324 = vld [vmem:[%s2164 + $0x120] sm:$0xf]
    %v2325 = vsel %vm2167, %v1904, %v2324
    %2326 = vst [vmem:[%s2164 + $0x120] sm:$0xf] %v2325
    %2327 = vst [vmem:[%s2164 + $0x124] sm:$0xf] %v1913
    %v2328 = vld [vmem:[%s2164 + $0x128] sm:$0x1]
    %v2329 = vsel %vm2173, %v1914, %v2328
    %2330 = vst [vmem:[%s2164 + $0x128] sm:$0x1] %v2329
    %v2331 = vld [vmem:[%s2164 + $0x12c] sm:$0xf]
    %v2332 = vsel %vm2167, %v1921, %v2331
    %2333 = vst [vmem:[%s2164 + $0x12c] sm:$0xf] %v2332
    %2334 = vst [vmem:[%s2164 + $0x130] sm:$0xf] %v1930
    %v2335 = vld [vmem:[%s2164 + $0x134] sm:$0x1]
    %v2336 = vsel %vm2173, %v1931, %v2335
    %2337 = vst [vmem:[%s2164 + $0x134] sm:$0x1] %v2336
    %v2338 = vld [vmem:[%s2164 + $0x138] sm:$0xf]
    %v2339 = vsel %vm2167, %v1938, %v2338
    %2340 = vst [vmem:[%s2164 + $0x138] sm:$0xf] %v2339
    %2341 = vst [vmem:[%s2164 + $0x13c] sm:$0xf] %v1947
    %v2342 = vld [vmem:[%s2164 + $0x140] sm:$0x1]
    %v2343 = vsel %vm2173, %v1948, %v2342
    %2344 = vst [vmem:[%s2164 + $0x140] sm:$0x1] %v2343
    %v2345 = vld [vmem:[%s2164 + $0x144] sm:$0xf]
    %v2346 = vsel %vm2167, %v1955, %v2345
    %2347 = vst [vmem:[%s2164 + $0x144] sm:$0xf] %v2346
    %2348 = vst [vmem:[%s2164 + $0x148] sm:$0xf] %v1964
    %v2349 = vld [vmem:[%s2164 + $0x14c] sm:$0x1]
    %v2350 = vsel %vm2173, %v1965, %v2349
    %2351 = vst [vmem:[%s2164 + $0x14c] sm:$0x1] %v2350
    %v2352 = vld [vmem:[%s2164 + $0x150] sm:$0xf]
    %v2353 = vsel %vm2167, %v1972, %v2352
    %2354 = vst [vmem:[%s2164 + $0x150] sm:$0xf] %v2353
    %2355 = vst [vmem:[%s2164 + $0x154] sm:$0xf] %v1981
    %v2356 = vld [vmem:[%s2164 + $0x158] sm:$0x1]
    %v2357 = vsel %vm2173, %v1982, %v2356
    %2358 = vst [vmem:[%s2164 + $0x158] sm:$0x1] %v2357
    %v2359 = vld [vmem:[%s2164 + $0x15c] sm:$0xf]
    %v2360 = vsel %vm2167, %v1989, %v2359
    %2361 = vst [vmem:[%s2164 + $0x15c] sm:$0xf] %v2360
    %2362 = vst [vmem:[%s2164 + $0x160] sm:$0xf] %v1998
    %v2363 = vld [vmem:[%s2164 + $0x164] sm:$0x1]
    %v2364 = vsel %vm2173, %v1999, %v2363
    %2365 = vst [vmem:[%s2164 + $0x164] sm:$0x1] %v2364
    %v2366 = vld [vmem:[%s2164 + $0x168] sm:$0xf]
    %v2367 = vsel %vm2167, %v2006, %v2366
    %2368 = vst [vmem:[%s2164 + $0x168] sm:$0xf] %v2367
    %2369 = vst [vmem:[%s2164 + $0x16c] sm:$0xf] %v2015
    %v2370 = vld [vmem:[%s2164 + $0x170] sm:$0x1]
    %v2371 = vsel %vm2173, %v2016, %v2370
    %2372 = vst [vmem:[%s2164 + $0x170] sm:$0x1] %v2371
    %v2373 = vld [vmem:[%s2164 + $0x174] sm:$0xf]
    %v2374 = vsel %vm2167, %v2023, %v2373
    %2375 = vst [vmem:[%s2164 + $0x174] sm:$0xf] %v2374
    %2376 = vst [vmem:[%s2164 + $0x178] sm:$0xf] %v2032
    %v2377 = vld [vmem:[%s2164 + $0x17c] sm:$0x1]
    %v2378 = vsel %vm2173, %v2033, %v2377
    %2379 = vst [vmem:[%s2164 + $0x17c] sm:$0x1] %v2378
    %v2380 = vld [vmem:[%s2164 + $0x180] sm:$0xf]
    %v2381 = vsel %vm2167, %v2040, %v2380
    %2382 = vst [vmem:[%s2164 + $0x180] sm:$0xf] %v2381
    %2383 = vst [vmem:[%s2164 + $0x184] sm:$0xf] %v2049
    %v2384 = vld [vmem:[%s2164 + $0x188] sm:$0x1]
    %v2385 = vsel %vm2173, %v2050, %v2384
    %2386 = vst [vmem:[%s2164 + $0x188] sm:$0x1] %v2385
    %v2387 = vld [vmem:[%s2164 + $0x18c] sm:$0xf]
    %v2388 = vsel %vm2167, %v2057, %v2387
    %2389 = vst [vmem:[%s2164 + $0x18c] sm:$0xf] %v2388
    %2390 = vst [vmem:[%s2164 + $0x190] sm:$0xf] %v2066
    %v2391 = vld [vmem:[%s2164 + $0x194] sm:$0x1]
    %v2392 = vsel %vm2173, %v2067, %v2391
    %2393 = vst [vmem:[%s2164 + $0x194] sm:$0x1] %v2392
    %v2394 = vld [vmem:[#allocation2] sm:$0xf]
    %v2395 = vld [vmem:[#allocation2 + $0x4] sm:$0xf]
    %v2396 = vld [vmem:[#allocation2 + $0xc] sm:$0xf]
    %v2397 = vld [vmem:[#allocation2 + $0x10] sm:$0xf]
    %v2398 = vld [vmem:[#allocation2 + $0x18] sm:$0xf]
    %v2399 = vld [vmem:[#allocation2 + $0x1c] sm:$0xf]
    %v2400 = vld [vmem:[#allocation2 + $0x24] sm:$0xf]
    %v2401 = vld [vmem:[#allocation2 + $0x28] sm:$0xf]
    %v2402 = vld [vmem:[#allocation2 + $0x30] sm:$0xf]
    %v2403 = vld [vmem:[#allocation2 + $0x34] sm:$0xf]
    %v2404 = vld [vmem:[#allocation2 + $0x3c] sm:$0xf]
    %v2405 = vld [vmem:[#allocation2 + $0x40] sm:$0xf]
    %v2406 = vld [vmem:[#allocation2 + $0x48] sm:$0xf]
    %v2407 = vld [vmem:[#allocation2 + $0x4c] sm:$0xf]
    %v2408 = vld [vmem:[#allocation2 + $0x54] sm:$0xf]
    %v2409 = vld [vmem:[#allocation2 + $0x58] sm:$0xf]
    %v2410 = vld [vmem:[#allocation2 + $0x60] sm:$0xf]
    %v2411 = vld [vmem:[#allocation2 + $0x64] sm:$0xf]
    %v2412 = vld [vmem:[#allocation2 + $0x6c] sm:$0xf]
    %v2413 = vld [vmem:[#allocation2 + $0x70] sm:$0xf]
    %v2414 = vld [vmem:[#allocation2 + $0x78] sm:$0xf]
    %v2415 = vld [vmem:[#allocation2 + $0x7c] sm:$0xf]
    %v2416 = vld [vmem:[#allocation2 + $0x84] sm:$0xf]
    %v2417 = vld [vmem:[#allocation2 + $0x88] sm:$0xf]
    %v2418 = vld [vmem:[#allocation2 + $0x90] sm:$0xf]
    %v2419 = vld [vmem:[#allocation2 + $0x94] sm:$0xf]
    %v2420 = vld [vmem:[#allocation2 + $0x9c] sm:$0xf]
    %v2421 = vld [vmem:[#allocation2 + $0xa0] sm:$0xf]
    %v2422 = vld [vmem:[#allocation2 + $0xa8] sm:$0xf]
    %v2423 = vld [vmem:[#allocation2 + $0xac] sm:$0xf]
    %v2424 = vld [vmem:[#allocation2 + $0xb4] sm:$0xf]
    %v2425 = vld [vmem:[#allocation2 + $0xb8] sm:$0xf]
    %v2426 = vld [vmem:[#allocation2 + $0xd8] sm:$0xf]
    %v2427 = vld [vmem:[#allocation2 + $0xdc] sm:$0xf]
    %v2428 = vld [vmem:[#allocation2 + $0xe4] sm:$0xf]
    %v2429 = vld [vmem:[#allocation2 + $0xe8] sm:$0xf]
    %v2430 = vld [vmem:[#allocation2 + $0xf0] sm:$0xf]
    %v2431 = vld [vmem:[#allocation2 + $0xf4] sm:$0xf]
    %v2432 = vld [vmem:[#allocation2 + $0xfc] sm:$0xf]
    %v2433 = vld [vmem:[#allocation2 + $0x100] sm:$0xf]
    %v2434 = vld [vmem:[#allocation2 + $0x108] sm:$0xf]
    %v2435 = vld [vmem:[#allocation2 + $0x10c] sm:$0xf]
    %v2436 = vld [vmem:[#allocation2 + $0x114] sm:$0xf]
    %v2437 = vld [vmem:[#allocation2 + $0x118] sm:$0xf]
    %v2438 = vld [vmem:[#allocation2 + $0x120] sm:$0xf]
    %v2439 = vld [vmem:[#allocation2 + $0x124] sm:$0xf]
    %v2440 = vld [vmem:[#allocation2 + $0x12c] sm:$0xf]
    %v2441 = vld [vmem:[#allocation2 + $0x130] sm:$0xf]
    %v2442 = vld [vmem:[#allocation2 + $0x138] sm:$0xf]
    %v2443 = vld [vmem:[#allocation2 + $0x13c] sm:$0xf]
    %v2444 = vld [vmem:[#allocation2 + $0x144] sm:$0xf]
    %v2445 = vld [vmem:[#allocation2 + $0x148] sm:$0xf]
    %v2446 = vld [vmem:[#allocation2 + $0x150] sm:$0xf]
    %v2447 = vld [vmem:[#allocation2 + $0x154] sm:$0xf]
    %v2448 = vld [vmem:[#allocation2 + $0x15c] sm:$0xf]
    %v2449 = vld [vmem:[#allocation2 + $0x160] sm:$0xf]
    %v2450 = vld [vmem:[#allocation2 + $0x168] sm:$0xf]
    %v2451 = vld [vmem:[#allocation2 + $0x16c] sm:$0xf]
    %v2452 = vld [vmem:[#allocation2 + $0x174] sm:$0xf]
    %v2453 = vld [vmem:[#allocation2 + $0x178] sm:$0xf]
    %v2454 = vld [vmem:[#allocation2 + $0x180] sm:$0xf]
    %v2455 = vld [vmem:[#allocation2 + $0x184] sm:$0xf]
    %v2456 = vld [vmem:[#allocation2 + $0x18c] sm:$0xf]
    %v2457 = vld [vmem:[#allocation2 + $0x190] sm:$0xf]
    %v2458 = vld [vmem:[#allocation8] sm:$0xf]
    %v2459 = vld [vmem:[#allocation8 + $0x4] sm:$0xf]
    %v2460 = vld [vmem:[#allocation8 + $0x8] sm:$0xf]
    %v2461 = vld [vmem:[#allocation8 + $0xc] sm:$0xf]
    %v2462 = vld [vmem:[#allocation8 + $0x10] sm:$0xf]
    %v2463 = vld [vmem:[#allocation8 + $0x14] sm:$0xf]
    %v2464 = vld [vmem:[#allocation8 + $0x18] sm:$0xf]
    %v2465 = vld [vmem:[#allocation8 + $0x1c] sm:$0xf]
    %v2466 = vld [vmem:[#allocation8 + $0x20] sm:$0xf]
    %v2467 = vld [vmem:[#allocation8 + $0x24] sm:$0xf]
    %v2468 = vld [vmem:[#allocation8 + $0x28] sm:$0xf]
    %v2469 = vld [vmem:[#allocation8 + $0x2c] sm:$0xf]
    %v2470 = vld [vmem:[#allocation8 + $0x30] sm:$0xf]
    %v2471 = vld [vmem:[#allocation8 + $0x34] sm:$0xf]
    %v2472 = vld [vmem:[#allocation8 + $0x38] sm:$0xf]
    %v2473 = vld [vmem:[#allocation8 + $0x3c] sm:$0xf]
    %v2474 = vld [vmem:[#allocation2 + $0x8] sm:$0x1]
    %v2475 = vld [vmem:[#allocation2 + $0x14] sm:$0x1]
    %v2476 = vld [vmem:[#allocation2 + $0x20] sm:$0x1]
    %v2477 = vld [vmem:[#allocation2 + $0x2c] sm:$0x1]
    %v2478 = vld [vmem:[#allocation2 + $0x38] sm:$0x1]
    %v2479 = vld [vmem:[#allocation2 + $0x44] sm:$0x1]
    %v2480 = vld [vmem:[#allocation2 + $0x50] sm:$0x1]
    %v2481 = vld [vmem:[#allocation2 + $0x5c] sm:$0x1]
    %v2482 = vld [vmem:[#allocation2 + $0x68] sm:$0x1]
    %v2483 = vld [vmem:[#allocation2 + $0x74] sm:$0x1]
    %v2484 = vld [vmem:[#allocation2 + $0x80] sm:$0x1]
    %v2485 = vld [vmem:[#allocation2 + $0x8c] sm:$0x1]
    %v2486 = vld [vmem:[#allocation2 + $0x98] sm:$0x1]
    %v2487 = vld [vmem:[#allocation2 + $0xa4] sm:$0x1]
    %v2488 = vld [vmem:[#allocation2 + $0xb0] sm:$0x1]
    %v2489 = vld [vmem:[#allocation2 + $0xbc] sm:$0x1]
    %v2490 = vld [vmem:[#allocation2 + $0xe0] sm:$0x1]
    %v2491 = vld [vmem:[#allocation2 + $0xec] sm:$0x1]
    %v2492 = vld [vmem:[#allocation2 + $0xf8] sm:$0x1]
    %v2493 = vld [vmem:[#allocation2 + $0x104] sm:$0x1]
    %v2494 = vld [vmem:[#allocation2 + $0x110] sm:$0x1]
    %v2495 = vld [vmem:[#allocation2 + $0x11c] sm:$0x1]
    %v2496 = vld [vmem:[#allocation2 + $0x128] sm:$0x1]
    %v2497 = vld [vmem:[#allocation2 + $0x134] sm:$0x1]
    %v2498 = vld [vmem:[#allocation2 + $0x140] sm:$0x1]
    %v2499 = vld [vmem:[#allocation2 + $0x14c] sm:$0x1]
    %v2500 = vld [vmem:[#allocation2 + $0x158] sm:$0x1]
    %v2501 = vld [vmem:[#allocation2 + $0x164] sm:$0x1]
    %v2502 = vld [vmem:[#allocation2 + $0x170] sm:$0x1]
    %v2503 = vld [vmem:[#allocation2 + $0x17c] sm:$0x1]
    %v2504 = vld [vmem:[#allocation2 + $0x188] sm:$0x1]
    %v2505 = vld [vmem:[#allocation2 + $0x194] sm:$0x1]
    %vm2506 = vsmask.f32 3328
    %vm2507 = vsmask.f32 7440
    %vm2508 = vmor %vm2506, %vm2507
    %v2510 = vshrl.u32 %v2394, 16
    %v2512 = vrot.slane %v2510, 4
    %v2513 = vshll.u32 %v2394, 16
    %v2515 = vrot.slane %v2513, 5
    %v2516 = vor.u32 %v2512, %v2515
    %v2517 = vrot.slane %v2516, 4
    %v2519 = vshll.u32 %v2395, 16
    %v2521 = vrot.slane %v2519, 5
    %v2522 = vsel %vm2508, %v2517, %v2521
    %v2523 = vshrl.u32 %v2395, 16
    %v2525 = vrot.slane %v2523, 4
    %v2526 = vor.u32 %v2525, %v2521
    %v2527 = vrot.slane %v2526, 4
    %v2529 = vshll.u32 %v2474, 16
    %v2531 = vrot.slane %v2529, 5
    %v2532 = vsel %vm2508, %v2527, %v2531
    %v2534 = vshrl.u32 %v2396, 16
    %v2536 = vrot.slane %v2534, 4
    %v2537 = vshll.u32 %v2396, 16
    %v2539 = vrot.slane %v2537, 5
    %v2540 = vor.u32 %v2536, %v2539
    %v2541 = vrot.slane %v2540, 4
    %v2543 = vshll.u32 %v2397, 16
    %v2545 = vrot.slane %v2543, 5
    %v2546 = vsel %vm2508, %v2541, %v2545
    %v2547 = vshrl.u32 %v2397, 16
    %v2549 = vrot.slane %v2547, 4
    %v2550 = vor.u32 %v2549, %v2545
    %v2551 = vrot.slane %v2550, 4
    %v2553 = vshll.u32 %v2475, 16
    %v2555 = vrot.slane %v2553, 5
    %v2556 = vsel %vm2508, %v2551, %v2555
    %v2558 = vshrl.u32 %v2398, 16
    %v2560 = vrot.slane %v2558, 4
    %v2561 = vshll.u32 %v2398, 16
    %v2563 = vrot.slane %v2561, 5
    %v2564 = vor.u32 %v2560, %v2563
    %v2565 = vrot.slane %v2564, 4
    %v2567 = vshll.u32 %v2399, 16
    %v2569 = vrot.slane %v2567, 5
    %v2570 = vsel %vm2508, %v2565, %v2569
    %v2571 = vshrl.u32 %v2399, 16
    %v2573 = vrot.slane %v2571, 4
    %v2574 = vor.u32 %v2573, %v2569
    %v2575 = vrot.slane %v2574, 4
    %v2577 = vshll.u32 %v2476, 16
    %v2579 = vrot.slane %v2577, 5
    %v2580 = vsel %vm2508, %v2575, %v2579
    %v2582 = vshrl.u32 %v2400, 16
    %v2584 = vrot.slane %v2582, 4
    %v2585 = vshll.u32 %v2400, 16
    %v2587 = vrot.slane %v2585, 5
    %v2588 = vor.u32 %v2584, %v2587
    %v2589 = vrot.slane %v2588, 4
    %v2591 = vshll.u32 %v2401, 16
    %v2593 = vrot.slane %v2591, 5
    %v2594 = vsel %vm2508, %v2589, %v2593
    %v2595 = vshrl.u32 %v2401, 16
    %v2597 = vrot.slane %v2595, 4
    %v2598 = vor.u32 %v2597, %v2593
    %v2599 = vrot.slane %v2598, 4
    %v2601 = vshll.u32 %v2477, 16
    %v2603 = vrot.slane %v2601, 5
    %v2604 = vsel %vm2508, %v2599, %v2603
    %v2606 = vshrl.u32 %v2402, 16
    %v2608 = vrot.slane %v2606, 4
    %v2609 = vshll.u32 %v2402, 16
    %v2611 = vrot.slane %v2609, 5
    %v2612 = vor.u32 %v2608, %v2611
    %v2613 = vrot.slane %v2612, 4
    %v2615 = vshll.u32 %v2403, 16
    %v2617 = vrot.slane %v2615, 5
    %v2618 = vsel %vm2508, %v2613, %v2617
    %v2619 = vshrl.u32 %v2403, 16
    %v2621 = vrot.slane %v2619, 4
    %v2622 = vor.u32 %v2621, %v2617
    %v2623 = vrot.slane %v2622, 4
    %v2625 = vshll.u32 %v2478, 16
    %v2627 = vrot.slane %v2625, 5
    %v2628 = vsel %vm2508, %v2623, %v2627
    %v2630 = vshrl.u32 %v2404, 16
    %v2632 = vrot.slane %v2630, 4
    %v2633 = vshll.u32 %v2404, 16
    %v2635 = vrot.slane %v2633, 5
    %v2636 = vor.u32 %v2632, %v2635
    %v2637 = vrot.slane %v2636, 4
    %v2639 = vshll.u32 %v2405, 16
    %v2641 = vrot.slane %v2639, 5
    %v2642 = vsel %vm2508, %v2637, %v2641
    %v2643 = vshrl.u32 %v2405, 16
    %v2645 = vrot.slane %v2643, 4
    %v2646 = vor.u32 %v2645, %v2641
    %v2647 = vrot.slane %v2646, 4
    %v2649 = vshll.u32 %v2479, 16
    %v2651 = vrot.slane %v2649, 5
    %v2652 = vsel %vm2508, %v2647, %v2651
    %v2654 = vshrl.u32 %v2406, 16
    %v2656 = vrot.slane %v2654, 4
    %v2657 = vshll.u32 %v2406, 16
    %v2659 = vrot.slane %v2657, 5
    %v2660 = vor.u32 %v2656, %v2659
    %v2661 = vrot.slane %v2660, 4
    %v2663 = vshll.u32 %v2407, 16
    %v2665 = vrot.slane %v2663, 5
    %v2666 = vsel %vm2508, %v2661, %v2665
    %v2667 = vshrl.u32 %v2407, 16
    %v2669 = vrot.slane %v2667, 4
    %v2670 = vor.u32 %v2669, %v2665
    %v2671 = vrot.slane %v2670, 4
    %v2673 = vshll.u32 %v2480, 16
    %v2675 = vrot.slane %v2673, 5
    %v2676 = vsel %vm2508, %v2671, %v2675
    %v2678 = vshrl.u32 %v2408, 16
    %v2680 = vrot.slane %v2678, 4
    %v2681 = vshll.u32 %v2408, 16
    %v2683 = vrot.slane %v2681, 5
    %v2684 = vor.u32 %v2680, %v2683
    %v2685 = vrot.slane %v2684, 4
    %v2687 = vshll.u32 %v2409, 16
    %v2689 = vrot.slane %v2687, 5
    %v2690 = vsel %vm2508, %v2685, %v2689
    %v2691 = vshrl.u32 %v2409, 16
    %v2693 = vrot.slane %v2691, 4
    %v2694 = vor.u32 %v2693, %v2689
    %v2695 = vrot.slane %v2694, 4
    %v2697 = vshll.u32 %v2481, 16
    %v2699 = vrot.slane %v2697, 5
    %v2700 = vsel %vm2508, %v2695, %v2699
    %v2702 = vshrl.u32 %v2410, 16
    %v2704 = vrot.slane %v2702, 4
    %v2705 = vshll.u32 %v2410, 16
    %v2707 = vrot.slane %v2705, 5
    %v2708 = vor.u32 %v2704, %v2707
    %v2709 = vrot.slane %v2708, 4
    %v2711 = vshll.u32 %v2411, 16
    %v2713 = vrot.slane %v2711, 5
    %v2714 = vsel %vm2508, %v2709, %v2713
    %v2715 = vshrl.u32 %v2411, 16
    %v2717 = vrot.slane %v2715, 4
    %v2718 = vor.u32 %v2717, %v2713
    %v2719 = vrot.slane %v2718, 4
    %v2721 = vshll.u32 %v2482, 16
    %v2723 = vrot.slane %v2721, 5
    %v2724 = vsel %vm2508, %v2719, %v2723
    %v2726 = vshrl.u32 %v2412, 16
    %v2728 = vrot.slane %v2726, 4
    %v2729 = vshll.u32 %v2412, 16
    %v2731 = vrot.slane %v2729, 5
    %v2732 = vor.u32 %v2728, %v2731
    %v2733 = vrot.slane %v2732, 4
    %v2735 = vshll.u32 %v2413, 16
    %v2737 = vrot.slane %v2735, 5
    %v2738 = vsel %vm2508, %v2733, %v2737
    %v2739 = vshrl.u32 %v2413, 16
    %v2741 = vrot.slane %v2739, 4
    %v2742 = vor.u32 %v2741, %v2737
    %v2743 = vrot.slane %v2742, 4
    %v2745 = vshll.u32 %v2483, 16
    %v2747 = vrot.slane %v2745, 5
    %v2748 = vsel %vm2508, %v2743, %v2747
    %v2750 = vshrl.u32 %v2414, 16
    %v2752 = vrot.slane %v2750, 4
    %v2753 = vshll.u32 %v2414, 16
    %v2755 = vrot.slane %v2753, 5
    %v2756 = vor.u32 %v2752, %v2755
    %v2757 = vrot.slane %v2756, 4
    %v2759 = vshll.u32 %v2415, 16
    %v2761 = vrot.slane %v2759, 5
    %v2762 = vsel %vm2508, %v2757, %v2761
    %v2763 = vshrl.u32 %v2415, 16
    %v2765 = vrot.slane %v2763, 4
    %v2766 = vor.u32 %v2765, %v2761
    %v2767 = vrot.slane %v2766, 4
    %v2769 = vshll.u32 %v2484, 16
    %v2771 = vrot.slane %v2769, 5
    %v2772 = vsel %vm2508, %v2767, %v2771
    %v2774 = vshrl.u32 %v2416, 16
    %v2776 = vrot.slane %v2774, 4
    %v2777 = vshll.u32 %v2416, 16
    %v2779 = vrot.slane %v2777, 5
    %v2780 = vor.u32 %v2776, %v2779
    %v2781 = vrot.slane %v2780, 4
    %v2783 = vshll.u32 %v2417, 16
    %v2785 = vrot.slane %v2783, 5
    %v2786 = vsel %vm2508, %v2781, %v2785
    %v2787 = vshrl.u32 %v2417, 16
    %v2789 = vrot.slane %v2787, 4
    %v2790 = vor.u32 %v2789, %v2785
    %v2791 = vrot.slane %v2790, 4
    %v2793 = vshll.u32 %v2485, 16
    %v2795 = vrot.slane %v2793, 5
    %v2796 = vsel %vm2508, %v2791, %v2795
    %v2798 = vshrl.u32 %v2418, 16
    %v2800 = vrot.slane %v2798, 4
    %v2801 = vshll.u32 %v2418, 16
    %v2803 = vrot.slane %v2801, 5
    %v2804 = vor.u32 %v2800, %v2803
    %v2805 = vrot.slane %v2804, 4
    %v2807 = vshll.u32 %v2419, 16
    %v2809 = vrot.slane %v2807, 5
    %v2810 = vsel %vm2508, %v2805, %v2809
    %v2811 = vshrl.u32 %v2419, 16
    %v2813 = vrot.slane %v2811, 4
    %v2814 = vor.u32 %v2813, %v2809
    %v2815 = vrot.slane %v2814, 4
    %v2817 = vshll.u32 %v2486, 16
    %v2819 = vrot.slane %v2817, 5
    %v2820 = vsel %vm2508, %v2815, %v2819
    %v2822 = vshrl.u32 %v2420, 16
    %v2824 = vrot.slane %v2822, 4
    %v2825 = vshll.u32 %v2420, 16
    %v2827 = vrot.slane %v2825, 5
    %v2828 = vor.u32 %v2824, %v2827
    %v2829 = vrot.slane %v2828, 4
    %v2831 = vshll.u32 %v2421, 16
    %v2833 = vrot.slane %v2831, 5
    %v2834 = vsel %vm2508, %v2829, %v2833
    %v2835 = vshrl.u32 %v2421, 16
    %v2837 = vrot.slane %v2835, 4
    %v2838 = vor.u32 %v2837, %v2833
    %v2839 = vrot.slane %v2838, 4
    %v2841 = vshll.u32 %v2487, 16
    %v2843 = vrot.slane %v2841, 5
    %v2844 = vsel %vm2508, %v2839, %v2843
    %v2846 = vshrl.u32 %v2422, 16
    %v2848 = vrot.slane %v2846, 4
    %v2849 = vshll.u32 %v2422, 16
    %v2851 = vrot.slane %v2849, 5
    %v2852 = vor.u32 %v2848, %v2851
    %v2853 = vrot.slane %v2852, 4
    %v2855 = vshll.u32 %v2423, 16
    %v2857 = vrot.slane %v2855, 5
    %v2858 = vsel %vm2508, %v2853, %v2857
    %v2859 = vshrl.u32 %v2423, 16
    %v2861 = vrot.slane %v2859, 4
    %v2862 = vor.u32 %v2861, %v2857
    %v2863 = vrot.slane %v2862, 4
    %v2865 = vshll.u32 %v2488, 16
    %v2867 = vrot.slane %v2865, 5
    %v2868 = vsel %vm2508, %v2863, %v2867
    %v2870 = vshrl.u32 %v2424, 16
    %v2872 = vrot.slane %v2870, 4
    %v2873 = vshll.u32 %v2424, 16
    %v2875 = vrot.slane %v2873, 5
    %v2876 = vor.u32 %v2872, %v2875
    %v2877 = vrot.slane %v2876, 4
    %v2879 = vshll.u32 %v2425, 16
    %v2881 = vrot.slane %v2879, 5
    %v2882 = vsel %vm2508, %v2877, %v2881
    %v2883 = vshrl.u32 %v2425, 16
    %v2885 = vrot.slane %v2883, 4
    %v2886 = vor.u32 %v2885, %v2881
    %v2887 = vrot.slane %v2886, 4
    %v2889 = vshll.u32 %v2489, 16
    %v2891 = vrot.slane %v2889, 5
    %v2892 = vsel %vm2508, %v2887, %v2891
    %v2894 = vshrl.u32 %v2426, 16
    %v2896 = vrot.slane %v2894, 4
    %v2897 = vshll.u32 %v2426, 16
    %v2899 = vrot.slane %v2897, 5
    %v2900 = vor.u32 %v2896, %v2899
    %v2901 = vrot.slane %v2900, 4
    %v2903 = vshll.u32 %v2427, 16
    %v2905 = vrot.slane %v2903, 5
    %v2906 = vsel %vm2508, %v2901, %v2905
    %v2907 = vshrl.u32 %v2427, 16
    %v2909 = vrot.slane %v2907, 4
    %v2910 = vor.u32 %v2909, %v2905
    %v2911 = vrot.slane %v2910, 4
    %v2913 = vshll.u32 %v2490, 16
    %v2915 = vrot.slane %v2913, 5
    %v2916 = vsel %vm2508, %v2911, %v2915
    %v2918 = vshrl.u32 %v2428, 16
    %v2920 = vrot.slane %v2918, 4
    %v2921 = vshll.u32 %v2428, 16
    %v2923 = vrot.slane %v2921, 5
    %v2924 = vor.u32 %v2920, %v2923
    %v2925 = vrot.slane %v2924, 4
    %v2927 = vshll.u32 %v2429, 16
    %v2929 = vrot.slane %v2927, 5
    %v2930 = vsel %vm2508, %v2925, %v2929
    %v2931 = vshrl.u32 %v2429, 16
    %v2933 = vrot.slane %v2931, 4
    %v2934 = vor.u32 %v2933, %v2929
    %v2935 = vrot.slane %v2934, 4
    %v2937 = vshll.u32 %v2491, 16
    %v2939 = vrot.slane %v2937, 5
    %v2940 = vsel %vm2508, %v2935, %v2939
    %v2942 = vshrl.u32 %v2430, 16
    %v2944 = vrot.slane %v2942, 4
    %v2945 = vshll.u32 %v2430, 16
    %v2947 = vrot.slane %v2945, 5
    %v2948 = vor.u32 %v2944, %v2947
    %v2949 = vrot.slane %v2948, 4
    %v2951 = vshll.u32 %v2431, 16
    %v2953 = vrot.slane %v2951, 5
    %v2954 = vsel %vm2508, %v2949, %v2953
    %v2955 = vshrl.u32 %v2431, 16
    %v2957 = vrot.slane %v2955, 4
    %v2958 = vor.u32 %v2957, %v2953
    %v2959 = vrot.slane %v2958, 4
    %v2961 = vshll.u32 %v2492, 16
    %v2963 = vrot.slane %v2961, 5
    %v2964 = vsel %vm2508, %v2959, %v2963
    %v2966 = vshrl.u32 %v2432, 16
    %v2968 = vrot.slane %v2966, 4
    %v2969 = vshll.u32 %v2432, 16
    %v2971 = vrot.slane %v2969, 5
    %v2972 = vor.u32 %v2968, %v2971
    %v2973 = vrot.slane %v2972, 4
    %v2975 = vshll.u32 %v2433, 16
    %v2977 = vrot.slane %v2975, 5
    %v2978 = vsel %vm2508, %v2973, %v2977
    %v2979 = vshrl.u32 %v2433, 16
    %v2981 = vrot.slane %v2979, 4
    %v2982 = vor.u32 %v2981, %v2977
    %v2983 = vrot.slane %v2982, 4
    %v2985 = vshll.u32 %v2493, 16
    %v2987 = vrot.slane %v2985, 5
    %v2988 = vsel %vm2508, %v2983, %v2987
    %v2990 = vshrl.u32 %v2434, 16
    %v2992 = vrot.slane %v2990, 4
    %v2993 = vshll.u32 %v2434, 16
    %v2995 = vrot.slane %v2993, 5
    %v2996 = vor.u32 %v2992, %v2995
    %v2997 = vrot.slane %v2996, 4
    %v2999 = vshll.u32 %v2435, 16
    %v3001 = vrot.slane %v2999, 5
    %v3002 = vsel %vm2508, %v2997, %v3001
    %v3003 = vshrl.u32 %v2435, 16
    %v3005 = vrot.slane %v3003, 4
    %v3006 = vor.u32 %v3005, %v3001
    %v3007 = vrot.slane %v3006, 4
    %v3009 = vshll.u32 %v2494, 16
    %v3011 = vrot.slane %v3009, 5
    %v3012 = vsel %vm2508, %v3007, %v3011
    %v3014 = vshrl.u32 %v2436, 16
    %v3016 = vrot.slane %v3014, 4
    %v3017 = vshll.u32 %v2436, 16
    %v3019 = vrot.slane %v3017, 5
    %v3020 = vor.u32 %v3016, %v3019
    %v3021 = vrot.slane %v3020, 4
    %v3023 = vshll.u32 %v2437, 16
    %v3025 = vrot.slane %v3023, 5
    %v3026 = vsel %vm2508, %v3021, %v3025
    %v3027 = vshrl.u32 %v2437, 16
    %v3029 = vrot.slane %v3027, 4
    %v3030 = vor.u32 %v3029, %v3025
    %v3031 = vrot.slane %v3030, 4
    %v3033 = vshll.u32 %v2495, 16
    %v3035 = vrot.slane %v3033, 5
    %v3036 = vsel %vm2508, %v3031, %v3035
    %v3038 = vshrl.u32 %v2438, 16
    %v3040 = vrot.slane %v3038, 4
    %v3041 = vshll.u32 %v2438, 16
    %v3043 = vrot.slane %v3041, 5
    %v3044 = vor.u32 %v3040, %v3043
    %v3045 = vrot.slane %v3044, 4
    %v3047 = vshll.u32 %v2439, 16
    %v3049 = vrot.slane %v3047, 5
    %v3050 = vsel %vm2508, %v3045, %v3049
    %v3051 = vshrl.u32 %v2439, 16
    %v3053 = vrot.slane %v3051, 4
    %v3054 = vor.u32 %v3053, %v3049
    %v3055 = vrot.slane %v3054, 4
    %v3057 = vshll.u32 %v2496, 16
    %v3059 = vrot.slane %v3057, 5
    %v3060 = vsel %vm2508, %v3055, %v3059
    %v3062 = vshrl.u32 %v2440, 16
    %v3064 = vrot.slane %v3062, 4
    %v3065 = vshll.u32 %v2440, 16
    %v3067 = vrot.slane %v3065, 5
    %v3068 = vor.u32 %v3064, %v3067
    %v3069 = vrot.slane %v3068, 4
    %v3071 = vshll.u32 %v2441, 16
    %v3073 = vrot.slane %v3071, 5
    %v3074 = vsel %vm2508, %v3069, %v3073
    %v3075 = vshrl.u32 %v2441, 16
    %v3077 = vrot.slane %v3075, 4
    %v3078 = vor.u32 %v3077, %v3073
    %v3079 = vrot.slane %v3078, 4
    %v3081 = vshll.u32 %v2497, 16
    %v3083 = vrot.slane %v3081, 5
    %v3084 = vsel %vm2508, %v3079, %v3083
    %v3086 = vshrl.u32 %v2442, 16
    %v3088 = vrot.slane %v3086, 4
    %v3089 = vshll.u32 %v2442, 16
    %v3091 = vrot.slane %v3089, 5
    %v3092 = vor.u32 %v3088, %v3091
    %v3093 = vrot.slane %v3092, 4
    %v3095 = vshll.u32 %v2443, 16
    %v3097 = vrot.slane %v3095, 5
    %v3098 = vsel %vm2508, %v3093, %v3097
    %v3099 = vshrl.u32 %v2443, 16
    %v3101 = vrot.slane %v3099, 4
    %v3102 = vor.u32 %v3101, %v3097
    %v3103 = vrot.slane %v3102, 4
    %v3105 = vshll.u32 %v2498, 16
    %v3107 = vrot.slane %v3105, 5
    %v3108 = vsel %vm2508, %v3103, %v3107
    %v3110 = vshrl.u32 %v2444, 16
    %v3112 = vrot.slane %v3110, 4
    %v3113 = vshll.u32 %v2444, 16
    %v3115 = vrot.slane %v3113, 5
    %v3116 = vor.u32 %v3112, %v3115
    %v3117 = vrot.slane %v3116, 4
    %v3119 = vshll.u32 %v2445, 16
    %v3121 = vrot.slane %v3119, 5
    %v3122 = vsel %vm2508, %v3117, %v3121
    %v3123 = vshrl.u32 %v2445, 16
    %v3125 = vrot.slane %v3123, 4
    %v3126 = vor.u32 %v3125, %v3121
    %v3127 = vrot.slane %v3126, 4
    %v3129 = vshll.u32 %v2499, 16
    %v3131 = vrot.slane %v3129, 5
    %v3132 = vsel %vm2508, %v3127, %v3131
    %v3134 = vshrl.u32 %v2446, 16
    %v3136 = vrot.slane %v3134, 4
    %v3137 = vshll.u32 %v2446, 16
    %v3139 = vrot.slane %v3137, 5
    %v3140 = vor.u32 %v3136, %v3139
    %v3141 = vrot.slane %v3140, 4
    %v3143 = vshll.u32 %v2447, 16
    %v3145 = vrot.slane %v3143, 5
    %v3146 = vsel %vm2508, %v3141, %v3145
    %v3147 = vshrl.u32 %v2447, 16
    %v3149 = vrot.slane %v3147, 4
    %v3150 = vor.u32 %v3149, %v3145
    %v3151 = vrot.slane %v3150, 4
    %v3153 = vshll.u32 %v2500, 16
    %v3155 = vrot.slane %v3153, 5
    %v3156 = vsel %vm2508, %v3151, %v3155
    %v3158 = vshrl.u32 %v2448, 16
    %v3160 = vrot.slane %v3158, 4
    %v3161 = vshll.u32 %v2448, 16
    %v3163 = vrot.slane %v3161, 5
    %v3164 = vor.u32 %v3160, %v3163
    %v3165 = vrot.slane %v3164, 4
    %v3167 = vshll.u32 %v2449, 16
    %v3169 = vrot.slane %v3167, 5
    %v3170 = vsel %vm2508, %v3165, %v3169
    %v3171 = vshrl.u32 %v2449, 16
    %v3173 = vrot.slane %v3171, 4
    %v3174 = vor.u32 %v3173, %v3169
    %v3175 = vrot.slane %v3174, 4
    %v3177 = vshll.u32 %v2501, 16
    %v3179 = vrot.slane %v3177, 5
    %v3180 = vsel %vm2508, %v3175, %v3179
    %v3182 = vshrl.u32 %v2450, 16
    %v3184 = vrot.slane %v3182, 4
    %v3185 = vshll.u32 %v2450, 16
    %v3187 = vrot.slane %v3185, 5
    %v3188 = vor.u32 %v3184, %v3187
    %v3189 = vrot.slane %v3188, 4
    %v3191 = vshll.u32 %v2451, 16
    %v3193 = vrot.slane %v3191, 5
    %v3194 = vsel %vm2508, %v3189, %v3193
    %v3195 = vshrl.u32 %v2451, 16
    %v3197 = vrot.slane %v3195, 4
    %v3198 = vor.u32 %v3197, %v3193
    %v3199 = vrot.slane %v3198, 4
    %v3201 = vshll.u32 %v2502, 16
    %v3203 = vrot.slane %v3201, 5
    %v3204 = vsel %vm2508, %v3199, %v3203
    %v3206 = vshrl.u32 %v2452, 16
    %v3208 = vrot.slane %v3206, 4
    %v3209 = vshll.u32 %v2452, 16
    %v3211 = vrot.slane %v3209, 5
    %v3212 = vor.u32 %v3208, %v3211
    %v3213 = vrot.slane %v3212, 4
    %v3215 = vshll.u32 %v2453, 16
    %v3217 = vrot.slane %v3215, 5
    %v3218 = vsel %vm2508, %v3213, %v3217
    %v3219 = vshrl.u32 %v2453, 16
    %v3221 = vrot.slane %v3219, 4
    %v3222 = vor.u32 %v3221, %v3217
    %v3223 = vrot.slane %v3222, 4
    %v3225 = vshll.u32 %v2503, 16
    %v3227 = vrot.slane %v3225, 5
    %v3228 = vsel %vm2508, %v3223, %v3227
    %v3230 = vshrl.u32 %v2454, 16
    %v3232 = vrot.slane %v3230, 4
    %v3233 = vshll.u32 %v2454, 16
    %v3235 = vrot.slane %v3233, 5
    %v3236 = vor.u32 %v3232, %v3235
    %v3237 = vrot.slane %v3236, 4
    %v3239 = vshll.u32 %v2455, 16
    %v3241 = vrot.slane %v3239, 5
    %v3242 = vsel %vm2508, %v3237, %v3241
    %v3243 = vshrl.u32 %v2455, 16
    %v3245 = vrot.slane %v3243, 4
    %v3246 = vor.u32 %v3245, %v3241
    %v3247 = vrot.slane %v3246, 4
    %v3249 = vshll.u32 %v2504, 16
    %v3251 = vrot.slane %v3249, 5
    %v3252 = vsel %vm2508, %v3247, %v3251
    %v3254 = vshrl.u32 %v2456, 16
    %v3256 = vrot.slane %v3254, 4
    %v3257 = vshll.u32 %v2456, 16
    %v3259 = vrot.slane %v3257, 5
    %v3260 = vor.u32 %v3256, %v3259
    %v3261 = vrot.slane %v3260, 4
    %v3263 = vshll.u32 %v2457, 16
    %v3265 = vrot.slane %v3263, 5
    %v3266 = vsel %vm2508, %v3261, %v3265
    %v3267 = vshrl.u32 %v2457, 16
    %v3269 = vrot.slane %v3267, 4
    %v3270 = vor.u32 %v3269, %v3265
    %v3271 = vrot.slane %v3270, 4
    %v3273 = vshll.u32 %v2505, 16
    %v3275 = vrot.slane %v3273, 5
    %v3276 = vsel %vm2508, %v3271, %v3275
    %v3277 = vld [vmem:[#allocation8 + $0x40] sm:$0xf]
    %v3278 = vld [vmem:[#allocation8 + $0x44] sm:$0xf]
    %v3279 = vld [vmem:[#allocation8 + $0x48] sm:$0xf]
    %v3280 = vld [vmem:[#allocation8 + $0x4c] sm:$0xf]
    %v3281 = vld [vmem:[#allocation8 + $0x50] sm:$0xf]
    %v3282 = vld [vmem:[#allocation8 + $0x54] sm:$0xf]
    %v3283 = vld [vmem:[#allocation8 + $0x58] sm:$0xf]
    %v3284 = vld [vmem:[#allocation8 + $0x5c] sm:$0xf]
    %v3285 = vld [vmem:[#allocation8 + $0x60] sm:$0xf]
    %v3286 = vld [vmem:[#allocation8 + $0x64] sm:$0xf]
    %v3287 = vld [vmem:[#allocation8 + $0x68] sm:$0xf]
    %v3288 = vld [vmem:[#allocation8 + $0x6c] sm:$0xf]
    %v3289 = vld [vmem:[#allocation8 + $0x70] sm:$0xf]
    %v3290 = vld [vmem:[#allocation8 + $0x74] sm:$0xf]
    %v3291 = vld [vmem:[#allocation8 + $0x78] sm:$0xf]
    %v3292 = vld [vmem:[#allocation8 + $0x7c] sm:$0xf]
    %v3293 = vunpack.c.l.b16 %v2522
    %v3294 = vunpack.c.l.b16 %v2532
    %v3295 = vunpack.c.l.b16 %v2546
    %v3296 = vunpack.c.l.b16 %v2556
    %v3297 = vunpack.c.l.b16 %v2570
    %v3298 = vunpack.c.l.b16 %v2580
    %v3299 = vunpack.c.l.b16 %v2594
    %v3300 = vunpack.c.l.b16 %v2604
    %v3301 = vunpack.c.l.b16 %v2618
    %v3302 = vunpack.c.l.b16 %v2628
    %v3303 = vunpack.c.l.b16 %v2642
    %v3304 = vunpack.c.l.b16 %v2652
    %v3305 = vunpack.c.l.b16 %v2666
    %v3306 = vunpack.c.l.b16 %v2676
    %v3307 = vunpack.c.l.b16 %v2690
    %v3308 = vunpack.c.l.b16 %v2700
    %v3309 = vunpack.c.l.b16 %v2714
    %v3310 = vunpack.c.l.b16 %v2724
    %v3311 = vunpack.c.l.b16 %v2738
    %v3312 = vunpack.c.l.b16 %v2748
    %v3313 = vunpack.c.l.b16 %v2762
    %v3314 = vunpack.c.l.b16 %v2772
    %v3315 = vunpack.c.l.b16 %v2786
    %v3316 = vunpack.c.l.b16 %v2796
    %v3317 = vunpack.c.l.b16 %v2810
    %v3318 = vunpack.c.l.b16 %v2820
    %v3319 = vunpack.c.l.b16 %v2834
    %v3320 = vunpack.c.l.b16 %v2844
    %v3321 = vunpack.c.l.b16 %v2858
    %v3322 = vunpack.c.l.b16 %v2868
    %v3323 = vunpack.c.l.b16 %v2882
    %v3324 = vunpack.c.l.b16 %v2892
    %v3325 = vunpack.c.l.b16 %v2906
    %v3326 = vunpack.c.l.b16 %v2916
    %v3327 = vunpack.c.l.b16 %v2930
    %v3328 = vunpack.c.l.b16 %v2940
    %v3329 = vunpack.c.l.b16 %v2954
    %v3330 = vunpack.c.l.b16 %v2964
    %v3331 = vunpack.c.l.b16 %v2978
    %v3332 = vunpack.c.l.b16 %v2988
    %v3333 = vunpack.c.l.b16 %v3002
    %v3334 = vunpack.c.l.b16 %v3012
    %v3335 = vunpack.c.l.b16 %v3026
    %v3336 = vunpack.c.l.b16 %v3036
    %v3337 = vunpack.c.l.b16 %v3050
    %v3338 = vunpack.c.l.b16 %v3060
    %v3339 = vunpack.c.l.b16 %v3074
    %v3340 = vunpack.c.l.b16 %v3084
    %v3341 = vunpack.c.l.b16 %v3098
    %v3342 = vunpack.c.l.b16 %v3108
    %v3343 = vunpack.c.l.b16 %v3122
    %v3344 = vunpack.c.l.b16 %v3132
    %v3345 = vunpack.c.l.b16 %v3146
    %v3346 = vunpack.c.l.b16 %v3156
    %v3347 = vunpack.c.l.b16 %v3170
    %v3348 = vunpack.c.l.b16 %v3180
    %v3349 = vunpack.c.l.b16 %v3194
    %v3350 = vunpack.c.l.b16 %v3204
    %v3351 = vunpack.c.l.b16 %v3218
    %v3352 = vunpack.c.l.b16 %v3228
    %v3353 = vunpack.c.l.b16 %v3242
    %v3354 = vunpack.c.l.b16 %v3252
    %v3355 = vunpack.c.l.b16 %v3266
    %v3356 = vunpack.c.l.b16 %v3276
    %v3357 = vpack.c.b16 %v3294, %v3293
    %v3358 = vpack.c.b16 %v3296, %v3295
    %v3359 = vpack.c.b16 %v3298, %v3297
    %v3360 = vpack.c.b16 %v3300, %v3299
    %v3361 = vpack.c.b16 %v3302, %v3301
    %v3362 = vpack.c.b16 %v3304, %v3303
    %v3363 = vpack.c.b16 %v3306, %v3305
    %v3364 = vpack.c.b16 %v3308, %v3307
    %v3365 = vpack.c.b16 %v3310, %v3309
    %v3366 = vpack.c.b16 %v3312, %v3311
    %v3367 = vpack.c.b16 %v3314, %v3313
    %v3368 = vpack.c.b16 %v3316, %v3315
    %v3369 = vpack.c.b16 %v3318, %v3317
    %v3370 = vpack.c.b16 %v3320, %v3319
    %v3371 = vpack.c.b16 %v3322, %v3321
    %v3372 = vpack.c.b16 %v3324, %v3323
    %v3373 = vpack.c.b16 %v3326, %v3325
    %v3374 = vpack.c.b16 %v3328, %v3327
    %v3375 = vpack.c.b16 %v3330, %v3329
    %v3376 = vpack.c.b16 %v3332, %v3331
    %v3377 = vpack.c.b16 %v3334, %v3333
    %v3378 = vpack.c.b16 %v3336, %v3335
    %v3379 = vpack.c.b16 %v3338, %v3337
    %v3380 = vpack.c.b16 %v3340, %v3339
    %v3381 = vpack.c.b16 %v3342, %v3341
    %v3382 = vpack.c.b16 %v3344, %v3343
    %v3383 = vpack.c.b16 %v3346, %v3345
    %v3384 = vpack.c.b16 %v3348, %v3347
    %v3385 = vpack.c.b16 %v3350, %v3349
    %v3386 = vpack.c.b16 %v3352, %v3351
    %v3387 = vpack.c.b16 %v3354, %v3353
    %v3388 = vpack.c.b16 %v3356, %v3355
    %v3437 = vunpack.c.l.b16 %v3277
    %v3438 = vunpack.c.l.b16 %v3278
    %v3439 = vunpack.c.l.b16 %v3279
    %v3440 = vunpack.c.l.b16 %v3280
    %v3441 = vunpack.c.l.b16 %v3281
    %v3442 = vunpack.c.l.b16 %v3282
    %v3443 = vunpack.c.l.b16 %v3283
    %v3444 = vunpack.c.l.b16 %v3284
    %v3445 = vunpack.c.l.b16 %v3285
    %v3446 = vunpack.c.l.b16 %v3286
    %v3447 = vunpack.c.l.b16 %v3287
    %v3448 = vunpack.c.l.b16 %v3288
    %v3449 = vunpack.c.l.b16 %v3289
    %v3450 = vunpack.c.l.b16 %v3290
    %v3451 = vunpack.c.l.b16 %v3291
    %v3452 = vunpack.c.l.b16 %v3292
    %v3453 = vpack.c.b16 %v3438, %v3437
    %v3454 = vpack.c.b16 %v3440, %v3439
    %v3455 = vpack.c.b16 %v3442, %v3441
    %v3456 = vpack.c.b16 %v3444, %v3443
    %v3457 = vpack.c.b16 %v3446, %v3445
    %v3458 = vpack.c.b16 %v3448, %v3447
    %v3459 = vpack.c.b16 %v3450, %v3449
    %v3460 = vpack.c.b16 %v3452, %v3451
    %3469 = vmatprep.subr.bf16.mxu0 0
    %3470 = vmatpush1.bf16.msra.mxu0 %v3460
    %3471 = vmatprep.subr.bf16.mxu0 0
    %3472 = vmatpush1.bf16.msra.mxu0 %v3459
    %3473 = vmatprep.subr.bf16.mxu0 0
    %3474 = vmatpush1.bf16.msra.mxu0 %v3458
    %3475 = vmatprep.subr.bf16.mxu0 0
    %3476 = vmatpush1.bf16.msra.mxu0 %v3457
    %3477 = vmatprep.subr.bf16.mxu0 0
    %3478 = vmatpush1.bf16.msra.mxu0 %v3456
    %3479 = vmatprep.subr.bf16.mxu0 0
    %3480 = vmatpush1.bf16.msra.mxu0 %v3455
    %3481 = vmatprep.subr.bf16.mxu0 0
    %3482 = vmatpush1.bf16.msra.mxu0 %v3454
    %3483 = vmatprep.subr.bf16.mxu0 0
    %3484 = vmatpush1.bf16.msra.mxu0 %v3453
    %3485 = vmatprep.subr.bf16.mxu0 0
    %3486 = vmatpush2.bf16.msra.mxu0 0
    %3487 = vmatprep.subr.bf16.mxu0 0
    %3488 = vmatpush2.bf16.msra.mxu0 0
    %3489 = vmatprep.subr.bf16.mxu0 0
    %3490 = vmatpush2.bf16.msra.mxu0 0
    %3491 = vmatprep.subr.bf16.mxu0 0
    %3492 = vmatpush2.bf16.msra.mxu0 0
    %3493 = vmatprep.subr.bf16.mxu0 0
    %3494 = vmatpush2.bf16.msra.mxu0 0
    %3495 = vmatprep.subr.bf16.mxu0 0
    %3496 = vmatpush2.bf16.msra.mxu0 0
    %3497 = vmatprep.subr.bf16.mxu0 0
    %3498 = vmatpush2.bf16.msra.mxu0 0
    %3499 = vmatprep.subr.bf16.mxu0 0
    %3500 = vmatpush2.bf16.msra.mxu0 0
    %3501 = vmatprep.mubr.bf16.mxu0 0
    %3502 = vmatmul.mubr.bf16.gmra.mxu0 %v3357
    %v3503 = vpop.f32.mrf.mxu0
    %v3504 = vadd.f32 0.0, %v3503
    %v3505 = vpop.f32.mrf.mxu0
    %v3506 = vpop.f32.mrf.mxu0
    %v3507 = vadd.f32 0.0, %v3506
    %v3508 = vpop.f32.mrf.mxu0
    %3509 = vmatprep.mubr.bf16.mxu0 0
    %3510 = vmatmul.mubr.bf16.gmra.mxu0 %v3358
    %v3511 = vpop.f32.mrf.mxu0
    %v3512 = vadd.f32 0.0, %v3511
    %v3513 = vpop.f32.mrf.mxu0
    %v3514 = vpop.f32.mrf.mxu0
    %v3515 = vadd.f32 0.0, %v3514
    %v3516 = vpop.f32.mrf.mxu0
    %3517 = vmatprep.mubr.bf16.mxu0 0
    %3518 = vmatmul.mubr.bf16.gmra.mxu0 %v3359
    %v3519 = vpop.f32.mrf.mxu0
    %v3520 = vadd.f32 0.0, %v3519
    %v3521 = vpop.f32.mrf.mxu0
    %v3522 = vpop.f32.mrf.mxu0
    %v3523 = vadd.f32 0.0, %v3522
    %v3524 = vpop.f32.mrf.mxu0
    %3525 = vmatprep.mubr.bf16.mxu0 0
    %3526 = vmatmul.mubr.bf16.gmra.mxu0 %v3360
    %v3527 = vpop.f32.mrf.mxu0
    %v3528 = vadd.f32 0.0, %v3527
    %v3529 = vpop.f32.mrf.mxu0
    %v3530 = vpop.f32.mrf.mxu0
    %v3531 = vadd.f32 0.0, %v3530
    %v3532 = vpop.f32.mrf.mxu0
    %3533 = vmatprep.mubr.bf16.mxu0 0
    %3534 = vmatmul.mubr.bf16.gmra.mxu0 %v3361
    %v3535 = vpop.f32.mrf.mxu0
    %v3536 = vadd.f32 0.0, %v3535
    %v3537 = vpop.f32.mrf.mxu0
    %v3538 = vpop.f32.mrf.mxu0
    %v3539 = vadd.f32 0.0, %v3538
    %v3540 = vpop.f32.mrf.mxu0
    %3541 = vmatprep.mubr.bf16.mxu0 0
    %3542 = vmatmul.mubr.bf16.gmra.mxu0 %v3362
    %v3543 = vpop.f32.mrf.mxu0
    %v3544 = vadd.f32 0.0, %v3543
    %v3545 = vpop.f32.mrf.mxu0
    %v3546 = vpop.f32.mrf.mxu0
    %v3547 = vadd.f32 0.0, %v3546
    %v3548 = vpop.f32.mrf.mxu0
    %3549 = vmatprep.mubr.bf16.mxu0 0
    %3550 = vmatmul.mubr.bf16.gmra.mxu0 %v3363
    %v3551 = vpop.f32.mrf.mxu0
    %v3552 = vadd.f32 0.0, %v3551
    %v3553 = vpop.f32.mrf.mxu0
    %v3554 = vpop.f32.mrf.mxu0
    %v3555 = vadd.f32 0.0, %v3554
    %v3556 = vpop.f32.mrf.mxu0
    %3557 = vmatprep.mubr.bf16.mxu0 0
    %3558 = vmatmul.mubr.bf16.gmra.mxu0 %v3364
    %v3559 = vpop.f32.mrf.mxu0
    %v3560 = vadd.f32 0.0, %v3559
    %v3561 = vpop.f32.mrf.mxu0
    %v3562 = vpop.f32.mrf.mxu0
    %v3563 = vadd.f32 0.0, %v3562
    %v3564 = vpop.f32.mrf.mxu0
    %3565 = vmatprep.mubr.bf16.mxu0 0
    %3566 = vmatmul.mubr.bf16.gmra.mxu0 %v3365
    %v3567 = vpop.f32.mrf.mxu0
    %v3568 = vadd.f32 0.0, %v3567
    %v3569 = vpop.f32.mrf.mxu0
    %v3570 = vpop.f32.mrf.mxu0
    %v3571 = vadd.f32 0.0, %v3570
    %v3572 = vpop.f32.mrf.mxu0
    %3573 = vmatprep.mubr.bf16.mxu0 0
    %3574 = vmatmul.mubr.bf16.gmra.mxu0 %v3366
    %v3575 = vpop.f32.mrf.mxu0
    %v3576 = vadd.f32 0.0, %v3575
    %v3577 = vpop.f32.mrf.mxu0
    %v3578 = vpop.f32.mrf.mxu0
    %v3579 = vadd.f32 0.0, %v3578
    %v3580 = vpop.f32.mrf.mxu0
    %3581 = vmatprep.mubr.bf16.mxu0 0
    %3582 = vmatmul.mubr.bf16.gmra.mxu0 %v3367
    %v3583 = vpop.f32.mrf.mxu0
    %v3584 = vadd.f32 0.0, %v3583
    %v3585 = vpop.f32.mrf.mxu0
    %v3586 = vpop.f32.mrf.mxu0
    %v3587 = vadd.f32 0.0, %v3586
    %v3588 = vpop.f32.mrf.mxu0
    %3589 = vmatprep.mubr.bf16.mxu0 0
    %3590 = vmatmul.mubr.bf16.gmra.mxu0 %v3368
    %v3591 = vpop.f32.mrf.mxu0
    %v3592 = vadd.f32 0.0, %v3591
    %v3593 = vpop.f32.mrf.mxu0
    %v3594 = vpop.f32.mrf.mxu0
    %v3595 = vadd.f32 0.0, %v3594
    %v3596 = vpop.f32.mrf.mxu0
    %3597 = vmatprep.mubr.bf16.mxu0 0
    %3598 = vmatmul.mubr.bf16.gmra.mxu0 %v3369
    %v3599 = vpop.f32.mrf.mxu0
    %v3600 = vadd.f32 0.0, %v3599
    %v3601 = vpop.f32.mrf.mxu0
    %v3602 = vpop.f32.mrf.mxu0
    %v3603 = vadd.f32 0.0, %v3602
    %v3604 = vpop.f32.mrf.mxu0
    %3605 = vmatprep.mubr.bf16.mxu0 0
    %3606 = vmatmul.mubr.bf16.gmra.mxu0 %v3370
    %v3607 = vpop.f32.mrf.mxu0
    %v3608 = vadd.f32 0.0, %v3607
    %v3609 = vpop.f32.mrf.mxu0
    %v3610 = vpop.f32.mrf.mxu0
    %v3611 = vadd.f32 0.0, %v3610
    %v3612 = vpop.f32.mrf.mxu0
    %3613 = vmatprep.mubr.bf16.mxu0 0
    %3614 = vmatmul.mubr.bf16.gmra.mxu0 %v3371
    %v3615 = vpop.f32.mrf.mxu0
    %v3616 = vadd.f32 0.0, %v3615
    %v3617 = vpop.f32.mrf.mxu0
    %v3618 = vpop.f32.mrf.mxu0
    %v3619 = vadd.f32 0.0, %v3618
    %v3620 = vpop.f32.mrf.mxu0
    %3621 = vmatprep.mubr.bf16.mxu0 0
    %3622 = vmatmul.mubr.bf16.gmra.mxu0 %v3372
    %v3623 = vpop.f32.mrf.mxu0
    %v3624 = vadd.f32 0.0, %v3623
    %v3625 = vpop.f32.mrf.mxu0
    %v3626 = vpop.f32.mrf.mxu0
    %v3627 = vadd.f32 0.0, %v3626
    %v3628 = vpop.f32.mrf.mxu0
    %3629 = vmatprep.mubr.bf16.mxu0 0
    %3630 = vmatmul.mubr.bf16.gmra.mxu0 %v3373
    %v3631 = vpop.f32.mrf.mxu0
    %v3632 = vadd.f32 0.0, %v3631
    %v3633 = vpop.f32.mrf.mxu0
    %v3634 = vpop.f32.mrf.mxu0
    %v3635 = vadd.f32 0.0, %v3634
    %v3636 = vpop.f32.mrf.mxu0
    %3637 = vmatprep.mubr.bf16.mxu0 0
    %3638 = vmatmul.mubr.bf16.gmra.mxu0 %v3374
    %v3639 = vpop.f32.mrf.mxu0
    %v3640 = vadd.f32 0.0, %v3639
    %v3641 = vpop.f32.mrf.mxu0
    %v3642 = vpop.f32.mrf.mxu0
    %v3643 = vadd.f32 0.0, %v3642
    %v3644 = vpop.f32.mrf.mxu0
    %3645 = vmatprep.mubr.bf16.mxu0 0
    %3646 = vmatmul.mubr.bf16.gmra.mxu0 %v3375
    %v3647 = vpop.f32.mrf.mxu0
    %v3648 = vadd.f32 0.0, %v3647
    %v3649 = vpop.f32.mrf.mxu0
    %v3650 = vpop.f32.mrf.mxu0
    %v3651 = vadd.f32 0.0, %v3650
    %v3652 = vpop.f32.mrf.mxu0
    %3653 = vmatprep.mubr.bf16.mxu0 0
    %3654 = vmatmul.mubr.bf16.gmra.mxu0 %v3376
    %v3655 = vpop.f32.mrf.mxu0
    %v3656 = vadd.f32 0.0, %v3655
    %v3657 = vpop.f32.mrf.mxu0
    %v3658 = vpop.f32.mrf.mxu0
    %v3659 = vadd.f32 0.0, %v3658
    %v3660 = vpop.f32.mrf.mxu0
    %3661 = vmatprep.mubr.bf16.mxu0 0
    %3662 = vmatmul.mubr.bf16.gmra.mxu0 %v3377
    %v3663 = vpop.f32.mrf.mxu0
    %v3664 = vadd.f32 0.0, %v3663
    %v3665 = vpop.f32.mrf.mxu0
    %v3666 = vpop.f32.mrf.mxu0
    %v3667 = vadd.f32 0.0, %v3666
    %v3668 = vpop.f32.mrf.mxu0
    %3669 = vmatprep.mubr.bf16.mxu0 0
    %3670 = vmatmul.mubr.bf16.gmra.mxu0 %v3378
    %v3671 = vpop.f32.mrf.mxu0
    %v3672 = vadd.f32 0.0, %v3671
    %v3673 = vpop.f32.mrf.mxu0
    %v3674 = vpop.f32.mrf.mxu0
    %v3675 = vadd.f32 0.0, %v3674
    %v3676 = vpop.f32.mrf.mxu0
    %3677 = vmatprep.mubr.bf16.mxu0 0
    %3678 = vmatmul.mubr.bf16.gmra.mxu0 %v3379
    %v3679 = vpop.f32.mrf.mxu0
    %v3680 = vadd.f32 0.0, %v3679
    %v3681 = vpop.f32.mrf.mxu0
    %v3682 = vpop.f32.mrf.mxu0
    %v3683 = vadd.f32 0.0, %v3682
    %v3684 = vpop.f32.mrf.mxu0
    %3685 = vmatprep.mubr.bf16.mxu0 0
    %3686 = vmatmul.mubr.bf16.gmra.mxu0 %v3380
    %v3687 = vpop.f32.mrf.mxu0
    %v3688 = vadd.f32 0.0, %v3687
    %v3689 = vpop.f32.mrf.mxu0
    %v3690 = vpop.f32.mrf.mxu0
    %v3691 = vadd.f32 0.0, %v3690
    %v3692 = vpop.f32.mrf.mxu0
    %3693 = vmatprep.mubr.bf16.mxu0 0
    %3694 = vmatmul.mubr.bf16.gmra.mxu0 %v3381
    %v3695 = vpop.f32.mrf.mxu0
    %v3696 = vadd.f32 0.0, %v3695
    %v3697 = vpop.f32.mrf.mxu0
    %v3698 = vpop.f32.mrf.mxu0
    %v3699 = vadd.f32 0.0, %v3698
    %v3700 = vpop.f32.mrf.mxu0
    %3701 = vmatprep.mubr.bf16.mxu0 0
    %3702 = vmatmul.mubr.bf16.gmra.mxu0 %v3382
    %v3703 = vpop.f32.mrf.mxu0
    %v3704 = vadd.f32 0.0, %v3703
    %v3705 = vpop.f32.mrf.mxu0
    %v3706 = vpop.f32.mrf.mxu0
    %v3707 = vadd.f32 0.0, %v3706
    %v3708 = vpop.f32.mrf.mxu0
    %3709 = vmatprep.mubr.bf16.mxu0 0
    %3710 = vmatmul.mubr.bf16.gmra.mxu0 %v3383
    %v3711 = vpop.f32.mrf.mxu0
    %v3712 = vadd.f32 0.0, %v3711
    %v3713 = vpop.f32.mrf.mxu0
    %v3714 = vpop.f32.mrf.mxu0
    %v3715 = vadd.f32 0.0, %v3714
    %v3716 = vpop.f32.mrf.mxu0
    %3717 = vmatprep.mubr.bf16.mxu0 0
    %3718 = vmatmul.mubr.bf16.gmra.mxu0 %v3384
    %v3719 = vpop.f32.mrf.mxu0
    %v3720 = vadd.f32 0.0, %v3719
    %v3721 = vpop.f32.mrf.mxu0
    %v3722 = vpop.f32.mrf.mxu0
    %v3723 = vadd.f32 0.0, %v3722
    %v3724 = vpop.f32.mrf.mxu0
    %3725 = vmatprep.mubr.bf16.mxu0 0
    %3726 = vmatmul.mubr.bf16.gmra.mxu0 %v3385
    %v3727 = vpop.f32.mrf.mxu0
    %v3728 = vadd.f32 0.0, %v3727
    %v3729 = vpop.f32.mrf.mxu0
    %v3730 = vpop.f32.mrf.mxu0
    %v3731 = vadd.f32 0.0, %v3730
    %v3732 = vpop.f32.mrf.mxu0
    %3733 = vmatprep.mubr.bf16.mxu0 0
    %3734 = vmatmul.mubr.bf16.gmra.mxu0 %v3386
    %v3735 = vpop.f32.mrf.mxu0
    %v3736 = vadd.f32 0.0, %v3735
    %v3737 = vpop.f32.mrf.mxu0
    %v3738 = vpop.f32.mrf.mxu0
    %v3739 = vadd.f32 0.0, %v3738
    %v3740 = vpop.f32.mrf.mxu0
    %3741 = vmatprep.mubr.bf16.mxu0 0
    %3742 = vmatmul.mubr.bf16.gmra.mxu0 %v3387
    %v3743 = vpop.f32.mrf.mxu0
    %v3744 = vadd.f32 0.0, %v3743
    %v3745 = vpop.f32.mrf.mxu0
    %v3746 = vpop.f32.mrf.mxu0
    %v3747 = vadd.f32 0.0, %v3746
    %v3748 = vpop.f32.mrf.mxu0
    %3749 = vmatprep.mubr.bf16.mxu0 0
    %3750 = vmatmul.mubr.bf16.gmra.mxu0 %v3388
    %v3751 = vpop.f32.mrf.mxu0
    %v3752 = vadd.f32 0.0, %v3751
    %v3753 = vpop.f32.mrf.mxu0
    %v3754 = vpop.f32.mrf.mxu0
    %v3755 = vadd.f32 0.0, %v3754
    %v3756 = vpop.f32.mrf.mxu0
    %3757 = vdwg.mxu0
    %v3822 = vunpack.c.l.b16 %v2394
    %v3823 = vunpack.c.l.b16 %v2395
    %v3824 = vunpack.c.l.b16 %v2396
    %v3825 = vunpack.c.l.b16 %v2397
    %v3826 = vunpack.c.l.b16 %v2398
    %v3827 = vunpack.c.l.b16 %v2399
    %v3828 = vunpack.c.l.b16 %v2400
    %v3829 = vunpack.c.l.b16 %v2401
    %v3830 = vunpack.c.l.b16 %v2402
    %v3831 = vunpack.c.l.b16 %v2403
    %v3832 = vunpack.c.l.b16 %v2404
    %v3833 = vunpack.c.l.b16 %v2405
    %v3834 = vunpack.c.l.b16 %v2406
    %v3835 = vunpack.c.l.b16 %v2407
    %v3836 = vunpack.c.l.b16 %v2408
    %v3837 = vunpack.c.l.b16 %v2409
    %v3838 = vunpack.c.l.b16 %v2410
    %v3839 = vunpack.c.l.b16 %v2411
    %v3840 = vunpack.c.l.b16 %v2412
    %v3841 = vunpack.c.l.b16 %v2413
    %v3842 = vunpack.c.l.b16 %v2414
    %v3843 = vunpack.c.l.b16 %v2415
    %v3844 = vunpack.c.l.b16 %v2416
    %v3845 = vunpack.c.l.b16 %v2417
    %v3846 = vunpack.c.l.b16 %v2418
    %v3847 = vunpack.c.l.b16 %v2419
    %v3848 = vunpack.c.l.b16 %v2420
    %v3849 = vunpack.c.l.b16 %v2421
    %v3850 = vunpack.c.l.b16 %v2422
    %v3851 = vunpack.c.l.b16 %v2423
    %v3852 = vunpack.c.l.b16 %v2424
    %v3853 = vunpack.c.l.b16 %v2425
    %v3854 = vunpack.c.l.b16 %v2426
    %v3855 = vunpack.c.l.b16 %v2427
    %v3856 = vunpack.c.l.b16 %v2428
    %v3857 = vunpack.c.l.b16 %v2429
    %v3858 = vunpack.c.l.b16 %v2430
    %v3859 = vunpack.c.l.b16 %v2431
    %v3860 = vunpack.c.l.b16 %v2432
    %v3861 = vunpack.c.l.b16 %v2433
    %v3862 = vunpack.c.l.b16 %v2434
    %v3863 = vunpack.c.l.b16 %v2435
    %v3864 = vunpack.c.l.b16 %v2436
    %v3865 = vunpack.c.l.b16 %v2437
    %v3866 = vunpack.c.l.b16 %v2438
    %v3867 = vunpack.c.l.b16 %v2439
    %v3868 = vunpack.c.l.b16 %v2440
    %v3869 = vunpack.c.l.b16 %v2441
    %v3870 = vunpack.c.l.b16 %v2442
    %v3871 = vunpack.c.l.b16 %v2443
    %v3872 = vunpack.c.l.b16 %v2444
    %v3873 = vunpack.c.l.b16 %v2445
    %v3874 = vunpack.c.l.b16 %v2446
    %v3875 = vunpack.c.l.b16 %v2447
    %v3876 = vunpack.c.l.b16 %v2448
    %v3877 = vunpack.c.l.b16 %v2449
    %v3878 = vunpack.c.l.b16 %v2450
    %v3879 = vunpack.c.l.b16 %v2451
    %v3880 = vunpack.c.l.b16 %v2452
    %v3881 = vunpack.c.l.b16 %v2453
    %v3882 = vunpack.c.l.b16 %v2454
    %v3883 = vunpack.c.l.b16 %v2455
    %v3884 = vunpack.c.l.b16 %v2456
    %v3885 = vunpack.c.l.b16 %v2457
    %v3886 = vpack.c.b16 %v3823, %v3822
    %v3887 = vpack.c.b16 %v3825, %v3824
    %v3888 = vpack.c.b16 %v3827, %v3826
    %v3889 = vpack.c.b16 %v3829, %v3828
    %v3890 = vpack.c.b16 %v3831, %v3830
    %v3891 = vpack.c.b16 %v3833, %v3832
    %v3892 = vpack.c.b16 %v3835, %v3834
    %v3893 = vpack.c.b16 %v3837, %v3836
    %v3894 = vpack.c.b16 %v3839, %v3838
    %v3895 = vpack.c.b16 %v3841, %v3840
    %v3896 = vpack.c.b16 %v3843, %v3842
    %v3897 = vpack.c.b16 %v3845, %v3844
    %v3898 = vpack.c.b16 %v3847, %v3846
    %v3899 = vpack.c.b16 %v3849, %v3848
    %v3900 = vpack.c.b16 %v3851, %v3850
    %v3901 = vpack.c.b16 %v3853, %v3852
    %v3902 = vpack.c.b16 %v3855, %v3854
    %v3903 = vpack.c.b16 %v3857, %v3856
    %v3904 = vpack.c.b16 %v3859, %v3858
    %v3905 = vpack.c.b16 %v3861, %v3860
    %v3906 = vpack.c.b16 %v3863, %v3862
    %v3907 = vpack.c.b16 %v3865, %v3864
    %v3908 = vpack.c.b16 %v3867, %v3866
    %v3909 = vpack.c.b16 %v3869, %v3868
    %v3910 = vpack.c.b16 %v3871, %v3870
    %v3911 = vpack.c.b16 %v3873, %v3872
    %v3912 = vpack.c.b16 %v3875, %v3874
    %v3913 = vpack.c.b16 %v3877, %v3876
    %v3914 = vpack.c.b16 %v3879, %v3878
    %v3915 = vpack.c.b16 %v3881, %v3880
    %v3916 = vpack.c.b16 %v3883, %v3882
    %v3917 = vpack.c.b16 %v3885, %v3884
    %v3966 = vunpack.c.l.b16 %v2458
    %v3967 = vunpack.c.l.b16 %v2459
    %v3968 = vunpack.c.l.b16 %v2460
    %v3969 = vunpack.c.l.b16 %v2461
    %v3970 = vunpack.c.l.b16 %v2462
    %v3971 = vunpack.c.l.b16 %v2463
    %v3972 = vunpack.c.l.b16 %v2464
    %v3973 = vunpack.c.l.b16 %v2465
    %v3974 = vunpack.c.l.b16 %v2466
    %v3975 = vunpack.c.l.b16 %v2467
    %v3976 = vunpack.c.l.b16 %v2468
    %v3977 = vunpack.c.l.b16 %v2469
    %v3978 = vunpack.c.l.b16 %v2470
    %v3979 = vunpack.c.l.b16 %v2471
    %v3980 = vunpack.c.l.b16 %v2472
    %v3981 = vunpack.c.l.b16 %v2473
    %v3982 = vpack.c.b16 %v3967, %v3966
    %v3983 = vpack.c.b16 %v3969, %v3968
    %v3984 = vpack.c.b16 %v3971, %v3970
    %v3985 = vpack.c.b16 %v3973, %v3972
    %v3986 = vpack.c.b16 %v3975, %v3974
    %v3987 = vpack.c.b16 %v3977, %v3976
    %v3988 = vpack.c.b16 %v3979, %v3978
    %v3989 = vpack.c.b16 %v3981, %v3980
    %3998 = vmatprep.subr.bf16.mxu0 0
    %3999 = vmatpush1.bf16.msra.mxu0 %v3989
    %4000 = vmatprep.subr.bf16.mxu0 0
    %4001 = vmatpush1.bf16.msra.mxu0 %v3988
    %4002 = vmatprep.subr.bf16.mxu0 0
    %4003 = vmatpush1.bf16.msra.mxu0 %v3987
    %4004 = vmatprep.subr.bf16.mxu0 0
    %4005 = vmatpush1.bf16.msra.mxu0 %v3986
    %4006 = vmatprep.subr.bf16.mxu0 0
    %4007 = vmatpush1.bf16.msra.mxu0 %v3985
    %4008 = vmatprep.subr.bf16.mxu0 0
    %4009 = vmatpush1.bf16.msra.mxu0 %v3984
    %4010 = vmatprep.subr.bf16.mxu0 0
    %4011 = vmatpush1.bf16.msra.mxu0 %v3983
    %4012 = vmatprep.subr.bf16.mxu0 0
    %4013 = vmatpush1.bf16.msra.mxu0 %v3982
    %4014 = vmatprep.subr.bf16.mxu0 0
    %4015 = vmatpush2.bf16.msra.mxu0 0
    %4016 = vmatprep.subr.bf16.mxu0 0
    %4017 = vmatpush2.bf16.msra.mxu0 0
    %4018 = vmatprep.subr.bf16.mxu0 0
    %4019 = vmatpush2.bf16.msra.mxu0 0
    %4020 = vmatprep.subr.bf16.mxu0 0
    %4021 = vmatpush2.bf16.msra.mxu0 0
    %4022 = vmatprep.subr.bf16.mxu0 0
    %4023 = vmatpush2.bf16.msra.mxu0 0
    %4024 = vmatprep.subr.bf16.mxu0 0
    %4025 = vmatpush2.bf16.msra.mxu0 0
    %4026 = vmatprep.subr.bf16.mxu0 0
    %4027 = vmatpush2.bf16.msra.mxu0 0
    %4028 = vmatprep.subr.bf16.mxu0 0
    %4029 = vmatpush2.bf16.msra.mxu0 0
    %4030 = vmatprep.mubr.bf16.mxu0 0
    %4031 = vmatmul.mubr.bf16.gmra.mxu0 %v3886
    %v4032 = vpop.f32.mrf.mxu0
    %v4033 = vadd.f32 %v3504, %v4032
    %v4034 = vpop.f32.mrf.mxu0
    %v4035 = vpop.f32.mrf.mxu0
    %v4036 = vadd.f32 %v3507, %v4035
    %v4037 = vpop.f32.mrf.mxu0
    %4038 = vmatprep.mubr.bf16.mxu0 0
    %4039 = vmatmul.mubr.bf16.gmra.mxu0 %v3887
    %v4040 = vpop.f32.mrf.mxu0
    %v4041 = vadd.f32 %v3512, %v4040
    %v4042 = vpop.f32.mrf.mxu0
    %v4043 = vpop.f32.mrf.mxu0
    %v4044 = vadd.f32 %v3515, %v4043
    %v4045 = vpop.f32.mrf.mxu0
    %4046 = vmatprep.mubr.bf16.mxu0 0
    %4047 = vmatmul.mubr.bf16.gmra.mxu0 %v3888
    %v4048 = vpop.f32.mrf.mxu0
    %v4049 = vadd.f32 %v3520, %v4048
    %v4050 = vpop.f32.mrf.mxu0
    %v4051 = vpop.f32.mrf.mxu0
    %v4052 = vadd.f32 %v3523, %v4051
    %v4053 = vpop.f32.mrf.mxu0
    %4054 = vmatprep.mubr.bf16.mxu0 0
    %4055 = vmatmul.mubr.bf16.gmra.mxu0 %v3889
    %v4056 = vpop.f32.mrf.mxu0
    %v4057 = vadd.f32 %v3528, %v4056
    %v4058 = vpop.f32.mrf.mxu0
    %v4059 = vpop.f32.mrf.mxu0
    %v4060 = vadd.f32 %v3531, %v4059
    %v4061 = vpop.f32.mrf.mxu0
    %4062 = vmatprep.mubr.bf16.mxu0 0
    %4063 = vmatmul.mubr.bf16.gmra.mxu0 %v3890
    %v4064 = vpop.f32.mrf.mxu0
    %v4065 = vadd.f32 %v3536, %v4064
    %v4066 = vpop.f32.mrf.mxu0
    %v4067 = vpop.f32.mrf.mxu0
    %v4068 = vadd.f32 %v3539, %v4067
    %v4069 = vpop.f32.mrf.mxu0
    %4070 = vmatprep.mubr.bf16.mxu0 0
    %4071 = vmatmul.mubr.bf16.gmra.mxu0 %v3891
    %v4072 = vpop.f32.mrf.mxu0
    %v4073 = vadd.f32 %v3544, %v4072
    %v4074 = vpop.f32.mrf.mxu0
    %v4075 = vpop.f32.mrf.mxu0
    %v4076 = vadd.f32 %v3547, %v4075
    %v4077 = vpop.f32.mrf.mxu0
    %4078 = vmatprep.mubr.bf16.mxu0 0
    %4079 = vmatmul.mubr.bf16.gmra.mxu0 %v3892
    %v4080 = vpop.f32.mrf.mxu0
    %v4081 = vadd.f32 %v3552, %v4080
    %v4082 = vpop.f32.mrf.mxu0
    %v4083 = vpop.f32.mrf.mxu0
    %v4084 = vadd.f32 %v3555, %v4083
    %v4085 = vpop.f32.mrf.mxu0
    %4086 = vmatprep.mubr.bf16.mxu0 0
    %4087 = vmatmul.mubr.bf16.gmra.mxu0 %v3893
    %v4088 = vpop.f32.mrf.mxu0
    %v4089 = vadd.f32 %v3560, %v4088
    %v4090 = vpop.f32.mrf.mxu0
    %v4091 = vpop.f32.mrf.mxu0
    %v4092 = vadd.f32 %v3563, %v4091
    %v4093 = vpop.f32.mrf.mxu0
    %4094 = vmatprep.mubr.bf16.mxu0 0
    %4095 = vmatmul.mubr.bf16.gmra.mxu0 %v3894
    %v4096 = vpop.f32.mrf.mxu0
    %v4097 = vadd.f32 %v3568, %v4096
    %v4098 = vpop.f32.mrf.mxu0
    %v4099 = vpop.f32.mrf.mxu0
    %v4100 = vadd.f32 %v3571, %v4099
    %v4101 = vpop.f32.mrf.mxu0
    %4102 = vmatprep.mubr.bf16.mxu0 0
    %4103 = vmatmul.mubr.bf16.gmra.mxu0 %v3895
    %v4104 = vpop.f32.mrf.mxu0
    %v4105 = vadd.f32 %v3576, %v4104
    %v4106 = vpop.f32.mrf.mxu0
    %v4107 = vpop.f32.mrf.mxu0
    %v4108 = vadd.f32 %v3579, %v4107
    %v4109 = vpop.f32.mrf.mxu0
    %4110 = vmatprep.mubr.bf16.mxu0 0
    %4111 = vmatmul.mubr.bf16.gmra.mxu0 %v3896
    %v4112 = vpop.f32.mrf.mxu0
    %v4113 = vadd.f32 %v3584, %v4112
    %v4114 = vpop.f32.mrf.mxu0
    %v4115 = vpop.f32.mrf.mxu0
    %v4116 = vadd.f32 %v3587, %v4115
    %v4117 = vpop.f32.mrf.mxu0
    %4118 = vmatprep.mubr.bf16.mxu0 0
    %4119 = vmatmul.mubr.bf16.gmra.mxu0 %v3897
    %v4120 = vpop.f32.mrf.mxu0
    %v4121 = vadd.f32 %v3592, %v4120
    %v4122 = vpop.f32.mrf.mxu0
    %v4123 = vpop.f32.mrf.mxu0
    %v4124 = vadd.f32 %v3595, %v4123
    %v4125 = vpop.f32.mrf.mxu0
    %4126 = vmatprep.mubr.bf16.mxu0 0
    %4127 = vmatmul.mubr.bf16.gmra.mxu0 %v3898
    %v4128 = vpop.f32.mrf.mxu0
    %v4129 = vadd.f32 %v3600, %v4128
    %v4130 = vpop.f32.mrf.mxu0
    %v4131 = vpop.f32.mrf.mxu0
    %v4132 = vadd.f32 %v3603, %v4131
    %v4133 = vpop.f32.mrf.mxu0
    %4134 = vmatprep.mubr.bf16.mxu0 0
    %4135 = vmatmul.mubr.bf16.gmra.mxu0 %v3899
    %v4136 = vpop.f32.mrf.mxu0
    %v4137 = vadd.f32 %v3608, %v4136
    %v4138 = vpop.f32.mrf.mxu0
    %v4139 = vpop.f32.mrf.mxu0
    %v4140 = vadd.f32 %v3611, %v4139
    %v4141 = vpop.f32.mrf.mxu0
    %4142 = vmatprep.mubr.bf16.mxu0 0
    %4143 = vmatmul.mubr.bf16.gmra.mxu0 %v3900
    %v4144 = vpop.f32.mrf.mxu0
    %v4145 = vadd.f32 %v3616, %v4144
    %v4146 = vpop.f32.mrf.mxu0
    %v4147 = vpop.f32.mrf.mxu0
    %v4148 = vadd.f32 %v3619, %v4147
    %v4149 = vpop.f32.mrf.mxu0
    %4150 = vmatprep.mubr.bf16.mxu0 0
    %4151 = vmatmul.mubr.bf16.gmra.mxu0 %v3901
    %v4152 = vpop.f32.mrf.mxu0
    %v4153 = vadd.f32 %v3624, %v4152
    %v4154 = vpop.f32.mrf.mxu0
    %v4155 = vpop.f32.mrf.mxu0
    %v4156 = vadd.f32 %v3627, %v4155
    %v4157 = vpop.f32.mrf.mxu0
    %4158 = vmatprep.mubr.bf16.mxu0 0
    %4159 = vmatmul.mubr.bf16.gmra.mxu0 %v3902
    %v4160 = vpop.f32.mrf.mxu0
    %v4161 = vadd.f32 %v3632, %v4160
    %v4162 = vpop.f32.mrf.mxu0
    %v4163 = vpop.f32.mrf.mxu0
    %v4164 = vadd.f32 %v3635, %v4163
    %v4165 = vpop.f32.mrf.mxu0
    %4166 = vmatprep.mubr.bf16.mxu0 0
    %4167 = vmatmul.mubr.bf16.gmra.mxu0 %v3903
    %v4168 = vpop.f32.mrf.mxu0
    %v4169 = vadd.f32 %v3640, %v4168
    %v4170 = vpop.f32.mrf.mxu0
    %v4171 = vpop.f32.mrf.mxu0
    %v4172 = vadd.f32 %v3643, %v4171
    %v4173 = vpop.f32.mrf.mxu0
    %4174 = vmatprep.mubr.bf16.mxu0 0
    %4175 = vmatmul.mubr.bf16.gmra.mxu0 %v3904
    %v4176 = vpop.f32.mrf.mxu0
    %v4177 = vadd.f32 %v3648, %v4176
    %v4178 = vpop.f32.mrf.mxu0
    %v4179 = vpop.f32.mrf.mxu0
    %v4180 = vadd.f32 %v3651, %v4179
    %v4181 = vpop.f32.mrf.mxu0
    %4182 = vmatprep.mubr.bf16.mxu0 0
    %4183 = vmatmul.mubr.bf16.gmra.mxu0 %v3905
    %v4184 = vpop.f32.mrf.mxu0
    %v4185 = vadd.f32 %v3656, %v4184
    %v4186 = vpop.f32.mrf.mxu0
    %v4187 = vpop.f32.mrf.mxu0
    %v4188 = vadd.f32 %v3659, %v4187
    %v4189 = vpop.f32.mrf.mxu0
    %4190 = vmatprep.mubr.bf16.mxu0 0
    %4191 = vmatmul.mubr.bf16.gmra.mxu0 %v3906
    %v4192 = vpop.f32.mrf.mxu0
    %v4193 = vadd.f32 %v3664, %v4192
    %v4194 = vpop.f32.mrf.mxu0
    %v4195 = vpop.f32.mrf.mxu0
    %v4196 = vadd.f32 %v3667, %v4195
    %v4197 = vpop.f32.mrf.mxu0
    %4198 = vmatprep.mubr.bf16.mxu0 0
    %4199 = vmatmul.mubr.bf16.gmra.mxu0 %v3907
    %v4200 = vpop.f32.mrf.mxu0
    %v4201 = vadd.f32 %v3672, %v4200
    %v4202 = vpop.f32.mrf.mxu0
    %v4203 = vpop.f32.mrf.mxu0
    %v4204 = vadd.f32 %v3675, %v4203
    %v4205 = vpop.f32.mrf.mxu0
    %4206 = vmatprep.mubr.bf16.mxu0 0
    %4207 = vmatmul.mubr.bf16.gmra.mxu0 %v3908
    %v4208 = vpop.f32.mrf.mxu0
    %v4209 = vadd.f32 %v3680, %v4208
    %v4210 = vpop.f32.mrf.mxu0
    %v4211 = vpop.f32.mrf.mxu0
    %v4212 = vadd.f32 %v3683, %v4211
    %v4213 = vpop.f32.mrf.mxu0
    %4214 = vmatprep.mubr.bf16.mxu0 0
    %4215 = vmatmul.mubr.bf16.gmra.mxu0 %v3909
    %v4216 = vpop.f32.mrf.mxu0
    %v4217 = vadd.f32 %v3688, %v4216
    %v4218 = vpop.f32.mrf.mxu0
    %v4219 = vpop.f32.mrf.mxu0
    %v4220 = vadd.f32 %v3691, %v4219
    %v4221 = vpop.f32.mrf.mxu0
    %4222 = vmatprep.mubr.bf16.mxu0 0
    %4223 = vmatmul.mubr.bf16.gmra.mxu0 %v3910
    %v4224 = vpop.f32.mrf.mxu0
    %v4225 = vadd.f32 %v3696, %v4224
    %v4226 = vpop.f32.mrf.mxu0
    %v4227 = vpop.f32.mrf.mxu0
    %v4228 = vadd.f32 %v3699, %v4227
    %v4229 = vpop.f32.mrf.mxu0
    %4230 = vmatprep.mubr.bf16.mxu0 0
    %4231 = vmatmul.mubr.bf16.gmra.mxu0 %v3911
    %v4232 = vpop.f32.mrf.mxu0
    %v4233 = vadd.f32 %v3704, %v4232
    %v4234 = vpop.f32.mrf.mxu0
    %v4235 = vpop.f32.mrf.mxu0
    %v4236 = vadd.f32 %v3707, %v4235
    %v4237 = vpop.f32.mrf.mxu0
    %4238 = vmatprep.mubr.bf16.mxu0 0
    %4239 = vmatmul.mubr.bf16.gmra.mxu0 %v3912
    %v4240 = vpop.f32.mrf.mxu0
    %v4241 = vadd.f32 %v3712, %v4240
    %v4242 = vpop.f32.mrf.mxu0
    %v4243 = vpop.f32.mrf.mxu0
    %v4244 = vadd.f32 %v3715, %v4243
    %v4245 = vpop.f32.mrf.mxu0
    %4246 = vmatprep.mubr.bf16.mxu0 0
    %4247 = vmatmul.mubr.bf16.gmra.mxu0 %v3913
    %v4248 = vpop.f32.mrf.mxu0
    %v4249 = vadd.f32 %v3720, %v4248
    %v4250 = vpop.f32.mrf.mxu0
    %v4251 = vpop.f32.mrf.mxu0
    %v4252 = vadd.f32 %v3723, %v4251
    %v4253 = vpop.f32.mrf.mxu0
    %4254 = vmatprep.mubr.bf16.mxu0 0
    %4255 = vmatmul.mubr.bf16.gmra.mxu0 %v3914
    %v4256 = vpop.f32.mrf.mxu0
    %v4257 = vadd.f32 %v3728, %v4256
    %v4258 = vpop.f32.mrf.mxu0
    %v4259 = vpop.f32.mrf.mxu0
    %v4260 = vadd.f32 %v3731, %v4259
    %v4261 = vpop.f32.mrf.mxu0
    %4262 = vmatprep.mubr.bf16.mxu0 0
    %4263 = vmatmul.mubr.bf16.gmra.mxu0 %v3915
    %v4264 = vpop.f32.mrf.mxu0
    %v4265 = vadd.f32 %v3736, %v4264
    %v4266 = vpop.f32.mrf.mxu0
    %v4267 = vpop.f32.mrf.mxu0
    %v4268 = vadd.f32 %v3739, %v4267
    %v4269 = vpop.f32.mrf.mxu0
    %4270 = vmatprep.mubr.bf16.mxu0 0
    %4271 = vmatmul.mubr.bf16.gmra.mxu0 %v3916
    %v4272 = vpop.f32.mrf.mxu0
    %v4273 = vadd.f32 %v3744, %v4272
    %v4274 = vpop.f32.mrf.mxu0
    %v4275 = vpop.f32.mrf.mxu0
    %v4276 = vadd.f32 %v3747, %v4275
    %v4277 = vpop.f32.mrf.mxu0
    %4278 = vmatprep.mubr.bf16.mxu0 0
    %4279 = vmatmul.mubr.bf16.gmra.mxu0 %v3917
    %v4280 = vpop.f32.mrf.mxu0
    %v4281 = vadd.f32 %v3752, %v4280
    %v4282 = vpop.f32.mrf.mxu0
    %v4283 = vpop.f32.mrf.mxu0
    %v4284 = vadd.f32 %v3755, %v4283
    %v4285 = vpop.f32.mrf.mxu0
    %4286 = vdwg.mxu0
    %v4287 = vld [vmem:[#allocation2] sm:$0xe]
    %v4288 = vld [vmem:[#allocation2 + $0xc] sm:$0xe]
    %v4289 = vld [vmem:[#allocation2 + $0x18] sm:$0xe]
    %v4290 = vld [vmem:[#allocation2 + $0x24] sm:$0xe]
    %v4291 = vld [vmem:[#allocation2 + $0x30] sm:$0xe]
    %v4292 = vld [vmem:[#allocation2 + $0x3c] sm:$0xe]
    %v4293 = vld [vmem:[#allocation2 + $0x48] sm:$0xe]
    %v4294 = vld [vmem:[#allocation2 + $0x54] sm:$0xe]
    %v4295 = vld [vmem:[#allocation2 + $0x60] sm:$0xe]
    %v4296 = vld [vmem:[#allocation2 + $0x6c] sm:$0xe]
    %v4297 = vld [vmem:[#allocation2 + $0x78] sm:$0xe]
    %v4298 = vld [vmem:[#allocation2 + $0x84] sm:$0xe]
    %v4299 = vld [vmem:[#allocation2 + $0x90] sm:$0xe]
    %v4300 = vld [vmem:[#allocation2 + $0x9c] sm:$0xe]
    %v4301 = vld [vmem:[#allocation2 + $0xa8] sm:$0xe]
    %v4302 = vld [vmem:[#allocation2 + $0xb4] sm:$0xe]
    %v4303 = vld [vmem:[#allocation2 + $0xd8] sm:$0xe]
    %v4304 = vld [vmem:[#allocation2 + $0xe4] sm:$0xe]
    %v4305 = vld [vmem:[#allocation2 + $0xf0] sm:$0xe]
    %v4306 = vld [vmem:[#allocation2 + $0xfc] sm:$0xe]
    %v4307 = vld [vmem:[#allocation2 + $0x108] sm:$0xe]
    %v4308 = vld [vmem:[#allocation2 + $0x114] sm:$0xe]
    %v4309 = vld [vmem:[#allocation2 + $0x120] sm:$0xe]
    %v4310 = vld [vmem:[#allocation2 + $0x12c] sm:$0xe]
    %v4311 = vld [vmem:[#allocation2 + $0x138] sm:$0xe]
    %v4312 = vld [vmem:[#allocation2 + $0x144] sm:$0xe]
    %v4313 = vld [vmem:[#allocation2 + $0x150] sm:$0xe]
    %v4314 = vld [vmem:[#allocation2 + $0x15c] sm:$0xe]
    %v4315 = vld [vmem:[#allocation2 + $0x168] sm:$0xe]
    %v4316 = vld [vmem:[#allocation2 + $0x174] sm:$0xe]
    %v4317 = vld [vmem:[#allocation2 + $0x180] sm:$0xe]
    %v4318 = vld [vmem:[#allocation2 + $0x18c] sm:$0xe]
    %vm4383 = vcmask 1042432
    %vm4384 = vcmask 1046532
    %vm4385 = vmor %vm4383, %vm4384
    %v4386 = vrot.slane %v4287, 5
    %v4387 = vrot.slane %v4386, 4
    %v4388 = vrot.slane %v2395, 5
    %v4389 = vsel %vm4385, %v4387, %v4388
    %v4390 = vrot.slane %v4388, 4
    %v4391 = vrot.slane %v2474, 5
    %v4392 = vsel %vm4385, %v4390, %v4391
    %v4393 = vrot.slane %v4288, 5
    %v4394 = vrot.slane %v4393, 4
    %v4395 = vrot.slane %v2397, 5
    %v4396 = vsel %vm4385, %v4394, %v4395
    %v4397 = vrot.slane %v4395, 4
    %v4398 = vrot.slane %v2475, 5
    %v4399 = vsel %vm4385, %v4397, %v4398
    %v4400 = vrot.slane %v4289, 5
    %v4401 = vrot.slane %v4400, 4
    %v4402 = vrot.slane %v2399, 5
    %v4403 = vsel %vm4385, %v4401, %v4402
    %v4404 = vrot.slane %v4402, 4
    %v4405 = vrot.slane %v2476, 5
    %v4406 = vsel %vm4385, %v4404, %v4405
    %v4407 = vrot.slane %v4290, 5
    %v4408 = vrot.slane %v4407, 4
    %v4409 = vrot.slane %v2401, 5
    %v4410 = vsel %vm4385, %v4408, %v4409
    %v4411 = vrot.slane %v4409, 4
    %v4412 = vrot.slane %v2477, 5
    %v4413 = vsel %vm4385, %v4411, %v4412
    %v4414 = vrot.slane %v4291, 5
    %v4415 = vrot.slane %v4414, 4
    %v4416 = vrot.slane %v2403, 5
    %v4417 = vsel %vm4385, %v4415, %v4416
    %v4418 = vrot.slane %v4416, 4
    %v4419 = vrot.slane %v2478, 5
    %v4420 = vsel %vm4385, %v4418, %v4419
    %v4421 = vrot.slane %v4292, 5
    %v4422 = vrot.slane %v4421, 4
    %v4423 = vrot.slane %v2405, 5
    %v4424 = vsel %vm4385, %v4422, %v4423
    %v4425 = vrot.slane %v4423, 4
    %v4426 = vrot.slane %v2479, 5
    %v4427 = vsel %vm4385, %v4425, %v4426
    %v4428 = vrot.slane %v4293, 5
    %v4429 = vrot.slane %v4428, 4
    %v4430 = vrot.slane %v2407, 5
    %v4431 = vsel %vm4385, %v4429, %v4430
    %v4432 = vrot.slane %v4430, 4
    %v4433 = vrot.slane %v2480, 5
    %v4434 = vsel %vm4385, %v4432, %v4433
    %v4435 = vrot.slane %v4294, 5
    %v4436 = vrot.slane %v4435, 4
    %v4437 = vrot.slane %v2409, 5
    %v4438 = vsel %vm4385, %v4436, %v4437
    %v4439 = vrot.slane %v4437, 4
    %v4440 = vrot.slane %v2481, 5
    %v4441 = vsel %vm4385, %v4439, %v4440
    %v4442 = vrot.slane %v4295, 5
    %v4443 = vrot.slane %v4442, 4
    %v4444 = vrot.slane %v2411, 5
    %v4445 = vsel %vm4385, %v4443, %v4444
    %v4446 = vrot.slane %v4444, 4
    %v4447 = vrot.slane %v2482, 5
    %v4448 = vsel %vm4385, %v4446, %v4447
    %v4449 = vrot.slane %v4296, 5
    %v4450 = vrot.slane %v4449, 4
    %v4451 = vrot.slane %v2413, 5
    %v4452 = vsel %vm4385, %v4450, %v4451
    %v4453 = vrot.slane %v4451, 4
    %v4454 = vrot.slane %v2483, 5
    %v4455 = vsel %vm4385, %v4453, %v4454
    %v4456 = vrot.slane %v4297, 5
    %v4457 = vrot.slane %v4456, 4
    %v4458 = vrot.slane %v2415, 5
    %v4459 = vsel %vm4385, %v4457, %v4458
    %v4460 = vrot.slane %v4458, 4
    %v4461 = vrot.slane %v2484, 5
    %v4462 = vsel %vm4385, %v4460, %v4461
    %v4463 = vrot.slane %v4298, 5
    %v4464 = vrot.slane %v4463, 4
    %v4465 = vrot.slane %v2417, 5
    %v4466 = vsel %vm4385, %v4464, %v4465
    %v4467 = vrot.slane %v4465, 4
    %v4468 = vrot.slane %v2485, 5
    %v4469 = vsel %vm4385, %v4467, %v4468
    %v4470 = vrot.slane %v4299, 5
    %v4471 = vrot.slane %v4470, 4
    %v4472 = vrot.slane %v2419, 5
    %v4473 = vsel %vm4385, %v4471, %v4472
    %v4474 = vrot.slane %v4472, 4
    %v4475 = vrot.slane %v2486, 5
    %v4476 = vsel %vm4385, %v4474, %v4475
    %v4477 = vrot.slane %v4300, 5
    %v4478 = vrot.slane %v4477, 4
    %v4479 = vrot.slane %v2421, 5
    %v4480 = vsel %vm4385, %v4478, %v4479
    %v4481 = vrot.slane %v4479, 4
    %v4482 = vrot.slane %v2487, 5
    %v4483 = vsel %vm4385, %v4481, %v4482
    %v4484 = vrot.slane %v4301, 5
    %v4485 = vrot.slane %v4484, 4
    %v4486 = vrot.slane %v2423, 5
    %v4487 = vsel %vm4385, %v4485, %v4486
    %v4488 = vrot.slane %v4486, 4
    %v4489 = vrot.slane %v2488, 5
    %v4490 = vsel %vm4385, %v4488, %v4489
    %v4491 = vrot.slane %v4302, 5
    %v4492 = vrot.slane %v4491, 4
    %v4493 = vrot.slane %v2425, 5
    %v4494 = vsel %vm4385, %v4492, %v4493
    %v4495 = vrot.slane %v4493, 4
    %v4496 = vrot.slane %v2489, 5
    %v4497 = vsel %vm4385, %v4495, %v4496
    %v4498 = vrot.slane %v4303, 5
    %v4499 = vrot.slane %v4498, 4
    %v4500 = vrot.slane %v2427, 5
    %v4501 = vsel %vm4385, %v4499, %v4500
    %v4502 = vrot.slane %v4500, 4
    %v4503 = vrot.slane %v2490, 5
    %v4504 = vsel %vm4385, %v4502, %v4503
    %v4505 = vrot.slane %v4304, 5
    %v4506 = vrot.slane %v4505, 4
    %v4507 = vrot.slane %v2429, 5
    %v4508 = vsel %vm4385, %v4506, %v4507
    %v4509 = vrot.slane %v4507, 4
    %v4510 = vrot.slane %v2491, 5
    %v4511 = vsel %vm4385, %v4509, %v4510
    %v4512 = vrot.slane %v4305, 5
    %v4513 = vrot.slane %v4512, 4
    %v4514 = vrot.slane %v2431, 5
    %v4515 = vsel %vm4385, %v4513, %v4514
    %v4516 = vrot.slane %v4514, 4
    %v4517 = vrot.slane %v2492, 5
    %v4518 = vsel %vm4385, %v4516, %v4517
    %v4519 = vrot.slane %v4306, 5
    %v4520 = vrot.slane %v4519, 4
    %v4521 = vrot.slane %v2433, 5
    %v4522 = vsel %vm4385, %v4520, %v4521
    %v4523 = vrot.slane %v4521, 4
    %v4524 = vrot.slane %v2493, 5
    %v4525 = vsel %vm4385, %v4523, %v4524
    %v4526 = vrot.slane %v4307, 5
    %v4527 = vrot.slane %v4526, 4
    %v4528 = vrot.slane %v2435, 5
    %v4529 = vsel %vm4385, %v4527, %v4528
    %v4530 = vrot.slane %v4528, 4
    %v4531 = vrot.slane %v2494, 5
    %v4532 = vsel %vm4385, %v4530, %v4531
    %v4533 = vrot.slane %v4308, 5
    %v4534 = vrot.slane %v4533, 4
    %v4535 = vrot.slane %v2437, 5
    %v4536 = vsel %vm4385, %v4534, %v4535
    %v4537 = vrot.slane %v4535, 4
    %v4538 = vrot.slane %v2495, 5
    %v4539 = vsel %vm4385, %v4537, %v4538
    %v4540 = vrot.slane %v4309, 5
    %v4541 = vrot.slane %v4540, 4
    %v4542 = vrot.slane %v2439, 5
    %v4543 = vsel %vm4385, %v4541, %v4542
    %v4544 = vrot.slane %v4542, 4
    %v4545 = vrot.slane %v2496, 5
    %v4546 = vsel %vm4385, %v4544, %v4545
    %v4547 = vrot.slane %v4310, 5
    %v4548 = vrot.slane %v4547, 4
    %v4549 = vrot.slane %v2441, 5
    %v4550 = vsel %vm4385, %v4548, %v4549
    %v4551 = vrot.slane %v4549, 4
    %v4552 = vrot.slane %v2497, 5
    %v4553 = vsel %vm4385, %v4551, %v4552
    %v4554 = vrot.slane %v4311, 5
    %v4555 = vrot.slane %v4554, 4
    %v4556 = vrot.slane %v2443, 5
    %v4557 = vsel %vm4385, %v4555, %v4556
    %v4558 = vrot.slane %v4556, 4
    %v4559 = vrot.slane %v2498, 5
    %v4560 = vsel %vm4385, %v4558, %v4559
    %v4561 = vrot.slane %v4312, 5
    %v4562 = vrot.slane %v4561, 4
    %v4563 = vrot.slane %v2445, 5
    %v4564 = vsel %vm4385, %v4562, %v4563
    %v4565 = vrot.slane %v4563, 4
    %v4566 = vrot.slane %v2499, 5
    %v4567 = vsel %vm4385, %v4565, %v4566
    %v4568 = vrot.slane %v4313, 5
    %v4569 = vrot.slane %v4568, 4
    %v4570 = vrot.slane %v2447, 5
    %v4571 = vsel %vm4385, %v4569, %v4570
    %v4572 = vrot.slane %v4570, 4
    %v4573 = vrot.slane %v2500, 5
    %v4574 = vsel %vm4385, %v4572, %v4573
    %v4575 = vrot.slane %v4314, 5
    %v4576 = vrot.slane %v4575, 4
    %v4577 = vrot.slane %v2449, 5
    %v4578 = vsel %vm4385, %v4576, %v4577
    %v4579 = vrot.slane %v4577, 4
    %v4580 = vrot.slane %v2501, 5
    %v4581 = vsel %vm4385, %v4579, %v4580
    %v4582 = vrot.slane %v4315, 5
    %v4583 = vrot.slane %v4582, 4
    %v4584 = vrot.slane %v2451, 5
    %v4585 = vsel %vm4385, %v4583, %v4584
    %v4586 = vrot.slane %v4584, 4
    %v4587 = vrot.slane %v2502, 5
    %v4588 = vsel %vm4385, %v4586, %v4587
    %v4589 = vrot.slane %v4316, 5
    %v4590 = vrot.slane %v4589, 4
    %v4591 = vrot.slane %v2453, 5
    %v4592 = vsel %vm4385, %v4590, %v4591
    %v4593 = vrot.slane %v4591, 4
    %v4594 = vrot.slane %v2503, 5
    %v4595 = vsel %vm4385, %v4593, %v4594
    %v4596 = vrot.slane %v4317, 5
    %v4597 = vrot.slane %v4596, 4
    %v4598 = vrot.slane %v2455, 5
    %v4599 = vsel %vm4385, %v4597, %v4598
    %v4600 = vrot.slane %v4598, 4
    %v4601 = vrot.slane %v2504, 5
    %v4602 = vsel %vm4385, %v4600, %v4601
    %v4603 = vrot.slane %v4318, 5
    %v4604 = vrot.slane %v4603, 4
    %v4605 = vrot.slane %v2457, 5
    %v4606 = vsel %vm4385, %v4604, %v4605
    %v4607 = vrot.slane %v4605, 4
    %v4608 = vrot.slane %v2505, 5
    %v4609 = vsel %vm4385, %v4607, %v4608
    %v4610 = vld [vmem:[#allocation8 + $0x80] sm:$0xf]
    %v4611 = vld [vmem:[#allocation8 + $0x84] sm:$0xf]
    %v4612 = vld [vmem:[#allocation8 + $0x88] sm:$0xf]
    %v4613 = vld [vmem:[#allocation8 + $0x8c] sm:$0xf]
    %v4614 = vld [vmem:[#allocation8 + $0x90] sm:$0xf]
    %v4615 = vld [vmem:[#allocation8 + $0x94] sm:$0xf]
    %v4616 = vld [vmem:[#allocation8 + $0x98] sm:$0xf]
    %v4617 = vld [vmem:[#allocation8 + $0x9c] sm:$0xf]
    %v4618 = vld [vmem:[#allocation8 + $0xa0] sm:$0xf]
    %v4619 = vld [vmem:[#allocation8 + $0xa4] sm:$0xf]
    %v4620 = vld [vmem:[#allocation8 + $0xa8] sm:$0xf]
    %v4621 = vld [vmem:[#allocation8 + $0xac] sm:$0xf]
    %v4622 = vld [vmem:[#allocation8 + $0xb0] sm:$0xf]
    %v4623 = vld [vmem:[#allocation8 + $0xb4] sm:$0xf]
    %v4624 = vld [vmem:[#allocation8 + $0xb8] sm:$0xf]
    %v4625 = vld [vmem:[#allocation8 + $0xbc] sm:$0xf]
    %v4626 = vunpack.c.l.b16 %v4389
    %v4627 = vunpack.c.l.b16 %v4392
    %v4628 = vunpack.c.l.b16 %v4396
    %v4629 = vunpack.c.l.b16 %v4399
    %v4630 = vunpack.c.l.b16 %v4403
    %v4631 = vunpack.c.l.b16 %v4406
    %v4632 = vunpack.c.l.b16 %v4410
    %v4633 = vunpack.c.l.b16 %v4413
    %v4634 = vunpack.c.l.b16 %v4417
    %v4635 = vunpack.c.l.b16 %v4420
    %v4636 = vunpack.c.l.b16 %v4424
    %v4637 = vunpack.c.l.b16 %v4427
    %v4638 = vunpack.c.l.b16 %v4431
    %v4639 = vunpack.c.l.b16 %v4434
    %v4640 = vunpack.c.l.b16 %v4438
    %v4641 = vunpack.c.l.b16 %v4441
    %v4642 = vunpack.c.l.b16 %v4445
    %v4643 = vunpack.c.l.b16 %v4448
    %v4644 = vunpack.c.l.b16 %v4452
    %v4645 = vunpack.c.l.b16 %v4455
    %v4646 = vunpack.c.l.b16 %v4459
    %v4647 = vunpack.c.l.b16 %v4462
    %v4648 = vunpack.c.l.b16 %v4466
    %v4649 = vunpack.c.l.b16 %v4469
    %v4650 = vunpack.c.l.b16 %v4473
    %v4651 = vunpack.c.l.b16 %v4476
    %v4652 = vunpack.c.l.b16 %v4480
    %v4653 = vunpack.c.l.b16 %v4483
    %v4654 = vunpack.c.l.b16 %v4487
    %v4655 = vunpack.c.l.b16 %v4490
    %v4656 = vunpack.c.l.b16 %v4494
    %v4657 = vunpack.c.l.b16 %v4497
    %v4658 = vunpack.c.l.b16 %v4501
    %v4659 = vunpack.c.l.b16 %v4504
    %v4660 = vunpack.c.l.b16 %v4508
    %v4661 = vunpack.c.l.b16 %v4511
    %v4662 = vunpack.c.l.b16 %v4515
    %v4663 = vunpack.c.l.b16 %v4518
    %v4664 = vunpack.c.l.b16 %v4522
    %v4665 = vunpack.c.l.b16 %v4525
    %v4666 = vunpack.c.l.b16 %v4529
    %v4667 = vunpack.c.l.b16 %v4532
    %v4668 = vunpack.c.l.b16 %v4536
    %v4669 = vunpack.c.l.b16 %v4539
    %v4670 = vunpack.c.l.b16 %v4543
    %v4671 = vunpack.c.l.b16 %v4546
    %v4672 = vunpack.c.l.b16 %v4550
    %v4673 = vunpack.c.l.b16 %v4553
    %v4674 = vunpack.c.l.b16 %v4557
    %v4675 = vunpack.c.l.b16 %v4560
    %v4676 = vunpack.c.l.b16 %v4564
    %v4677 = vunpack.c.l.b16 %v4567
    %v4678 = vunpack.c.l.b16 %v4571
    %v4679 = vunpack.c.l.b16 %v4574
    %v4680 = vunpack.c.l.b16 %v4578
    %v4681 = vunpack.c.l.b16 %v4581
    %v4682 = vunpack.c.l.b16 %v4585
    %v4683 = vunpack.c.l.b16 %v4588
    %v4684 = vunpack.c.l.b16 %v4592
    %v4685 = vunpack.c.l.b16 %v4595
    %v4686 = vunpack.c.l.b16 %v4599
    %v4687 = vunpack.c.l.b16 %v4602
    %v4688 = vunpack.c.l.b16 %v4606
    %v4689 = vunpack.c.l.b16 %v4609
    %v4690 = vpack.c.b16 %v4627, %v4626
    %v4691 = vpack.c.b16 %v4629, %v4628
    %v4692 = vpack.c.b16 %v4631, %v4630
    %v4693 = vpack.c.b16 %v4633, %v4632
    %v4694 = vpack.c.b16 %v4635, %v4634
    %v4695 = vpack.c.b16 %v4637, %v4636
    %v4696 = vpack.c.b16 %v4639, %v4638
    %v4697 = vpack.c.b16 %v4641, %v4640
    %v4698 = vpack.c.b16 %v4643, %v4642
    %v4699 = vpack.c.b16 %v4645, %v4644
    %v4700 = vpack.c.b16 %v4647, %v4646
    %v4701 = vpack.c.b16 %v4649, %v4648
    %v4702 = vpack.c.b16 %v4651, %v4650
    %v4703 = vpack.c.b16 %v4653, %v4652
    %v4704 = vpack.c.b16 %v4655, %v4654
    %v4705 = vpack.c.b16 %v4657, %v4656
    %v4706 = vpack.c.b16 %v4659, %v4658
    %v4707 = vpack.c.b16 %v4661, %v4660
    %v4708 = vpack.c.b16 %v4663, %v4662
    %v4709 = vpack.c.b16 %v4665, %v4664
    %v4710 = vpack.c.b16 %v4667, %v4666
    %v4711 = vpack.c.b16 %v4669, %v4668
    %v4712 = vpack.c.b16 %v4671, %v4670
    %v4713 = vpack.c.b16 %v4673, %v4672
    %v4714 = vpack.c.b16 %v4675, %v4674
    %v4715 = vpack.c.b16 %v4677, %v4676
    %v4716 = vpack.c.b16 %v4679, %v4678
    %v4717 = vpack.c.b16 %v4681, %v4680
    %v4718 = vpack.c.b16 %v4683, %v4682
    %v4719 = vpack.c.b16 %v4685, %v4684
    %v4720 = vpack.c.b16 %v4687, %v4686
    %v4721 = vpack.c.b16 %v4689, %v4688
    %v4770 = vunpack.c.l.b16 %v4610
    %v4771 = vunpack.c.l.b16 %v4611
    %v4772 = vunpack.c.l.b16 %v4612
    %v4773 = vunpack.c.l.b16 %v4613
    %v4774 = vunpack.c.l.b16 %v4614
    %v4775 = vunpack.c.l.b16 %v4615
    %v4776 = vunpack.c.l.b16 %v4616
    %v4777 = vunpack.c.l.b16 %v4617
    %v4778 = vunpack.c.l.b16 %v4618
    %v4779 = vunpack.c.l.b16 %v4619
    %v4780 = vunpack.c.l.b16 %v4620
    %v4781 = vunpack.c.l.b16 %v4621
    %v4782 = vunpack.c.l.b16 %v4622
    %v4783 = vunpack.c.l.b16 %v4623
    %v4784 = vunpack.c.l.b16 %v4624
    %v4785 = vunpack.c.l.b16 %v4625
    %v4786 = vpack.c.b16 %v4771, %v4770
    %v4787 = vpack.c.b16 %v4773, %v4772
    %v4788 = vpack.c.b16 %v4775, %v4774
    %v4789 = vpack.c.b16 %v4777, %v4776
    %v4790 = vpack.c.b16 %v4779, %v4778
    %v4791 = vpack.c.b16 %v4781, %v4780
    %v4792 = vpack.c.b16 %v4783, %v4782
    %v4793 = vpack.c.b16 %v4785, %v4784
    %4802 = vmatprep.subr.bf16.mxu0 0
    %4803 = vmatpush1.bf16.msra.mxu0 %v4793
    %4804 = vmatprep.subr.bf16.mxu0 0
    %4805 = vmatpush1.bf16.msra.mxu0 %v4792
    %4806 = vmatprep.subr.bf16.mxu0 0
    %4807 = vmatpush1.bf16.msra.mxu0 %v4791
    %4808 = vmatprep.subr.bf16.mxu0 0
    %4809 = vmatpush1.bf16.msra.mxu0 %v4790
    %4810 = vmatprep.subr.bf16.mxu0 0
    %4811 = vmatpush1.bf16.msra.mxu0 %v4789
    %4812 = vmatprep.subr.bf16.mxu0 0
    %4813 = vmatpush1.bf16.msra.mxu0 %v4788
    %4814 = vmatprep.subr.bf16.mxu0 0
    %4815 = vmatpush1.bf16.msra.mxu0 %v4787
    %4816 = vmatprep.subr.bf16.mxu0 0
    %4817 = vmatpush1.bf16.msra.mxu0 %v4786
    %4818 = vmatprep.subr.bf16.mxu0 0
    %4819 = vmatpush2.bf16.msra.mxu0 0
    %4820 = vmatprep.subr.bf16.mxu0 0
    %4821 = vmatpush2.bf16.msra.mxu0 0
    %4822 = vmatprep.subr.bf16.mxu0 0
    %4823 = vmatpush2.bf16.msra.mxu0 0
    %4824 = vmatprep.subr.bf16.mxu0 0
    %4825 = vmatpush2.bf16.msra.mxu0 0
    %4826 = vmatprep.subr.bf16.mxu0 0
    %4827 = vmatpush2.bf16.msra.mxu0 0
    %4828 = vmatprep.subr.bf16.mxu0 0
    %4829 = vmatpush2.bf16.msra.mxu0 0
    %4830 = vmatprep.subr.bf16.mxu0 0
    %4831 = vmatpush2.bf16.msra.mxu0 0
    %4832 = vmatprep.subr.bf16.mxu0 0
    %4833 = vmatpush2.bf16.msra.mxu0 0
    %4834 = vmatprep.mubr.bf16.mxu0 0
    %4835 = vmatmul.mubr.bf16.gmra.mxu0 %v4690
    %v4836 = vpop.f32.mrf.mxu0
    %v4837 = vadd.f32 0.0, %v4836
    %v4838 = vpop.f32.mrf.mxu0
    %v4839 = vpop.f32.mrf.mxu0
    %v4840 = vadd.f32 0.0, %v4839
    %v4841 = vpop.f32.mrf.mxu0
    %4842 = vmatprep.mubr.bf16.mxu0 0
    %4843 = vmatmul.mubr.bf16.gmra.mxu0 %v4691
    %v4844 = vpop.f32.mrf.mxu0
    %v4845 = vadd.f32 0.0, %v4844
    %v4846 = vpop.f32.mrf.mxu0
    %v4847 = vpop.f32.mrf.mxu0
    %v4848 = vadd.f32 0.0, %v4847
    %v4849 = vpop.f32.mrf.mxu0
    %4850 = vmatprep.mubr.bf16.mxu0 0
    %4851 = vmatmul.mubr.bf16.gmra.mxu0 %v4692
    %v4852 = vpop.f32.mrf.mxu0
    %v4853 = vadd.f32 0.0, %v4852
    %v4854 = vpop.f32.mrf.mxu0
    %v4855 = vpop.f32.mrf.mxu0
    %v4856 = vadd.f32 0.0, %v4855
    %v4857 = vpop.f32.mrf.mxu0
    %4858 = vmatprep.mubr.bf16.mxu0 0
    %4859 = vmatmul.mubr.bf16.gmra.mxu0 %v4693
    %v4860 = vpop.f32.mrf.mxu0
    %v4861 = vadd.f32 0.0, %v4860
    %v4862 = vpop.f32.mrf.mxu0
    %v4863 = vpop.f32.mrf.mxu0
    %v4864 = vadd.f32 0.0, %v4863
    %v4865 = vpop.f32.mrf.mxu0
    %4866 = vmatprep.mubr.bf16.mxu0 0
    %4867 = vmatmul.mubr.bf16.gmra.mxu0 %v4694
    %v4868 = vpop.f32.mrf.mxu0
    %v4869 = vadd.f32 0.0, %v4868
    %v4870 = vpop.f32.mrf.mxu0
    %v4871 = vpop.f32.mrf.mxu0
    %v4872 = vadd.f32 0.0, %v4871
    %v4873 = vpop.f32.mrf.mxu0
    %4874 = vmatprep.mubr.bf16.mxu0 0
    %4875 = vmatmul.mubr.bf16.gmra.mxu0 %v4695
    %v4876 = vpop.f32.mrf.mxu0
    %v4877 = vadd.f32 0.0, %v4876
    %v4878 = vpop.f32.mrf.mxu0
    %v4879 = vpop.f32.mrf.mxu0
    %v4880 = vadd.f32 0.0, %v4879
    %v4881 = vpop.f32.mrf.mxu0
    %4882 = vmatprep.mubr.bf16.mxu0 0
    %4883 = vmatmul.mubr.bf16.gmra.mxu0 %v4696
    %v4884 = vpop.f32.mrf.mxu0
    %v4885 = vadd.f32 0.0, %v4884
    %v4886 = vpop.f32.mrf.mxu0
    %v4887 = vpop.f32.mrf.mxu0
    %v4888 = vadd.f32 0.0, %v4887
    %v4889 = vpop.f32.mrf.mxu0
    %4890 = vmatprep.mubr.bf16.mxu0 0
    %4891 = vmatmul.mubr.bf16.gmra.mxu0 %v4697
    %v4892 = vpop.f32.mrf.mxu0
    %v4893 = vadd.f32 0.0, %v4892
    %v4894 = vpop.f32.mrf.mxu0
    %v4895 = vpop.f32.mrf.mxu0
    %v4896 = vadd.f32 0.0, %v4895
    %v4897 = vpop.f32.mrf.mxu0
    %4898 = vmatprep.mubr.bf16.mxu0 0
    %4899 = vmatmul.mubr.bf16.gmra.mxu0 %v4698
    %v4900 = vpop.f32.mrf.mxu0
    %v4901 = vadd.f32 0.0, %v4900
    %v4902 = vpop.f32.mrf.mxu0
    %v4903 = vpop.f32.mrf.mxu0
    %v4904 = vadd.f32 0.0, %v4903
    %v4905 = vpop.f32.mrf.mxu0
    %4906 = vmatprep.mubr.bf16.mxu0 0
    %4907 = vmatmul.mubr.bf16.gmra.mxu0 %v4699
    %v4908 = vpop.f32.mrf.mxu0
    %v4909 = vadd.f32 0.0, %v4908
    %v4910 = vpop.f32.mrf.mxu0
    %v4911 = vpop.f32.mrf.mxu0
    %v4912 = vadd.f32 0.0, %v4911
    %v4913 = vpop.f32.mrf.mxu0
    %4914 = vmatprep.mubr.bf16.mxu0 0
    %4915 = vmatmul.mubr.bf16.gmra.mxu0 %v4700
    %v4916 = vpop.f32.mrf.mxu0
    %v4917 = vadd.f32 0.0, %v4916
    %v4918 = vpop.f32.mrf.mxu0
    %v4919 = vpop.f32.mrf.mxu0
    %v4920 = vadd.f32 0.0, %v4919
    %v4921 = vpop.f32.mrf.mxu0
    %4922 = vmatprep.mubr.bf16.mxu0 0
    %4923 = vmatmul.mubr.bf16.gmra.mxu0 %v4701
    %v4924 = vpop.f32.mrf.mxu0
    %v4925 = vadd.f32 0.0, %v4924
    %v4926 = vpop.f32.mrf.mxu0
    %v4927 = vpop.f32.mrf.mxu0
    %v4928 = vadd.f32 0.0, %v4927
    %v4929 = vpop.f32.mrf.mxu0
    %4930 = vmatprep.mubr.bf16.mxu0 0
    %4931 = vmatmul.mubr.bf16.gmra.mxu0 %v4702
    %v4932 = vpop.f32.mrf.mxu0
    %v4933 = vadd.f32 0.0, %v4932
    %v4934 = vpop.f32.mrf.mxu0
    %v4935 = vpop.f32.mrf.mxu0
    %v4936 = vadd.f32 0.0, %v4935
    %v4937 = vpop.f32.mrf.mxu0
    %4938 = vmatprep.mubr.bf16.mxu0 0
    %4939 = vmatmul.mubr.bf16.gmra.mxu0 %v4703
    %v4940 = vpop.f32.mrf.mxu0
    %v4941 = vadd.f32 0.0, %v4940
    %v4942 = vpop.f32.mrf.mxu0
    %v4943 = vpop.f32.mrf.mxu0
    %v4944 = vadd.f32 0.0, %v4943
    %v4945 = vpop.f32.mrf.mxu0
    %4946 = vmatprep.mubr.bf16.mxu0 0
    %4947 = vmatmul.mubr.bf16.gmra.mxu0 %v4704
    %v4948 = vpop.f32.mrf.mxu0
    %v4949 = vadd.f32 0.0, %v4948
    %v4950 = vpop.f32.mrf.mxu0
    %v4951 = vpop.f32.mrf.mxu0
    %v4952 = vadd.f32 0.0, %v4951
    %v4953 = vpop.f32.mrf.mxu0
    %4954 = vmatprep.mubr.bf16.mxu0 0
    %4955 = vmatmul.mubr.bf16.gmra.mxu0 %v4705
    %v4956 = vpop.f32.mrf.mxu0
    %v4957 = vadd.f32 0.0, %v4956
    %v4958 = vpop.f32.mrf.mxu0
    %v4959 = vpop.f32.mrf.mxu0
    %v4960 = vadd.f32 0.0, %v4959
    %v4961 = vpop.f32.mrf.mxu0
    %4962 = vmatprep.mubr.bf16.mxu0 0
    %4963 = vmatmul.mubr.bf16.gmra.mxu0 %v4706
    %v4964 = vpop.f32.mrf.mxu0
    %v4965 = vadd.f32 0.0, %v4964
    %v4966 = vpop.f32.mrf.mxu0
    %v4967 = vpop.f32.mrf.mxu0
    %v4968 = vadd.f32 0.0, %v4967
    %v4969 = vpop.f32.mrf.mxu0
    %4970 = vmatprep.mubr.bf16.mxu0 0
    %4971 = vmatmul.mubr.bf16.gmra.mxu0 %v4707
    %v4972 = vpop.f32.mrf.mxu0
    %v4973 = vadd.f32 0.0, %v4972
    %v4974 = vpop.f32.mrf.mxu0
    %v4975 = vpop.f32.mrf.mxu0
    %v4976 = vadd.f32 0.0, %v4975
    %v4977 = vpop.f32.mrf.mxu0
    %4978 = vmatprep.mubr.bf16.mxu0 0
    %4979 = vmatmul.mubr.bf16.gmra.mxu0 %v4708
    %v4980 = vpop.f32.mrf.mxu0
    %v4981 = vadd.f32 0.0, %v4980
    %v4982 = vpop.f32.mrf.mxu0
    %v4983 = vpop.f32.mrf.mxu0
    %v4984 = vadd.f32 0.0, %v4983
    %v4985 = vpop.f32.mrf.mxu0
    %4986 = vmatprep.mubr.bf16.mxu0 0
    %4987 = vmatmul.mubr.bf16.gmra.mxu0 %v4709
    %v4988 = vpop.f32.mrf.mxu0
    %v4989 = vadd.f32 0.0, %v4988
    %v4990 = vpop.f32.mrf.mxu0
    %v4991 = vpop.f32.mrf.mxu0
    %v4992 = vadd.f32 0.0, %v4991
    %v4993 = vpop.f32.mrf.mxu0
    %4994 = vmatprep.mubr.bf16.mxu0 0
    %4995 = vmatmul.mubr.bf16.gmra.mxu0 %v4710
    %v4996 = vpop.f32.mrf.mxu0
    %v4997 = vadd.f32 0.0, %v4996
    %v4998 = vpop.f32.mrf.mxu0
    %v4999 = vpop.f32.mrf.mxu0
    %v5000 = vadd.f32 0.0, %v4999
    %v5001 = vpop.f32.mrf.mxu0
    %5002 = vmatprep.mubr.bf16.mxu0 0
    %5003 = vmatmul.mubr.bf16.gmra.mxu0 %v4711
    %v5004 = vpop.f32.mrf.mxu0
    %v5005 = vadd.f32 0.0, %v5004
    %v5006 = vpop.f32.mrf.mxu0
    %v5007 = vpop.f32.mrf.mxu0
    %v5008 = vadd.f32 0.0, %v5007
    %v5009 = vpop.f32.mrf.mxu0
    %5010 = vmatprep.mubr.bf16.mxu0 0
    %5011 = vmatmul.mubr.bf16.gmra.mxu0 %v4712
    %v5012 = vpop.f32.mrf.mxu0
    %v5013 = vadd.f32 0.0, %v5012
    %v5014 = vpop.f32.mrf.mxu0
    %v5015 = vpop.f32.mrf.mxu0
    %v5016 = vadd.f32 0.0, %v5015
    %v5017 = vpop.f32.mrf.mxu0
    %5018 = vmatprep.mubr.bf16.mxu0 0
    %5019 = vmatmul.mubr.bf16.gmra.mxu0 %v4713
    %v5020 = vpop.f32.mrf.mxu0
    %v5021 = vadd.f32 0.0, %v5020
    %v5022 = vpop.f32.mrf.mxu0
    %v5023 = vpop.f32.mrf.mxu0
    %v5024 = vadd.f32 0.0, %v5023
    %v5025 = vpop.f32.mrf.mxu0
    %5026 = vmatprep.mubr.bf16.mxu0 0
    %5027 = vmatmul.mubr.bf16.gmra.mxu0 %v4714
    %v5028 = vpop.f32.mrf.mxu0
    %v5029 = vadd.f32 0.0, %v5028
    %v5030 = vpop.f32.mrf.mxu0
    %v5031 = vpop.f32.mrf.mxu0
    %v5032 = vadd.f32 0.0, %v5031
    %v5033 = vpop.f32.mrf.mxu0
    %5034 = vmatprep.mubr.bf16.mxu0 0
    %5035 = vmatmul.mubr.bf16.gmra.mxu0 %v4715
    %v5036 = vpop.f32.mrf.mxu0
    %v5037 = vadd.f32 0.0, %v5036
    %v5038 = vpop.f32.mrf.mxu0
    %v5039 = vpop.f32.mrf.mxu0
    %v5040 = vadd.f32 0.0, %v5039
    %v5041 = vpop.f32.mrf.mxu0
    %5042 = vmatprep.mubr.bf16.mxu0 0
    %5043 = vmatmul.mubr.bf16.gmra.mxu0 %v4716
    %v5044 = vpop.f32.mrf.mxu0
    %v5045 = vadd.f32 0.0, %v5044
    %v5046 = vpop.f32.mrf.mxu0
    %v5047 = vpop.f32.mrf.mxu0
    %v5048 = vadd.f32 0.0, %v5047
    %v5049 = vpop.f32.mrf.mxu0
    %5050 = vmatprep.mubr.bf16.mxu0 0
    %5051 = vmatmul.mubr.bf16.gmra.mxu0 %v4717
    %v5052 = vpop.f32.mrf.mxu0
    %v5053 = vadd.f32 0.0, %v5052
    %v5054 = vpop.f32.mrf.mxu0
    %v5055 = vpop.f32.mrf.mxu0
    %v5056 = vadd.f32 0.0, %v5055
    %v5057 = vpop.f32.mrf.mxu0
    %5058 = vmatprep.mubr.bf16.mxu0 0
    %5059 = vmatmul.mubr.bf16.gmra.mxu0 %v4718
    %v5060 = vpop.f32.mrf.mxu0
    %v5061 = vadd.f32 0.0, %v5060
    %v5062 = vpop.f32.mrf.mxu0
    %v5063 = vpop.f32.mrf.mxu0
    %v5064 = vadd.f32 0.0, %v5063
    %v5065 = vpop.f32.mrf.mxu0
    %5066 = vmatprep.mubr.bf16.mxu0 0
    %5067 = vmatmul.mubr.bf16.gmra.mxu0 %v4719
    %v5068 = vpop.f32.mrf.mxu0
    %v5069 = vadd.f32 0.0, %v5068
    %v5070 = vpop.f32.mrf.mxu0
    %v5071 = vpop.f32.mrf.mxu0
    %v5072 = vadd.f32 0.0, %v5071
    %v5073 = vpop.f32.mrf.mxu0
    %5074 = vmatprep.mubr.bf16.mxu0 0
    %5075 = vmatmul.mubr.bf16.gmra.mxu0 %v4720
    %v5076 = vpop.f32.mrf.mxu0
    %v5077 = vadd.f32 0.0, %v5076
    %v5078 = vpop.f32.mrf.mxu0
    %v5079 = vpop.f32.mrf.mxu0
    %v5080 = vadd.f32 0.0, %v5079
    %v5081 = vpop.f32.mrf.mxu0
    %5082 = vmatprep.mubr.bf16.mxu0 0
    %5083 = vmatmul.mubr.bf16.gmra.mxu0 %v4721
    %v5084 = vpop.f32.mrf.mxu0
    %v5085 = vadd.f32 0.0, %v5084
    %v5086 = vpop.f32.mrf.mxu0
    %v5087 = vpop.f32.mrf.mxu0
    %v5088 = vadd.f32 0.0, %v5087
    %v5089 = vpop.f32.mrf.mxu0
    %5090 = vdwg.mxu0
    %v5091 = vadd.f32 %v4033, %v4837
    %v5092 = vadd.f32 %v4036, %v4840
    %v5093 = vadd.f32 %v4041, %v4845
    %v5094 = vadd.f32 %v4044, %v4848
    %v5095 = vadd.f32 %v4049, %v4853
    %v5096 = vadd.f32 %v4052, %v4856
    %v5097 = vadd.f32 %v4057, %v4861
    %v5098 = vadd.f32 %v4060, %v4864
    %v5099 = vadd.f32 %v4065, %v4869
    %v5100 = vadd.f32 %v4068, %v4872
    %v5101 = vadd.f32 %v4073, %v4877
    %v5102 = vadd.f32 %v4076, %v4880
    %v5103 = vadd.f32 %v4081, %v4885
    %v5104 = vadd.f32 %v4084, %v4888
    %v5105 = vadd.f32 %v4089, %v4893
    %v5106 = vadd.f32 %v4092, %v4896
    %v5107 = vadd.f32 %v4097, %v4901
    %v5108 = vadd.f32 %v4100, %v4904
    %v5109 = vadd.f32 %v4105, %v4909
    %v5110 = vadd.f32 %v4108, %v4912
    %v5111 = vadd.f32 %v4113, %v4917
    %v5112 = vadd.f32 %v4116, %v4920
    %v5113 = vadd.f32 %v4121, %v4925
    %v5114 = vadd.f32 %v4124, %v4928
    %v5115 = vadd.f32 %v4129, %v4933
    %v5116 = vadd.f32 %v4132, %v4936
    %v5117 = vadd.f32 %v4137, %v4941
    %v5118 = vadd.f32 %v4140, %v4944
    %v5119 = vadd.f32 %v4145, %v4949
    %v5120 = vadd.f32 %v4148, %v4952
    %v5121 = vadd.f32 %v4153, %v4957
    %v5122 = vadd.f32 %v4156, %v4960
    %v5123 = vadd.f32 %v4161, %v4965
    %v5124 = vadd.f32 %v4164, %v4968
    %v5125 = vadd.f32 %v4169, %v4973
    %v5126 = vadd.f32 %v4172, %v4976
    %v5127 = vadd.f32 %v4177, %v4981
    %v5128 = vadd.f32 %v4180, %v4984
    %v5129 = vadd.f32 %v4185, %v4989
    %v5130 = vadd.f32 %v4188, %v4992
    %v5131 = vadd.f32 %v4193, %v4997
    %v5132 = vadd.f32 %v4196, %v5000
    %v5133 = vadd.f32 %v4201, %v5005
    %v5134 = vadd.f32 %v4204, %v5008
    %v5135 = vadd.f32 %v4209, %v5013
    %v5136 = vadd.f32 %v4212, %v5016
    %v5137 = vadd.f32 %v4217, %v5021
    %v5138 = vadd.f32 %v4220, %v5024
    %v5139 = vadd.f32 %v4225, %v5029
    %v5140 = vadd.f32 %v4228, %v5032
    %v5141 = vadd.f32 %v4233, %v5037
    %v5142 = vadd.f32 %v4236, %v5040
    %v5143 = vadd.f32 %v4241, %v5045
    %v5144 = vadd.f32 %v4244, %v5048
    %v5145 = vadd.f32 %v4249, %v5053
    %v5146 = vadd.f32 %v4252, %v5056
    %v5147 = vadd.f32 %v4257, %v5061
    %v5148 = vadd.f32 %v4260, %v5064
    %v5149 = vadd.f32 %v4265, %v5069
    %v5150 = vadd.f32 %v4268, %v5072
    %v5151 = vadd.f32 %v4273, %v5077
    %v5152 = vadd.f32 %v4276, %v5080
    %v5153 = vadd.f32 %v4281, %v5085
    %v5154 = vadd.f32 %v4284, %v5088
    %v5155 = vld [vmem:[%s2164] sm:$0xf]
    %v5156 = vld [vmem:[%s2164 + $0x4] sm:$0xf]
    %v5157 = vld [vmem:[%s2164 + $0xc] sm:$0xf]
    %v5158 = vld [vmem:[%s2164 + $0x10] sm:$0xf]
    %v5159 = vld [vmem:[%s2164 + $0x18] sm:$0xf]
    %v5160 = vld [vmem:[%s2164 + $0x1c] sm:$0xf]
    %v5161 = vld [vmem:[%s2164 + $0x24] sm:$0xf]
    %v5162 = vld [vmem:[%s2164 + $0x28] sm:$0xf]
    %v5163 = vld [vmem:[%s2164 + $0x30] sm:$0xf]
    %v5164 = vld [vmem:[%s2164 + $0x34] sm:$0xf]
    %v5165 = vld [vmem:[%s2164 + $0x3c] sm:$0xf]
    %v5166 = vld [vmem:[%s2164 + $0x40] sm:$0xf]
    %v5167 = vld [vmem:[%s2164 + $0x48] sm:$0xf]
    %v5168 = vld [vmem:[%s2164 + $0x4c] sm:$0xf]
    %v5169 = vld [vmem:[%s2164 + $0x54] sm:$0xf]
    %v5170 = vld [vmem:[%s2164 + $0x58] sm:$0xf]
    %v5171 = vld [vmem:[%s2164 + $0x60] sm:$0xf]
    %v5172 = vld [vmem:[%s2164 + $0x64] sm:$0xf]
    %v5173 = vld [vmem:[%s2164 + $0x6c] sm:$0xf]
    %v5174 = vld [vmem:[%s2164 + $0x70] sm:$0xf]
    %v5175 = vld [vmem:[%s2164 + $0x78] sm:$0xf]
    %v5176 = vld [vmem:[%s2164 + $0x7c] sm:$0xf]
    %v5177 = vld [vmem:[%s2164 + $0x84] sm:$0xf]
    %v5178 = vld [vmem:[%s2164 + $0x88] sm:$0xf]
    %v5179 = vld [vmem:[%s2164 + $0x90] sm:$0xf]
    %v5180 = vld [vmem:[%s2164 + $0x94] sm:$0xf]
    %v5181 = vld [vmem:[%s2164 + $0x9c] sm:$0xf]
    %v5182 = vld [vmem:[%s2164 + $0xa0] sm:$0xf]
    %v5183 = vld [vmem:[%s2164 + $0xa8] sm:$0xf]
    %v5184 = vld [vmem:[%s2164 + $0xac] sm:$0xf]
    %v5185 = vld [vmem:[%s2164 + $0xb4] sm:$0xf]
    %v5186 = vld [vmem:[%s2164 + $0xb8] sm:$0xf]
    %v5187 = vld [vmem:[%s2164 + $0xd8] sm:$0xf]
    %v5188 = vld [vmem:[%s2164 + $0xdc] sm:$0xf]
    %v5189 = vld [vmem:[%s2164 + $0xe4] sm:$0xf]
    %v5190 = vld [vmem:[%s2164 + $0xe8] sm:$0xf]
    %v5191 = vld [vmem:[%s2164 + $0xf0] sm:$0xf]
    %v5192 = vld [vmem:[%s2164 + $0xf4] sm:$0xf]
    %v5193 = vld [vmem:[%s2164 + $0xfc] sm:$0xf]
    %v5194 = vld [vmem:[%s2164 + $0x100] sm:$0xf]
    %v5195 = vld [vmem:[%s2164 + $0x108] sm:$0xf]
    %v5196 = vld [vmem:[%s2164 + $0x10c] sm:$0xf]
    %v5197 = vld [vmem:[%s2164 + $0x114] sm:$0xf]
    %v5198 = vld [vmem:[%s2164 + $0x118] sm:$0xf]
    %v5199 = vld [vmem:[%s2164 + $0x120] sm:$0xf]
    %v5200 = vld [vmem:[%s2164 + $0x124] sm:$0xf]
    %v5201 = vld [vmem:[%s2164 + $0x12c] sm:$0xf]
    %v5202 = vld [vmem:[%s2164 + $0x130] sm:$0xf]
    %v5203 = vld [vmem:[%s2164 + $0x138] sm:$0xf]
    %v5204 = vld [vmem:[%s2164 + $0x13c] sm:$0xf]
    %v5205 = vld [vmem:[%s2164 + $0x144] sm:$0xf]
    %v5206 = vld [vmem:[%s2164 + $0x148] sm:$0xf]
    %v5207 = vld [vmem:[%s2164 + $0x150] sm:$0xf]
    %v5208 = vld [vmem:[%s2164 + $0x154] sm:$0xf]
    %v5209 = vld [vmem:[%s2164 + $0x15c] sm:$0xf]
    %v5210 = vld [vmem:[%s2164 + $0x160] sm:$0xf]
    %v5211 = vld [vmem:[%s2164 + $0x168] sm:$0xf]
    %v5212 = vld [vmem:[%s2164 + $0x16c] sm:$0xf]
    %v5213 = vld [vmem:[%s2164 + $0x174] sm:$0xf]
    %v5214 = vld [vmem:[%s2164 + $0x178] sm:$0xf]
    %v5215 = vld [vmem:[%s2164 + $0x180] sm:$0xf]
    %v5216 = vld [vmem:[%s2164 + $0x184] sm:$0xf]
    %v5217 = vld [vmem:[%s2164 + $0x18c] sm:$0xf]
    %v5218 = vld [vmem:[%s2164 + $0x190] sm:$0xf]
    %v5219 = vld [vmem:[#allocation8 + $0xc0] sm:$0xf]
    %v5220 = vld [vmem:[#allocation8 + $0xc4] sm:$0xf]
    %v5221 = vld [vmem:[#allocation8 + $0xc8] sm:$0xf]
    %v5222 = vld [vmem:[#allocation8 + $0xcc] sm:$0xf]
    %v5223 = vld [vmem:[#allocation8 + $0xd0] sm:$0xf]
    %v5224 = vld [vmem:[#allocation8 + $0xd4] sm:$0xf]
    %v5225 = vld [vmem:[#allocation8 + $0xd8] sm:$0xf]
    %v5226 = vld [vmem:[#allocation8 + $0xdc] sm:$0xf]
    %v5227 = vld [vmem:[#allocation8 + $0xe0] sm:$0xf]
    %v5228 = vld [vmem:[#allocation8 + $0xe4] sm:$0xf]
    %v5229 = vld [vmem:[#allocation8 + $0xe8] sm:$0xf]
    %v5230 = vld [vmem:[#allocation8 + $0xec] sm:$0xf]
    %v5231 = vld [vmem:[#allocation8 + $0xf0] sm:$0xf]
    %v5232 = vld [vmem:[#allocation8 + $0xf4] sm:$0xf]
    %v5233 = vld [vmem:[#allocation8 + $0xf8] sm:$0xf]
    %v5234 = vld [vmem:[#allocation8 + $0xfc] sm:$0xf]
    %v5299 = vunpack.c.l.b16 %v5155
    %v5300 = vunpack.c.l.b16 %v5156
    %v5301 = vunpack.c.l.b16 %v5157
    %v5302 = vunpack.c.l.b16 %v5158
    %v5303 = vunpack.c.l.b16 %v5159
    %v5304 = vunpack.c.l.b16 %v5160
    %v5305 = vunpack.c.l.b16 %v5161
    %v5306 = vunpack.c.l.b16 %v5162
    %v5307 = vunpack.c.l.b16 %v5163
    %v5308 = vunpack.c.l.b16 %v5164
    %v5309 = vunpack.c.l.b16 %v5165
    %v5310 = vunpack.c.l.b16 %v5166
    %v5311 = vunpack.c.l.b16 %v5167
    %v5312 = vunpack.c.l.b16 %v5168
    %v5313 = vunpack.c.l.b16 %v5169
    %v5314 = vunpack.c.l.b16 %v5170
    %v5315 = vunpack.c.l.b16 %v5171
    %v5316 = vunpack.c.l.b16 %v5172
    %v5317 = vunpack.c.l.b16 %v5173
    %v5318 = vunpack.c.l.b16 %v5174
    %v5319 = vunpack.c.l.b16 %v5175
    %v5320 = vunpack.c.l.b16 %v5176
    %v5321 = vunpack.c.l.b16 %v5177
    %v5322 = vunpack.c.l.b16 %v5178
    %v5323 = vunpack.c.l.b16 %v5179
    %v5324 = vunpack.c.l.b16 %v5180
    %v5325 = vunpack.c.l.b16 %v5181
    %v5326 = vunpack.c.l.b16 %v5182
    %v5327 = vunpack.c.l.b16 %v5183
    %v5328 = vunpack.c.l.b16 %v5184
    %v5329 = vunpack.c.l.b16 %v5185
    %v5330 = vunpack.c.l.b16 %v5186
    %v5331 = vunpack.c.l.b16 %v5187
    %v5332 = vunpack.c.l.b16 %v5188
    %v5333 = vunpack.c.l.b16 %v5189
    %v5334 = vunpack.c.l.b16 %v5190
    %v5335 = vunpack.c.l.b16 %v5191
    %v5336 = vunpack.c.l.b16 %v5192
    %v5337 = vunpack.c.l.b16 %v5193
    %v5338 = vunpack.c.l.b16 %v5194
    %v5339 = vunpack.c.l.b16 %v5195
    %v5340 = vunpack.c.l.b16 %v5196
    %v5341 = vunpack.c.l.b16 %v5197
    %v5342 = vunpack.c.l.b16 %v5198
    %v5343 = vunpack.c.l.b16 %v5199
    %v5344 = vunpack.c.l.b16 %v5200
    %v5345 = vunpack.c.l.b16 %v5201
    %v5346 = vunpack.c.l.b16 %v5202
    %v5347 = vunpack.c.l.b16 %v5203
    %v5348 = vunpack.c.l.b16 %v5204
    %v5349 = vunpack.c.l.b16 %v5205
    %v5350 = vunpack.c.l.b16 %v5206
    %v5351 = vunpack.c.l.b16 %v5207
    %v5352 = vunpack.c.l.b16 %v5208
    %v5353 = vunpack.c.l.b16 %v5209
    %v5354 = vunpack.c.l.b16 %v5210
    %v5355 = vunpack.c.l.b16 %v5211
    %v5356 = vunpack.c.l.b16 %v5212
    %v5357 = vunpack.c.l.b16 %v5213
    %v5358 = vunpack.c.l.b16 %v5214
    %v5359 = vunpack.c.l.b16 %v5215
    %v5360 = vunpack.c.l.b16 %v5216
    %v5361 = vunpack.c.l.b16 %v5217
    %v5362 = vunpack.c.l.b16 %v5218
    %v5363 = vpack.c.b16 %v5300, %v5299
    %v5364 = vpack.c.b16 %v5302, %v5301
    %v5365 = vpack.c.b16 %v5304, %v5303
    %v5366 = vpack.c.b16 %v5306, %v5305
    %v5367 = vpack.c.b16 %v5308, %v5307
    %v5368 = vpack.c.b16 %v5310, %v5309
    %v5369 = vpack.c.b16 %v5312, %v5311
    %v5370 = vpack.c.b16 %v5314, %v5313
    %v5371 = vpack.c.b16 %v5316, %v5315
    %v5372 = vpack.c.b16 %v5318, %v5317
    %v5373 = vpack.c.b16 %v5320, %v5319
    %v5374 = vpack.c.b16 %v5322, %v5321
    %v5375 = vpack.c.b16 %v5324, %v5323
    %v5376 = vpack.c.b16 %v5326, %v5325
    %v5377 = vpack.c.b16 %v5328, %v5327
    %v5378 = vpack.c.b16 %v5330, %v5329
    %v5379 = vpack.c.b16 %v5332, %v5331
    %v5380 = vpack.c.b16 %v5334, %v5333
    %v5381 = vpack.c.b16 %v5336, %v5335
    %v5382 = vpack.c.b16 %v5338, %v5337
    %v5383 = vpack.c.b16 %v5340, %v5339
    %v5384 = vpack.c.b16 %v5342, %v5341
    %v5385 = vpack.c.b16 %v5344, %v5343
    %v5386 = vpack.c.b16 %v5346, %v5345
    %v5387 = vpack.c.b16 %v5348, %v5347
    %v5388 = vpack.c.b16 %v5350, %v5349
    %v5389 = vpack.c.b16 %v5352, %v5351
    %v5390 = vpack.c.b16 %v5354, %v5353
    %v5391 = vpack.c.b16 %v5356, %v5355
    %v5392 = vpack.c.b16 %v5358, %v5357
    %v5393 = vpack.c.b16 %v5360, %v5359
    %v5394 = vpack.c.b16 %v5362, %v5361
    %v5443 = vunpack.c.l.b16 %v5219
    %v5444 = vunpack.c.l.b16 %v5220
    %v5445 = vunpack.c.l.b16 %v5221
    %v5446 = vunpack.c.l.b16 %v5222
    %v5447 = vunpack.c.l.b16 %v5223
    %v5448 = vunpack.c.l.b16 %v5224
    %v5449 = vunpack.c.l.b16 %v5225
    %v5450 = vunpack.c.l.b16 %v5226
    %v5451 = vunpack.c.l.b16 %v5227
    %v5452 = vunpack.c.l.b16 %v5228
    %v5453 = vunpack.c.l.b16 %v5229
    %v5454 = vunpack.c.l.b16 %v5230
    %v5455 = vunpack.c.l.b16 %v5231
    %v5456 = vunpack.c.l.b16 %v5232
    %v5457 = vunpack.c.l.b16 %v5233
    %v5458 = vunpack.c.l.b16 %v5234
    %v5459 = vpack.c.b16 %v5444, %v5443
    %v5460 = vpack.c.b16 %v5446, %v5445
    %v5461 = vpack.c.b16 %v5448, %v5447
    %v5462 = vpack.c.b16 %v5450, %v5449
    %v5463 = vpack.c.b16 %v5452, %v5451
    %v5464 = vpack.c.b16 %v5454, %v5453
    %v5465 = vpack.c.b16 %v5456, %v5455
    %v5466 = vpack.c.b16 %v5458, %v5457
    %5475 = vmatprep.subr.bf16.mxu0 0
    %5476 = vmatpush1.bf16.msra.mxu0 %v5466
    %5477 = vmatprep.subr.bf16.mxu0 0
    %5478 = vmatpush1.bf16.msra.mxu0 %v5465
    %5479 = vmatprep.subr.bf16.mxu0 0
    %5480 = vmatpush1.bf16.msra.mxu0 %v5464
    %5481 = vmatprep.subr.bf16.mxu0 0
    %5482 = vmatpush1.bf16.msra.mxu0 %v5463
    %5483 = vmatprep.subr.bf16.mxu0 0
    %5484 = vmatpush1.bf16.msra.mxu0 %v5462
    %5485 = vmatprep.subr.bf16.mxu0 0
    %5486 = vmatpush1.bf16.msra.mxu0 %v5461
    %5487 = vmatprep.subr.bf16.mxu0 0
    %5488 = vmatpush1.bf16.msra.mxu0 %v5460
    %5489 = vmatprep.subr.bf16.mxu0 0
    %5490 = vmatpush1.bf16.msra.mxu0 %v5459
    %5491 = vmatprep.subr.bf16.mxu0 0
    %5492 = vmatpush2.bf16.msra.mxu0 0
    %5493 = vmatprep.subr.bf16.mxu0 0
    %5494 = vmatpush2.bf16.msra.mxu0 0
    %5495 = vmatprep.subr.bf16.mxu0 0
    %5496 = vmatpush2.bf16.msra.mxu0 0
    %5497 = vmatprep.subr.bf16.mxu0 0
    %5498 = vmatpush2.bf16.msra.mxu0 0
    %5499 = vmatprep.subr.bf16.mxu0 0
    %5500 = vmatpush2.bf16.msra.mxu0 0
    %5501 = vmatprep.subr.bf16.mxu0 0
    %5502 = vmatpush2.bf16.msra.mxu0 0
    %5503 = vmatprep.subr.bf16.mxu0 0
    %5504 = vmatpush2.bf16.msra.mxu0 0
    %5505 = vmatprep.subr.bf16.mxu0 0
    %5506 = vmatpush2.bf16.msra.mxu0 0
    %5507 = vmatprep.mubr.bf16.mxu0 0
    %5508 = vmatmul.mubr.bf16.gmra.mxu0 %v5363
    %v5509 = vpop.f32.mrf.mxu0
    %v5510 = vadd.f32 0.0, %v5509
    %v5511 = vpop.f32.mrf.mxu0
    %v5512 = vpop.f32.mrf.mxu0
    %v5513 = vadd.f32 0.0, %v5512
    %v5514 = vpop.f32.mrf.mxu0
    %5515 = vmatprep.mubr.bf16.mxu0 0
    %5516 = vmatmul.mubr.bf16.gmra.mxu0 %v5364
    %v5517 = vpop.f32.mrf.mxu0
    %v5518 = vadd.f32 0.0, %v5517
    %v5519 = vpop.f32.mrf.mxu0
    %v5520 = vpop.f32.mrf.mxu0
    %v5521 = vadd.f32 0.0, %v5520
    %v5522 = vpop.f32.mrf.mxu0
    %5523 = vmatprep.mubr.bf16.mxu0 0
    %5524 = vmatmul.mubr.bf16.gmra.mxu0 %v5365
    %v5525 = vpop.f32.mrf.mxu0
    %v5526 = vadd.f32 0.0, %v5525
    %v5527 = vpop.f32.mrf.mxu0
    %v5528 = vpop.f32.mrf.mxu0
    %v5529 = vadd.f32 0.0, %v5528
    %v5530 = vpop.f32.mrf.mxu0
    %5531 = vmatprep.mubr.bf16.mxu0 0
    %5532 = vmatmul.mubr.bf16.gmra.mxu0 %v5366
    %v5533 = vpop.f32.mrf.mxu0
    %v5534 = vadd.f32 0.0, %v5533
    %v5535 = vpop.f32.mrf.mxu0
    %v5536 = vpop.f32.mrf.mxu0
    %v5537 = vadd.f32 0.0, %v5536
    %v5538 = vpop.f32.mrf.mxu0
    %5539 = vmatprep.mubr.bf16.mxu0 0
    %5540 = vmatmul.mubr.bf16.gmra.mxu0 %v5367
    %v5541 = vpop.f32.mrf.mxu0
    %v5542 = vadd.f32 0.0, %v5541
    %v5543 = vpop.f32.mrf.mxu0
    %v5544 = vpop.f32.mrf.mxu0
    %v5545 = vadd.f32 0.0, %v5544
    %v5546 = vpop.f32.mrf.mxu0
    %5547 = vmatprep.mubr.bf16.mxu0 0
    %5548 = vmatmul.mubr.bf16.gmra.mxu0 %v5368
    %v5549 = vpop.f32.mrf.mxu0
    %v5550 = vadd.f32 0.0, %v5549
    %v5551 = vpop.f32.mrf.mxu0
    %v5552 = vpop.f32.mrf.mxu0
    %v5553 = vadd.f32 0.0, %v5552
    %v5554 = vpop.f32.mrf.mxu0
    %5555 = vmatprep.mubr.bf16.mxu0 0
    %5556 = vmatmul.mubr.bf16.gmra.mxu0 %v5369
    %v5557 = vpop.f32.mrf.mxu0
    %v5558 = vadd.f32 0.0, %v5557
    %v5559 = vpop.f32.mrf.mxu0
    %v5560 = vpop.f32.mrf.mxu0
    %v5561 = vadd.f32 0.0, %v5560
    %v5562 = vpop.f32.mrf.mxu0
    %5563 = vmatprep.mubr.bf16.mxu0 0
    %5564 = vmatmul.mubr.bf16.gmra.mxu0 %v5370
    %v5565 = vpop.f32.mrf.mxu0
    %v5566 = vadd.f32 0.0, %v5565
    %v5567 = vpop.f32.mrf.mxu0
    %v5568 = vpop.f32.mrf.mxu0
    %v5569 = vadd.f32 0.0, %v5568
    %v5570 = vpop.f32.mrf.mxu0
    %5571 = vmatprep.mubr.bf16.mxu0 0
    %5572 = vmatmul.mubr.bf16.gmra.mxu0 %v5371
    %v5573 = vpop.f32.mrf.mxu0
    %v5574 = vadd.f32 0.0, %v5573
    %v5575 = vpop.f32.mrf.mxu0
    %v5576 = vpop.f32.mrf.mxu0
    %v5577 = vadd.f32 0.0, %v5576
    %v5578 = vpop.f32.mrf.mxu0
    %5579 = vmatprep.mubr.bf16.mxu0 0
    %5580 = vmatmul.mubr.bf16.gmra.mxu0 %v5372
    %v5581 = vpop.f32.mrf.mxu0
    %v5582 = vadd.f32 0.0, %v5581
    %v5583 = vpop.f32.mrf.mxu0
    %v5584 = vpop.f32.mrf.mxu0
    %v5585 = vadd.f32 0.0, %v5584
    %v5586 = vpop.f32.mrf.mxu0
    %5587 = vmatprep.mubr.bf16.mxu0 0
    %5588 = vmatmul.mubr.bf16.gmra.mxu0 %v5373
    %v5589 = vpop.f32.mrf.mxu0
    %v5590 = vadd.f32 0.0, %v5589
    %v5591 = vpop.f32.mrf.mxu0
    %v5592 = vpop.f32.mrf.mxu0
    %v5593 = vadd.f32 0.0, %v5592
    %v5594 = vpop.f32.mrf.mxu0
    %5595 = vmatprep.mubr.bf16.mxu0 0
    %5596 = vmatmul.mubr.bf16.gmra.mxu0 %v5374
    %v5597 = vpop.f32.mrf.mxu0
    %v5598 = vadd.f32 0.0, %v5597
    %v5599 = vpop.f32.mrf.mxu0
    %v5600 = vpop.f32.mrf.mxu0
    %v5601 = vadd.f32 0.0, %v5600
    %v5602 = vpop.f32.mrf.mxu0
    %5603 = vmatprep.mubr.bf16.mxu0 0
    %5604 = vmatmul.mubr.bf16.gmra.mxu0 %v5375
    %v5605 = vpop.f32.mrf.mxu0
    %v5606 = vadd.f32 0.0, %v5605
    %v5607 = vpop.f32.mrf.mxu0
    %v5608 = vpop.f32.mrf.mxu0
    %v5609 = vadd.f32 0.0, %v5608
    %v5610 = vpop.f32.mrf.mxu0
    %5611 = vmatprep.mubr.bf16.mxu0 0
    %5612 = vmatmul.mubr.bf16.gmra.mxu0 %v5376
    %v5613 = vpop.f32.mrf.mxu0
    %v5614 = vadd.f32 0.0, %v5613
    %v5615 = vpop.f32.mrf.mxu0
    %v5616 = vpop.f32.mrf.mxu0
    %v5617 = vadd.f32 0.0, %v5616
    %v5618 = vpop.f32.mrf.mxu0
    %5619 = vmatprep.mubr.bf16.mxu0 0
    %5620 = vmatmul.mubr.bf16.gmra.mxu0 %v5377
    %v5621 = vpop.f32.mrf.mxu0
    %v5622 = vadd.f32 0.0, %v5621
    %v5623 = vpop.f32.mrf.mxu0
    %v5624 = vpop.f32.mrf.mxu0
    %v5625 = vadd.f32 0.0, %v5624
    %v5626 = vpop.f32.mrf.mxu0
    %5627 = vmatprep.mubr.bf16.mxu0 0
    %5628 = vmatmul.mubr.bf16.gmra.mxu0 %v5378
    %v5629 = vpop.f32.mrf.mxu0
    %v5630 = vadd.f32 0.0, %v5629
    %v5631 = vpop.f32.mrf.mxu0
    %v5632 = vpop.f32.mrf.mxu0
    %v5633 = vadd.f32 0.0, %v5632
    %v5634 = vpop.f32.mrf.mxu0
    %5635 = vmatprep.mubr.bf16.mxu0 0
    %5636 = vmatmul.mubr.bf16.gmra.mxu0 %v5379
    %v5637 = vpop.f32.mrf.mxu0
    %v5638 = vadd.f32 0.0, %v5637
    %v5639 = vpop.f32.mrf.mxu0
    %v5640 = vpop.f32.mrf.mxu0
    %v5641 = vadd.f32 0.0, %v5640
    %v5642 = vpop.f32.mrf.mxu0
    %5643 = vmatprep.mubr.bf16.mxu0 0
    %5644 = vmatmul.mubr.bf16.gmra.mxu0 %v5380
    %v5645 = vpop.f32.mrf.mxu0
    %v5646 = vadd.f32 0.0, %v5645
    %v5647 = vpop.f32.mrf.mxu0
    %v5648 = vpop.f32.mrf.mxu0
    %v5649 = vadd.f32 0.0, %v5648
    %v5650 = vpop.f32.mrf.mxu0
    %5651 = vmatprep.mubr.bf16.mxu0 0
    %5652 = vmatmul.mubr.bf16.gmra.mxu0 %v5381
    %v5653 = vpop.f32.mrf.mxu0
    %v5654 = vadd.f32 0.0, %v5653
    %v5655 = vpop.f32.mrf.mxu0
    %v5656 = vpop.f32.mrf.mxu0
    %v5657 = vadd.f32 0.0, %v5656
    %v5658 = vpop.f32.mrf.mxu0
    %5659 = vmatprep.mubr.bf16.mxu0 0
    %5660 = vmatmul.mubr.bf16.gmra.mxu0 %v5382
    %v5661 = vpop.f32.mrf.mxu0
    %v5662 = vadd.f32 0.0, %v5661
    %v5663 = vpop.f32.mrf.mxu0
    %v5664 = vpop.f32.mrf.mxu0
    %v5665 = vadd.f32 0.0, %v5664
    %v5666 = vpop.f32.mrf.mxu0
    %5667 = vmatprep.mubr.bf16.mxu0 0
    %5668 = vmatmul.mubr.bf16.gmra.mxu0 %v5383
    %v5669 = vpop.f32.mrf.mxu0
    %v5670 = vadd.f32 0.0, %v5669
    %v5671 = vpop.f32.mrf.mxu0
    %v5672 = vpop.f32.mrf.mxu0
    %v5673 = vadd.f32 0.0, %v5672
    %v5674 = vpop.f32.mrf.mxu0
    %5675 = vmatprep.mubr.bf16.mxu0 0
    %5676 = vmatmul.mubr.bf16.gmra.mxu0 %v5384
    %v5677 = vpop.f32.mrf.mxu0
    %v5678 = vadd.f32 0.0, %v5677
    %v5679 = vpop.f32.mrf.mxu0
    %v5680 = vpop.f32.mrf.mxu0
    %v5681 = vadd.f32 0.0, %v5680
    %v5682 = vpop.f32.mrf.mxu0
    %5683 = vmatprep.mubr.bf16.mxu0 0
    %5684 = vmatmul.mubr.bf16.gmra.mxu0 %v5385
    %v5685 = vpop.f32.mrf.mxu0
    %v5686 = vadd.f32 0.0, %v5685
    %v5687 = vpop.f32.mrf.mxu0
    %v5688 = vpop.f32.mrf.mxu0
    %v5689 = vadd.f32 0.0, %v5688
    %v5690 = vpop.f32.mrf.mxu0
    %5691 = vmatprep.mubr.bf16.mxu0 0
    %5692 = vmatmul.mubr.bf16.gmra.mxu0 %v5386
    %v5693 = vpop.f32.mrf.mxu0
    %v5694 = vadd.f32 0.0, %v5693
    %v5695 = vpop.f32.mrf.mxu0
    %v5696 = vpop.f32.mrf.mxu0
    %v5697 = vadd.f32 0.0, %v5696
    %v5698 = vpop.f32.mrf.mxu0
    %5699 = vmatprep.mubr.bf16.mxu0 0
    %5700 = vmatmul.mubr.bf16.gmra.mxu0 %v5387
    %v5701 = vpop.f32.mrf.mxu0
    %v5702 = vadd.f32 0.0, %v5701
    %v5703 = vpop.f32.mrf.mxu0
    %v5704 = vpop.f32.mrf.mxu0
    %v5705 = vadd.f32 0.0, %v5704
    %v5706 = vpop.f32.mrf.mxu0
    %5707 = vmatprep.mubr.bf16.mxu0 0
    %5708 = vmatmul.mubr.bf16.gmra.mxu0 %v5388
    %v5709 = vpop.f32.mrf.mxu0
    %v5710 = vadd.f32 0.0, %v5709
    %v5711 = vpop.f32.mrf.mxu0
    %v5712 = vpop.f32.mrf.mxu0
    %v5713 = vadd.f32 0.0, %v5712
    %v5714 = vpop.f32.mrf.mxu0
    %5715 = vmatprep.mubr.bf16.mxu0 0
    %5716 = vmatmul.mubr.bf16.gmra.mxu0 %v5389
    %v5717 = vpop.f32.mrf.mxu0
    %v5718 = vadd.f32 0.0, %v5717
    %v5719 = vpop.f32.mrf.mxu0
    %v5720 = vpop.f32.mrf.mxu0
    %v5721 = vadd.f32 0.0, %v5720
    %v5722 = vpop.f32.mrf.mxu0
    %5723 = vmatprep.mubr.bf16.mxu0 0
    %5724 = vmatmul.mubr.bf16.gmra.mxu0 %v5390
    %v5725 = vpop.f32.mrf.mxu0
    %v5726 = vadd.f32 0.0, %v5725
    %v5727 = vpop.f32.mrf.mxu0
    %v5728 = vpop.f32.mrf.mxu0
    %v5729 = vadd.f32 0.0, %v5728
    %v5730 = vpop.f32.mrf.mxu0
    %5731 = vmatprep.mubr.bf16.mxu0 0
    %5732 = vmatmul.mubr.bf16.gmra.mxu0 %v5391
    %v5733 = vpop.f32.mrf.mxu0
    %v5734 = vadd.f32 0.0, %v5733
    %v5735 = vpop.f32.mrf.mxu0
    %v5736 = vpop.f32.mrf.mxu0
    %v5737 = vadd.f32 0.0, %v5736
    %v5738 = vpop.f32.mrf.mxu0
    %5739 = vmatprep.mubr.bf16.mxu0 0
    %5740 = vmatmul.mubr.bf16.gmra.mxu0 %v5392
    %v5741 = vpop.f32.mrf.mxu0
    %v5742 = vadd.f32 0.0, %v5741
    %v5743 = vpop.f32.mrf.mxu0
    %v5744 = vpop.f32.mrf.mxu0
    %v5745 = vadd.f32 0.0, %v5744
    %v5746 = vpop.f32.mrf.mxu0
    %5747 = vmatprep.mubr.bf16.mxu0 0
    %5748 = vmatmul.mubr.bf16.gmra.mxu0 %v5393
    %v5749 = vpop.f32.mrf.mxu0
    %v5750 = vadd.f32 0.0, %v5749
    %v5751 = vpop.f32.mrf.mxu0
    %v5752 = vpop.f32.mrf.mxu0
    %v5753 = vadd.f32 0.0, %v5752
    %v5754 = vpop.f32.mrf.mxu0
    %5755 = vmatprep.mubr.bf16.mxu0 0
    %5756 = vmatmul.mubr.bf16.gmra.mxu0 %v5394
    %v5757 = vpop.f32.mrf.mxu0
    %v5758 = vadd.f32 0.0, %v5757
    %v5759 = vpop.f32.mrf.mxu0
    %v5760 = vpop.f32.mrf.mxu0
    %v5761 = vadd.f32 0.0, %v5760
    %v5762 = vpop.f32.mrf.mxu0
    %5763 = vdwg.mxu0
    %v5764 = vadd.f32 %v5091, %v5510
    %v5765 = vadd.f32 %v5092, %v5513
    %v5766 = vadd.f32 %v5093, %v5518
    %v5767 = vadd.f32 %v5094, %v5521
    %v5768 = vadd.f32 %v5095, %v5526
    %v5769 = vadd.f32 %v5096, %v5529
    %v5770 = vadd.f32 %v5097, %v5534
    %v5771 = vadd.f32 %v5098, %v5537
    %v5772 = vadd.f32 %v5099, %v5542
    %v5773 = vadd.f32 %v5100, %v5545
    %v5774 = vadd.f32 %v5101, %v5550
    %v5775 = vadd.f32 %v5102, %v5553
    %v5776 = vadd.f32 %v5103, %v5558
    %v5777 = vadd.f32 %v5104, %v5561
    %v5778 = vadd.f32 %v5105, %v5566
    %v5779 = vadd.f32 %v5106, %v5569
    %v5780 = vadd.f32 %v5107, %v5574
    %v5781 = vadd.f32 %v5108, %v5577
    %v5782 = vadd.f32 %v5109, %v5582
    %v5783 = vadd.f32 %v5110, %v5585
    %v5784 = vadd.f32 %v5111, %v5590
    %v5785 = vadd.f32 %v5112, %v5593
    %v5786 = vadd.f32 %v5113, %v5598
    %v5787 = vadd.f32 %v5114, %v5601
    %v5788 = vadd.f32 %v5115, %v5606
    %v5789 = vadd.f32 %v5116, %v5609
    %v5790 = vadd.f32 %v5117, %v5614
    %v5791 = vadd.f32 %v5118, %v5617
    %v5792 = vadd.f32 %v5119, %v5622
    %v5793 = vadd.f32 %v5120, %v5625
    %v5794 = vadd.f32 %v5121, %v5630
    %v5795 = vadd.f32 %v5122, %v5633
    %v5796 = vadd.f32 %v5123, %v5638
    %v5797 = vadd.f32 %v5124, %v5641
    %v5798 = vadd.f32 %v5125, %v5646
    %v5799 = vadd.f32 %v5126, %v5649
    %v5800 = vadd.f32 %v5127, %v5654
    %v5801 = vadd.f32 %v5128, %v5657
    %v5802 = vadd.f32 %v5129, %v5662
    %v5803 = vadd.f32 %v5130, %v5665
    %v5804 = vadd.f32 %v5131, %v5670
    %v5805 = vadd.f32 %v5132, %v5673
    %v5806 = vadd.f32 %v5133, %v5678
    %v5807 = vadd.f32 %v5134, %v5681
    %v5808 = vadd.f32 %v5135, %v5686
    %v5809 = vadd.f32 %v5136, %v5689
    %v5810 = vadd.f32 %v5137, %v5694
    %v5811 = vadd.f32 %v5138, %v5697
    %v5812 = vadd.f32 %v5139, %v5702
    %v5813 = vadd.f32 %v5140, %v5705
    %v5814 = vadd.f32 %v5141, %v5710
    %v5815 = vadd.f32 %v5142, %v5713
    %v5816 = vadd.f32 %v5143, %v5718
    %v5817 = vadd.f32 %v5144, %v5721
    %v5818 = vadd.f32 %v5145, %v5726
    %v5819 = vadd.f32 %v5146, %v5729
    %v5820 = vadd.f32 %v5147, %v5734
    %v5821 = vadd.f32 %v5148, %v5737
    %v5822 = vadd.f32 %v5149, %v5742
    %v5823 = vadd.f32 %v5150, %v5745
    %v5824 = vadd.f32 %v5151, %v5750
    %v5825 = vadd.f32 %v5152, %v5753
    %v5826 = vadd.f32 %v5153, %v5758
    %v5827 = vadd.f32 %v5154, %v5761
    %v5828 = vld [vmem:[%s2164] sm:$0xf]
    %v5829 = vld [vmem:[%s2164 + $0x4] sm:$0xf]
    %v5830 = vld [vmem:[%s2164 + $0x8] sm:$0x1]
    %v5831 = vld [vmem:[%s2164 + $0xc] sm:$0xf]
    %v5832 = vld [vmem:[%s2164 + $0x10] sm:$0xf]
    %v5833 = vld [vmem:[%s2164 + $0x14] sm:$0x1]
    %v5834 = vld [vmem:[%s2164 + $0x18] sm:$0xf]
    %v5835 = vld [vmem:[%s2164 + $0x1c] sm:$0xf]
    %v5836 = vld [vmem:[%s2164 + $0x20] sm:$0x1]
    %v5837 = vld [vmem:[%s2164 + $0x24] sm:$0xf]
    %v5838 = vld [vmem:[%s2164 + $0x28] sm:$0xf]
    %v5839 = vld [vmem:[%s2164 + $0x2c] sm:$0x1]
    %v5840 = vld [vmem:[%s2164 + $0x30] sm:$0xf]
    %v5841 = vld [vmem:[%s2164 + $0x34] sm:$0xf]
    %v5842 = vld [vmem:[%s2164 + $0x38] sm:$0x1]
    %v5843 = vld [vmem:[%s2164 + $0x3c] sm:$0xf]
    %v5844 = vld [vmem:[%s2164 + $0x40] sm:$0xf]
    %v5845 = vld [vmem:[%s2164 + $0x44] sm:$0x1]
    %v5846 = vld [vmem:[%s2164 + $0x48] sm:$0xf]
    %v5847 = vld [vmem:[%s2164 + $0x4c] sm:$0xf]
    %v5848 = vld [vmem:[%s2164 + $0x50] sm:$0x1]
    %v5849 = vld [vmem:[%s2164 + $0x54] sm:$0xf]
    %v5850 = vld [vmem:[%s2164 + $0x58] sm:$0xf]
    %v5851 = vld [vmem:[%s2164 + $0x5c] sm:$0x1]
    %v5852 = vld [vmem:[%s2164 + $0x60] sm:$0xf]
    %v5853 = vld [vmem:[%s2164 + $0x64] sm:$0xf]
    %v5854 = vld [vmem:[%s2164 + $0x68] sm:$0x1]
    %v5855 = vld [vmem:[%s2164 + $0x6c] sm:$0xf]
    %v5856 = vld [vmem:[%s2164 + $0x70] sm:$0xf]
    %v5857 = vld [vmem:[%s2164 + $0x74] sm:$0x1]
    %v5858 = vld [vmem:[%s2164 + $0x78] sm:$0xf]
    %v5859 = vld [vmem:[%s2164 + $0x7c] sm:$0xf]
    %v5860 = vld [vmem:[%s2164 + $0x80] sm:$0x1]
    %v5861 = vld [vmem:[%s2164 + $0x84] sm:$0xf]
    %v5862 = vld [vmem:[%s2164 + $0x88] sm:$0xf]
    %v5863 = vld [vmem:[%s2164 + $0x8c] sm:$0x1]
    %v5864 = vld [vmem:[%s2164 + $0x90] sm:$0xf]
    %v5865 = vld [vmem:[%s2164 + $0x94] sm:$0xf]
    %v5866 = vld [vmem:[%s2164 + $0x98] sm:$0x1]
    %v5867 = vld [vmem:[%s2164 + $0x9c] sm:$0xf]
    %v5868 = vld [vmem:[%s2164 + $0xa0] sm:$0xf]
    %v5869 = vld [vmem:[%s2164 + $0xa4] sm:$0x1]
    %v5870 = vld [vmem:[%s2164 + $0xa8] sm:$0xf]
    %v5871 = vld [vmem:[%s2164 + $0xac] sm:$0xf]
    %v5872 = vld [vmem:[%s2164 + $0xb0] sm:$0x1]
    %v5873 = vld [vmem:[%s2164 + $0xb4] sm:$0xf]
    %v5874 = vld [vmem:[%s2164 + $0xb8] sm:$0xf]
    %v5875 = vld [vmem:[%s2164 + $0xbc] sm:$0x1]
    %v5876 = vld [vmem:[%s2164 + $0xd8] sm:$0xf]
    %v5877 = vld [vmem:[%s2164 + $0xdc] sm:$0xf]
    %v5878 = vld [vmem:[%s2164 + $0xe0] sm:$0x1]
    %v5879 = vld [vmem:[%s2164 + $0xe4] sm:$0xf]
    %v5880 = vld [vmem:[%s2164 + $0xe8] sm:$0xf]
    %v5881 = vld [vmem:[%s2164 + $0xec] sm:$0x1]
    %v5882 = vld [vmem:[%s2164 + $0xf0] sm:$0xf]
    %v5883 = vld [vmem:[%s2164 + $0xf4] sm:$0xf]
    %v5884 = vld [vmem:[%s2164 + $0xf8] sm:$0x1]
    %v5885 = vld [vmem:[%s2164 + $0xfc] sm:$0xf]
    %v5886 = vld [vmem:[%s2164 + $0x100] sm:$0xf]
    %v5887 = vld [vmem:[%s2164 + $0x104] sm:$0x1]
    %v5888 = vld [vmem:[%s2164 + $0x108] sm:$0xf]
    %v5889 = vld [vmem:[%s2164 + $0x10c] sm:$0xf]
    %v5890 = vld [vmem:[%s2164 + $0x110] sm:$0x1]
    %v5891 = vld [vmem:[%s2164 + $0x114] sm:$0xf]
    %v5892 = vld [vmem:[%s2164 + $0x118] sm:$0xf]
    %v5893 = vld [vmem:[%s2164 + $0x11c] sm:$0x1]
    %v5894 = vld [vmem:[%s2164 + $0x120] sm:$0xf]
    %v5895 = vld [vmem:[%s2164 + $0x124] sm:$0xf]
    %v5896 = vld [vmem:[%s2164 + $0x128] sm:$0x1]
    %v5897 = vld [vmem:[%s2164 + $0x12c] sm:$0xf]
    %v5898 = vld [vmem:[%s2164 + $0x130] sm:$0xf]
    %v5899 = vld [vmem:[%s2164 + $0x134] sm:$0x1]
    %v5900 = vld [vmem:[%s2164 + $0x138] sm:$0xf]
    %v5901 = vld [vmem:[%s2164 + $0x13c] sm:$0xf]
    %v5902 = vld [vmem:[%s2164 + $0x140] sm:$0x1]
    %v5903 = vld [vmem:[%s2164 + $0x144] sm:$0xf]
    %v5904 = vld [vmem:[%s2164 + $0x148] sm:$0xf]
    %v5905 = vld [vmem:[%s2164 + $0x14c] sm:$0x1]
    %v5906 = vld [vmem:[%s2164 + $0x150] sm:$0xf]
    %v5907 = vld [vmem:[%s2164 + $0x154] sm:$0xf]
    %v5908 = vld [vmem:[%s2164 + $0x158] sm:$0x1]
    %v5909 = vld [vmem:[%s2164 + $0x15c] sm:$0xf]
    %v5910 = vld [vmem:[%s2164 + $0x160] sm:$0xf]
    %v5911 = vld [vmem:[%s2164 + $0x164] sm:$0x1]
    %v5912 = vld [vmem:[%s2164 + $0x168] sm:$0xf]
    %v5913 = vld [vmem:[%s2164 + $0x16c] sm:$0xf]
    %v5914 = vld [vmem:[%s2164 + $0x170] sm:$0x1]
    %v5915 = vld [vmem:[%s2164 + $0x174] sm:$0xf]
    %v5916 = vld [vmem:[%s2164 + $0x178] sm:$0xf]
    %v5917 = vld [vmem:[%s2164 + $0x17c] sm:$0x1]
    %v5918 = vld [vmem:[%s2164 + $0x180] sm:$0xf]
    %v5919 = vld [vmem:[%s2164 + $0x184] sm:$0xf]
    %v5920 = vld [vmem:[%s2164 + $0x188] sm:$0x1]
    %v5921 = vld [vmem:[%s2164 + $0x18c] sm:$0xf]
    %v5922 = vld [vmem:[%s2164 + $0x190] sm:$0xf]
    %v5923 = vld [vmem:[%s2164 + $0x194] sm:$0x1]
    %v5925 = vshrl.u32 %v5828, 16
    %v5927 = vrot.slane %v5925, 4
    %v5928 = vshll.u32 %v5828, 16
    %v5930 = vrot.slane %v5928, 5
    %v5931 = vor.u32 %v5927, %v5930
    %v5932 = vrot.slane %v5931, 4
    %v5934 = vshll.u32 %v5829, 16
    %v5936 = vrot.slane %v5934, 5
    %v5937 = vsel %vm2508, %v5932, %v5936
    %v5938 = vshrl.u32 %v5829, 16
    %v5940 = vrot.slane %v5938, 4
    %v5941 = vor.u32 %v5940, %v5936
    %v5942 = vrot.slane %v5941, 4
    %v5944 = vshll.u32 %v5830, 16
    %v5946 = vrot.slane %v5944, 5
    %v5947 = vsel %vm2508, %v5942, %v5946
    %v5949 = vshrl.u32 %v5831, 16
    %v5951 = vrot.slane %v5949, 4
    %v5952 = vshll.u32 %v5831, 16
    %v5954 = vrot.slane %v5952, 5
    %v5955 = vor.u32 %v5951, %v5954
    %v5956 = vrot.slane %v5955, 4
    %v5958 = vshll.u32 %v5832, 16
    %v5960 = vrot.slane %v5958, 5
    %v5961 = vsel %vm2508, %v5956, %v5960
    %v5962 = vshrl.u32 %v5832, 16
    %v5964 = vrot.slane %v5962, 4
    %v5965 = vor.u32 %v5964, %v5960
    %v5966 = vrot.slane %v5965, 4
    %v5968 = vshll.u32 %v5833, 16
    %v5970 = vrot.slane %v5968, 5
    %v5971 = vsel %vm2508, %v5966, %v5970
    %v5973 = vshrl.u32 %v5834, 16
    %v5975 = vrot.slane %v5973, 4
    %v5976 = vshll.u32 %v5834, 16
    %v5978 = vrot.slane %v5976, 5
    %v5979 = vor.u32 %v5975, %v5978
    %v5980 = vrot.slane %v5979, 4
    %v5982 = vshll.u32 %v5835, 16
    %v5984 = vrot.slane %v5982, 5
    %v5985 = vsel %vm2508, %v5980, %v5984
    %v5986 = vshrl.u32 %v5835, 16
    %v5988 = vrot.slane %v5986, 4
    %v5989 = vor.u32 %v5988, %v5984
    %v5990 = vrot.slane %v5989, 4
    %v5992 = vshll.u32 %v5836, 16
    %v5994 = vrot.slane %v5992, 5
    %v5995 = vsel %vm2508, %v5990, %v5994
    %v5997 = vshrl.u32 %v5837, 16
    %v5999 = vrot.slane %v5997, 4
    %v6000 = vshll.u32 %v5837, 16
    %v6002 = vrot.slane %v6000, 5
    %v6003 = vor.u32 %v5999, %v6002
    %v6004 = vrot.slane %v6003, 4
    %v6006 = vshll.u32 %v5838, 16
    %v6008 = vrot.slane %v6006, 5
    %v6009 = vsel %vm2508, %v6004, %v6008
    %v6010 = vshrl.u32 %v5838, 16
    %v6012 = vrot.slane %v6010, 4
    %v6013 = vor.u32 %v6012, %v6008
    %v6014 = vrot.slane %v6013, 4
    %v6016 = vshll.u32 %v5839, 16
    %v6018 = vrot.slane %v6016, 5
    %v6019 = vsel %vm2508, %v6014, %v6018
    %v6021 = vshrl.u32 %v5840, 16
    %v6023 = vrot.slane %v6021, 4
    %v6024 = vshll.u32 %v5840, 16
    %v6026 = vrot.slane %v6024, 5
    %v6027 = vor.u32 %v6023, %v6026
    %v6028 = vrot.slane %v6027, 4
    %v6030 = vshll.u32 %v5841, 16
    %v6032 = vrot.slane %v6030, 5
    %v6033 = vsel %vm2508, %v6028, %v6032
    %v6034 = vshrl.u32 %v5841, 16
    %v6036 = vrot.slane %v6034, 4
    %v6037 = vor.u32 %v6036, %v6032
    %v6038 = vrot.slane %v6037, 4
    %v6040 = vshll.u32 %v5842, 16
    %v6042 = vrot.slane %v6040, 5
    %v6043 = vsel %vm2508, %v6038, %v6042
    %v6045 = vshrl.u32 %v5843, 16
    %v6047 = vrot.slane %v6045, 4
    %v6048 = vshll.u32 %v5843, 16
    %v6050 = vrot.slane %v6048, 5
    %v6051 = vor.u32 %v6047, %v6050
    %v6052 = vrot.slane %v6051, 4
    %v6054 = vshll.u32 %v5844, 16
    %v6056 = vrot.slane %v6054, 5
    %v6057 = vsel %vm2508, %v6052, %v6056
    %v6058 = vshrl.u32 %v5844, 16
    %v6060 = vrot.slane %v6058, 4
    %v6061 = vor.u32 %v6060, %v6056
    %v6062 = vrot.slane %v6061, 4
    %v6064 = vshll.u32 %v5845, 16
    %v6066 = vrot.slane %v6064, 5
    %v6067 = vsel %vm2508, %v6062, %v6066
    %v6069 = vshrl.u32 %v5846, 16
    %v6071 = vrot.slane %v6069, 4
    %v6072 = vshll.u32 %v5846, 16
    %v6074 = vrot.slane %v6072, 5
    %v6075 = vor.u32 %v6071, %v6074
    %v6076 = vrot.slane %v6075, 4
    %v6078 = vshll.u32 %v5847, 16
    %v6080 = vrot.slane %v6078, 5
    %v6081 = vsel %vm2508, %v6076, %v6080
    %v6082 = vshrl.u32 %v5847, 16
    %v6084 = vrot.slane %v6082, 4
    %v6085 = vor.u32 %v6084, %v6080
    %v6086 = vrot.slane %v6085, 4
    %v6088 = vshll.u32 %v5848, 16
    %v6090 = vrot.slane %v6088, 5
    %v6091 = vsel %vm2508, %v6086, %v6090
    %v6093 = vshrl.u32 %v5849, 16
    %v6095 = vrot.slane %v6093, 4
    %v6096 = vshll.u32 %v5849, 16
    %v6098 = vrot.slane %v6096, 5
    %v6099 = vor.u32 %v6095, %v6098
    %v6100 = vrot.slane %v6099, 4
    %v6102 = vshll.u32 %v5850, 16
    %v6104 = vrot.slane %v6102, 5
    %v6105 = vsel %vm2508, %v6100, %v6104
    %v6106 = vshrl.u32 %v5850, 16
    %v6108 = vrot.slane %v6106, 4
    %v6109 = vor.u32 %v6108, %v6104
    %v6110 = vrot.slane %v6109, 4
    %v6112 = vshll.u32 %v5851, 16
    %v6114 = vrot.slane %v6112, 5
    %v6115 = vsel %vm2508, %v6110, %v6114
    %v6117 = vshrl.u32 %v5852, 16
    %v6119 = vrot.slane %v6117, 4
    %v6120 = vshll.u32 %v5852, 16
    %v6122 = vrot.slane %v6120, 5
    %v6123 = vor.u32 %v6119, %v6122
    %v6124 = vrot.slane %v6123, 4
    %v6126 = vshll.u32 %v5853, 16
    %v6128 = vrot.slane %v6126, 5
    %v6129 = vsel %vm2508, %v6124, %v6128
    %v6130 = vshrl.u32 %v5853, 16
    %v6132 = vrot.slane %v6130, 4
    %v6133 = vor.u32 %v6132, %v6128
    %v6134 = vrot.slane %v6133, 4
    %v6136 = vshll.u32 %v5854, 16
    %v6138 = vrot.slane %v6136, 5
    %v6139 = vsel %vm2508, %v6134, %v6138
    %v6141 = vshrl.u32 %v5855, 16
    %v6143 = vrot.slane %v6141, 4
    %v6144 = vshll.u32 %v5855, 16
    %v6146 = vrot.slane %v6144, 5
    %v6147 = vor.u32 %v6143, %v6146
    %v6148 = vrot.slane %v6147, 4
    %v6150 = vshll.u32 %v5856, 16
    %v6152 = vrot.slane %v6150, 5
    %v6153 = vsel %vm2508, %v6148, %v6152
    %v6154 = vshrl.u32 %v5856, 16
    %v6156 = vrot.slane %v6154, 4
    %v6157 = vor.u32 %v6156, %v6152
    %v6158 = vrot.slane %v6157, 4
    %v6160 = vshll.u32 %v5857, 16
    %v6162 = vrot.slane %v6160, 5
    %v6163 = vsel %vm2508, %v6158, %v6162
    %v6165 = vshrl.u32 %v5858, 16
    %v6167 = vrot.slane %v6165, 4
    %v6168 = vshll.u32 %v5858, 16
    %v6170 = vrot.slane %v6168, 5
    %v6171 = vor.u32 %v6167, %v6170
    %v6172 = vrot.slane %v6171, 4
    %v6174 = vshll.u32 %v5859, 16
    %v6176 = vrot.slane %v6174, 5
    %v6177 = vsel %vm2508, %v6172, %v6176
    %v6178 = vshrl.u32 %v5859, 16
    %v6180 = vrot.slane %v6178, 4
    %v6181 = vor.u32 %v6180, %v6176
    %v6182 = vrot.slane %v6181, 4
    %v6184 = vshll.u32 %v5860, 16
    %v6186 = vrot.slane %v6184, 5
    %v6187 = vsel %vm2508, %v6182, %v6186
    %v6189 = vshrl.u32 %v5861, 16
    %v6191 = vrot.slane %v6189, 4
    %v6192 = vshll.u32 %v5861, 16
    %v6194 = vrot.slane %v6192, 5
    %v6195 = vor.u32 %v6191, %v6194
    %v6196 = vrot.slane %v6195, 4
    %v6198 = vshll.u32 %v5862, 16
    %v6200 = vrot.slane %v6198, 5
    %v6201 = vsel %vm2508, %v6196, %v6200
    %v6202 = vshrl.u32 %v5862, 16
    %v6204 = vrot.slane %v6202, 4
    %v6205 = vor.u32 %v6204, %v6200
    %v6206 = vrot.slane %v6205, 4
    %v6208 = vshll.u32 %v5863, 16
    %v6210 = vrot.slane %v6208, 5
    %v6211 = vsel %vm2508, %v6206, %v6210
    %v6213 = vshrl.u32 %v5864, 16
    %v6215 = vrot.slane %v6213, 4
    %v6216 = vshll.u32 %v5864, 16
    %v6218 = vrot.slane %v6216, 5
    %v6219 = vor.u32 %v6215, %v6218
    %v6220 = vrot.slane %v6219, 4
    %v6222 = vshll.u32 %v5865, 16
    %v6224 = vrot.slane %v6222, 5
    %v6225 = vsel %vm2508, %v6220, %v6224
    %v6226 = vshrl.u32 %v5865, 16
    %v6228 = vrot.slane %v6226, 4
    %v6229 = vor.u32 %v6228, %v6224
    %v6230 = vrot.slane %v6229, 4
    %v6232 = vshll.u32 %v5866, 16
    %v6234 = vrot.slane %v6232, 5
    %v6235 = vsel %vm2508, %v6230, %v6234
    %v6237 = vshrl.u32 %v5867, 16
    %v6239 = vrot.slane %v6237, 4
    %v6240 = vshll.u32 %v5867, 16
    %v6242 = vrot.slane %v6240, 5
    %v6243 = vor.u32 %v6239, %v6242
    %v6244 = vrot.slane %v6243, 4
    %v6246 = vshll.u32 %v5868, 16
    %v6248 = vrot.slane %v6246, 5
    %v6249 = vsel %vm2508, %v6244, %v6248
    %v6250 = vshrl.u32 %v5868, 16
    %v6252 = vrot.slane %v6250, 4
    %v6253 = vor.u32 %v6252, %v6248
    %v6254 = vrot.slane %v6253, 4
    %v6256 = vshll.u32 %v5869, 16
    %v6258 = vrot.slane %v6256, 5
    %v6259 = vsel %vm2508, %v6254, %v6258
    %v6261 = vshrl.u32 %v5870, 16
    %v6263 = vrot.slane %v6261, 4
    %v6264 = vshll.u32 %v5870, 16
    %v6266 = vrot.slane %v6264, 5
    %v6267 = vor.u32 %v6263, %v6266
    %v6268 = vrot.slane %v6267, 4
    %v6270 = vshll.u32 %v5871, 16
    %v6272 = vrot.slane %v6270, 5
    %v6273 = vsel %vm2508, %v6268, %v6272
    %v6274 = vshrl.u32 %v5871, 16
    %v6276 = vrot.slane %v6274, 4
    %v6277 = vor.u32 %v6276, %v6272
    %v6278 = vrot.slane %v6277, 4
    %v6280 = vshll.u32 %v5872, 16
    %v6282 = vrot.slane %v6280, 5
    %v6283 = vsel %vm2508, %v6278, %v6282
    %v6285 = vshrl.u32 %v5873, 16
    %v6287 = vrot.slane %v6285, 4
    %v6288 = vshll.u32 %v5873, 16
    %v6290 = vrot.slane %v6288, 5
    %v6291 = vor.u32 %v6287, %v6290
    %v6292 = vrot.slane %v6291, 4
    %v6294 = vshll.u32 %v5874, 16
    %v6296 = vrot.slane %v6294, 5
    %v6297 = vsel %vm2508, %v6292, %v6296
    %v6298 = vshrl.u32 %v5874, 16
    %v6300 = vrot.slane %v6298, 4
    %v6301 = vor.u32 %v6300, %v6296
    %v6302 = vrot.slane %v6301, 4
    %v6304 = vshll.u32 %v5875, 16
    %v6306 = vrot.slane %v6304, 5
    %v6307 = vsel %vm2508, %v6302, %v6306
    %v6309 = vshrl.u32 %v5876, 16
    %v6311 = vrot.slane %v6309, 4
    %v6312 = vshll.u32 %v5876, 16
    %v6314 = vrot.slane %v6312, 5
    %v6315 = vor.u32 %v6311, %v6314
    %v6316 = vrot.slane %v6315, 4
    %v6318 = vshll.u32 %v5877, 16
    %v6320 = vrot.slane %v6318, 5
    %v6321 = vsel %vm2508, %v6316, %v6320
    %v6322 = vshrl.u32 %v5877, 16
    %v6324 = vrot.slane %v6322, 4
    %v6325 = vor.u32 %v6324, %v6320
    %v6326 = vrot.slane %v6325, 4
    %v6328 = vshll.u32 %v5878, 16
    %v6330 = vrot.slane %v6328, 5
    %v6331 = vsel %vm2508, %v6326, %v6330
    %v6333 = vshrl.u32 %v5879, 16
    %v6335 = vrot.slane %v6333, 4
    %v6336 = vshll.u32 %v5879, 16
    %v6338 = vrot.slane %v6336, 5
    %v6339 = vor.u32 %v6335, %v6338
    %v6340 = vrot.slane %v6339, 4
    %v6342 = vshll.u32 %v5880, 16
    %v6344 = vrot.slane %v6342, 5
    %v6345 = vsel %vm2508, %v6340, %v6344
    %v6346 = vshrl.u32 %v5880, 16
    %v6348 = vrot.slane %v6346, 4
    %v6349 = vor.u32 %v6348, %v6344
    %v6350 = vrot.slane %v6349, 4
    %v6352 = vshll.u32 %v5881, 16
    %v6354 = vrot.slane %v6352, 5
    %v6355 = vsel %vm2508, %v6350, %v6354
    %v6357 = vshrl.u32 %v5882, 16
    %v6359 = vrot.slane %v6357, 4
    %v6360 = vshll.u32 %v5882, 16
    %v6362 = vrot.slane %v6360, 5
    %v6363 = vor.u32 %v6359, %v6362
    %v6364 = vrot.slane %v6363, 4
    %v6366 = vshll.u32 %v5883, 16
    %v6368 = vrot.slane %v6366, 5
    %v6369 = vsel %vm2508, %v6364, %v6368
    %v6370 = vshrl.u32 %v5883, 16
    %v6372 = vrot.slane %v6370, 4
    %v6373 = vor.u32 %v6372, %v6368
    %v6374 = vrot.slane %v6373, 4
    %v6376 = vshll.u32 %v5884, 16
    %v6378 = vrot.slane %v6376, 5
    %v6379 = vsel %vm2508, %v6374, %v6378
    %v6381 = vshrl.u32 %v5885, 16
    %v6383 = vrot.slane %v6381, 4
    %v6384 = vshll.u32 %v5885, 16
    %v6386 = vrot.slane %v6384, 5
    %v6387 = vor.u32 %v6383, %v6386
    %v6388 = vrot.slane %v6387, 4
    %v6390 = vshll.u32 %v5886, 16
    %v6392 = vrot.slane %v6390, 5
    %v6393 = vsel %vm2508, %v6388, %v6392
    %v6394 = vshrl.u32 %v5886, 16
    %v6396 = vrot.slane %v6394, 4
    %v6397 = vor.u32 %v6396, %v6392
    %v6398 = vrot.slane %v6397, 4
    %v6400 = vshll.u32 %v5887, 16
    %v6402 = vrot.slane %v6400, 5
    %v6403 = vsel %vm2508, %v6398, %v6402
    %v6405 = vshrl.u32 %v5888, 16
    %v6407 = vrot.slane %v6405, 4
    %v6408 = vshll.u32 %v5888, 16
    %v6410 = vrot.slane %v6408, 5
    %v6411 = vor.u32 %v6407, %v6410
    %v6412 = vrot.slane %v6411, 4
    %v6414 = vshll.u32 %v5889, 16
    %v6416 = vrot.slane %v6414, 5
    %v6417 = vsel %vm2508, %v6412, %v6416
    %v6418 = vshrl.u32 %v5889, 16
    %v6420 = vrot.slane %v6418, 4
    %v6421 = vor.u32 %v6420, %v6416
    %v6422 = vrot.slane %v6421, 4
    %v6424 = vshll.u32 %v5890, 16
    %v6426 = vrot.slane %v6424, 5
    %v6427 = vsel %vm2508, %v6422, %v6426
    %v6429 = vshrl.u32 %v5891, 16
    %v6431 = vrot.slane %v6429, 4
    %v6432 = vshll.u32 %v5891, 16
    %v6434 = vrot.slane %v6432, 5
    %v6435 = vor.u32 %v6431, %v6434
    %v6436 = vrot.slane %v6435, 4
    %v6438 = vshll.u32 %v5892, 16
    %v6440 = vrot.slane %v6438, 5
    %v6441 = vsel %vm2508, %v6436, %v6440
    %v6442 = vshrl.u32 %v5892, 16
    %v6444 = vrot.slane %v6442, 4
    %v6445 = vor.u32 %v6444, %v6440
    %v6446 = vrot.slane %v6445, 4
    %v6448 = vshll.u32 %v5893, 16
    %v6450 = vrot.slane %v6448, 5
    %v6451 = vsel %vm2508, %v6446, %v6450
    %v6453 = vshrl.u32 %v5894, 16
    %v6455 = vrot.slane %v6453, 4
    %v6456 = vshll.u32 %v5894, 16
    %v6458 = vrot.slane %v6456, 5
    %v6459 = vor.u32 %v6455, %v6458
    %v6460 = vrot.slane %v6459, 4
    %v6462 = vshll.u32 %v5895, 16
    %v6464 = vrot.slane %v6462, 5
    %v6465 = vsel %vm2508, %v6460, %v6464
    %v6466 = vshrl.u32 %v5895, 16
    %v6468 = vrot.slane %v6466, 4
    %v6469 = vor.u32 %v6468, %v6464
    %v6470 = vrot.slane %v6469, 4
    %v6472 = vshll.u32 %v5896, 16
    %v6474 = vrot.slane %v6472, 5
    %v6475 = vsel %vm2508, %v6470, %v6474
    %v6477 = vshrl.u32 %v5897, 16
    %v6479 = vrot.slane %v6477, 4
    %v6480 = vshll.u32 %v5897, 16
    %v6482 = vrot.slane %v6480, 5
    %v6483 = vor.u32 %v6479, %v6482
    %v6484 = vrot.slane %v6483, 4
    %v6486 = vshll.u32 %v5898, 16
    %v6488 = vrot.slane %v6486, 5
    %v6489 = vsel %vm2508, %v6484, %v6488
    %v6490 = vshrl.u32 %v5898, 16
    %v6492 = vrot.slane %v6490, 4
    %v6493 = vor.u32 %v6492, %v6488
    %v6494 = vrot.slane %v6493, 4
    %v6496 = vshll.u32 %v5899, 16
    %v6498 = vrot.slane %v6496, 5
    %v6499 = vsel %vm2508, %v6494, %v6498
    %v6501 = vshrl.u32 %v5900, 16
    %v6503 = vrot.slane %v6501, 4
    %v6504 = vshll.u32 %v5900, 16
    %v6506 = vrot.slane %v6504, 5
    %v6507 = vor.u32 %v6503, %v6506
    %v6508 = vrot.slane %v6507, 4
    %v6510 = vshll.u32 %v5901, 16
    %v6512 = vrot.slane %v6510, 5
    %v6513 = vsel %vm2508, %v6508, %v6512
    %v6514 = vshrl.u32 %v5901, 16
    %v6516 = vrot.slane %v6514, 4
    %v6517 = vor.u32 %v6516, %v6512
    %v6518 = vrot.slane %v6517, 4
    %v6520 = vshll.u32 %v5902, 16
    %v6522 = vrot.slane %v6520, 5
    %v6523 = vsel %vm2508, %v6518, %v6522
    %v6525 = vshrl.u32 %v5903, 16
    %v6527 = vrot.slane %v6525, 4
    %v6528 = vshll.u32 %v5903, 16
    %v6530 = vrot.slane %v6528, 5
    %v6531 = vor.u32 %v6527, %v6530
    %v6532 = vrot.slane %v6531, 4
    %v6534 = vshll.u32 %v5904, 16
    %v6536 = vrot.slane %v6534, 5
    %v6537 = vsel %vm2508, %v6532, %v6536
    %v6538 = vshrl.u32 %v5904, 16
    %v6540 = vrot.slane %v6538, 4
    %v6541 = vor.u32 %v6540, %v6536
    %v6542 = vrot.slane %v6541, 4
    %v6544 = vshll.u32 %v5905, 16
    %v6546 = vrot.slane %v6544, 5
    %v6547 = vsel %vm2508, %v6542, %v6546
    %v6549 = vshrl.u32 %v5906, 16
    %v6551 = vrot.slane %v6549, 4
    %v6552 = vshll.u32 %v5906, 16
    %v6554 = vrot.slane %v6552, 5
    %v6555 = vor.u32 %v6551, %v6554
    %v6556 = vrot.slane %v6555, 4
    %v6558 = vshll.u32 %v5907, 16
    %v6560 = vrot.slane %v6558, 5
    %v6561 = vsel %vm2508, %v6556, %v6560
    %v6562 = vshrl.u32 %v5907, 16
    %v6564 = vrot.slane %v6562, 4
    %v6565 = vor.u32 %v6564, %v6560
    %v6566 = vrot.slane %v6565, 4
    %v6568 = vshll.u32 %v5908, 16
    %v6570 = vrot.slane %v6568, 5
    %v6571 = vsel %vm2508, %v6566, %v6570
    %v6573 = vshrl.u32 %v5909, 16
    %v6575 = vrot.slane %v6573, 4
    %v6576 = vshll.u32 %v5909, 16
    %v6578 = vrot.slane %v6576, 5
    %v6579 = vor.u32 %v6575, %v6578
    %v6580 = vrot.slane %v6579, 4
    %v6582 = vshll.u32 %v5910, 16
    %v6584 = vrot.slane %v6582, 5
    %v6585 = vsel %vm2508, %v6580, %v6584
    %v6586 = vshrl.u32 %v5910, 16
    %v6588 = vrot.slane %v6586, 4
    %v6589 = vor.u32 %v6588, %v6584
    %v6590 = vrot.slane %v6589, 4
    %v6592 = vshll.u32 %v5911, 16
    %v6594 = vrot.slane %v6592, 5
    %v6595 = vsel %vm2508, %v6590, %v6594
    %v6597 = vshrl.u32 %v5912, 16
    %v6599 = vrot.slane %v6597, 4
    %v6600 = vshll.u32 %v5912, 16
    %v6602 = vrot.slane %v6600, 5
    %v6603 = vor.u32 %v6599, %v6602
    %v6604 = vrot.slane %v6603, 4
    %v6606 = vshll.u32 %v5913, 16
    %v6608 = vrot.slane %v6606, 5
    %v6609 = vsel %vm2508, %v6604, %v6608
    %v6610 = vshrl.u32 %v5913, 16
    %v6612 = vrot.slane %v6610, 4
    %v6613 = vor.u32 %v6612, %v6608
    %v6614 = vrot.slane %v6613, 4
    %v6616 = vshll.u32 %v5914, 16
    %v6618 = vrot.slane %v6616, 5
    %v6619 = vsel %vm2508, %v6614, %v6618
    %v6621 = vshrl.u32 %v5915, 16
    %v6623 = vrot.slane %v6621, 4
    %v6624 = vshll.u32 %v5915, 16
    %v6626 = vrot.slane %v6624, 5
    %v6627 = vor.u32 %v6623, %v6626
    %v6628 = vrot.slane %v6627, 4
    %v6630 = vshll.u32 %v5916, 16
    %v6632 = vrot.slane %v6630, 5
    %v6633 = vsel %vm2508, %v6628, %v6632
    %v6634 = vshrl.u32 %v5916, 16
    %v6636 = vrot.slane %v6634, 4
    %v6637 = vor.u32 %v6636, %v6632
    %v6638 = vrot.slane %v6637, 4
    %v6640 = vshll.u32 %v5917, 16
    %v6642 = vrot.slane %v6640, 5
    %v6643 = vsel %vm2508, %v6638, %v6642
    %v6645 = vshrl.u32 %v5918, 16
    %v6647 = vrot.slane %v6645, 4
    %v6648 = vshll.u32 %v5918, 16
    %v6650 = vrot.slane %v6648, 5
    %v6651 = vor.u32 %v6647, %v6650
    %v6652 = vrot.slane %v6651, 4
    %v6654 = vshll.u32 %v5919, 16
    %v6656 = vrot.slane %v6654, 5
    %v6657 = vsel %vm2508, %v6652, %v6656
    %v6658 = vshrl.u32 %v5919, 16
    %v6660 = vrot.slane %v6658, 4
    %v6661 = vor.u32 %v6660, %v6656
    %v6662 = vrot.slane %v6661, 4
    %v6664 = vshll.u32 %v5920, 16
    %v6666 = vrot.slane %v6664, 5
    %v6667 = vsel %vm2508, %v6662, %v6666
    %v6669 = vshrl.u32 %v5921, 16
    %v6671 = vrot.slane %v6669, 4
    %v6672 = vshll.u32 %v5921, 16
    %v6674 = vrot.slane %v6672, 5
    %v6675 = vor.u32 %v6671, %v6674
    %v6676 = vrot.slane %v6675, 4
    %v6678 = vshll.u32 %v5922, 16
    %v6680 = vrot.slane %v6678, 5
    %v6681 = vsel %vm2508, %v6676, %v6680
    %v6682 = vshrl.u32 %v5922, 16
    %v6684 = vrot.slane %v6682, 4
    %v6685 = vor.u32 %v6684, %v6680
    %v6686 = vrot.slane %v6685, 4
    %v6688 = vshll.u32 %v5923, 16
    %v6690 = vrot.slane %v6688, 5
    %v6691 = vsel %vm2508, %v6686, %v6690
    %v6692 = vld [vmem:[#allocation8 + $0x100] sm:$0xf]
    %v6693 = vld [vmem:[#allocation8 + $0x104] sm:$0xf]
    %v6694 = vld [vmem:[#allocation8 + $0x108] sm:$0xf]
    %v6695 = vld [vmem:[#allocation8 + $0x10c] sm:$0xf]
    %v6696 = vld [vmem:[#allocation8 + $0x110] sm:$0xf]
    %v6697 = vld [vmem:[#allocation8 + $0x114] sm:$0xf]
    %v6698 = vld [vmem:[#allocation8 + $0x118] sm:$0xf]
    %v6699 = vld [vmem:[#allocation8 + $0x11c] sm:$0xf]
    %v6700 = vld [vmem:[#allocation8 + $0x120] sm:$0xf]
    %v6701 = vld [vmem:[#allocation8 + $0x124] sm:$0xf]
    %v6702 = vld [vmem:[#allocation8 + $0x128] sm:$0xf]
    %v6703 = vld [vmem:[#allocation8 + $0x12c] sm:$0xf]
    %v6704 = vld [vmem:[#allocation8 + $0x130] sm:$0xf]
    %v6705 = vld [vmem:[#allocation8 + $0x134] sm:$0xf]
    %v6706 = vld [vmem:[#allocation8 + $0x138] sm:$0xf]
    %v6707 = vld [vmem:[#allocation8 + $0x13c] sm:$0xf]
    %v6708 = vunpack.c.l.b16 %v5937
    %v6709 = vunpack.c.l.b16 %v5947
    %v6710 = vunpack.c.l.b16 %v5961
    %v6711 = vunpack.c.l.b16 %v5971
    %v6712 = vunpack.c.l.b16 %v5985
    %v6713 = vunpack.c.l.b16 %v5995
    %v6714 = vunpack.c.l.b16 %v6009
    %v6715 = vunpack.c.l.b16 %v6019
    %v6716 = vunpack.c.l.b16 %v6033
    %v6717 = vunpack.c.l.b16 %v6043
    %v6718 = vunpack.c.l.b16 %v6057
    %v6719 = vunpack.c.l.b16 %v6067
    %v6720 = vunpack.c.l.b16 %v6081
    %v6721 = vunpack.c.l.b16 %v6091
    %v6722 = vunpack.c.l.b16 %v6105
    %v6723 = vunpack.c.l.b16 %v6115
    %v6724 = vunpack.c.l.b16 %v6129
    %v6725 = vunpack.c.l.b16 %v6139
    %v6726 = vunpack.c.l.b16 %v6153
    %v6727 = vunpack.c.l.b16 %v6163
    %v6728 = vunpack.c.l.b16 %v6177
    %v6729 = vunpack.c.l.b16 %v6187
    %v6730 = vunpack.c.l.b16 %v6201
    %v6731 = vunpack.c.l.b16 %v6211
    %v6732 = vunpack.c.l.b16 %v6225
    %v6733 = vunpack.c.l.b16 %v6235
    %v6734 = vunpack.c.l.b16 %v6249
    %v6735 = vunpack.c.l.b16 %v6259
    %v6736 = vunpack.c.l.b16 %v6273
    %v6737 = vunpack.c.l.b16 %v6283
    %v6738 = vunpack.c.l.b16 %v6297
    %v6739 = vunpack.c.l.b16 %v6307
    %v6740 = vunpack.c.l.b16 %v6321
    %v6741 = vunpack.c.l.b16 %v6331
    %v6742 = vunpack.c.l.b16 %v6345
    %v6743 = vunpack.c.l.b16 %v6355
    %v6744 = vunpack.c.l.b16 %v6369
    %v6745 = vunpack.c.l.b16 %v6379
    %v6746 = vunpack.c.l.b16 %v6393
    %v6747 = vunpack.c.l.b16 %v6403
    %v6748 = vunpack.c.l.b16 %v6417
    %v6749 = vunpack.c.l.b16 %v6427
    %v6750 = vunpack.c.l.b16 %v6441
    %v6751 = vunpack.c.l.b16 %v6451
    %v6752 = vunpack.c.l.b16 %v6465
    %v6753 = vunpack.c.l.b16 %v6475
    %v6754 = vunpack.c.l.b16 %v6489
    %v6755 = vunpack.c.l.b16 %v6499
    %v6756 = vunpack.c.l.b16 %v6513
    %v6757 = vunpack.c.l.b16 %v6523
    %v6758 = vunpack.c.l.b16 %v6537
    %v6759 = vunpack.c.l.b16 %v6547
    %v6760 = vunpack.c.l.b16 %v6561
    %v6761 = vunpack.c.l.b16 %v6571
    %v6762 = vunpack.c.l.b16 %v6585
    %v6763 = vunpack.c.l.b16 %v6595
    %v6764 = vunpack.c.l.b16 %v6609
    %v6765 = vunpack.c.l.b16 %v6619
    %v6766 = vunpack.c.l.b16 %v6633
    %v6767 = vunpack.c.l.b16 %v6643
    %v6768 = vunpack.c.l.b16 %v6657
    %v6769 = vunpack.c.l.b16 %v6667
    %v6770 = vunpack.c.l.b16 %v6681
    %v6771 = vunpack.c.l.b16 %v6691
    %v6772 = vpack.c.b16 %v6709, %v6708
    %v6773 = vpack.c.b16 %v6711, %v6710
    %v6774 = vpack.c.b16 %v6713, %v6712
    %v6775 = vpack.c.b16 %v6715, %v6714
    %v6776 = vpack.c.b16 %v6717, %v6716
    %v6777 = vpack.c.b16 %v6719, %v6718
    %v6778 = vpack.c.b16 %v6721, %v6720
    %v6779 = vpack.c.b16 %v6723, %v6722
    %v6780 = vpack.c.b16 %v6725, %v6724
    %v6781 = vpack.c.b16 %v6727, %v6726
    %v6782 = vpack.c.b16 %v6729, %v6728
    %v6783 = vpack.c.b16 %v6731, %v6730
    %v6784 = vpack.c.b16 %v6733, %v6732
    %v6785 = vpack.c.b16 %v6735, %v6734
    %v6786 = vpack.c.b16 %v6737, %v6736
    %v6787 = vpack.c.b16 %v6739, %v6738
    %v6788 = vpack.c.b16 %v6741, %v6740
    %v6789 = vpack.c.b16 %v6743, %v6742
    %v6790 = vpack.c.b16 %v6745, %v6744
    %v6791 = vpack.c.b16 %v6747, %v6746
    %v6792 = vpack.c.b16 %v6749, %v6748
    %v6793 = vpack.c.b16 %v6751, %v6750
    %v6794 = vpack.c.b16 %v6753, %v6752
    %v6795 = vpack.c.b16 %v6755, %v6754
    %v6796 = vpack.c.b16 %v6757, %v6756
    %v6797 = vpack.c.b16 %v6759, %v6758
    %v6798 = vpack.c.b16 %v6761, %v6760
    %v6799 = vpack.c.b16 %v6763, %v6762
    %v6800 = vpack.c.b16 %v6765, %v6764
    %v6801 = vpack.c.b16 %v6767, %v6766
    %v6802 = vpack.c.b16 %v6769, %v6768
    %v6803 = vpack.c.b16 %v6771, %v6770
    %v6852 = vunpack.c.l.b16 %v6692
    %v6853 = vunpack.c.l.b16 %v6693
    %v6854 = vunpack.c.l.b16 %v6694
    %v6855 = vunpack.c.l.b16 %v6695
    %v6856 = vunpack.c.l.b16 %v6696
    %v6857 = vunpack.c.l.b16 %v6697
    %v6858 = vunpack.c.l.b16 %v6698
    %v6859 = vunpack.c.l.b16 %v6699
    %v6860 = vunpack.c.l.b16 %v6700
    %v6861 = vunpack.c.l.b16 %v6701
    %v6862 = vunpack.c.l.b16 %v6702
    %v6863 = vunpack.c.l.b16 %v6703
    %v6864 = vunpack.c.l.b16 %v6704
    %v6865 = vunpack.c.l.b16 %v6705
    %v6866 = vunpack.c.l.b16 %v6706
    %v6867 = vunpack.c.l.b16 %v6707
    %v6868 = vpack.c.b16 %v6853, %v6852
    %v6869 = vpack.c.b16 %v6855, %v6854
    %v6870 = vpack.c.b16 %v6857, %v6856
    %v6871 = vpack.c.b16 %v6859, %v6858
    %v6872 = vpack.c.b16 %v6861, %v6860
    %v6873 = vpack.c.b16 %v6863, %v6862
    %v6874 = vpack.c.b16 %v6865, %v6864
    %v6875 = vpack.c.b16 %v6867, %v6866
    %6884 = vmatprep.subr.bf16.mxu0 0
    %6885 = vmatpush1.bf16.msra.mxu0 %v6875
    %6886 = vmatprep.subr.bf16.mxu0 0
    %6887 = vmatpush1.bf16.msra.mxu0 %v6874
    %6888 = vmatprep.subr.bf16.mxu0 0
    %6889 = vmatpush1.bf16.msra.mxu0 %v6873
    %6890 = vmatprep.subr.bf16.mxu0 0
    %6891 = vmatpush1.bf16.msra.mxu0 %v6872
    %6892 = vmatprep.subr.bf16.mxu0 0
    %6893 = vmatpush1.bf16.msra.mxu0 %v6871
    %6894 = vmatprep.subr.bf16.mxu0 0
    %6895 = vmatpush1.bf16.msra.mxu0 %v6870
    %6896 = vmatprep.subr.bf16.mxu0 0
    %6897 = vmatpush1.bf16.msra.mxu0 %v6869
    %6898 = vmatprep.subr.bf16.mxu0 0
    %6899 = vmatpush1.bf16.msra.mxu0 %v6868
    %6900 = vmatprep.subr.bf16.mxu0 0
    %6901 = vmatpush2.bf16.msra.mxu0 0
    %6902 = vmatprep.subr.bf16.mxu0 0
    %6903 = vmatpush2.bf16.msra.mxu0 0
    %6904 = vmatprep.subr.bf16.mxu0 0
    %6905 = vmatpush2.bf16.msra.mxu0 0
    %6906 = vmatprep.subr.bf16.mxu0 0
    %6907 = vmatpush2.bf16.msra.mxu0 0
    %6908 = vmatprep.subr.bf16.mxu0 0
    %6909 = vmatpush2.bf16.msra.mxu0 0
    %6910 = vmatprep.subr.bf16.mxu0 0
    %6911 = vmatpush2.bf16.msra.mxu0 0
    %6912 = vmatprep.subr.bf16.mxu0 0
    %6913 = vmatpush2.bf16.msra.mxu0 0
    %6914 = vmatprep.subr.bf16.mxu0 0
    %6915 = vmatpush2.bf16.msra.mxu0 0
    %6916 = vmatprep.mubr.bf16.mxu0 0
    %6917 = vmatmul.mubr.bf16.gmra.mxu0 %v6772
    %v6918 = vpop.f32.mrf.mxu0
    %v6919 = vadd.f32 0.0, %v6918
    %v6920 = vpop.f32.mrf.mxu0
    %v6921 = vpop.f32.mrf.mxu0
    %v6922 = vadd.f32 0.0, %v6921
    %v6923 = vpop.f32.mrf.mxu0
    %6924 = vmatprep.mubr.bf16.mxu0 0
    %6925 = vmatmul.mubr.bf16.gmra.mxu0 %v6773
    %v6926 = vpop.f32.mrf.mxu0
    %v6927 = vadd.f32 0.0, %v6926
    %v6928 = vpop.f32.mrf.mxu0
    %v6929 = vpop.f32.mrf.mxu0
    %v6930 = vadd.f32 0.0, %v6929
    %v6931 = vpop.f32.mrf.mxu0
    %6932 = vmatprep.mubr.bf16.mxu0 0
    %6933 = vmatmul.mubr.bf16.gmra.mxu0 %v6774
    %v6934 = vpop.f32.mrf.mxu0
    %v6935 = vadd.f32 0.0, %v6934
    %v6936 = vpop.f32.mrf.mxu0
    %v6937 = vpop.f32.mrf.mxu0
    %v6938 = vadd.f32 0.0, %v6937
    %v6939 = vpop.f32.mrf.mxu0
    %6940 = vmatprep.mubr.bf16.mxu0 0
    %6941 = vmatmul.mubr.bf16.gmra.mxu0 %v6775
    %v6942 = vpop.f32.mrf.mxu0
    %v6943 = vadd.f32 0.0, %v6942
    %v6944 = vpop.f32.mrf.mxu0
    %v6945 = vpop.f32.mrf.mxu0
    %v6946 = vadd.f32 0.0, %v6945
    %v6947 = vpop.f32.mrf.mxu0
    %6948 = vmatprep.mubr.bf16.mxu0 0
    %6949 = vmatmul.mubr.bf16.gmra.mxu0 %v6776
    %v6950 = vpop.f32.mrf.mxu0
    %v6951 = vadd.f32 0.0, %v6950
    %v6952 = vpop.f32.mrf.mxu0
    %v6953 = vpop.f32.mrf.mxu0
    %v6954 = vadd.f32 0.0, %v6953
    %v6955 = vpop.f32.mrf.mxu0
    %6956 = vmatprep.mubr.bf16.mxu0 0
    %6957 = vmatmul.mubr.bf16.gmra.mxu0 %v6777
    %v6958 = vpop.f32.mrf.mxu0
    %v6959 = vadd.f32 0.0, %v6958
    %v6960 = vpop.f32.mrf.mxu0
    %v6961 = vpop.f32.mrf.mxu0
    %v6962 = vadd.f32 0.0, %v6961
    %v6963 = vpop.f32.mrf.mxu0
    %6964 = vmatprep.mubr.bf16.mxu0 0
    %6965 = vmatmul.mubr.bf16.gmra.mxu0 %v6778
    %v6966 = vpop.f32.mrf.mxu0
    %v6967 = vadd.f32 0.0, %v6966
    %v6968 = vpop.f32.mrf.mxu0
    %v6969 = vpop.f32.mrf.mxu0
    %v6970 = vadd.f32 0.0, %v6969
    %v6971 = vpop.f32.mrf.mxu0
    %6972 = vmatprep.mubr.bf16.mxu0 0
    %6973 = vmatmul.mubr.bf16.gmra.mxu0 %v6779
    %v6974 = vpop.f32.mrf.mxu0
    %v6975 = vadd.f32 0.0, %v6974
    %v6976 = vpop.f32.mrf.mxu0
    %v6977 = vpop.f32.mrf.mxu0
    %v6978 = vadd.f32 0.0, %v6977
    %v6979 = vpop.f32.mrf.mxu0
    %6980 = vmatprep.mubr.bf16.mxu0 0
    %6981 = vmatmul.mubr.bf16.gmra.mxu0 %v6780
    %v6982 = vpop.f32.mrf.mxu0
    %v6983 = vadd.f32 0.0, %v6982
    %v6984 = vpop.f32.mrf.mxu0
    %v6985 = vpop.f32.mrf.mxu0
    %v6986 = vadd.f32 0.0, %v6985
    %v6987 = vpop.f32.mrf.mxu0
    %6988 = vmatprep.mubr.bf16.mxu0 0
    %6989 = vmatmul.mubr.bf16.gmra.mxu0 %v6781
    %v6990 = vpop.f32.mrf.mxu0
    %v6991 = vadd.f32 0.0, %v6990
    %v6992 = vpop.f32.mrf.mxu0
    %v6993 = vpop.f32.mrf.mxu0
    %v6994 = vadd.f32 0.0, %v6993
    %v6995 = vpop.f32.mrf.mxu0
    %6996 = vmatprep.mubr.bf16.mxu0 0
    %6997 = vmatmul.mubr.bf16.gmra.mxu0 %v6782
    %v6998 = vpop.f32.mrf.mxu0
    %v6999 = vadd.f32 0.0, %v6998
    %v7000 = vpop.f32.mrf.mxu0
    %v7001 = vpop.f32.mrf.mxu0
    %v7002 = vadd.f32 0.0, %v7001
    %v7003 = vpop.f32.mrf.mxu0
    %7004 = vmatprep.mubr.bf16.mxu0 0
    %7005 = vmatmul.mubr.bf16.gmra.mxu0 %v6783
    %v7006 = vpop.f32.mrf.mxu0
    %v7007 = vadd.f32 0.0, %v7006
    %v7008 = vpop.f32.mrf.mxu0
    %v7009 = vpop.f32.mrf.mxu0
    %v7010 = vadd.f32 0.0, %v7009
    %v7011 = vpop.f32.mrf.mxu0
    %7012 = vmatprep.mubr.bf16.mxu0 0
    %7013 = vmatmul.mubr.bf16.gmra.mxu0 %v6784
    %v7014 = vpop.f32.mrf.mxu0
    %v7015 = vadd.f32 0.0, %v7014
    %v7016 = vpop.f32.mrf.mxu0
    %v7017 = vpop.f32.mrf.mxu0
    %v7018 = vadd.f32 0.0, %v7017
    %v7019 = vpop.f32.mrf.mxu0
    %7020 = vmatprep.mubr.bf16.mxu0 0
    %7021 = vmatmul.mubr.bf16.gmra.mxu0 %v6785
    %v7022 = vpop.f32.mrf.mxu0
    %v7023 = vadd.f32 0.0, %v7022
    %v7024 = vpop.f32.mrf.mxu0
    %v7025 = vpop.f32.mrf.mxu0
    %v7026 = vadd.f32 0.0, %v7025
    %v7027 = vpop.f32.mrf.mxu0
    %7028 = vmatprep.mubr.bf16.mxu0 0
    %7029 = vmatmul.mubr.bf16.gmra.mxu0 %v6786
    %v7030 = vpop.f32.mrf.mxu0
    %v7031 = vadd.f32 0.0, %v7030
    %v7032 = vpop.f32.mrf.mxu0
    %v7033 = vpop.f32.mrf.mxu0
    %v7034 = vadd.f32 0.0, %v7033
    %v7035 = vpop.f32.mrf.mxu0
    %7036 = vmatprep.mubr.bf16.mxu0 0
    %7037 = vmatmul.mubr.bf16.gmra.mxu0 %v6787
    %v7038 = vpop.f32.mrf.mxu0
    %v7039 = vadd.f32 0.0, %v7038
    %v7040 = vpop.f32.mrf.mxu0
    %v7041 = vpop.f32.mrf.mxu0
    %v7042 = vadd.f32 0.0, %v7041
    %v7043 = vpop.f32.mrf.mxu0
    %7044 = vmatprep.mubr.bf16.mxu0 0
    %7045 = vmatmul.mubr.bf16.gmra.mxu0 %v6788
    %v7046 = vpop.f32.mrf.mxu0
    %v7047 = vadd.f32 0.0, %v7046
    %v7048 = vpop.f32.mrf.mxu0
    %v7049 = vpop.f32.mrf.mxu0
    %v7050 = vadd.f32 0.0, %v7049
    %v7051 = vpop.f32.mrf.mxu0
    %7052 = vmatprep.mubr.bf16.mxu0 0
    %7053 = vmatmul.mubr.bf16.gmra.mxu0 %v6789
    %v7054 = vpop.f32.mrf.mxu0
    %v7055 = vadd.f32 0.0, %v7054
    %v7056 = vpop.f32.mrf.mxu0
    %v7057 = vpop.f32.mrf.mxu0
    %v7058 = vadd.f32 0.0, %v7057
    %v7059 = vpop.f32.mrf.mxu0
    %7060 = vmatprep.mubr.bf16.mxu0 0
    %7061 = vmatmul.mubr.bf16.gmra.mxu0 %v6790
    %v7062 = vpop.f32.mrf.mxu0
    %v7063 = vadd.f32 0.0, %v7062
    %v7064 = vpop.f32.mrf.mxu0
    %v7065 = vpop.f32.mrf.mxu0
    %v7066 = vadd.f32 0.0, %v7065
    %v7067 = vpop.f32.mrf.mxu0
    %7068 = vmatprep.mubr.bf16.mxu0 0
    %7069 = vmatmul.mubr.bf16.gmra.mxu0 %v6791
    %v7070 = vpop.f32.mrf.mxu0
    %v7071 = vadd.f32 0.0, %v7070
    %v7072 = vpop.f32.mrf.mxu0
    %v7073 = vpop.f32.mrf.mxu0
    %v7074 = vadd.f32 0.0, %v7073
    %v7075 = vpop.f32.mrf.mxu0
    %7076 = vmatprep.mubr.bf16.mxu0 0
    %7077 = vmatmul.mubr.bf16.gmra.mxu0 %v6792
    %v7078 = vpop.f32.mrf.mxu0
    %v7079 = vadd.f32 0.0, %v7078
    %v7080 = vpop.f32.mrf.mxu0
    %v7081 = vpop.f32.mrf.mxu0
    %v7082 = vadd.f32 0.0, %v7081
    %v7083 = vpop.f32.mrf.mxu0
    %7084 = vmatprep.mubr.bf16.mxu0 0
    %7085 = vmatmul.mubr.bf16.gmra.mxu0 %v6793
    %v7086 = vpop.f32.mrf.mxu0
    %v7087 = vadd.f32 0.0, %v7086
    %v7088 = vpop.f32.mrf.mxu0
    %v7089 = vpop.f32.mrf.mxu0
    %v7090 = vadd.f32 0.0, %v7089
    %v7091 = vpop.f32.mrf.mxu0
    %7092 = vmatprep.mubr.bf16.mxu0 0
    %7093 = vmatmul.mubr.bf16.gmra.mxu0 %v6794
    %v7094 = vpop.f32.mrf.mxu0
    %v7095 = vadd.f32 0.0, %v7094
    %v7096 = vpop.f32.mrf.mxu0
    %v7097 = vpop.f32.mrf.mxu0
    %v7098 = vadd.f32 0.0, %v7097
    %v7099 = vpop.f32.mrf.mxu0
    %7100 = vmatprep.mubr.bf16.mxu0 0
    %7101 = vmatmul.mubr.bf16.gmra.mxu0 %v6795
    %v7102 = vpop.f32.mrf.mxu0
    %v7103 = vadd.f32 0.0, %v7102
    %v7104 = vpop.f32.mrf.mxu0
    %v7105 = vpop.f32.mrf.mxu0
    %v7106 = vadd.f32 0.0, %v7105
    %v7107 = vpop.f32.mrf.mxu0
    %7108 = vmatprep.mubr.bf16.mxu0 0
    %7109 = vmatmul.mubr.bf16.gmra.mxu0 %v6796
    %v7110 = vpop.f32.mrf.mxu0
    %v7111 = vadd.f32 0.0, %v7110
    %v7112 = vpop.f32.mrf.mxu0
    %v7113 = vpop.f32.mrf.mxu0
    %v7114 = vadd.f32 0.0, %v7113
    %v7115 = vpop.f32.mrf.mxu0
    %7116 = vmatprep.mubr.bf16.mxu0 0
    %7117 = vmatmul.mubr.bf16.gmra.mxu0 %v6797
    %v7118 = vpop.f32.mrf.mxu0
    %v7119 = vadd.f32 0.0, %v7118
    %v7120 = vpop.f32.mrf.mxu0
    %v7121 = vpop.f32.mrf.mxu0
    %v7122 = vadd.f32 0.0, %v7121
    %v7123 = vpop.f32.mrf.mxu0
    %7124 = vmatprep.mubr.bf16.mxu0 0
    %7125 = vmatmul.mubr.bf16.gmra.mxu0 %v6798
    %v7126 = vpop.f32.mrf.mxu0
    %v7127 = vadd.f32 0.0, %v7126
    %v7128 = vpop.f32.mrf.mxu0
    %v7129 = vpop.f32.mrf.mxu0
    %v7130 = vadd.f32 0.0, %v7129
    %v7131 = vpop.f32.mrf.mxu0
    %7132 = vmatprep.mubr.bf16.mxu0 0
    %7133 = vmatmul.mubr.bf16.gmra.mxu0 %v6799
    %v7134 = vpop.f32.mrf.mxu0
    %v7135 = vadd.f32 0.0, %v7134
    %v7136 = vpop.f32.mrf.mxu0
    %v7137 = vpop.f32.mrf.mxu0
    %v7138 = vadd.f32 0.0, %v7137
    %v7139 = vpop.f32.mrf.mxu0
    %7140 = vmatprep.mubr.bf16.mxu0 0
    %7141 = vmatmul.mubr.bf16.gmra.mxu0 %v6800
    %v7142 = vpop.f32.mrf.mxu0
    %v7143 = vadd.f32 0.0, %v7142
    %v7144 = vpop.f32.mrf.mxu0
    %v7145 = vpop.f32.mrf.mxu0
    %v7146 = vadd.f32 0.0, %v7145
    %v7147 = vpop.f32.mrf.mxu0
    %7148 = vmatprep.mubr.bf16.mxu0 0
    %7149 = vmatmul.mubr.bf16.gmra.mxu0 %v6801
    %v7150 = vpop.f32.mrf.mxu0
    %v7151 = vadd.f32 0.0, %v7150
    %v7152 = vpop.f32.mrf.mxu0
    %v7153 = vpop.f32.mrf.mxu0
    %v7154 = vadd.f32 0.0, %v7153
    %v7155 = vpop.f32.mrf.mxu0
    %7156 = vmatprep.mubr.bf16.mxu0 0
    %7157 = vmatmul.mubr.bf16.gmra.mxu0 %v6802
    %v7158 = vpop.f32.mrf.mxu0
    %v7159 = vadd.f32 0.0, %v7158
    %v7160 = vpop.f32.mrf.mxu0
    %v7161 = vpop.f32.mrf.mxu0
    %v7162 = vadd.f32 0.0, %v7161
    %v7163 = vpop.f32.mrf.mxu0
    %7164 = vmatprep.mubr.bf16.mxu0 0
    %7165 = vmatmul.mubr.bf16.gmra.mxu0 %v6803
    %v7166 = vpop.f32.mrf.mxu0
    %v7167 = vadd.f32 0.0, %v7166
    %v7168 = vpop.f32.mrf.mxu0
    %v7169 = vpop.f32.mrf.mxu0
    %v7170 = vadd.f32 0.0, %v7169
    %v7171 = vpop.f32.mrf.mxu0
    %7172 = vdwg.mxu0
    %v7173 = vadd.f32 %v5764, %v6919
    %v7174 = vadd.f32 %v5765, %v6922
    %v7175 = vadd.f32 %v5766, %v6927
    %v7176 = vadd.f32 %v5767, %v6930
    %v7177 = vadd.f32 %v5768, %v6935
    %v7178 = vadd.f32 %v5769, %v6938
    %v7179 = vadd.f32 %v5770, %v6943
    %v7180 = vadd.f32 %v5771, %v6946
    %v7181 = vadd.f32 %v5772, %v6951
    %v7182 = vadd.f32 %v5773, %v6954
    %v7183 = vadd.f32 %v5774, %v6959
    %v7184 = vadd.f32 %v5775, %v6962
    %v7185 = vadd.f32 %v5776, %v6967
    %v7186 = vadd.f32 %v5777, %v6970
    %v7187 = vadd.f32 %v5778, %v6975
    %v7188 = vadd.f32 %v5779, %v6978
    %v7189 = vadd.f32 %v5780, %v6983
    %v7190 = vadd.f32 %v5781, %v6986
    %v7191 = vadd.f32 %v5782, %v6991
    %v7192 = vadd.f32 %v5783, %v6994
    %v7193 = vadd.f32 %v5784, %v6999
    %v7194 = vadd.f32 %v5785, %v7002
    %v7195 = vadd.f32 %v5786, %v7007
    %v7196 = vadd.f32 %v5787, %v7010
    %v7197 = vadd.f32 %v5788, %v7015
    %v7198 = vadd.f32 %v5789, %v7018
    %v7199 = vadd.f32 %v5790, %v7023
    %v7200 = vadd.f32 %v5791, %v7026
    %v7201 = vadd.f32 %v5792, %v7031
    %v7202 = vadd.f32 %v5793, %v7034
    %v7203 = vadd.f32 %v5794, %v7039
    %v7204 = vadd.f32 %v5795, %v7042
    %v7205 = vadd.f32 %v5796, %v7047
    %v7206 = vadd.f32 %v5797, %v7050
    %v7207 = vadd.f32 %v5798, %v7055
    %v7208 = vadd.f32 %v5799, %v7058
    %v7209 = vadd.f32 %v5800, %v7063
    %v7210 = vadd.f32 %v5801, %v7066
    %v7211 = vadd.f32 %v5802, %v7071
    %v7212 = vadd.f32 %v5803, %v7074
    %v7213 = vadd.f32 %v5804, %v7079
    %v7214 = vadd.f32 %v5805, %v7082
    %v7215 = vadd.f32 %v5806, %v7087
    %v7216 = vadd.f32 %v5807, %v7090
    %v7217 = vadd.f32 %v5808, %v7095
    %v7218 = vadd.f32 %v5809, %v7098
    %v7219 = vadd.f32 %v5810, %v7103
    %v7220 = vadd.f32 %v5811, %v7106
    %v7221 = vadd.f32 %v5812, %v7111
    %v7222 = vadd.f32 %v5813, %v7114
    %v7223 = vadd.f32 %v5814, %v7119
    %v7224 = vadd.f32 %v5815, %v7122
    %v7225 = vadd.f32 %v5816, %v7127
    %v7226 = vadd.f32 %v5817, %v7130
    %v7227 = vadd.f32 %v5818, %v7135
    %v7228 = vadd.f32 %v5819, %v7138
    %v7229 = vadd.f32 %v5820, %v7143
    %v7230 = vadd.f32 %v5821, %v7146
    %v7231 = vadd.f32 %v5822, %v7151
    %v7232 = vadd.f32 %v5823, %v7154
    %v7233 = vadd.f32 %v5824, %v7159
    %v7234 = vadd.f32 %v5825, %v7162
    %v7235 = vadd.f32 %v5826, %v7167
    %v7236 = vadd.f32 %v5827, %v7170
    %v7237 = vld [vmem:[%s2164] sm:$0xe]
    %v7238 = vld [vmem:[%s2164 + $0xc] sm:$0xe]
    %v7239 = vld [vmem:[%s2164 + $0x18] sm:$0xe]
    %v7240 = vld [vmem:[%s2164 + $0x24] sm:$0xe]
    %v7241 = vld [vmem:[%s2164 + $0x30] sm:$0xe]
    %v7242 = vld [vmem:[%s2164 + $0x3c] sm:$0xe]
    %v7243 = vld [vmem:[%s2164 + $0x48] sm:$0xe]
    %v7244 = vld [vmem:[%s2164 + $0x54] sm:$0xe]
    %v7245 = vld [vmem:[%s2164 + $0x60] sm:$0xe]
    %v7246 = vld [vmem:[%s2164 + $0x6c] sm:$0xe]
    %v7247 = vld [vmem:[%s2164 + $0x78] sm:$0xe]
    %v7248 = vld [vmem:[%s2164 + $0x84] sm:$0xe]
    %v7249 = vld [vmem:[%s2164 + $0x90] sm:$0xe]
    %v7250 = vld [vmem:[%s2164 + $0x9c] sm:$0xe]
    %v7251 = vld [vmem:[%s2164 + $0xa8] sm:$0xe]
    %v7252 = vld [vmem:[%s2164 + $0xb4] sm:$0xe]
    %v7253 = vld [vmem:[%s2164 + $0xd8] sm:$0xe]
    %v7254 = vld [vmem:[%s2164 + $0xe4] sm:$0xe]
    %v7255 = vld [vmem:[%s2164 + $0xf0] sm:$0xe]
    %v7256 = vld [vmem:[%s2164 + $0xfc] sm:$0xe]
    %v7257 = vld [vmem:[%s2164 + $0x108] sm:$0xe]
    %v7258 = vld [vmem:[%s2164 + $0x114] sm:$0xe]
    %v7259 = vld [vmem:[%s2164 + $0x120] sm:$0xe]
    %v7260 = vld [vmem:[%s2164 + $0x12c] sm:$0xe]
    %v7261 = vld [vmem:[%s2164 + $0x138] sm:$0xe]
    %v7262 = vld [vmem:[%s2164 + $0x144] sm:$0xe]
    %v7263 = vld [vmem:[%s2164 + $0x150] sm:$0xe]
    %v7264 = vld [vmem:[%s2164 + $0x15c] sm:$0xe]
    %v7265 = vld [vmem:[%s2164 + $0x168] sm:$0xe]
    %v7266 = vld [vmem:[%s2164 + $0x174] sm:$0xe]
    %v7267 = vld [vmem:[%s2164 + $0x180] sm:$0xe]
    %v7268 = vld [vmem:[%s2164 + $0x18c] sm:$0xe]
    %v7365 = vrot.slane %v7237, 5
    %v7366 = vrot.slane %v7365, 4
    %v7367 = vrot.slane %v5829, 5
    %v7368 = vsel %vm4385, %v7366, %v7367
    %v7369 = vrot.slane %v7367, 4
    %v7370 = vrot.slane %v5830, 5
    %v7371 = vsel %vm4385, %v7369, %v7370
    %v7372 = vrot.slane %v7238, 5
    %v7373 = vrot.slane %v7372, 4
    %v7374 = vrot.slane %v5832, 5
    %v7375 = vsel %vm4385, %v7373, %v7374
    %v7376 = vrot.slane %v7374, 4
    %v7377 = vrot.slane %v5833, 5
    %v7378 = vsel %vm4385, %v7376, %v7377
    %v7379 = vrot.slane %v7239, 5
    %v7380 = vrot.slane %v7379, 4
    %v7381 = vrot.slane %v5835, 5
    %v7382 = vsel %vm4385, %v7380, %v7381
    %v7383 = vrot.slane %v7381, 4
    %v7384 = vrot.slane %v5836, 5
    %v7385 = vsel %vm4385, %v7383, %v7384
    %v7386 = vrot.slane %v7240, 5
    %v7387 = vrot.slane %v7386, 4
    %v7388 = vrot.slane %v5838, 5
    %v7389 = vsel %vm4385, %v7387, %v7388
    %v7390 = vrot.slane %v7388, 4
    %v7391 = vrot.slane %v5839, 5
    %v7392 = vsel %vm4385, %v7390, %v7391
    %v7393 = vrot.slane %v7241, 5
    %v7394 = vrot.slane %v7393, 4
    %v7395 = vrot.slane %v5841, 5
    %v7396 = vsel %vm4385, %v7394, %v7395
    %v7397 = vrot.slane %v7395, 4
    %v7398 = vrot.slane %v5842, 5
    %v7399 = vsel %vm4385, %v7397, %v7398
    %v7400 = vrot.slane %v7242, 5
    %v7401 = vrot.slane %v7400, 4
    %v7402 = vrot.slane %v5844, 5
    %v7403 = vsel %vm4385, %v7401, %v7402
    %v7404 = vrot.slane %v7402, 4
    %v7405 = vrot.slane %v5845, 5
    %v7406 = vsel %vm4385, %v7404, %v7405
    %v7407 = vrot.slane %v7243, 5
    %v7408 = vrot.slane %v7407, 4
    %v7409 = vrot.slane %v5847, 5
    %v7410 = vsel %vm4385, %v7408, %v7409
    %v7411 = vrot.slane %v7409, 4
    %v7412 = vrot.slane %v5848, 5
    %v7413 = vsel %vm4385, %v7411, %v7412
    %v7414 = vrot.slane %v7244, 5
    %v7415 = vrot.slane %v7414, 4
    %v7416 = vrot.slane %v5850, 5
    %v7417 = vsel %vm4385, %v7415, %v7416
    %v7418 = vrot.slane %v7416, 4
    %v7419 = vrot.slane %v5851, 5
    %v7420 = vsel %vm4385, %v7418, %v7419
    %v7421 = vrot.slane %v7245, 5
    %v7422 = vrot.slane %v7421, 4
    %v7423 = vrot.slane %v5853, 5
    %v7424 = vsel %vm4385, %v7422, %v7423
    %v7425 = vrot.slane %v7423, 4
    %v7426 = vrot.slane %v5854, 5
    %v7427 = vsel %vm4385, %v7425, %v7426
    %v7428 = vrot.slane %v7246, 5
    %v7429 = vrot.slane %v7428, 4
    %v7430 = vrot.slane %v5856, 5
    %v7431 = vsel %vm4385, %v7429, %v7430
    %v7432 = vrot.slane %v7430, 4
    %v7433 = vrot.slane %v5857, 5
    %v7434 = vsel %vm4385, %v7432, %v7433
    %v7435 = vrot.slane %v7247, 5
    %v7436 = vrot.slane %v7435, 4
    %v7437 = vrot.slane %v5859, 5
    %v7438 = vsel %vm4385, %v7436, %v7437
    %v7439 = vrot.slane %v7437, 4
    %v7440 = vrot.slane %v5860, 5
    %v7441 = vsel %vm4385, %v7439, %v7440
    %v7442 = vrot.slane %v7248, 5
    %v7443 = vrot.slane %v7442, 4
    %v7444 = vrot.slane %v5862, 5
    %v7445 = vsel %vm4385, %v7443, %v7444
    %v7446 = vrot.slane %v7444, 4
    %v7447 = vrot.slane %v5863, 5
    %v7448 = vsel %vm4385, %v7446, %v7447
    %v7449 = vrot.slane %v7249, 5
    %v7450 = vrot.slane %v7449, 4
    %v7451 = vrot.slane %v5865, 5
    %v7452 = vsel %vm4385, %v7450, %v7451
    %v7453 = vrot.slane %v7451, 4
    %v7454 = vrot.slane %v5866, 5
    %v7455 = vsel %vm4385, %v7453, %v7454
    %v7456 = vrot.slane %v7250, 5
    %v7457 = vrot.slane %v7456, 4
    %v7458 = vrot.slane %v5868, 5
    %v7459 = vsel %vm4385, %v7457, %v7458
    %v7460 = vrot.slane %v7458, 4
    %v7461 = vrot.slane %v5869, 5
    %v7462 = vsel %vm4385, %v7460, %v7461
    %v7463 = vrot.slane %v7251, 5
    %v7464 = vrot.slane %v7463, 4
    %v7465 = vrot.slane %v5871, 5
    %v7466 = vsel %vm4385, %v7464, %v7465
    %v7467 = vrot.slane %v7465, 4
    %v7468 = vrot.slane %v5872, 5
    %v7469 = vsel %vm4385, %v7467, %v7468
    %v7470 = vrot.slane %v7252, 5
    %v7471 = vrot.slane %v7470, 4
    %v7472 = vrot.slane %v5874, 5
    %v7473 = vsel %vm4385, %v7471, %v7472
    %v7474 = vrot.slane %v7472, 4
    %v7475 = vrot.slane %v5875, 5
    %v7476 = vsel %vm4385, %v7474, %v7475
    %v7477 = vrot.slane %v7253, 5
    %v7478 = vrot.slane %v7477, 4
    %v7479 = vrot.slane %v5877, 5
    %v7480 = vsel %vm4385, %v7478, %v7479
    %v7481 = vrot.slane %v7479, 4
    %v7482 = vrot.slane %v5878, 5
    %v7483 = vsel %vm4385, %v7481, %v7482
    %v7484 = vrot.slane %v7254, 5
    %v7485 = vrot.slane %v7484, 4
    %v7486 = vrot.slane %v5880, 5
    %v7487 = vsel %vm4385, %v7485, %v7486
    %v7488 = vrot.slane %v7486, 4
    %v7489 = vrot.slane %v5881, 5
    %v7490 = vsel %vm4385, %v7488, %v7489
    %v7491 = vrot.slane %v7255, 5
    %v7492 = vrot.slane %v7491, 4
    %v7493 = vrot.slane %v5883, 5
    %v7494 = vsel %vm4385, %v7492, %v7493
    %v7495 = vrot.slane %v7493, 4
    %v7496 = vrot.slane %v5884, 5
    %v7497 = vsel %vm4385, %v7495, %v7496
    %v7498 = vrot.slane %v7256, 5
    %v7499 = vrot.slane %v7498, 4
    %v7500 = vrot.slane %v5886, 5
    %v7501 = vsel %vm4385, %v7499, %v7500
    %v7502 = vrot.slane %v7500, 4
    %v7503 = vrot.slane %v5887, 5
    %v7504 = vsel %vm4385, %v7502, %v7503
    %v7505 = vrot.slane %v7257, 5
    %v7506 = vrot.slane %v7505, 4
    %v7507 = vrot.slane %v5889, 5
    %v7508 = vsel %vm4385, %v7506, %v7507
    %v7509 = vrot.slane %v7507, 4
    %v7510 = vrot.slane %v5890, 5
    %v7511 = vsel %vm4385, %v7509, %v7510
    %v7512 = vrot.slane %v7258, 5
    %v7513 = vrot.slane %v7512, 4
    %v7514 = vrot.slane %v5892, 5
    %v7515 = vsel %vm4385, %v7513, %v7514
    %v7516 = vrot.slane %v7514, 4
    %v7517 = vrot.slane %v5893, 5
    %v7518 = vsel %vm4385, %v7516, %v7517
    %v7519 = vrot.slane %v7259, 5
    %v7520 = vrot.slane %v7519, 4
    %v7521 = vrot.slane %v5895, 5
    %v7522 = vsel %vm4385, %v7520, %v7521
    %v7523 = vrot.slane %v7521, 4
    %v7524 = vrot.slane %v5896, 5
    %v7525 = vsel %vm4385, %v7523, %v7524
    %v7526 = vrot.slane %v7260, 5
    %v7527 = vrot.slane %v7526, 4
    %v7528 = vrot.slane %v5898, 5
    %v7529 = vsel %vm4385, %v7527, %v7528
    %v7530 = vrot.slane %v7528, 4
    %v7531 = vrot.slane %v5899, 5
    %v7532 = vsel %vm4385, %v7530, %v7531
    %v7533 = vrot.slane %v7261, 5
    %v7534 = vrot.slane %v7533, 4
    %v7535 = vrot.slane %v5901, 5
    %v7536 = vsel %vm4385, %v7534, %v7535
    %v7537 = vrot.slane %v7535, 4
    %v7538 = vrot.slane %v5902, 5
    %v7539 = vsel %vm4385, %v7537, %v7538
    %v7540 = vrot.slane %v7262, 5
    %v7541 = vrot.slane %v7540, 4
    %v7542 = vrot.slane %v5904, 5
    %v7543 = vsel %vm4385, %v7541, %v7542
    %v7544 = vrot.slane %v7542, 4
    %v7545 = vrot.slane %v5905, 5
    %v7546 = vsel %vm4385, %v7544, %v7545
    %v7547 = vrot.slane %v7263, 5
    %v7548 = vrot.slane %v7547, 4
    %v7549 = vrot.slane %v5907, 5
    %v7550 = vsel %vm4385, %v7548, %v7549
    %v7551 = vrot.slane %v7549, 4
    %v7552 = vrot.slane %v5908, 5
    %v7553 = vsel %vm4385, %v7551, %v7552
    %v7554 = vrot.slane %v7264, 5
    %v7555 = vrot.slane %v7554, 4
    %v7556 = vrot.slane %v5910, 5
    %v7557 = vsel %vm4385, %v7555, %v7556
    %v7558 = vrot.slane %v7556, 4
    %v7559 = vrot.slane %v5911, 5
    %v7560 = vsel %vm4385, %v7558, %v7559
    %v7561 = vrot.slane %v7265, 5
    %v7562 = vrot.slane %v7561, 4
    %v7563 = vrot.slane %v5913, 5
    %v7564 = vsel %vm4385, %v7562, %v7563
    %v7565 = vrot.slane %v7563, 4
    %v7566 = vrot.slane %v5914, 5
    %v7567 = vsel %vm4385, %v7565, %v7566
    %v7568 = vrot.slane %v7266, 5
    %v7569 = vrot.slane %v7568, 4
    %v7570 = vrot.slane %v5916, 5
    %v7571 = vsel %vm4385, %v7569, %v7570
    %v7572 = vrot.slane %v7570, 4
    %v7573 = vrot.slane %v5917, 5
    %v7574 = vsel %vm4385, %v7572, %v7573
    %v7575 = vrot.slane %v7267, 5
    %v7576 = vrot.slane %v7575, 4
    %v7577 = vrot.slane %v5919, 5
    %v7578 = vsel %vm4385, %v7576, %v7577
    %v7579 = vrot.slane %v7577, 4
    %v7580 = vrot.slane %v5920, 5
    %v7581 = vsel %vm4385, %v7579, %v7580
    %v7582 = vrot.slane %v7268, 5
    %v7583 = vrot.slane %v7582, 4
    %v7584 = vrot.slane %v5922, 5
    %v7585 = vsel %vm4385, %v7583, %v7584
    %v7586 = vrot.slane %v7584, 4
    %v7587 = vrot.slane %v5923, 5
    %v7588 = vsel %vm4385, %v7586, %v7587
    %v7589 = vld [vmem:[#allocation8 + $0x140] sm:$0xf]
    %v7590 = vld [vmem:[#allocation8 + $0x144] sm:$0xf]
    %v7591 = vld [vmem:[#allocation8 + $0x148] sm:$0xf]
    %v7592 = vld [vmem:[#allocation8 + $0x14c] sm:$0xf]
    %v7593 = vld [vmem:[#allocation8 + $0x150] sm:$0xf]
    %v7594 = vld [vmem:[#allocation8 + $0x154] sm:$0xf]
    %v7595 = vld [vmem:[#allocation8 + $0x158] sm:$0xf]
    %v7596 = vld [vmem:[#allocation8 + $0x15c] sm:$0xf]
    %v7597 = vld [vmem:[#allocation8 + $0x160] sm:$0xf]
    %v7598 = vld [vmem:[#allocation8 + $0x164] sm:$0xf]
    %v7599 = vld [vmem:[#allocation8 + $0x168] sm:$0xf]
    %v7600 = vld [vmem:[#allocation8 + $0x16c] sm:$0xf]
    %v7601 = vld [vmem:[#allocation8 + $0x170] sm:$0xf]
    %v7602 = vld [vmem:[#allocation8 + $0x174] sm:$0xf]
    %v7603 = vld [vmem:[#allocation8 + $0x178] sm:$0xf]
    %v7604 = vld [vmem:[#allocation8 + $0x17c] sm:$0xf]
    %v7605 = vunpack.c.l.b16 %v7368
    %v7606 = vunpack.c.l.b16 %v7371
    %v7607 = vunpack.c.l.b16 %v7375
    %v7608 = vunpack.c.l.b16 %v7378
    %v7609 = vunpack.c.l.b16 %v7382
    %v7610 = vunpack.c.l.b16 %v7385
    %v7611 = vunpack.c.l.b16 %v7389
    %v7612 = vunpack.c.l.b16 %v7392
    %v7613 = vunpack.c.l.b16 %v7396
    %v7614 = vunpack.c.l.b16 %v7399
    %v7615 = vunpack.c.l.b16 %v7403
    %v7616 = vunpack.c.l.b16 %v7406
    %v7617 = vunpack.c.l.b16 %v7410
    %v7618 = vunpack.c.l.b16 %v7413
    %v7619 = vunpack.c.l.b16 %v7417
    %v7620 = vunpack.c.l.b16 %v7420
    %v7621 = vunpack.c.l.b16 %v7424
    %v7622 = vunpack.c.l.b16 %v7427
    %v7623 = vunpack.c.l.b16 %v7431
    %v7624 = vunpack.c.l.b16 %v7434
    %v7625 = vunpack.c.l.b16 %v7438
    %v7626 = vunpack.c.l.b16 %v7441
    %v7627 = vunpack.c.l.b16 %v7445
    %v7628 = vunpack.c.l.b16 %v7448
    %v7629 = vunpack.c.l.b16 %v7452
    %v7630 = vunpack.c.l.b16 %v7455
    %v7631 = vunpack.c.l.b16 %v7459
    %v7632 = vunpack.c.l.b16 %v7462
    %v7633 = vunpack.c.l.b16 %v7466
    %v7634 = vunpack.c.l.b16 %v7469
    %v7635 = vunpack.c.l.b16 %v7473
    %v7636 = vunpack.c.l.b16 %v7476
    %v7637 = vunpack.c.l.b16 %v7480
    %v7638 = vunpack.c.l.b16 %v7483
    %v7639 = vunpack.c.l.b16 %v7487
    %v7640 = vunpack.c.l.b16 %v7490
    %v7641 = vunpack.c.l.b16 %v7494
    %v7642 = vunpack.c.l.b16 %v7497
    %v7643 = vunpack.c.l.b16 %v7501
    %v7644 = vunpack.c.l.b16 %v7504
    %v7645 = vunpack.c.l.b16 %v7508
    %v7646 = vunpack.c.l.b16 %v7511
    %v7647 = vunpack.c.l.b16 %v7515
    %v7648 = vunpack.c.l.b16 %v7518
    %v7649 = vunpack.c.l.b16 %v7522
    %v7650 = vunpack.c.l.b16 %v7525
    %v7651 = vunpack.c.l.b16 %v7529
    %v7652 = vunpack.c.l.b16 %v7532
    %v7653 = vunpack.c.l.b16 %v7536
    %v7654 = vunpack.c.l.b16 %v7539
    %v7655 = vunpack.c.l.b16 %v7543
    %v7656 = vunpack.c.l.b16 %v7546
    %v7657 = vunpack.c.l.b16 %v7550
    %v7658 = vunpack.c.l.b16 %v7553
    %v7659 = vunpack.c.l.b16 %v7557
    %v7660 = vunpack.c.l.b16 %v7560
    %v7661 = vunpack.c.l.b16 %v7564
    %v7662 = vunpack.c.l.b16 %v7567
    %v7663 = vunpack.c.l.b16 %v7571
    %v7664 = vunpack.c.l.b16 %v7574
    %v7665 = vunpack.c.l.b16 %v7578
    %v7666 = vunpack.c.l.b16 %v7581
    %v7667 = vunpack.c.l.b16 %v7585
    %v7668 = vunpack.c.l.b16 %v7588
    %v7669 = vpack.c.b16 %v7606, %v7605
    %v7670 = vpack.c.b16 %v7608, %v7607
    %v7671 = vpack.c.b16 %v7610, %v7609
    %v7672 = vpack.c.b16 %v7612, %v7611
    %v7673 = vpack.c.b16 %v7614, %v7613
    %v7674 = vpack.c.b16 %v7616, %v7615
    %v7675 = vpack.c.b16 %v7618, %v7617
    %v7676 = vpack.c.b16 %v7620, %v7619
    %v7677 = vpack.c.b16 %v7622, %v7621
    %v7678 = vpack.c.b16 %v7624, %v7623
    %v7679 = vpack.c.b16 %v7626, %v7625
    %v7680 = vpack.c.b16 %v7628, %v7627
    %v7681 = vpack.c.b16 %v7630, %v7629
    %v7682 = vpack.c.b16 %v7632, %v7631
    %v7683 = vpack.c.b16 %v7634, %v7633
    %v7684 = vpack.c.b16 %v7636, %v7635
    %v7685 = vpack.c.b16 %v7638, %v7637
    %v7686 = vpack.c.b16 %v7640, %v7639
    %v7687 = vpack.c.b16 %v7642, %v7641
    %v7688 = vpack.c.b16 %v7644, %v7643
    %v7689 = vpack.c.b16 %v7646, %v7645
    %v7690 = vpack.c.b16 %v7648, %v7647
    %v7691 = vpack.c.b16 %v7650, %v7649
    %v7692 = vpack.c.b16 %v7652, %v7651
    %v7693 = vpack.c.b16 %v7654, %v7653
    %v7694 = vpack.c.b16 %v7656, %v7655
    %v7695 = vpack.c.b16 %v7658, %v7657
    %v7696 = vpack.c.b16 %v7660, %v7659
    %v7697 = vpack.c.b16 %v7662, %v7661
    %v7698 = vpack.c.b16 %v7664, %v7663
    %v7699 = vpack.c.b16 %v7666, %v7665
    %v7700 = vpack.c.b16 %v7668, %v7667
    %v7749 = vunpack.c.l.b16 %v7589
    %v7750 = vunpack.c.l.b16 %v7590
    %v7751 = vunpack.c.l.b16 %v7591
    %v7752 = vunpack.c.l.b16 %v7592
    %v7753 = vunpack.c.l.b16 %v7593
    %v7754 = vunpack.c.l.b16 %v7594
    %v7755 = vunpack.c.l.b16 %v7595
    %v7756 = vunpack.c.l.b16 %v7596
    %v7757 = vunpack.c.l.b16 %v7597
    %v7758 = vunpack.c.l.b16 %v7598
    %v7759 = vunpack.c.l.b16 %v7599
    %v7760 = vunpack.c.l.b16 %v7600
    %v7761 = vunpack.c.l.b16 %v7601
    %v7762 = vunpack.c.l.b16 %v7602
    %v7763 = vunpack.c.l.b16 %v7603
    %v7764 = vunpack.c.l.b16 %v7604
    %v7765 = vpack.c.b16 %v7750, %v7749
    %v7766 = vpack.c.b16 %v7752, %v7751
    %v7767 = vpack.c.b16 %v7754, %v7753
    %v7768 = vpack.c.b16 %v7756, %v7755
    %v7769 = vpack.c.b16 %v7758, %v7757
    %v7770 = vpack.c.b16 %v7760, %v7759
    %v7771 = vpack.c.b16 %v7762, %v7761
    %v7772 = vpack.c.b16 %v7764, %v7763
    %7781 = vmatprep.subr.bf16.mxu0 0
    %7782 = vmatpush1.bf16.msra.mxu0 %v7772
    %7783 = vmatprep.subr.bf16.mxu0 0
    %7784 = vmatpush1.bf16.msra.mxu0 %v7771
    %7785 = vmatprep.subr.bf16.mxu0 0
    %7786 = vmatpush1.bf16.msra.mxu0 %v7770
    %7787 = vmatprep.subr.bf16.mxu0 0
    %7788 = vmatpush1.bf16.msra.mxu0 %v7769
    %7789 = vmatprep.subr.bf16.mxu0 0
    %7790 = vmatpush1.bf16.msra.mxu0 %v7768
    %7791 = vmatprep.subr.bf16.mxu0 0
    %7792 = vmatpush1.bf16.msra.mxu0 %v7767
    %7793 = vmatprep.subr.bf16.mxu0 0
    %7794 = vmatpush1.bf16.msra.mxu0 %v7766
    %7795 = vmatprep.subr.bf16.mxu0 0
    %7796 = vmatpush1.bf16.msra.mxu0 %v7765
    %7797 = vmatprep.subr.bf16.mxu0 0
    %7798 = vmatpush2.bf16.msra.mxu0 0
    %7799 = vmatprep.subr.bf16.mxu0 0
    %7800 = vmatpush2.bf16.msra.mxu0 0
    %7801 = vmatprep.subr.bf16.mxu0 0
    %7802 = vmatpush2.bf16.msra.mxu0 0
    %7803 = vmatprep.subr.bf16.mxu0 0
    %7804 = vmatpush2.bf16.msra.mxu0 0
    %7805 = vmatprep.subr.bf16.mxu0 0
    %7806 = vmatpush2.bf16.msra.mxu0 0
    %7807 = vmatprep.subr.bf16.mxu0 0
    %7808 = vmatpush2.bf16.msra.mxu0 0
    %7809 = vmatprep.subr.bf16.mxu0 0
    %7810 = vmatpush2.bf16.msra.mxu0 0
    %7811 = vmatprep.subr.bf16.mxu0 0
    %7812 = vmatpush2.bf16.msra.mxu0 0
    %7813 = vmatprep.mubr.bf16.mxu0 0
    %7814 = vmatmul.mubr.bf16.gmra.mxu0 %v7669
    %v7815 = vpop.f32.mrf.mxu0
    %v7816 = vadd.f32 0.0, %v7815
    %v7817 = vpop.f32.mrf.mxu0
    %v7818 = vpop.f32.mrf.mxu0
    %v7819 = vadd.f32 0.0, %v7818
    %v7820 = vpop.f32.mrf.mxu0
    %7821 = vmatprep.mubr.bf16.mxu0 0
    %7822 = vmatmul.mubr.bf16.gmra.mxu0 %v7670
    %v7823 = vpop.f32.mrf.mxu0
    %v7824 = vadd.f32 0.0, %v7823
    %v7825 = vpop.f32.mrf.mxu0
    %v7826 = vpop.f32.mrf.mxu0
    %v7827 = vadd.f32 0.0, %v7826
    %v7828 = vpop.f32.mrf.mxu0
    %7829 = vmatprep.mubr.bf16.mxu0 0
    %7830 = vmatmul.mubr.bf16.gmra.mxu0 %v7671
    %v7831 = vpop.f32.mrf.mxu0
    %v7832 = vadd.f32 0.0, %v7831
    %v7833 = vpop.f32.mrf.mxu0
    %v7834 = vpop.f32.mrf.mxu0
    %v7835 = vadd.f32 0.0, %v7834
    %v7836 = vpop.f32.mrf.mxu0
    %7837 = vmatprep.mubr.bf16.mxu0 0
    %7838 = vmatmul.mubr.bf16.gmra.mxu0 %v7672
    %v7839 = vpop.f32.mrf.mxu0
    %v7840 = vadd.f32 0.0, %v7839
    %v7841 = vpop.f32.mrf.mxu0
    %v7842 = vpop.f32.mrf.mxu0
    %v7843 = vadd.f32 0.0, %v7842
    %v7844 = vpop.f32.mrf.mxu0
    %7845 = vmatprep.mubr.bf16.mxu0 0
    %7846 = vmatmul.mubr.bf16.gmra.mxu0 %v7673
    %v7847 = vpop.f32.mrf.mxu0
    %v7848 = vadd.f32 0.0, %v7847
    %v7849 = vpop.f32.mrf.mxu0
    %v7850 = vpop.f32.mrf.mxu0
    %v7851 = vadd.f32 0.0, %v7850
    %v7852 = vpop.f32.mrf.mxu0
    %7853 = vmatprep.mubr.bf16.mxu0 0
    %7854 = vmatmul.mubr.bf16.gmra.mxu0 %v7674
    %v7855 = vpop.f32.mrf.mxu0
    %v7856 = vadd.f32 0.0, %v7855
    %v7857 = vpop.f32.mrf.mxu0
    %v7858 = vpop.f32.mrf.mxu0
    %v7859 = vadd.f32 0.0, %v7858
    %v7860 = vpop.f32.mrf.mxu0
    %7861 = vmatprep.mubr.bf16.mxu0 0
    %7862 = vmatmul.mubr.bf16.gmra.mxu0 %v7675
    %v7863 = vpop.f32.mrf.mxu0
    %v7864 = vadd.f32 0.0, %v7863
    %v7865 = vpop.f32.mrf.mxu0
    %v7866 = vpop.f32.mrf.mxu0
    %v7867 = vadd.f32 0.0, %v7866
    %v7868 = vpop.f32.mrf.mxu0
    %7869 = vmatprep.mubr.bf16.mxu0 0
    %7870 = vmatmul.mubr.bf16.gmra.mxu0 %v7676
    %v7871 = vpop.f32.mrf.mxu0
    %v7872 = vadd.f32 0.0, %v7871
    %v7873 = vpop.f32.mrf.mxu0
    %v7874 = vpop.f32.mrf.mxu0
    %v7875 = vadd.f32 0.0, %v7874
    %v7876 = vpop.f32.mrf.mxu0
    %7877 = vmatprep.mubr.bf16.mxu0 0
    %7878 = vmatmul.mubr.bf16.gmra.mxu0 %v7677
    %v7879 = vpop.f32.mrf.mxu0
    %v7880 = vadd.f32 0.0, %v7879
    %v7881 = vpop.f32.mrf.mxu0
    %v7882 = vpop.f32.mrf.mxu0
    %v7883 = vadd.f32 0.0, %v7882
    %v7884 = vpop.f32.mrf.mxu0
    %7885 = vmatprep.mubr.bf16.mxu0 0
    %7886 = vmatmul.mubr.bf16.gmra.mxu0 %v7678
    %v7887 = vpop.f32.mrf.mxu0
    %v7888 = vadd.f32 0.0, %v7887
    %v7889 = vpop.f32.mrf.mxu0
    %v7890 = vpop.f32.mrf.mxu0
    %v7891 = vadd.f32 0.0, %v7890
    %v7892 = vpop.f32.mrf.mxu0
    %7893 = vmatprep.mubr.bf16.mxu0 0
    %7894 = vmatmul.mubr.bf16.gmra.mxu0 %v7679
    %v7895 = vpop.f32.mrf.mxu0
    %v7896 = vadd.f32 0.0, %v7895
    %v7897 = vpop.f32.mrf.mxu0
    %v7898 = vpop.f32.mrf.mxu0
    %v7899 = vadd.f32 0.0, %v7898
    %v7900 = vpop.f32.mrf.mxu0
    %7901 = vmatprep.mubr.bf16.mxu0 0
    %7902 = vmatmul.mubr.bf16.gmra.mxu0 %v7680
    %v7903 = vpop.f32.mrf.mxu0
    %v7904 = vadd.f32 0.0, %v7903
    %v7905 = vpop.f32.mrf.mxu0
    %v7906 = vpop.f32.mrf.mxu0
    %v7907 = vadd.f32 0.0, %v7906
    %v7908 = vpop.f32.mrf.mxu0
    %7909 = vmatprep.mubr.bf16.mxu0 0
    %7910 = vmatmul.mubr.bf16.gmra.mxu0 %v7681
    %v7911 = vpop.f32.mrf.mxu0
    %v7912 = vadd.f32 0.0, %v7911
    %v7913 = vpop.f32.mrf.mxu0
    %v7914 = vpop.f32.mrf.mxu0
    %v7915 = vadd.f32 0.0, %v7914
    %v7916 = vpop.f32.mrf.mxu0
    %7917 = vmatprep.mubr.bf16.mxu0 0
    %7918 = vmatmul.mubr.bf16.gmra.mxu0 %v7682
    %v7919 = vpop.f32.mrf.mxu0
    %v7920 = vadd.f32 0.0, %v7919
    %v7921 = vpop.f32.mrf.mxu0
    %v7922 = vpop.f32.mrf.mxu0
    %v7923 = vadd.f32 0.0, %v7922
    %v7924 = vpop.f32.mrf.mxu0
    %7925 = vmatprep.mubr.bf16.mxu0 0
    %7926 = vmatmul.mubr.bf16.gmra.mxu0 %v7683
    %v7927 = vpop.f32.mrf.mxu0
    %v7928 = vadd.f32 0.0, %v7927
    %v7929 = vpop.f32.mrf.mxu0
    %v7930 = vpop.f32.mrf.mxu0
    %v7931 = vadd.f32 0.0, %v7930
    %v7932 = vpop.f32.mrf.mxu0
    %7933 = vmatprep.mubr.bf16.mxu0 0
    %7934 = vmatmul.mubr.bf16.gmra.mxu0 %v7684
    %v7935 = vpop.f32.mrf.mxu0
    %v7936 = vadd.f32 0.0, %v7935
    %v7937 = vpop.f32.mrf.mxu0
    %v7938 = vpop.f32.mrf.mxu0
    %v7939 = vadd.f32 0.0, %v7938
    %v7940 = vpop.f32.mrf.mxu0
    %7941 = vmatprep.mubr.bf16.mxu0 0
    %7942 = vmatmul.mubr.bf16.gmra.mxu0 %v7685
    %v7943 = vpop.f32.mrf.mxu0
    %v7944 = vadd.f32 0.0, %v7943
    %v7945 = vpop.f32.mrf.mxu0
    %v7946 = vpop.f32.mrf.mxu0
    %v7947 = vadd.f32 0.0, %v7946
    %v7948 = vpop.f32.mrf.mxu0
    %7949 = vmatprep.mubr.bf16.mxu0 0
    %7950 = vmatmul.mubr.bf16.gmra.mxu0 %v7686
    %v7951 = vpop.f32.mrf.mxu0
    %v7952 = vadd.f32 0.0, %v7951
    %v7953 = vpop.f32.mrf.mxu0
    %v7954 = vpop.f32.mrf.mxu0
    %v7955 = vadd.f32 0.0, %v7954
    %v7956 = vpop.f32.mrf.mxu0
    %7957 = vmatprep.mubr.bf16.mxu0 0
    %7958 = vmatmul.mubr.bf16.gmra.mxu0 %v7687
    %v7959 = vpop.f32.mrf.mxu0
    %v7960 = vadd.f32 0.0, %v7959
    %v7961 = vpop.f32.mrf.mxu0
    %v7962 = vpop.f32.mrf.mxu0
    %v7963 = vadd.f32 0.0, %v7962
    %v7964 = vpop.f32.mrf.mxu0
    %7965 = vmatprep.mubr.bf16.mxu0 0
    %7966 = vmatmul.mubr.bf16.gmra.mxu0 %v7688
    %v7967 = vpop.f32.mrf.mxu0
    %v7968 = vadd.f32 0.0, %v7967
    %v7969 = vpop.f32.mrf.mxu0
    %v7970 = vpop.f32.mrf.mxu0
    %v7971 = vadd.f32 0.0, %v7970
    %v7972 = vpop.f32.mrf.mxu0
    %7973 = vmatprep.mubr.bf16.mxu0 0
    %7974 = vmatmul.mubr.bf16.gmra.mxu0 %v7689
    %v7975 = vpop.f32.mrf.mxu0
    %v7976 = vadd.f32 0.0, %v7975
    %v7977 = vpop.f32.mrf.mxu0
    %v7978 = vpop.f32.mrf.mxu0
    %v7979 = vadd.f32 0.0, %v7978
    %v7980 = vpop.f32.mrf.mxu0
    %7981 = vmatprep.mubr.bf16.mxu0 0
    %7982 = vmatmul.mubr.bf16.gmra.mxu0 %v7690
    %v7983 = vpop.f32.mrf.mxu0
    %v7984 = vadd.f32 0.0, %v7983
    %v7985 = vpop.f32.mrf.mxu0
    %v7986 = vpop.f32.mrf.mxu0
    %v7987 = vadd.f32 0.0, %v7986
    %v7988 = vpop.f32.mrf.mxu0
    %7989 = vmatprep.mubr.bf16.mxu0 0
    %7990 = vmatmul.mubr.bf16.gmra.mxu0 %v7691
    %v7991 = vpop.f32.mrf.mxu0
    %v7992 = vadd.f32 0.0, %v7991
    %v7993 = vpop.f32.mrf.mxu0
    %v7994 = vpop.f32.mrf.mxu0
    %v7995 = vadd.f32 0.0, %v7994
    %v7996 = vpop.f32.mrf.mxu0
    %7997 = vmatprep.mubr.bf16.mxu0 0
    %7998 = vmatmul.mubr.bf16.gmra.mxu0 %v7692
    %v7999 = vpop.f32.mrf.mxu0
    %v8000 = vadd.f32 0.0, %v7999
    %v8001 = vpop.f32.mrf.mxu0
    %v8002 = vpop.f32.mrf.mxu0
    %v8003 = vadd.f32 0.0, %v8002
    %v8004 = vpop.f32.mrf.mxu0
    %8005 = vmatprep.mubr.bf16.mxu0 0
    %8006 = vmatmul.mubr.bf16.gmra.mxu0 %v7693
    %v8007 = vpop.f32.mrf.mxu0
    %v8008 = vadd.f32 0.0, %v8007
    %v8009 = vpop.f32.mrf.mxu0
    %v8010 = vpop.f32.mrf.mxu0
    %v8011 = vadd.f32 0.0, %v8010
    %v8012 = vpop.f32.mrf.mxu0
    %8013 = vmatprep.mubr.bf16.mxu0 0
    %8014 = vmatmul.mubr.bf16.gmra.mxu0 %v7694
    %v8015 = vpop.f32.mrf.mxu0
    %v8016 = vadd.f32 0.0, %v8015
    %v8017 = vpop.f32.mrf.mxu0
    %v8018 = vpop.f32.mrf.mxu0
    %v8019 = vadd.f32 0.0, %v8018
    %v8020 = vpop.f32.mrf.mxu0
    %8021 = vmatprep.mubr.bf16.mxu0 0
    %8022 = vmatmul.mubr.bf16.gmra.mxu0 %v7695
    %v8023 = vpop.f32.mrf.mxu0
    %v8024 = vadd.f32 0.0, %v8023
    %v8025 = vpop.f32.mrf.mxu0
    %v8026 = vpop.f32.mrf.mxu0
    %v8027 = vadd.f32 0.0, %v8026
    %v8028 = vpop.f32.mrf.mxu0
    %8029 = vmatprep.mubr.bf16.mxu0 0
    %8030 = vmatmul.mubr.bf16.gmra.mxu0 %v7696
    %v8031 = vpop.f32.mrf.mxu0
    %v8032 = vadd.f32 0.0, %v8031
    %v8033 = vpop.f32.mrf.mxu0
    %v8034 = vpop.f32.mrf.mxu0
    %v8035 = vadd.f32 0.0, %v8034
    %v8036 = vpop.f32.mrf.mxu0
    %8037 = vmatprep.mubr.bf16.mxu0 0
    %8038 = vmatmul.mubr.bf16.gmra.mxu0 %v7697
    %v8039 = vpop.f32.mrf.mxu0
    %v8040 = vadd.f32 0.0, %v8039
    %v8041 = vpop.f32.mrf.mxu0
    %v8042 = vpop.f32.mrf.mxu0
    %v8043 = vadd.f32 0.0, %v8042
    %v8044 = vpop.f32.mrf.mxu0
    %8045 = vmatprep.mubr.bf16.mxu0 0
    %8046 = vmatmul.mubr.bf16.gmra.mxu0 %v7698
    %v8047 = vpop.f32.mrf.mxu0
    %v8048 = vadd.f32 0.0, %v8047
    %v8049 = vpop.f32.mrf.mxu0
    %v8050 = vpop.f32.mrf.mxu0
    %v8051 = vadd.f32 0.0, %v8050
    %v8052 = vpop.f32.mrf.mxu0
    %8053 = vmatprep.mubr.bf16.mxu0 0
    %8054 = vmatmul.mubr.bf16.gmra.mxu0 %v7699
    %v8055 = vpop.f32.mrf.mxu0
    %v8056 = vadd.f32 0.0, %v8055
    %v8057 = vpop.f32.mrf.mxu0
    %v8058 = vpop.f32.mrf.mxu0
    %v8059 = vadd.f32 0.0, %v8058
    %v8060 = vpop.f32.mrf.mxu0
    %8061 = vmatprep.mubr.bf16.mxu0 0
    %8062 = vmatmul.mubr.bf16.gmra.mxu0 %v7700
    %v8063 = vpop.f32.mrf.mxu0
    %v8064 = vadd.f32 0.0, %v8063
    %v8065 = vpop.f32.mrf.mxu0
    %v8066 = vpop.f32.mrf.mxu0
    %v8067 = vadd.f32 0.0, %v8066
    %v8068 = vpop.f32.mrf.mxu0
    %8069 = vdwg.mxu0
    %v8070 = vadd.f32 %v7173, %v7816
    %v8071 = vadd.f32 %v7174, %v7819
    %v8072 = vadd.f32 %v7175, %v7824
    %v8073 = vadd.f32 %v7176, %v7827
    %v8074 = vadd.f32 %v7177, %v7832
    %v8075 = vadd.f32 %v7178, %v7835
    %v8076 = vadd.f32 %v7179, %v7840
    %v8077 = vadd.f32 %v7180, %v7843
    %v8078 = vadd.f32 %v7181, %v7848
    %v8079 = vadd.f32 %v7182, %v7851
    %v8080 = vadd.f32 %v7183, %v7856
    %v8081 = vadd.f32 %v7184, %v7859
    %v8082 = vadd.f32 %v7185, %v7864
    %v8083 = vadd.f32 %v7186, %v7867
    %v8084 = vadd.f32 %v7187, %v7872
    %v8085 = vadd.f32 %v7188, %v7875
    %v8086 = vadd.f32 %v7189, %v7880
    %v8087 = vadd.f32 %v7190, %v7883
    %v8088 = vadd.f32 %v7191, %v7888
    %v8089 = vadd.f32 %v7192, %v7891
    %v8090 = vadd.f32 %v7193, %v7896
    %v8091 = vadd.f32 %v7194, %v7899
    %v8092 = vadd.f32 %v7195, %v7904
    %v8093 = vadd.f32 %v7196, %v7907
    %v8094 = vadd.f32 %v7197, %v7912
    %v8095 = vadd.f32 %v7198, %v7915
    %v8096 = vadd.f32 %v7199, %v7920
    %v8097 = vadd.f32 %v7200, %v7923
    %v8098 = vadd.f32 %v7201, %v7928
    %v8099 = vadd.f32 %v7202, %v7931
    %v8100 = vadd.f32 %v7203, %v7936
    %v8101 = vadd.f32 %v7204, %v7939
    %v8102 = vadd.f32 %v7205, %v7944
    %v8103 = vadd.f32 %v7206, %v7947
    %v8104 = vadd.f32 %v7207, %v7952
    %v8105 = vadd.f32 %v7208, %v7955
    %v8106 = vadd.f32 %v7209, %v7960
    %v8107 = vadd.f32 %v7210, %v7963
    %v8108 = vadd.f32 %v7211, %v7968
    %v8109 = vadd.f32 %v7212, %v7971
    %v8110 = vadd.f32 %v7213, %v7976
    %v8111 = vadd.f32 %v7214, %v7979
    %v8112 = vadd.f32 %v7215, %v7984
    %v8113 = vadd.f32 %v7216, %v7987
    %v8114 = vadd.f32 %v7217, %v7992
    %v8115 = vadd.f32 %v7218, %v7995
    %v8116 = vadd.f32 %v7219, %v8000
    %v8117 = vadd.f32 %v7220, %v8003
    %v8118 = vadd.f32 %v7221, %v8008
    %v8119 = vadd.f32 %v7222, %v8011
    %v8120 = vadd.f32 %v7223, %v8016
    %v8121 = vadd.f32 %v7224, %v8019
    %v8122 = vadd.f32 %v7225, %v8024
    %v8123 = vadd.f32 %v7226, %v8027
    %v8124 = vadd.f32 %v7227, %v8032
    %v8125 = vadd.f32 %v7228, %v8035
    %v8126 = vadd.f32 %v7229, %v8040
    %v8127 = vadd.f32 %v7230, %v8043
    %v8128 = vadd.f32 %v7231, %v8048
    %v8129 = vadd.f32 %v7232, %v8051
    %v8130 = vadd.f32 %v7233, %v8056
    %v8131 = vadd.f32 %v7234, %v8059
    %v8132 = vadd.f32 %v7235, %v8064
    %v8133 = vadd.f32 %v7236, %v8067
    %s8134 = scalar_lea.vmem [#allocation2], 24
    %v8135 = vld [vmem:[%s8134] sm:$0xf]
    %v8136 = vld [vmem:[%s8134 + $0x4] sm:$0xf]
    %v8137 = vld [vmem:[%s8134 + $0xc] sm:$0xf]
    %v8138 = vld [vmem:[%s8134 + $0x10] sm:$0xf]
    %v8139 = vld [vmem:[%s8134 + $0x18] sm:$0xf]
    %v8140 = vld [vmem:[%s8134 + $0x1c] sm:$0xf]
    %v8141 = vld [vmem:[%s8134 + $0x24] sm:$0xf]
    %v8142 = vld [vmem:[%s8134 + $0x28] sm:$0xf]
    %v8143 = vld [vmem:[%s8134 + $0x30] sm:$0xf]
    %v8144 = vld [vmem:[%s8134 + $0x34] sm:$0xf]
    %v8145 = vld [vmem:[%s8134 + $0x3c] sm:$0xf]
    %v8146 = vld [vmem:[%s8134 + $0x40] sm:$0xf]
    %v8147 = vld [vmem:[%s8134 + $0x48] sm:$0xf]
    %v8148 = vld [vmem:[%s8134 + $0x4c] sm:$0xf]
    %v8149 = vld [vmem:[%s8134 + $0x54] sm:$0xf]
    %v8150 = vld [vmem:[%s8134 + $0x58] sm:$0xf]
    %v8151 = vld [vmem:[%s8134 + $0x60] sm:$0xf]
    %v8152 = vld [vmem:[%s8134 + $0x64] sm:$0xf]
    %v8153 = vld [vmem:[%s8134 + $0x6c] sm:$0xf]
    %v8154 = vld [vmem:[%s8134 + $0x70] sm:$0xf]
    %v8155 = vld [vmem:[%s8134 + $0x78] sm:$0xf]
    %v8156 = vld [vmem:[%s8134 + $0x7c] sm:$0xf]
    %v8157 = vld [vmem:[%s8134 + $0x84] sm:$0xf]
    %v8158 = vld [vmem:[%s8134 + $0x88] sm:$0xf]
    %v8159 = vld [vmem:[%s8134 + $0x90] sm:$0xf]
    %v8160 = vld [vmem:[%s8134 + $0x94] sm:$0xf]
    %v8161 = vld [vmem:[%s8134 + $0x9c] sm:$0xf]
    %v8162 = vld [vmem:[%s8134 + $0xa0] sm:$0xf]
    %v8163 = vld [vmem:[%s8134 + $0xa8] sm:$0xf]
    %v8164 = vld [vmem:[%s8134 + $0xac] sm:$0xf]
    %v8165 = vld [vmem:[%s8134 + $0xb4] sm:$0xf]
    %v8166 = vld [vmem:[%s8134 + $0xb8] sm:$0xf]
    %v8167 = vld [vmem:[%s8134 + $0xd8] sm:$0xf]
    %v8168 = vld [vmem:[%s8134 + $0xdc] sm:$0xf]
    %v8169 = vld [vmem:[%s8134 + $0xe4] sm:$0xf]
    %v8170 = vld [vmem:[%s8134 + $0xe8] sm:$0xf]
    %v8171 = vld [vmem:[%s8134 + $0xf0] sm:$0xf]
    %v8172 = vld [vmem:[%s8134 + $0xf4] sm:$0xf]
    %v8173 = vld [vmem:[%s8134 + $0xfc] sm:$0xf]
    %v8174 = vld [vmem:[%s8134 + $0x100] sm:$0xf]
    %v8175 = vld [vmem:[%s8134 + $0x108] sm:$0xf]
    %v8176 = vld [vmem:[%s8134 + $0x10c] sm:$0xf]
    %v8177 = vld [vmem:[%s8134 + $0x114] sm:$0xf]
    %v8178 = vld [vmem:[%s8134 + $0x118] sm:$0xf]
    %v8179 = vld [vmem:[%s8134 + $0x120] sm:$0xf]
    %v8180 = vld [vmem:[%s8134 + $0x124] sm:$0xf]
    %v8181 = vld [vmem:[%s8134 + $0x12c] sm:$0xf]
    %v8182 = vld [vmem:[%s8134 + $0x130] sm:$0xf]
    %v8183 = vld [vmem:[%s8134 + $0x138] sm:$0xf]
    %v8184 = vld [vmem:[%s8134 + $0x13c] sm:$0xf]
    %v8185 = vld [vmem:[%s8134 + $0x144] sm:$0xf]
    %v8186 = vld [vmem:[%s8134 + $0x148] sm:$0xf]
    %v8187 = vld [vmem:[%s8134 + $0x150] sm:$0xf]
    %v8188 = vld [vmem:[%s8134 + $0x154] sm:$0xf]
    %v8189 = vld [vmem:[%s8134 + $0x15c] sm:$0xf]
    %v8190 = vld [vmem:[%s8134 + $0x160] sm:$0xf]
    %v8191 = vld [vmem:[%s8134 + $0x168] sm:$0xf]
    %v8192 = vld [vmem:[%s8134 + $0x16c] sm:$0xf]
    %v8193 = vld [vmem:[%s8134 + $0x174] sm:$0xf]
    %v8194 = vld [vmem:[%s8134 + $0x178] sm:$0xf]
    %v8195 = vld [vmem:[%s8134 + $0x180] sm:$0xf]
    %v8196 = vld [vmem:[%s8134 + $0x184] sm:$0xf]
    %v8197 = vld [vmem:[%s8134 + $0x18c] sm:$0xf]
    %v8198 = vld [vmem:[%s8134 + $0x190] sm:$0xf]
    %v8199 = vld [vmem:[#allocation8 + $0x180] sm:$0xf]
    %v8200 = vld [vmem:[#allocation8 + $0x184] sm:$0xf]
    %v8201 = vld [vmem:[#allocation8 + $0x188] sm:$0xf]
    %v8202 = vld [vmem:[#allocation8 + $0x18c] sm:$0xf]
    %v8203 = vld [vmem:[#allocation8 + $0x190] sm:$0xf]
    %v8204 = vld [vmem:[#allocation8 + $0x194] sm:$0xf]
    %v8205 = vld [vmem:[#allocation8 + $0x198] sm:$0xf]
    %v8206 = vld [vmem:[#allocation8 + $0x19c] sm:$0xf]
    %v8207 = vld [vmem:[#allocation8 + $0x1a0] sm:$0xf]
    %v8208 = vld [vmem:[#allocation8 + $0x1a4] sm:$0xf]
    %v8209 = vld [vmem:[#allocation8 + $0x1a8] sm:$0xf]
    %v8210 = vld [vmem:[#allocation8 + $0x1ac] sm:$0xf]
    %v8211 = vld [vmem:[#allocation8 + $0x1b0] sm:$0xf]
    %v8212 = vld [vmem:[#allocation8 + $0x1b4] sm:$0xf]
    %v8213 = vld [vmem:[#allocation8 + $0x1b8] sm:$0xf]
    %v8214 = vld [vmem:[#allocation8 + $0x1bc] sm:$0xf]
    %v8279 = vunpack.c.l.b16 %v8135
    %v8280 = vunpack.c.l.b16 %v8136
    %v8281 = vunpack.c.l.b16 %v8137
    %v8282 = vunpack.c.l.b16 %v8138
    %v8283 = vunpack.c.l.b16 %v8139
    %v8284 = vunpack.c.l.b16 %v8140
    %v8285 = vunpack.c.l.b16 %v8141
    %v8286 = vunpack.c.l.b16 %v8142
    %v8287 = vunpack.c.l.b16 %v8143
    %v8288 = vunpack.c.l.b16 %v8144
    %v8289 = vunpack.c.l.b16 %v8145
    %v8290 = vunpack.c.l.b16 %v8146
    %v8291 = vunpack.c.l.b16 %v8147
    %v8292 = vunpack.c.l.b16 %v8148
    %v8293 = vunpack.c.l.b16 %v8149
    %v8294 = vunpack.c.l.b16 %v8150
    %v8295 = vunpack.c.l.b16 %v8151
    %v8296 = vunpack.c.l.b16 %v8152
    %v8297 = vunpack.c.l.b16 %v8153
    %v8298 = vunpack.c.l.b16 %v8154
    %v8299 = vunpack.c.l.b16 %v8155
    %v8300 = vunpack.c.l.b16 %v8156
    %v8301 = vunpack.c.l.b16 %v8157
    %v8302 = vunpack.c.l.b16 %v8158
    %v8303 = vunpack.c.l.b16 %v8159
    %v8304 = vunpack.c.l.b16 %v8160
    %v8305 = vunpack.c.l.b16 %v8161
    %v8306 = vunpack.c.l.b16 %v8162
    %v8307 = vunpack.c.l.b16 %v8163
    %v8308 = vunpack.c.l.b16 %v8164
    %v8309 = vunpack.c.l.b16 %v8165
    %v8310 = vunpack.c.l.b16 %v8166
    %v8311 = vunpack.c.l.b16 %v8167
    %v8312 = vunpack.c.l.b16 %v8168
    %v8313 = vunpack.c.l.b16 %v8169
    %v8314 = vunpack.c.l.b16 %v8170
    %v8315 = vunpack.c.l.b16 %v8171
    %v8316 = vunpack.c.l.b16 %v8172
    %v8317 = vunpack.c.l.b16 %v8173
    %v8318 = vunpack.c.l.b16 %v8174
    %v8319 = vunpack.c.l.b16 %v8175
    %v8320 = vunpack.c.l.b16 %v8176
    %v8321 = vunpack.c.l.b16 %v8177
    %v8322 = vunpack.c.l.b16 %v8178
    %v8323 = vunpack.c.l.b16 %v8179
    %v8324 = vunpack.c.l.b16 %v8180
    %v8325 = vunpack.c.l.b16 %v8181
    %v8326 = vunpack.c.l.b16 %v8182
    %v8327 = vunpack.c.l.b16 %v8183
    %v8328 = vunpack.c.l.b16 %v8184
    %v8329 = vunpack.c.l.b16 %v8185
    %v8330 = vunpack.c.l.b16 %v8186
    %v8331 = vunpack.c.l.b16 %v8187
    %v8332 = vunpack.c.l.b16 %v8188
    %v8333 = vunpack.c.l.b16 %v8189
    %v8334 = vunpack.c.l.b16 %v8190
    %v8335 = vunpack.c.l.b16 %v8191
    %v8336 = vunpack.c.l.b16 %v8192
    %v8337 = vunpack.c.l.b16 %v8193
    %v8338 = vunpack.c.l.b16 %v8194
    %v8339 = vunpack.c.l.b16 %v8195
    %v8340 = vunpack.c.l.b16 %v8196
    %v8341 = vunpack.c.l.b16 %v8197
    %v8342 = vunpack.c.l.b16 %v8198
    %v8343 = vpack.c.b16 %v8280, %v8279
    %v8344 = vpack.c.b16 %v8282, %v8281
    %v8345 = vpack.c.b16 %v8284, %v8283
    %v8346 = vpack.c.b16 %v8286, %v8285
    %v8347 = vpack.c.b16 %v8288, %v8287
    %v8348 = vpack.c.b16 %v8290, %v8289
    %v8349 = vpack.c.b16 %v8292, %v8291
    %v8350 = vpack.c.b16 %v8294, %v8293
    %v8351 = vpack.c.b16 %v8296, %v8295
    %v8352 = vpack.c.b16 %v8298, %v8297
    %v8353 = vpack.c.b16 %v8300, %v8299
    %v8354 = vpack.c.b16 %v8302, %v8301
    %v8355 = vpack.c.b16 %v8304, %v8303
    %v8356 = vpack.c.b16 %v8306, %v8305
    %v8357 = vpack.c.b16 %v8308, %v8307
    %v8358 = vpack.c.b16 %v8310, %v8309
    %v8359 = vpack.c.b16 %v8312, %v8311
    %v8360 = vpack.c.b16 %v8314, %v8313
    %v8361 = vpack.c.b16 %v8316, %v8315
    %v8362 = vpack.c.b16 %v8318, %v8317
    %v8363 = vpack.c.b16 %v8320, %v8319
    %v8364 = vpack.c.b16 %v8322, %v8321
    %v8365 = vpack.c.b16 %v8324, %v8323
    %v8366 = vpack.c.b16 %v8326, %v8325
    %v8367 = vpack.c.b16 %v8328, %v8327
    %v8368 = vpack.c.b16 %v8330, %v8329
    %v8369 = vpack.c.b16 %v8332, %v8331
    %v8370 = vpack.c.b16 %v8334, %v8333
    %v8371 = vpack.c.b16 %v8336, %v8335
    %v8372 = vpack.c.b16 %v8338, %v8337
    %v8373 = vpack.c.b16 %v8340, %v8339
    %v8374 = vpack.c.b16 %v8342, %v8341
    %v8423 = vunpack.c.l.b16 %v8199
    %v8424 = vunpack.c.l.b16 %v8200
    %v8425 = vunpack.c.l.b16 %v8201
    %v8426 = vunpack.c.l.b16 %v8202
    %v8427 = vunpack.c.l.b16 %v8203
    %v8428 = vunpack.c.l.b16 %v8204
    %v8429 = vunpack.c.l.b16 %v8205
    %v8430 = vunpack.c.l.b16 %v8206
    %v8431 = vunpack.c.l.b16 %v8207
    %v8432 = vunpack.c.l.b16 %v8208
    %v8433 = vunpack.c.l.b16 %v8209
    %v8434 = vunpack.c.l.b16 %v8210
    %v8435 = vunpack.c.l.b16 %v8211
    %v8436 = vunpack.c.l.b16 %v8212
    %v8437 = vunpack.c.l.b16 %v8213
    %v8438 = vunpack.c.l.b16 %v8214
    %v8439 = vpack.c.b16 %v8424, %v8423
    %v8440 = vpack.c.b16 %v8426, %v8425
    %v8441 = vpack.c.b16 %v8428, %v8427
    %v8442 = vpack.c.b16 %v8430, %v8429
    %v8443 = vpack.c.b16 %v8432, %v8431
    %v8444 = vpack.c.b16 %v8434, %v8433
    %v8445 = vpack.c.b16 %v8436, %v8435
    %v8446 = vpack.c.b16 %v8438, %v8437
    %8455 = vmatprep.subr.bf16.mxu0 0
    %8456 = vmatpush1.bf16.msra.mxu0 %v8446
    %8457 = vmatprep.subr.bf16.mxu0 0
    %8458 = vmatpush1.bf16.msra.mxu0 %v8445
    %8459 = vmatprep.subr.bf16.mxu0 0
    %8460 = vmatpush1.bf16.msra.mxu0 %v8444
    %8461 = vmatprep.subr.bf16.mxu0 0
    %8462 = vmatpush1.bf16.msra.mxu0 %v8443
    %8463 = vmatprep.subr.bf16.mxu0 0
    %8464 = vmatpush1.bf16.msra.mxu0 %v8442
    %8465 = vmatprep.subr.bf16.mxu0 0
    %8466 = vmatpush1.bf16.msra.mxu0 %v8441
    %8467 = vmatprep.subr.bf16.mxu0 0
    %8468 = vmatpush1.bf16.msra.mxu0 %v8440
    %8469 = vmatprep.subr.bf16.mxu0 0
    %8470 = vmatpush1.bf16.msra.mxu0 %v8439
    %8471 = vmatprep.subr.bf16.mxu0 0
    %8472 = vmatpush2.bf16.msra.mxu0 0
    %8473 = vmatprep.subr.bf16.mxu0 0
    %8474 = vmatpush2.bf16.msra.mxu0 0
    %8475 = vmatprep.subr.bf16.mxu0 0
    %8476 = vmatpush2.bf16.msra.mxu0 0
    %8477 = vmatprep.subr.bf16.mxu0 0
    %8478 = vmatpush2.bf16.msra.mxu0 0
    %8479 = vmatprep.subr.bf16.mxu0 0
    %8480 = vmatpush2.bf16.msra.mxu0 0
    %8481 = vmatprep.subr.bf16.mxu0 0
    %8482 = vmatpush2.bf16.msra.mxu0 0
    %8483 = vmatprep.subr.bf16.mxu0 0
    %8484 = vmatpush2.bf16.msra.mxu0 0
    %8485 = vmatprep.subr.bf16.mxu0 0
    %8486 = vmatpush2.bf16.msra.mxu0 0
    %8487 = vmatprep.mubr.bf16.mxu0 0
    %8488 = vmatmul.mubr.bf16.gmra.mxu0 %v8343
    %v8489 = vpop.f32.mrf.mxu0
    %v8490 = vadd.f32 0.0, %v8489
    %v8491 = vpop.f32.mrf.mxu0
    %v8492 = vpop.f32.mrf.mxu0
    %v8493 = vadd.f32 0.0, %v8492
    %v8494 = vpop.f32.mrf.mxu0
    %8495 = vmatprep.mubr.bf16.mxu0 0
    %8496 = vmatmul.mubr.bf16.gmra.mxu0 %v8344
    %v8497 = vpop.f32.mrf.mxu0
    %v8498 = vadd.f32 0.0, %v8497
    %v8499 = vpop.f32.mrf.mxu0
    %v8500 = vpop.f32.mrf.mxu0
    %v8501 = vadd.f32 0.0, %v8500
    %v8502 = vpop.f32.mrf.mxu0
    %8503 = vmatprep.mubr.bf16.mxu0 0
    %8504 = vmatmul.mubr.bf16.gmra.mxu0 %v8345
    %v8505 = vpop.f32.mrf.mxu0
    %v8506 = vadd.f32 0.0, %v8505
    %v8507 = vpop.f32.mrf.mxu0
    %v8508 = vpop.f32.mrf.mxu0
    %v8509 = vadd.f32 0.0, %v8508
    %v8510 = vpop.f32.mrf.mxu0
    %8511 = vmatprep.mubr.bf16.mxu0 0
    %8512 = vmatmul.mubr.bf16.gmra.mxu0 %v8346
    %v8513 = vpop.f32.mrf.mxu0
    %v8514 = vadd.f32 0.0, %v8513
    %v8515 = vpop.f32.mrf.mxu0
    %v8516 = vpop.f32.mrf.mxu0
    %v8517 = vadd.f32 0.0, %v8516
    %v8518 = vpop.f32.mrf.mxu0
    %8519 = vmatprep.mubr.bf16.mxu0 0
    %8520 = vmatmul.mubr.bf16.gmra.mxu0 %v8347
    %v8521 = vpop.f32.mrf.mxu0
    %v8522 = vadd.f32 0.0, %v8521
    %v8523 = vpop.f32.mrf.mxu0
    %v8524 = vpop.f32.mrf.mxu0
    %v8525 = vadd.f32 0.0, %v8524
    %v8526 = vpop.f32.mrf.mxu0
    %8527 = vmatprep.mubr.bf16.mxu0 0
    %8528 = vmatmul.mubr.bf16.gmra.mxu0 %v8348
    %v8529 = vpop.f32.mrf.mxu0
    %v8530 = vadd.f32 0.0, %v8529
    %v8531 = vpop.f32.mrf.mxu0
    %v8532 = vpop.f32.mrf.mxu0
    %v8533 = vadd.f32 0.0, %v8532
    %v8534 = vpop.f32.mrf.mxu0
    %8535 = vmatprep.mubr.bf16.mxu0 0
    %8536 = vmatmul.mubr.bf16.gmra.mxu0 %v8349
    %v8537 = vpop.f32.mrf.mxu0
    %v8538 = vadd.f32 0.0, %v8537
    %v8539 = vpop.f32.mrf.mxu0
    %v8540 = vpop.f32.mrf.mxu0
    %v8541 = vadd.f32 0.0, %v8540
    %v8542 = vpop.f32.mrf.mxu0
    %8543 = vmatprep.mubr.bf16.mxu0 0
    %8544 = vmatmul.mubr.bf16.gmra.mxu0 %v8350
    %v8545 = vpop.f32.mrf.mxu0
    %v8546 = vadd.f32 0.0, %v8545
    %v8547 = vpop.f32.mrf.mxu0
    %v8548 = vpop.f32.mrf.mxu0
    %v8549 = vadd.f32 0.0, %v8548
    %v8550 = vpop.f32.mrf.mxu0
    %8551 = vmatprep.mubr.bf16.mxu0 0
    %8552 = vmatmul.mubr.bf16.gmra.mxu0 %v8351
    %v8553 = vpop.f32.mrf.mxu0
    %v8554 = vadd.f32 0.0, %v8553
    %v8555 = vpop.f32.mrf.mxu0
    %v8556 = vpop.f32.mrf.mxu0
    %v8557 = vadd.f32 0.0, %v8556
    %v8558 = vpop.f32.mrf.mxu0
    %8559 = vmatprep.mubr.bf16.mxu0 0
    %8560 = vmatmul.mubr.bf16.gmra.mxu0 %v8352
    %v8561 = vpop.f32.mrf.mxu0
    %v8562 = vadd.f32 0.0, %v8561
    %v8563 = vpop.f32.mrf.mxu0
    %v8564 = vpop.f32.mrf.mxu0
    %v8565 = vadd.f32 0.0, %v8564
    %v8566 = vpop.f32.mrf.mxu0
    %8567 = vmatprep.mubr.bf16.mxu0 0
    %8568 = vmatmul.mubr.bf16.gmra.mxu0 %v8353
    %v8569 = vpop.f32.mrf.mxu0
    %v8570 = vadd.f32 0.0, %v8569
    %v8571 = vpop.f32.mrf.mxu0
    %v8572 = vpop.f32.mrf.mxu0
    %v8573 = vadd.f32 0.0, %v8572
    %v8574 = vpop.f32.mrf.mxu0
    %8575 = vmatprep.mubr.bf16.mxu0 0
    %8576 = vmatmul.mubr.bf16.gmra.mxu0 %v8354
    %v8577 = vpop.f32.mrf.mxu0
    %v8578 = vadd.f32 0.0, %v8577
    %v8579 = vpop.f32.mrf.mxu0
    %v8580 = vpop.f32.mrf.mxu0
    %v8581 = vadd.f32 0.0, %v8580
    %v8582 = vpop.f32.mrf.mxu0
    %8583 = vmatprep.mubr.bf16.mxu0 0
    %8584 = vmatmul.mubr.bf16.gmra.mxu0 %v8355
    %v8585 = vpop.f32.mrf.mxu0
    %v8586 = vadd.f32 0.0, %v8585
    %v8587 = vpop.f32.mrf.mxu0
    %v8588 = vpop.f32.mrf.mxu0
    %v8589 = vadd.f32 0.0, %v8588
    %v8590 = vpop.f32.mrf.mxu0
    %8591 = vmatprep.mubr.bf16.mxu0 0
    %8592 = vmatmul.mubr.bf16.gmra.mxu0 %v8356
    %v8593 = vpop.f32.mrf.mxu0
    %v8594 = vadd.f32 0.0, %v8593
    %v8595 = vpop.f32.mrf.mxu0
    %v8596 = vpop.f32.mrf.mxu0
    %v8597 = vadd.f32 0.0, %v8596
    %v8598 = vpop.f32.mrf.mxu0
    %8599 = vmatprep.mubr.bf16.mxu0 0
    %8600 = vmatmul.mubr.bf16.gmra.mxu0 %v8357
    %v8601 = vpop.f32.mrf.mxu0
    %v8602 = vadd.f32 0.0, %v8601
    %v8603 = vpop.f32.mrf.mxu0
    %v8604 = vpop.f32.mrf.mxu0
    %v8605 = vadd.f32 0.0, %v8604
    %v8606 = vpop.f32.mrf.mxu0
    %8607 = vmatprep.mubr.bf16.mxu0 0
    %8608 = vmatmul.mubr.bf16.gmra.mxu0 %v8358
    %v8609 = vpop.f32.mrf.mxu0
    %v8610 = vadd.f32 0.0, %v8609
    %v8611 = vpop.f32.mrf.mxu0
    %v8612 = vpop.f32.mrf.mxu0
    %v8613 = vadd.f32 0.0, %v8612
    %v8614 = vpop.f32.mrf.mxu0
    %8615 = vmatprep.mubr.bf16.mxu0 0
    %8616 = vmatmul.mubr.bf16.gmra.mxu0 %v8359
    %v8617 = vpop.f32.mrf.mxu0
    %v8618 = vadd.f32 0.0, %v8617
    %v8619 = vpop.f32.mrf.mxu0
    %v8620 = vpop.f32.mrf.mxu0
    %v8621 = vadd.f32 0.0, %v8620
    %v8622 = vpop.f32.mrf.mxu0
    %8623 = vmatprep.mubr.bf16.mxu0 0
    %8624 = vmatmul.mubr.bf16.gmra.mxu0 %v8360
    %v8625 = vpop.f32.mrf.mxu0
    %v8626 = vadd.f32 0.0, %v8625
    %v8627 = vpop.f32.mrf.mxu0
    %v8628 = vpop.f32.mrf.mxu0
    %v8629 = vadd.f32 0.0, %v8628
    %v8630 = vpop.f32.mrf.mxu0
    %8631 = vmatprep.mubr.bf16.mxu0 0
    %8632 = vmatmul.mubr.bf16.gmra.mxu0 %v8361
    %v8633 = vpop.f32.mrf.mxu0
    %v8634 = vadd.f32 0.0, %v8633
    %v8635 = vpop.f32.mrf.mxu0
    %v8636 = vpop.f32.mrf.mxu0
    %v8637 = vadd.f32 0.0, %v8636
    %v8638 = vpop.f32.mrf.mxu0
    %8639 = vmatprep.mubr.bf16.mxu0 0
    %8640 = vmatmul.mubr.bf16.gmra.mxu0 %v8362
    %v8641 = vpop.f32.mrf.mxu0
    %v8642 = vadd.f32 0.0, %v8641
    %v8643 = vpop.f32.mrf.mxu0
    %v8644 = vpop.f32.mrf.mxu0
    %v8645 = vadd.f32 0.0, %v8644
    %v8646 = vpop.f32.mrf.mxu0
    %8647 = vmatprep.mubr.bf16.mxu0 0
    %8648 = vmatmul.mubr.bf16.gmra.mxu0 %v8363
    %v8649 = vpop.f32.mrf.mxu0
    %v8650 = vadd.f32 0.0, %v8649
    %v8651 = vpop.f32.mrf.mxu0
    %v8652 = vpop.f32.mrf.mxu0
    %v8653 = vadd.f32 0.0, %v8652
    %v8654 = vpop.f32.mrf.mxu0
    %8655 = vmatprep.mubr.bf16.mxu0 0
    %8656 = vmatmul.mubr.bf16.gmra.mxu0 %v8364
    %v8657 = vpop.f32.mrf.mxu0
    %v8658 = vadd.f32 0.0, %v8657
    %v8659 = vpop.f32.mrf.mxu0
    %v8660 = vpop.f32.mrf.mxu0
    %v8661 = vadd.f32 0.0, %v8660
    %v8662 = vpop.f32.mrf.mxu0
    %8663 = vmatprep.mubr.bf16.mxu0 0
    %8664 = vmatmul.mubr.bf16.gmra.mxu0 %v8365
    %v8665 = vpop.f32.mrf.mxu0
    %v8666 = vadd.f32 0.0, %v8665
    %v8667 = vpop.f32.mrf.mxu0
    %v8668 = vpop.f32.mrf.mxu0
    %v8669 = vadd.f32 0.0, %v8668
    %v8670 = vpop.f32.mrf.mxu0
    %8671 = vmatprep.mubr.bf16.mxu0 0
    %8672 = vmatmul.mubr.bf16.gmra.mxu0 %v8366
    %v8673 = vpop.f32.mrf.mxu0
    %v8674 = vadd.f32 0.0, %v8673
    %v8675 = vpop.f32.mrf.mxu0
    %v8676 = vpop.f32.mrf.mxu0
    %v8677 = vadd.f32 0.0, %v8676
    %v8678 = vpop.f32.mrf.mxu0
    %8679 = vmatprep.mubr.bf16.mxu0 0
    %8680 = vmatmul.mubr.bf16.gmra.mxu0 %v8367
    %v8681 = vpop.f32.mrf.mxu0
    %v8682 = vadd.f32 0.0, %v8681
    %v8683 = vpop.f32.mrf.mxu0
    %v8684 = vpop.f32.mrf.mxu0
    %v8685 = vadd.f32 0.0, %v8684
    %v8686 = vpop.f32.mrf.mxu0
    %8687 = vmatprep.mubr.bf16.mxu0 0
    %8688 = vmatmul.mubr.bf16.gmra.mxu0 %v8368
    %v8689 = vpop.f32.mrf.mxu0
    %v8690 = vadd.f32 0.0, %v8689
    %v8691 = vpop.f32.mrf.mxu0
    %v8692 = vpop.f32.mrf.mxu0
    %v8693 = vadd.f32 0.0, %v8692
    %v8694 = vpop.f32.mrf.mxu0
    %8695 = vmatprep.mubr.bf16.mxu0 0
    %8696 = vmatmul.mubr.bf16.gmra.mxu0 %v8369
    %v8697 = vpop.f32.mrf.mxu0
    %v8698 = vadd.f32 0.0, %v8697
    %v8699 = vpop.f32.mrf.mxu0
    %v8700 = vpop.f32.mrf.mxu0
    %v8701 = vadd.f32 0.0, %v8700
    %v8702 = vpop.f32.mrf.mxu0
    %8703 = vmatprep.mubr.bf16.mxu0 0
    %8704 = vmatmul.mubr.bf16.gmra.mxu0 %v8370
    %v8705 = vpop.f32.mrf.mxu0
    %v8706 = vadd.f32 0.0, %v8705
    %v8707 = vpop.f32.mrf.mxu0
    %v8708 = vpop.f32.mrf.mxu0
    %v8709 = vadd.f32 0.0, %v8708
    %v8710 = vpop.f32.mrf.mxu0
    %8711 = vmatprep.mubr.bf16.mxu0 0
    %8712 = vmatmul.mubr.bf16.gmra.mxu0 %v8371
    %v8713 = vpop.f32.mrf.mxu0
    %v8714 = vadd.f32 0.0, %v8713
    %v8715 = vpop.f32.mrf.mxu0
    %v8716 = vpop.f32.mrf.mxu0
    %v8717 = vadd.f32 0.0, %v8716
    %v8718 = vpop.f32.mrf.mxu0
    %8719 = vmatprep.mubr.bf16.mxu0 0
    %8720 = vmatmul.mubr.bf16.gmra.mxu0 %v8372
    %v8721 = vpop.f32.mrf.mxu0
    %v8722 = vadd.f32 0.0, %v8721
    %v8723 = vpop.f32.mrf.mxu0
    %v8724 = vpop.f32.mrf.mxu0
    %v8725 = vadd.f32 0.0, %v8724
    %v8726 = vpop.f32.mrf.mxu0
    %8727 = vmatprep.mubr.bf16.mxu0 0
    %8728 = vmatmul.mubr.bf16.gmra.mxu0 %v8373
    %v8729 = vpop.f32.mrf.mxu0
    %v8730 = vadd.f32 0.0, %v8729
    %v8731 = vpop.f32.mrf.mxu0
    %v8732 = vpop.f32.mrf.mxu0
    %v8733 = vadd.f32 0.0, %v8732
    %v8734 = vpop.f32.mrf.mxu0
    %8735 = vmatprep.mubr.bf16.mxu0 0
    %8736 = vmatmul.mubr.bf16.gmra.mxu0 %v8374
    %v8737 = vpop.f32.mrf.mxu0
    %v8738 = vadd.f32 0.0, %v8737
    %v8739 = vpop.f32.mrf.mxu0
    %v8740 = vpop.f32.mrf.mxu0
    %v8741 = vadd.f32 0.0, %v8740
    %v8742 = vpop.f32.mrf.mxu0
    %8743 = vdwg.mxu0
    %v8744 = vadd.f32 %v8070, %v8490
    %v8745 = vadd.f32 %v8071, %v8493
    %v8746 = vadd.f32 %v8072, %v8498
    %v8747 = vadd.f32 %v8073, %v8501
    %v8748 = vadd.f32 %v8074, %v8506
    %v8749 = vadd.f32 %v8075, %v8509
    %v8750 = vadd.f32 %v8076, %v8514
    %v8751 = vadd.f32 %v8077, %v8517
    %v8752 = vadd.f32 %v8078, %v8522
    %v8753 = vadd.f32 %v8079, %v8525
    %v8754 = vadd.f32 %v8080, %v8530
    %v8755 = vadd.f32 %v8081, %v8533
    %v8756 = vadd.f32 %v8082, %v8538
    %v8757 = vadd.f32 %v8083, %v8541
    %v8758 = vadd.f32 %v8084, %v8546
    %v8759 = vadd.f32 %v8085, %v8549
    %v8760 = vadd.f32 %v8086, %v8554
    %v8761 = vadd.f32 %v8087, %v8557
    %v8762 = vadd.f32 %v8088, %v8562
    %v8763 = vadd.f32 %v8089, %v8565
    %v8764 = vadd.f32 %v8090, %v8570
    %v8765 = vadd.f32 %v8091, %v8573
    %v8766 = vadd.f32 %v8092, %v8578
    %v8767 = vadd.f32 %v8093, %v8581
    %v8768 = vadd.f32 %v8094, %v8586
    %v8769 = vadd.f32 %v8095, %v8589
    %v8770 = vadd.f32 %v8096, %v8594
    %v8771 = vadd.f32 %v8097, %v8597
    %v8772 = vadd.f32 %v8098, %v8602
    %v8773 = vadd.f32 %v8099, %v8605
    %v8774 = vadd.f32 %v8100, %v8610
    %v8775 = vadd.f32 %v8101, %v8613
    %v8776 = vadd.f32 %v8102, %v8618
    %v8777 = vadd.f32 %v8103, %v8621
    %v8778 = vadd.f32 %v8104, %v8626
    %v8779 = vadd.f32 %v8105, %v8629
    %v8780 = vadd.f32 %v8106, %v8634
    %v8781 = vadd.f32 %v8107, %v8637
    %v8782 = vadd.f32 %v8108, %v8642
    %v8783 = vadd.f32 %v8109, %v8645
    %v8784 = vadd.f32 %v8110, %v8650
    %v8785 = vadd.f32 %v8111, %v8653
    %v8786 = vadd.f32 %v8112, %v8658
    %v8787 = vadd.f32 %v8113, %v8661
    %v8788 = vadd.f32 %v8114, %v8666
    %v8789 = vadd.f32 %v8115, %v8669
    %v8790 = vadd.f32 %v8116, %v8674
    %v8791 = vadd.f32 %v8117, %v8677
    %v8792 = vadd.f32 %v8118, %v8682
    %v8793 = vadd.f32 %v8119, %v8685
    %v8794 = vadd.f32 %v8120, %v8690
    %v8795 = vadd.f32 %v8121, %v8693
    %v8796 = vadd.f32 %v8122, %v8698
    %v8797 = vadd.f32 %v8123, %v8701
    %v8798 = vadd.f32 %v8124, %v8706
    %v8799 = vadd.f32 %v8125, %v8709
    %v8800 = vadd.f32 %v8126, %v8714
    %v8801 = vadd.f32 %v8127, %v8717
    %v8802 = vadd.f32 %v8128, %v8722
    %v8803 = vadd.f32 %v8129, %v8725
    %v8804 = vadd.f32 %v8130, %v8730
    %v8805 = vadd.f32 %v8131, %v8733
    %v8806 = vadd.f32 %v8132, %v8738
    %v8807 = vadd.f32 %v8133, %v8741
    %v8808 = vld [vmem:[%s8134] sm:$0xf]
    %v8809 = vld [vmem:[%s8134 + $0x4] sm:$0xf]
    %v8810 = vld [vmem:[%s8134 + $0x8] sm:$0x1]
    %v8811 = vld [vmem:[%s8134 + $0xc] sm:$0xf]
    %v8812 = vld [vmem:[%s8134 + $0x10] sm:$0xf]
    %v8813 = vld [vmem:[%s8134 + $0x14] sm:$0x1]
    %v8814 = vld [vmem:[%s8134 + $0x18] sm:$0xf]
    %v8815 = vld [vmem:[%s8134 + $0x1c] sm:$0xf]
    %v8816 = vld [vmem:[%s8134 + $0x20] sm:$0x1]
    %v8817 = vld [vmem:[%s8134 + $0x24] sm:$0xf]
    %v8818 = vld [vmem:[%s8134 + $0x28] sm:$0xf]
    %v8819 = vld [vmem:[%s8134 + $0x2c] sm:$0x1]
    %v8820 = vld [vmem:[%s8134 + $0x30] sm:$0xf]
    %v8821 = vld [vmem:[%s8134 + $0x34] sm:$0xf]
    %v8822 = vld [vmem:[%s8134 + $0x38] sm:$0x1]
    %v8823 = vld [vmem:[%s8134 + $0x3c] sm:$0xf]
    %v8824 = vld [vmem:[%s8134 + $0x40] sm:$0xf]
    %v8825 = vld [vmem:[%s8134 + $0x44] sm:$0x1]
    %v8826 = vld [vmem:[%s8134 + $0x48] sm:$0xf]
    %v8827 = vld [vmem:[%s8134 + $0x4c] sm:$0xf]
    %v8828 = vld [vmem:[%s8134 + $0x50] sm:$0x1]
    %v8829 = vld [vmem:[%s8134 + $0x54] sm:$0xf]
    %v8830 = vld [vmem:[%s8134 + $0x58] sm:$0xf]
    %v8831 = vld [vmem:[%s8134 + $0x5c] sm:$0x1]
    %v8832 = vld [vmem:[%s8134 + $0x60] sm:$0xf]
    %v8833 = vld [vmem:[%s8134 + $0x64] sm:$0xf]
    %v8834 = vld [vmem:[%s8134 + $0x68] sm:$0x1]
    %v8835 = vld [vmem:[%s8134 + $0x6c] sm:$0xf]
    %v8836 = vld [vmem:[%s8134 + $0x70] sm:$0xf]
    %v8837 = vld [vmem:[%s8134 + $0x74] sm:$0x1]
    %v8838 = vld [vmem:[%s8134 + $0x78] sm:$0xf]
    %v8839 = vld [vmem:[%s8134 + $0x7c] sm:$0xf]
    %v8840 = vld [vmem:[%s8134 + $0x80] sm:$0x1]
    %v8841 = vld [vmem:[%s8134 + $0x84] sm:$0xf]
    %v8842 = vld [vmem:[%s8134 + $0x88] sm:$0xf]
    %v8843 = vld [vmem:[%s8134 + $0x8c] sm:$0x1]
    %v8844 = vld [vmem:[%s8134 + $0x90] sm:$0xf]
    %v8845 = vld [vmem:[%s8134 + $0x94] sm:$0xf]
    %v8846 = vld [vmem:[%s8134 + $0x98] sm:$0x1]
    %v8847 = vld [vmem:[%s8134 + $0x9c] sm:$0xf]
    %v8848 = vld [vmem:[%s8134 + $0xa0] sm:$0xf]
    %v8849 = vld [vmem:[%s8134 + $0xa4] sm:$0x1]
    %v8850 = vld [vmem:[%s8134 + $0xa8] sm:$0xf]
    %v8851 = vld [vmem:[%s8134 + $0xac] sm:$0xf]
    %v8852 = vld [vmem:[%s8134 + $0xb0] sm:$0x1]
    %v8853 = vld [vmem:[%s8134 + $0xb4] sm:$0xf]
    %v8854 = vld [vmem:[%s8134 + $0xb8] sm:$0xf]
    %v8855 = vld [vmem:[%s8134 + $0xbc] sm:$0x1]
    %v8856 = vld [vmem:[%s8134 + $0xd8] sm:$0xf]
    %v8857 = vld [vmem:[%s8134 + $0xdc] sm:$0xf]
    %v8858 = vld [vmem:[%s8134 + $0xe0] sm:$0x1]
    %v8859 = vld [vmem:[%s8134 + $0xe4] sm:$0xf]
    %v8860 = vld [vmem:[%s8134 + $0xe8] sm:$0xf]
    %v8861 = vld [vmem:[%s8134 + $0xec] sm:$0x1]
    %v8862 = vld [vmem:[%s8134 + $0xf0] sm:$0xf]
    %v8863 = vld [vmem:[%s8134 + $0xf4] sm:$0xf]
    %v8864 = vld [vmem:[%s8134 + $0xf8] sm:$0x1]
    %v8865 = vld [vmem:[%s8134 + $0xfc] sm:$0xf]
    %v8866 = vld [vmem:[%s8134 + $0x100] sm:$0xf]
    %v8867 = vld [vmem:[%s8134 + $0x104] sm:$0x1]
    %v8868 = vld [vmem:[%s8134 + $0x108] sm:$0xf]
    %v8869 = vld [vmem:[%s8134 + $0x10c] sm:$0xf]
    %v8870 = vld [vmem:[%s8134 + $0x110] sm:$0x1]
    %v8871 = vld [vmem:[%s8134 + $0x114] sm:$0xf]
    %v8872 = vld [vmem:[%s8134 + $0x118] sm:$0xf]
    %v8873 = vld [vmem:[%s8134 + $0x11c] sm:$0x1]
    %v8874 = vld [vmem:[%s8134 + $0x120] sm:$0xf]
    %v8875 = vld [vmem:[%s8134 + $0x124] sm:$0xf]
    %v8876 = vld [vmem:[%s8134 + $0x128] sm:$0x1]
    %v8877 = vld [vmem:[%s8134 + $0x12c] sm:$0xf]
    %v8878 = vld [vmem:[%s8134 + $0x130] sm:$0xf]
    %v8879 = vld [vmem:[%s8134 + $0x134] sm:$0x1]
    %v8880 = vld [vmem:[%s8134 + $0x138] sm:$0xf]
    %v8881 = vld [vmem:[%s8134 + $0x13c] sm:$0xf]
    %v8882 = vld [vmem:[%s8134 + $0x140] sm:$0x1]
    %v8883 = vld [vmem:[%s8134 + $0x144] sm:$0xf]
    %v8884 = vld [vmem:[%s8134 + $0x148] sm:$0xf]
    %v8885 = vld [vmem:[%s8134 + $0x14c] sm:$0x1]
    %v8886 = vld [vmem:[%s8134 + $0x150] sm:$0xf]
    %v8887 = vld [vmem:[%s8134 + $0x154] sm:$0xf]
    %v8888 = vld [vmem:[%s8134 + $0x158] sm:$0x1]
    %v8889 = vld [vmem:[%s8134 + $0x15c] sm:$0xf]
    %v8890 = vld [vmem:[%s8134 + $0x160] sm:$0xf]
    %v8891 = vld [vmem:[%s8134 + $0x164] sm:$0x1]
    %v8892 = vld [vmem:[%s8134 + $0x168] sm:$0xf]
    %v8893 = vld [vmem:[%s8134 + $0x16c] sm:$0xf]
    %v8894 = vld [vmem:[%s8134 + $0x170] sm:$0x1]
    %v8895 = vld [vmem:[%s8134 + $0x174] sm:$0xf]
    %v8896 = vld [vmem:[%s8134 + $0x178] sm:$0xf]
    %v8897 = vld [vmem:[%s8134 + $0x17c] sm:$0x1]
    %v8898 = vld [vmem:[%s8134 + $0x180] sm:$0xf]
    %v8899 = vld [vmem:[%s8134 + $0x184] sm:$0xf]
    %v8900 = vld [vmem:[%s8134 + $0x188] sm:$0x1]
    %v8901 = vld [vmem:[%s8134 + $0x18c] sm:$0xf]
    %v8902 = vld [vmem:[%s8134 + $0x190] sm:$0xf]
    %v8903 = vld [vmem:[%s8134 + $0x194] sm:$0x1]
    %v8905 = vshrl.u32 %v8808, 16
    %v8907 = vrot.slane %v8905, 4
    %v8908 = vshll.u32 %v8808, 16
    %v8910 = vrot.slane %v8908, 5
    %v8911 = vor.u32 %v8907, %v8910
    %v8912 = vrot.slane %v8911, 4
    %v8914 = vshll.u32 %v8809, 16
    %v8916 = vrot.slane %v8914, 5
    %v8917 = vsel %vm2508, %v8912, %v8916
    %v8918 = vshrl.u32 %v8809, 16
    %v8920 = vrot.slane %v8918, 4
    %v8921 = vor.u32 %v8920, %v8916
    %v8922 = vrot.slane %v8921, 4
    %v8924 = vshll.u32 %v8810, 16
    %v8926 = vrot.slane %v8924, 5
    %v8927 = vsel %vm2508, %v8922, %v8926
    %v8929 = vshrl.u32 %v8811, 16
    %v8931 = vrot.slane %v8929, 4
    %v8932 = vshll.u32 %v8811, 16
    %v8934 = vrot.slane %v8932, 5
    %v8935 = vor.u32 %v8931, %v8934
    %v8936 = vrot.slane %v8935, 4
    %v8938 = vshll.u32 %v8812, 16
    %v8940 = vrot.slane %v8938, 5
    %v8941 = vsel %vm2508, %v8936, %v8940
    %v8942 = vshrl.u32 %v8812, 16
    %v8944 = vrot.slane %v8942, 4
    %v8945 = vor.u32 %v8944, %v8940
    %v8946 = vrot.slane %v8945, 4
    %v8948 = vshll.u32 %v8813, 16
    %v8950 = vrot.slane %v8948, 5
    %v8951 = vsel %vm2508, %v8946, %v8950
    %v8953 = vshrl.u32 %v8814, 16
    %v8955 = vrot.slane %v8953, 4
    %v8956 = vshll.u32 %v8814, 16
    %v8958 = vrot.slane %v8956, 5
    %v8959 = vor.u32 %v8955, %v8958
    %v8960 = vrot.slane %v8959, 4
    %v8962 = vshll.u32 %v8815, 16
    %v8964 = vrot.slane %v8962, 5
    %v8965 = vsel %vm2508, %v8960, %v8964
    %v8966 = vshrl.u32 %v8815, 16
    %v8968 = vrot.slane %v8966, 4
    %v8969 = vor.u32 %v8968, %v8964
    %v8970 = vrot.slane %v8969, 4
    %v8972 = vshll.u32 %v8816, 16
    %v8974 = vrot.slane %v8972, 5
    %v8975 = vsel %vm2508, %v8970, %v8974
    %v8977 = vshrl.u32 %v8817, 16
    %v8979 = vrot.slane %v8977, 4
    %v8980 = vshll.u32 %v8817, 16
    %v8982 = vrot.slane %v8980, 5
    %v8983 = vor.u32 %v8979, %v8982
    %v8984 = vrot.slane %v8983, 4
    %v8986 = vshll.u32 %v8818, 16
    %v8988 = vrot.slane %v8986, 5
    %v8989 = vsel %vm2508, %v8984, %v8988
    %v8990 = vshrl.u32 %v8818, 16
    %v8992 = vrot.slane %v8990, 4
    %v8993 = vor.u32 %v8992, %v8988
    %v8994 = vrot.slane %v8993, 4
    %v8996 = vshll.u32 %v8819, 16
    %v8998 = vrot.slane %v8996, 5
    %v8999 = vsel %vm2508, %v8994, %v8998
    %v9001 = vshrl.u32 %v8820, 16
    %v9003 = vrot.slane %v9001, 4
    %v9004 = vshll.u32 %v8820, 16
    %v9006 = vrot.slane %v9004, 5
    %v9007 = vor.u32 %v9003, %v9006
    %v9008 = vrot.slane %v9007, 4
    %v9010 = vshll.u32 %v8821, 16
    %v9012 = vrot.slane %v9010, 5
    %v9013 = vsel %vm2508, %v9008, %v9012
    %v9014 = vshrl.u32 %v8821, 16
    %v9016 = vrot.slane %v9014, 4
    %v9017 = vor.u32 %v9016, %v9012
    %v9018 = vrot.slane %v9017, 4
    %v9020 = vshll.u32 %v8822, 16
    %v9022 = vrot.slane %v9020, 5
    %v9023 = vsel %vm2508, %v9018, %v9022
    %v9025 = vshrl.u32 %v8823, 16
    %v9027 = vrot.slane %v9025, 4
    %v9028 = vshll.u32 %v8823, 16
    %v9030 = vrot.slane %v9028, 5
    %v9031 = vor.u32 %v9027, %v9030
    %v9032 = vrot.slane %v9031, 4
    %v9034 = vshll.u32 %v8824, 16
    %v9036 = vrot.slane %v9034, 5
    %v9037 = vsel %vm2508, %v9032, %v9036
    %v9038 = vshrl.u32 %v8824, 16
    %v9040 = vrot.slane %v9038, 4
    %v9041 = vor.u32 %v9040, %v9036
    %v9042 = vrot.slane %v9041, 4
    %v9044 = vshll.u32 %v8825, 16
    %v9046 = vrot.slane %v9044, 5
    %v9047 = vsel %vm2508, %v9042, %v9046
    %v9049 = vshrl.u32 %v8826, 16
    %v9051 = vrot.slane %v9049, 4
    %v9052 = vshll.u32 %v8826, 16
    %v9054 = vrot.slane %v9052, 5
    %v9055 = vor.u32 %v9051, %v9054
    %v9056 = vrot.slane %v9055, 4
    %v9058 = vshll.u32 %v8827, 16
    %v9060 = vrot.slane %v9058, 5
    %v9061 = vsel %vm2508, %v9056, %v9060
    %v9062 = vshrl.u32 %v8827, 16
    %v9064 = vrot.slane %v9062, 4
    %v9065 = vor.u32 %v9064, %v9060
    %v9066 = vrot.slane %v9065, 4
    %v9068 = vshll.u32 %v8828, 16
    %v9070 = vrot.slane %v9068, 5
    %v9071 = vsel %vm2508, %v9066, %v9070
    %v9073 = vshrl.u32 %v8829, 16
    %v9075 = vrot.slane %v9073, 4
    %v9076 = vshll.u32 %v8829, 16
    %v9078 = vrot.slane %v9076, 5
    %v9079 = vor.u32 %v9075, %v9078
    %v9080 = vrot.slane %v9079, 4
    %v9082 = vshll.u32 %v8830, 16
    %v9084 = vrot.slane %v9082, 5
    %v9085 = vsel %vm2508, %v9080, %v9084
    %v9086 = vshrl.u32 %v8830, 16
    %v9088 = vrot.slane %v9086, 4
    %v9089 = vor.u32 %v9088, %v9084
    %v9090 = vrot.slane %v9089, 4
    %v9092 = vshll.u32 %v8831, 16
    %v9094 = vrot.slane %v9092, 5
    %v9095 = vsel %vm2508, %v9090, %v9094
    %v9097 = vshrl.u32 %v8832, 16
    %v9099 = vrot.slane %v9097, 4
    %v9100 = vshll.u32 %v8832, 16
    %v9102 = vrot.slane %v9100, 5
    %v9103 = vor.u32 %v9099, %v9102
    %v9104 = vrot.slane %v9103, 4
    %v9106 = vshll.u32 %v8833, 16
    %v9108 = vrot.slane %v9106, 5
    %v9109 = vsel %vm2508, %v9104, %v9108
    %v9110 = vshrl.u32 %v8833, 16
    %v9112 = vrot.slane %v9110, 4
    %v9113 = vor.u32 %v9112, %v9108
    %v9114 = vrot.slane %v9113, 4
    %v9116 = vshll.u32 %v8834, 16
    %v9118 = vrot.slane %v9116, 5
    %v9119 = vsel %vm2508, %v9114, %v9118
    %v9121 = vshrl.u32 %v8835, 16
    %v9123 = vrot.slane %v9121, 4
    %v9124 = vshll.u32 %v8835, 16
    %v9126 = vrot.slane %v9124, 5
    %v9127 = vor.u32 %v9123, %v9126
    %v9128 = vrot.slane %v9127, 4
    %v9130 = vshll.u32 %v8836, 16
    %v9132 = vrot.slane %v9130, 5
    %v9133 = vsel %vm2508, %v9128, %v9132
    %v9134 = vshrl.u32 %v8836, 16
    %v9136 = vrot.slane %v9134, 4
    %v9137 = vor.u32 %v9136, %v9132
    %v9138 = vrot.slane %v9137, 4
    %v9140 = vshll.u32 %v8837, 16
    %v9142 = vrot.slane %v9140, 5
    %v9143 = vsel %vm2508, %v9138, %v9142
    %v9145 = vshrl.u32 %v8838, 16
    %v9147 = vrot.slane %v9145, 4
    %v9148 = vshll.u32 %v8838, 16
    %v9150 = vrot.slane %v9148, 5
    %v9151 = vor.u32 %v9147, %v9150
    %v9152 = vrot.slane %v9151, 4
    %v9154 = vshll.u32 %v8839, 16
    %v9156 = vrot.slane %v9154, 5
    %v9157 = vsel %vm2508, %v9152, %v9156
    %v9158 = vshrl.u32 %v8839, 16
    %v9160 = vrot.slane %v9158, 4
    %v9161 = vor.u32 %v9160, %v9156
    %v9162 = vrot.slane %v9161, 4
    %v9164 = vshll.u32 %v8840, 16
    %v9166 = vrot.slane %v9164, 5
    %v9167 = vsel %vm2508, %v9162, %v9166
    %v9169 = vshrl.u32 %v8841, 16
    %v9171 = vrot.slane %v9169, 4
    %v9172 = vshll.u32 %v8841, 16
    %v9174 = vrot.slane %v9172, 5
    %v9175 = vor.u32 %v9171, %v9174
    %v9176 = vrot.slane %v9175, 4
    %v9178 = vshll.u32 %v8842, 16
    %v9180 = vrot.slane %v9178, 5
    %v9181 = vsel %vm2508, %v9176, %v9180
    %v9182 = vshrl.u32 %v8842, 16
    %v9184 = vrot.slane %v9182, 4
    %v9185 = vor.u32 %v9184, %v9180
    %v9186 = vrot.slane %v9185, 4
    %v9188 = vshll.u32 %v8843, 16
    %v9190 = vrot.slane %v9188, 5
    %v9191 = vsel %vm2508, %v9186, %v9190
    %v9193 = vshrl.u32 %v8844, 16
    %v9195 = vrot.slane %v9193, 4
    %v9196 = vshll.u32 %v8844, 16
    %v9198 = vrot.slane %v9196, 5
    %v9199 = vor.u32 %v9195, %v9198
    %v9200 = vrot.slane %v9199, 4
    %v9202 = vshll.u32 %v8845, 16
    %v9204 = vrot.slane %v9202, 5
    %v9205 = vsel %vm2508, %v9200, %v9204
    %v9206 = vshrl.u32 %v8845, 16
    %v9208 = vrot.slane %v9206, 4
    %v9209 = vor.u32 %v9208, %v9204
    %v9210 = vrot.slane %v9209, 4
    %v9212 = vshll.u32 %v8846, 16
    %v9214 = vrot.slane %v9212, 5
    %v9215 = vsel %vm2508, %v9210, %v9214
    %v9217 = vshrl.u32 %v8847, 16
    %v9219 = vrot.slane %v9217, 4
    %v9220 = vshll.u32 %v8847, 16
    %v9222 = vrot.slane %v9220, 5
    %v9223 = vor.u32 %v9219, %v9222
    %v9224 = vrot.slane %v9223, 4
    %v9226 = vshll.u32 %v8848, 16
    %v9228 = vrot.slane %v9226, 5
    %v9229 = vsel %vm2508, %v9224, %v9228
    %v9230 = vshrl.u32 %v8848, 16
    %v9232 = vrot.slane %v9230, 4
    %v9233 = vor.u32 %v9232, %v9228
    %v9234 = vrot.slane %v9233, 4
    %v9236 = vshll.u32 %v8849, 16
    %v9238 = vrot.slane %v9236, 5
    %v9239 = vsel %vm2508, %v9234, %v9238
    %v9241 = vshrl.u32 %v8850, 16
    %v9243 = vrot.slane %v9241, 4
    %v9244 = vshll.u32 %v8850, 16
    %v9246 = vrot.slane %v9244, 5
    %v9247 = vor.u32 %v9243, %v9246
    %v9248 = vrot.slane %v9247, 4
    %v9250 = vshll.u32 %v8851, 16
    %v9252 = vrot.slane %v9250, 5
    %v9253 = vsel %vm2508, %v9248, %v9252
    %v9254 = vshrl.u32 %v8851, 16
    %v9256 = vrot.slane %v9254, 4
    %v9257 = vor.u32 %v9256, %v9252
    %v9258 = vrot.slane %v9257, 4
    %v9260 = vshll.u32 %v8852, 16
    %v9262 = vrot.slane %v9260, 5
    %v9263 = vsel %vm2508, %v9258, %v9262
    %v9265 = vshrl.u32 %v8853, 16
    %v9267 = vrot.slane %v9265, 4
    %v9268 = vshll.u32 %v8853, 16
    %v9270 = vrot.slane %v9268, 5
    %v9271 = vor.u32 %v9267, %v9270
    %v9272 = vrot.slane %v9271, 4
    %v9274 = vshll.u32 %v8854, 16
    %v9276 = vrot.slane %v9274, 5
    %v9277 = vsel %vm2508, %v9272, %v9276
    %v9278 = vshrl.u32 %v8854, 16
    %v9280 = vrot.slane %v9278, 4
    %v9281 = vor.u32 %v9280, %v9276
    %v9282 = vrot.slane %v9281, 4
    %v9284 = vshll.u32 %v8855, 16
    %v9286 = vrot.slane %v9284, 5
    %v9287 = vsel %vm2508, %v9282, %v9286
    %v9289 = vshrl.u32 %v8856, 16
    %v9291 = vrot.slane %v9289, 4
    %v9292 = vshll.u32 %v8856, 16
    %v9294 = vrot.slane %v9292, 5
    %v9295 = vor.u32 %v9291, %v9294
    %v9296 = vrot.slane %v9295, 4
    %v9298 = vshll.u32 %v8857, 16
    %v9300 = vrot.slane %v9298, 5
    %v9301 = vsel %vm2508, %v9296, %v9300
    %v9302 = vshrl.u32 %v8857, 16
    %v9304 = vrot.slane %v9302, 4
    %v9305 = vor.u32 %v9304, %v9300
    %v9306 = vrot.slane %v9305, 4
    %v9308 = vshll.u32 %v8858, 16
    %v9310 = vrot.slane %v9308, 5
    %v9311 = vsel %vm2508, %v9306, %v9310
    %v9313 = vshrl.u32 %v8859, 16
    %v9315 = vrot.slane %v9313, 4
    %v9316 = vshll.u32 %v8859, 16
    %v9318 = vrot.slane %v9316, 5
    %v9319 = vor.u32 %v9315, %v9318
    %v9320 = vrot.slane %v9319, 4
    %v9322 = vshll.u32 %v8860, 16
    %v9324 = vrot.slane %v9322, 5
    %v9325 = vsel %vm2508, %v9320, %v9324
    %v9326 = vshrl.u32 %v8860, 16
    %v9328 = vrot.slane %v9326, 4
    %v9329 = vor.u32 %v9328, %v9324
    %v9330 = vrot.slane %v9329, 4
    %v9332 = vshll.u32 %v8861, 16
    %v9334 = vrot.slane %v9332, 5
    %v9335 = vsel %vm2508, %v9330, %v9334
    %v9337 = vshrl.u32 %v8862, 16
    %v9339 = vrot.slane %v9337, 4
    %v9340 = vshll.u32 %v8862, 16
    %v9342 = vrot.slane %v9340, 5
    %v9343 = vor.u32 %v9339, %v9342
    %v9344 = vrot.slane %v9343, 4
    %v9346 = vshll.u32 %v8863, 16
    %v9348 = vrot.slane %v9346, 5
    %v9349 = vsel %vm2508, %v9344, %v9348
    %v9350 = vshrl.u32 %v8863, 16
    %v9352 = vrot.slane %v9350, 4
    %v9353 = vor.u32 %v9352, %v9348
    %v9354 = vrot.slane %v9353, 4
    %v9356 = vshll.u32 %v8864, 16
    %v9358 = vrot.slane %v9356, 5
    %v9359 = vsel %vm2508, %v9354, %v9358
    %v9361 = vshrl.u32 %v8865, 16
    %v9363 = vrot.slane %v9361, 4
    %v9364 = vshll.u32 %v8865, 16
    %v9366 = vrot.slane %v9364, 5
    %v9367 = vor.u32 %v9363, %v9366
    %v9368 = vrot.slane %v9367, 4
    %v9370 = vshll.u32 %v8866, 16
    %v9372 = vrot.slane %v9370, 5
    %v9373 = vsel %vm2508, %v9368, %v9372
    %v9374 = vshrl.u32 %v8866, 16
    %v9376 = vrot.slane %v9374, 4
    %v9377 = vor.u32 %v9376, %v9372
    %v9378 = vrot.slane %v9377, 4
    %v9380 = vshll.u32 %v8867, 16
    %v9382 = vrot.slane %v9380, 5
    %v9383 = vsel %vm2508, %v9378, %v9382
    %v9385 = vshrl.u32 %v8868, 16
    %v9387 = vrot.slane %v9385, 4
    %v9388 = vshll.u32 %v8868, 16
    %v9390 = vrot.slane %v9388, 5
    %v9391 = vor.u32 %v9387, %v9390
    %v9392 = vrot.slane %v9391, 4
    %v9394 = vshll.u32 %v8869, 16
    %v9396 = vrot.slane %v9394, 5
    %v9397 = vsel %vm2508, %v9392, %v9396
    %v9398 = vshrl.u32 %v8869, 16
    %v9400 = vrot.slane %v9398, 4
    %v9401 = vor.u32 %v9400, %v9396
    %v9402 = vrot.slane %v9401, 4
    %v9404 = vshll.u32 %v8870, 16
    %v9406 = vrot.slane %v9404, 5
    %v9407 = vsel %vm2508, %v9402, %v9406
    %v9409 = vshrl.u32 %v8871, 16
    %v9411 = vrot.slane %v9409, 4
    %v9412 = vshll.u32 %v8871, 16
    %v9414 = vrot.slane %v9412, 5
    %v9415 = vor.u32 %v9411, %v9414
    %v9416 = vrot.slane %v9415, 4
    %v9418 = vshll.u32 %v8872, 16
    %v9420 = vrot.slane %v9418, 5
    %v9421 = vsel %vm2508, %v9416, %v9420
    %v9422 = vshrl.u32 %v8872, 16
    %v9424 = vrot.slane %v9422, 4
    %v9425 = vor.u32 %v9424, %v9420
    %v9426 = vrot.slane %v9425, 4
    %v9428 = vshll.u32 %v8873, 16
    %v9430 = vrot.slane %v9428, 5
    %v9431 = vsel %vm2508, %v9426, %v9430
    %v9433 = vshrl.u32 %v8874, 16
    %v9435 = vrot.slane %v9433, 4
    %v9436 = vshll.u32 %v8874, 16
    %v9438 = vrot.slane %v9436, 5
    %v9439 = vor.u32 %v9435, %v9438
    %v9440 = vrot.slane %v9439, 4
    %v9442 = vshll.u32 %v8875, 16
    %v9444 = vrot.slane %v9442, 5
    %v9445 = vsel %vm2508, %v9440, %v9444
    %v9446 = vshrl.u32 %v8875, 16
    %v9448 = vrot.slane %v9446, 4
    %v9449 = vor.u32 %v9448, %v9444
    %v9450 = vrot.slane %v9449, 4
    %v9452 = vshll.u32 %v8876, 16
    %v9454 = vrot.slane %v9452, 5
    %v9455 = vsel %vm2508, %v9450, %v9454
    %v9457 = vshrl.u32 %v8877, 16
    %v9459 = vrot.slane %v9457, 4
    %v9460 = vshll.u32 %v8877, 16
    %v9462 = vrot.slane %v9460, 5
    %v9463 = vor.u32 %v9459, %v9462
    %v9464 = vrot.slane %v9463, 4
    %v9466 = vshll.u32 %v8878, 16
    %v9468 = vrot.slane %v9466, 5
    %v9469 = vsel %vm2508, %v9464, %v9468
    %v9470 = vshrl.u32 %v8878, 16
    %v9472 = vrot.slane %v9470, 4
    %v9473 = vor.u32 %v9472, %v9468
    %v9474 = vrot.slane %v9473, 4
    %v9476 = vshll.u32 %v8879, 16
    %v9478 = vrot.slane %v9476, 5
    %v9479 = vsel %vm2508, %v9474, %v9478
    %v9481 = vshrl.u32 %v8880, 16
    %v9483 = vrot.slane %v9481, 4
    %v9484 = vshll.u32 %v8880, 16
    %v9486 = vrot.slane %v9484, 5
    %v9487 = vor.u32 %v9483, %v9486
    %v9488 = vrot.slane %v9487, 4
    %v9490 = vshll.u32 %v8881, 16
    %v9492 = vrot.slane %v9490, 5
    %v9493 = vsel %vm2508, %v9488, %v9492
    %v9494 = vshrl.u32 %v8881, 16
    %v9496 = vrot.slane %v9494, 4
    %v9497 = vor.u32 %v9496, %v9492
    %v9498 = vrot.slane %v9497, 4
    %v9500 = vshll.u32 %v8882, 16
    %v9502 = vrot.slane %v9500, 5
    %v9503 = vsel %vm2508, %v9498, %v9502
    %v9505 = vshrl.u32 %v8883, 16
    %v9507 = vrot.slane %v9505, 4
    %v9508 = vshll.u32 %v8883, 16
    %v9510 = vrot.slane %v9508, 5
    %v9511 = vor.u32 %v9507, %v9510
    %v9512 = vrot.slane %v9511, 4
    %v9514 = vshll.u32 %v8884, 16
    %v9516 = vrot.slane %v9514, 5
    %v9517 = vsel %vm2508, %v9512, %v9516
    %v9518 = vshrl.u32 %v8884, 16
    %v9520 = vrot.slane %v9518, 4
    %v9521 = vor.u32 %v9520, %v9516
    %v9522 = vrot.slane %v9521, 4
    %v9524 = vshll.u32 %v8885, 16
    %v9526 = vrot.slane %v9524, 5
    %v9527 = vsel %vm2508, %v9522, %v9526
    %v9529 = vshrl.u32 %v8886, 16
    %v9531 = vrot.slane %v9529, 4
    %v9532 = vshll.u32 %v8886, 16
    %v9534 = vrot.slane %v9532, 5
    %v9535 = vor.u32 %v9531, %v9534
    %v9536 = vrot.slane %v9535, 4
    %v9538 = vshll.u32 %v8887, 16
    %v9540 = vrot.slane %v9538, 5
    %v9541 = vsel %vm2508, %v9536, %v9540
    %v9542 = vshrl.u32 %v8887, 16
    %v9544 = vrot.slane %v9542, 4
    %v9545 = vor.u32 %v9544, %v9540
    %v9546 = vrot.slane %v9545, 4
    %v9548 = vshll.u32 %v8888, 16
    %v9550 = vrot.slane %v9548, 5
    %v9551 = vsel %vm2508, %v9546, %v9550
    %v9553 = vshrl.u32 %v8889, 16
    %v9555 = vrot.slane %v9553, 4
    %v9556 = vshll.u32 %v8889, 16
    %v9558 = vrot.slane %v9556, 5
    %v9559 = vor.u32 %v9555, %v9558
    %v9560 = vrot.slane %v9559, 4
    %v9562 = vshll.u32 %v8890, 16
    %v9564 = vrot.slane %v9562, 5
    %v9565 = vsel %vm2508, %v9560, %v9564
    %v9566 = vshrl.u32 %v8890, 16
    %v9568 = vrot.slane %v9566, 4
    %v9569 = vor.u32 %v9568, %v9564
    %v9570 = vrot.slane %v9569, 4
    %v9572 = vshll.u32 %v8891, 16
    %v9574 = vrot.slane %v9572, 5
    %v9575 = vsel %vm2508, %v9570, %v9574
    %v9577 = vshrl.u32 %v8892, 16
    %v9579 = vrot.slane %v9577, 4
    %v9580 = vshll.u32 %v8892, 16
    %v9582 = vrot.slane %v9580, 5
    %v9583 = vor.u32 %v9579, %v9582
    %v9584 = vrot.slane %v9583, 4
    %v9586 = vshll.u32 %v8893, 16
    %v9588 = vrot.slane %v9586, 5
    %v9589 = vsel %vm2508, %v9584, %v9588
    %v9590 = vshrl.u32 %v8893, 16
    %v9592 = vrot.slane %v9590, 4
    %v9593 = vor.u32 %v9592, %v9588
    %v9594 = vrot.slane %v9593, 4
    %v9596 = vshll.u32 %v8894, 16
    %v9598 = vrot.slane %v9596, 5
    %v9599 = vsel %vm2508, %v9594, %v9598
    %v9601 = vshrl.u32 %v8895, 16
    %v9603 = vrot.slane %v9601, 4
    %v9604 = vshll.u32 %v8895, 16
    %v9606 = vrot.slane %v9604, 5
    %v9607 = vor.u32 %v9603, %v9606
    %v9608 = vrot.slane %v9607, 4
    %v9610 = vshll.u32 %v8896, 16
    %v9612 = vrot.slane %v9610, 5
    %v9613 = vsel %vm2508, %v9608, %v9612
    %v9614 = vshrl.u32 %v8896, 16
    %v9616 = vrot.slane %v9614, 4
    %v9617 = vor.u32 %v9616, %v9612
    %v9618 = vrot.slane %v9617, 4
    %v9620 = vshll.u32 %v8897, 16
    %v9622 = vrot.slane %v9620, 5
    %v9623 = vsel %vm2508, %v9618, %v9622
    %v9625 = vshrl.u32 %v8898, 16
    %v9627 = vrot.slane %v9625, 4
    %v9628 = vshll.u32 %v8898, 16
    %v9630 = vrot.slane %v9628, 5
    %v9631 = vor.u32 %v9627, %v9630
    %v9632 = vrot.slane %v9631, 4
    %v9634 = vshll.u32 %v8899, 16
    %v9636 = vrot.slane %v9634, 5
    %v9637 = vsel %vm2508, %v9632, %v9636
    %v9638 = vshrl.u32 %v8899, 16
    %v9640 = vrot.slane %v9638, 4
    %v9641 = vor.u32 %v9640, %v9636
    %v9642 = vrot.slane %v9641, 4
    %v9644 = vshll.u32 %v8900, 16
    %v9646 = vrot.slane %v9644, 5
    %v9647 = vsel %vm2508, %v9642, %v9646
    %v9649 = vshrl.u32 %v8901, 16
    %v9651 = vrot.slane %v9649, 4
    %v9652 = vshll.u32 %v8901, 16
    %v9654 = vrot.slane %v9652, 5
    %v9655 = vor.u32 %v9651, %v9654
    %v9656 = vrot.slane %v9655, 4
    %v9658 = vshll.u32 %v8902, 16
    %v9660 = vrot.slane %v9658, 5
    %v9661 = vsel %vm2508, %v9656, %v9660
    %v9662 = vshrl.u32 %v8902, 16
    %v9664 = vrot.slane %v9662, 4
    %v9665 = vor.u32 %v9664, %v9660
    %v9666 = vrot.slane %v9665, 4
    %v9668 = vshll.u32 %v8903, 16
    %v9670 = vrot.slane %v9668, 5
    %v9671 = vsel %vm2508, %v9666, %v9670
    %v9672 = vld [vmem:[#allocation8 + $0x1c0] sm:$0xf]
    %v9673 = vld [vmem:[#allocation8 + $0x1c4] sm:$0xf]
    %v9674 = vld [vmem:[#allocation8 + $0x1c8] sm:$0xf]
    %v9675 = vld [vmem:[#allocation8 + $0x1cc] sm:$0xf]
    %v9676 = vld [vmem:[#allocation8 + $0x1d0] sm:$0xf]
    %v9677 = vld [vmem:[#allocation8 + $0x1d4] sm:$0xf]
    %v9678 = vld [vmem:[#allocation8 + $0x1d8] sm:$0xf]
    %v9679 = vld [vmem:[#allocation8 + $0x1dc] sm:$0xf]
    %v9680 = vld [vmem:[#allocation8 + $0x1e0] sm:$0xf]
    %v9681 = vld [vmem:[#allocation8 + $0x1e4] sm:$0xf]
    %v9682 = vld [vmem:[#allocation8 + $0x1e8] sm:$0xf]
    %v9683 = vld [vmem:[#allocation8 + $0x1ec] sm:$0xf]
    %v9684 = vld [vmem:[#allocation8 + $0x1f0] sm:$0xf]
    %v9685 = vld [vmem:[#allocation8 + $0x1f4] sm:$0xf]
    %v9686 = vld [vmem:[#allocation8 + $0x1f8] sm:$0xf]
    %v9687 = vld [vmem:[#allocation8 + $0x1fc] sm:$0xf]
    %v9688 = vunpack.c.l.b16 %v8917
    %v9689 = vunpack.c.l.b16 %v8927
    %v9690 = vunpack.c.l.b16 %v8941
    %v9691 = vunpack.c.l.b16 %v8951
    %v9692 = vunpack.c.l.b16 %v8965
    %v9693 = vunpack.c.l.b16 %v8975
    %v9694 = vunpack.c.l.b16 %v8989
    %v9695 = vunpack.c.l.b16 %v8999
    %v9696 = vunpack.c.l.b16 %v9013
    %v9697 = vunpack.c.l.b16 %v9023
    %v9698 = vunpack.c.l.b16 %v9037
    %v9699 = vunpack.c.l.b16 %v9047
    %v9700 = vunpack.c.l.b16 %v9061
    %v9701 = vunpack.c.l.b16 %v9071
    %v9702 = vunpack.c.l.b16 %v9085
    %v9703 = vunpack.c.l.b16 %v9095
    %v9704 = vunpack.c.l.b16 %v9109
    %v9705 = vunpack.c.l.b16 %v9119
    %v9706 = vunpack.c.l.b16 %v9133
    %v9707 = vunpack.c.l.b16 %v9143
    %v9708 = vunpack.c.l.b16 %v9157
    %v9709 = vunpack.c.l.b16 %v9167
    %v9710 = vunpack.c.l.b16 %v9181
    %v9711 = vunpack.c.l.b16 %v9191
    %v9712 = vunpack.c.l.b16 %v9205
    %v9713 = vunpack.c.l.b16 %v9215
    %v9714 = vunpack.c.l.b16 %v9229
    %v9715 = vunpack.c.l.b16 %v9239
    %v9716 = vunpack.c.l.b16 %v9253
    %v9717 = vunpack.c.l.b16 %v9263
    %v9718 = vunpack.c.l.b16 %v9277
    %v9719 = vunpack.c.l.b16 %v9287
    %v9720 = vunpack.c.l.b16 %v9301
    %v9721 = vunpack.c.l.b16 %v9311
    %v9722 = vunpack.c.l.b16 %v9325
    %v9723 = vunpack.c.l.b16 %v9335
    %v9724 = vunpack.c.l.b16 %v9349
    %v9725 = vunpack.c.l.b16 %v9359
    %v9726 = vunpack.c.l.b16 %v9373
    %v9727 = vunpack.c.l.b16 %v9383
    %v9728 = vunpack.c.l.b16 %v9397
    %v9729 = vunpack.c.l.b16 %v9407
    %v9730 = vunpack.c.l.b16 %v9421
    %v9731 = vunpack.c.l.b16 %v9431
    %v9732 = vunpack.c.l.b16 %v9445
    %v9733 = vunpack.c.l.b16 %v9455
    %v9734 = vunpack.c.l.b16 %v9469
    %v9735 = vunpack.c.l.b16 %v9479
    %v9736 = vunpack.c.l.b16 %v9493
    %v9737 = vunpack.c.l.b16 %v9503
    %v9738 = vunpack.c.l.b16 %v9517
    %v9739 = vunpack.c.l.b16 %v9527
    %v9740 = vunpack.c.l.b16 %v9541
    %v9741 = vunpack.c.l.b16 %v9551
    %v9742 = vunpack.c.l.b16 %v9565
    %v9743 = vunpack.c.l.b16 %v9575
    %v9744 = vunpack.c.l.b16 %v9589
    %v9745 = vunpack.c.l.b16 %v9599
    %v9746 = vunpack.c.l.b16 %v9613
    %v9747 = vunpack.c.l.b16 %v9623
    %v9748 = vunpack.c.l.b16 %v9637
    %v9749 = vunpack.c.l.b16 %v9647
    %v9750 = vunpack.c.l.b16 %v9661
    %v9751 = vunpack.c.l.b16 %v9671
    %v9752 = vpack.c.b16 %v9689, %v9688
    %v9753 = vpack.c.b16 %v9691, %v9690
    %v9754 = vpack.c.b16 %v9693, %v9692
    %v9755 = vpack.c.b16 %v9695, %v9694
    %v9756 = vpack.c.b16 %v9697, %v9696
    %v9757 = vpack.c.b16 %v9699, %v9698
    %v9758 = vpack.c.b16 %v9701, %v9700
    %v9759 = vpack.c.b16 %v9703, %v9702
    %v9760 = vpack.c.b16 %v9705, %v9704
    %v9761 = vpack.c.b16 %v9707, %v9706
    %v9762 = vpack.c.b16 %v9709, %v9708
    %v9763 = vpack.c.b16 %v9711, %v9710
    %v9764 = vpack.c.b16 %v9713, %v9712
    %v9765 = vpack.c.b16 %v9715, %v9714
    %v9766 = vpack.c.b16 %v9717, %v9716
    %v9767 = vpack.c.b16 %v9719, %v9718
    %v9768 = vpack.c.b16 %v9721, %v9720
    %v9769 = vpack.c.b16 %v9723, %v9722
    %v9770 = vpack.c.b16 %v9725, %v9724
    %v9771 = vpack.c.b16 %v9727, %v9726
    %v9772 = vpack.c.b16 %v9729, %v9728
    %v9773 = vpack.c.b16 %v9731, %v9730
    %v9774 = vpack.c.b16 %v9733, %v9732
    %v9775 = vpack.c.b16 %v9735, %v9734
    %v9776 = vpack.c.b16 %v9737, %v9736
    %v9777 = vpack.c.b16 %v9739, %v9738
    %v9778 = vpack.c.b16 %v9741, %v9740
    %v9779 = vpack.c.b16 %v9743, %v9742
    %v9780 = vpack.c.b16 %v9745, %v9744
    %v9781 = vpack.c.b16 %v9747, %v9746
    %v9782 = vpack.c.b16 %v9749, %v9748
    %v9783 = vpack.c.b16 %v9751, %v9750
    %v9832 = vunpack.c.l.b16 %v9672
    %v9833 = vunpack.c.l.b16 %v9673
    %v9834 = vunpack.c.l.b16 %v9674
    %v9835 = vunpack.c.l.b16 %v9675
    %v9836 = vunpack.c.l.b16 %v9676
    %v9837 = vunpack.c.l.b16 %v9677
    %v9838 = vunpack.c.l.b16 %v9678
    %v9839 = vunpack.c.l.b16 %v9679
    %v9840 = vunpack.c.l.b16 %v9680
    %v9841 = vunpack.c.l.b16 %v9681
    %v9842 = vunpack.c.l.b16 %v9682
    %v9843 = vunpack.c.l.b16 %v9683
    %v9844 = vunpack.c.l.b16 %v9684
    %v9845 = vunpack.c.l.b16 %v9685
    %v9846 = vunpack.c.l.b16 %v9686
    %v9847 = vunpack.c.l.b16 %v9687
    %v9848 = vpack.c.b16 %v9833, %v9832
    %v9849 = vpack.c.b16 %v9835, %v9834
    %v9850 = vpack.c.b16 %v9837, %v9836
    %v9851 = vpack.c.b16 %v9839, %v9838
    %v9852 = vpack.c.b16 %v9841, %v9840
    %v9853 = vpack.c.b16 %v9843, %v9842
    %v9854 = vpack.c.b16 %v9845, %v9844
    %v9855 = vpack.c.b16 %v9847, %v9846
    %9864 = vmatprep.subr.bf16.mxu0 0
    %9865 = vmatpush1.bf16.msra.mxu0 %v9855
    %9866 = vmatprep.subr.bf16.mxu0 0
    %9867 = vmatpush1.bf16.msra.mxu0 %v9854
    %9868 = vmatprep.subr.bf16.mxu0 0
    %9869 = vmatpush1.bf16.msra.mxu0 %v9853
    %9870 = vmatprep.subr.bf16.mxu0 0
    %9871 = vmatpush1.bf16.msra.mxu0 %v9852
    %9872 = vmatprep.subr.bf16.mxu0 0
    %9873 = vmatpush1.bf16.msra.mxu0 %v9851
    %9874 = vmatprep.subr.bf16.mxu0 0
    %9875 = vmatpush1.bf16.msra.mxu0 %v9850
    %9876 = vmatprep.subr.bf16.mxu0 0
    %9877 = vmatpush1.bf16.msra.mxu0 %v9849
    %9878 = vmatprep.subr.bf16.mxu0 0
    %9879 = vmatpush1.bf16.msra.mxu0 %v9848
    %9880 = vmatprep.subr.bf16.mxu0 0
    %9881 = vmatpush2.bf16.msra.mxu0 0
    %9882 = vmatprep.subr.bf16.mxu0 0
    %9883 = vmatpush2.bf16.msra.mxu0 0
    %9884 = vmatprep.subr.bf16.mxu0 0
    %9885 = vmatpush2.bf16.msra.mxu0 0
    %9886 = vmatprep.subr.bf16.mxu0 0
    %9887 = vmatpush2.bf16.msra.mxu0 0
    %9888 = vmatprep.subr.bf16.mxu0 0
    %9889 = vmatpush2.bf16.msra.mxu0 0
    %9890 = vmatprep.subr.bf16.mxu0 0
    %9891 = vmatpush2.bf16.msra.mxu0 0
    %9892 = vmatprep.subr.bf16.mxu0 0
    %9893 = vmatpush2.bf16.msra.mxu0 0
    %9894 = vmatprep.subr.bf16.mxu0 0
    %9895 = vmatpush2.bf16.msra.mxu0 0
    %9896 = vmatprep.mubr.bf16.mxu0 0
    %9897 = vmatmul.mubr.bf16.gmra.mxu0 %v9752
    %v9898 = vpop.f32.mrf.mxu0
    %v9899 = vadd.f32 0.0, %v9898
    %v9900 = vpop.f32.mrf.mxu0
    %v9901 = vpop.f32.mrf.mxu0
    %v9902 = vadd.f32 0.0, %v9901
    %v9903 = vpop.f32.mrf.mxu0
    %9904 = vmatprep.mubr.bf16.mxu0 0
    %9905 = vmatmul.mubr.bf16.gmra.mxu0 %v9753
    %v9906 = vpop.f32.mrf.mxu0
    %v9907 = vadd.f32 0.0, %v9906
    %v9908 = vpop.f32.mrf.mxu0
    %v9909 = vpop.f32.mrf.mxu0
    %v9910 = vadd.f32 0.0, %v9909
    %v9911 = vpop.f32.mrf.mxu0
    %9912 = vmatprep.mubr.bf16.mxu0 0
    %9913 = vmatmul.mubr.bf16.gmra.mxu0 %v9754
    %v9914 = vpop.f32.mrf.mxu0
    %v9915 = vadd.f32 0.0, %v9914
    %v9916 = vpop.f32.mrf.mxu0
    %v9917 = vpop.f32.mrf.mxu0
    %v9918 = vadd.f32 0.0, %v9917
    %v9919 = vpop.f32.mrf.mxu0
    %9920 = vmatprep.mubr.bf16.mxu0 0
    %9921 = vmatmul.mubr.bf16.gmra.mxu0 %v9755
    %v9922 = vpop.f32.mrf.mxu0
    %v9923 = vadd.f32 0.0, %v9922
    %v9924 = vpop.f32.mrf.mxu0
    %v9925 = vpop.f32.mrf.mxu0
    %v9926 = vadd.f32 0.0, %v9925
    %v9927 = vpop.f32.mrf.mxu0
    %9928 = vmatprep.mubr.bf16.mxu0 0
    %9929 = vmatmul.mubr.bf16.gmra.mxu0 %v9756
    %v9930 = vpop.f32.mrf.mxu0
    %v9931 = vadd.f32 0.0, %v9930
    %v9932 = vpop.f32.mrf.mxu0
    %v9933 = vpop.f32.mrf.mxu0
    %v9934 = vadd.f32 0.0, %v9933
    %v9935 = vpop.f32.mrf.mxu0
    %9936 = vmatprep.mubr.bf16.mxu0 0
    %9937 = vmatmul.mubr.bf16.gmra.mxu0 %v9757
    %v9938 = vpop.f32.mrf.mxu0
    %v9939 = vadd.f32 0.0, %v9938
    %v9940 = vpop.f32.mrf.mxu0
    %v9941 = vpop.f32.mrf.mxu0
    %v9942 = vadd.f32 0.0, %v9941
    %v9943 = vpop.f32.mrf.mxu0
    %9944 = vmatprep.mubr.bf16.mxu0 0
    %9945 = vmatmul.mubr.bf16.gmra.mxu0 %v9758
    %v9946 = vpop.f32.mrf.mxu0
    %v9947 = vadd.f32 0.0, %v9946
    %v9948 = vpop.f32.mrf.mxu0
    %v9949 = vpop.f32.mrf.mxu0
    %v9950 = vadd.f32 0.0, %v9949
    %v9951 = vpop.f32.mrf.mxu0
    %9952 = vmatprep.mubr.bf16.mxu0 0
    %9953 = vmatmul.mubr.bf16.gmra.mxu0 %v9759
    %v9954 = vpop.f32.mrf.mxu0
    %v9955 = vadd.f32 0.0, %v9954
    %v9956 = vpop.f32.mrf.mxu0
    %v9957 = vpop.f32.mrf.mxu0
    %v9958 = vadd.f32 0.0, %v9957
    %v9959 = vpop.f32.mrf.mxu0
    %9960 = vmatprep.mubr.bf16.mxu0 0
    %9961 = vmatmul.mubr.bf16.gmra.mxu0 %v9760
    %v9962 = vpop.f32.mrf.mxu0
    %v9963 = vadd.f32 0.0, %v9962
    %v9964 = vpop.f32.mrf.mxu0
    %v9965 = vpop.f32.mrf.mxu0
    %v9966 = vadd.f32 0.0, %v9965
    %v9967 = vpop.f32.mrf.mxu0
    %9968 = vmatprep.mubr.bf16.mxu0 0
    %9969 = vmatmul.mubr.bf16.gmra.mxu0 %v9761
    %v9970 = vpop.f32.mrf.mxu0
    %v9971 = vadd.f32 0.0, %v9970
    %v9972 = vpop.f32.mrf.mxu0
    %v9973 = vpop.f32.mrf.mxu0
    %v9974 = vadd.f32 0.0, %v9973
    %v9975 = vpop.f32.mrf.mxu0
    %9976 = vmatprep.mubr.bf16.mxu0 0
    %9977 = vmatmul.mubr.bf16.gmra.mxu0 %v9762
    %v9978 = vpop.f32.mrf.mxu0
    %v9979 = vadd.f32 0.0, %v9978
    %v9980 = vpop.f32.mrf.mxu0
    %v9981 = vpop.f32.mrf.mxu0
    %v9982 = vadd.f32 0.0, %v9981
    %v9983 = vpop.f32.mrf.mxu0
    %9984 = vmatprep.mubr.bf16.mxu0 0
    %9985 = vmatmul.mubr.bf16.gmra.mxu0 %v9763
    %v9986 = vpop.f32.mrf.mxu0
    %v9987 = vadd.f32 0.0, %v9986
    %v9988 = vpop.f32.mrf.mxu0
    %v9989 = vpop.f32.mrf.mxu0
    %v9990 = vadd.f32 0.0, %v9989
    %v9991 = vpop.f32.mrf.mxu0
    %9992 = vmatprep.mubr.bf16.mxu0 0
    %9993 = vmatmul.mubr.bf16.gmra.mxu0 %v9764
    %v9994 = vpop.f32.mrf.mxu0
    %v9995 = vadd.f32 0.0, %v9994
    %v9996 = vpop.f32.mrf.mxu0
    %v9997 = vpop.f32.mrf.mxu0
    %v9998 = vadd.f32 0.0, %v9997
    %v9999 = vpop.f32.mrf.mxu0
    %10000 = vmatprep.mubr.bf16.mxu0 0
    %10001 = vmatmul.mubr.bf16.gmra.mxu0 %v9765
    %v10002 = vpop.f32.mrf.mxu0
    %v10003 = vadd.f32 0.0, %v10002
    %v10004 = vpop.f32.mrf.mxu0
    %v10005 = vpop.f32.mrf.mxu0
    %v10006 = vadd.f32 0.0, %v10005
    %v10007 = vpop.f32.mrf.mxu0
    %10008 = vmatprep.mubr.bf16.mxu0 0
    %10009 = vmatmul.mubr.bf16.gmra.mxu0 %v9766
    %v10010 = vpop.f32.mrf.mxu0
    %v10011 = vadd.f32 0.0, %v10010
    %v10012 = vpop.f32.mrf.mxu0
    %v10013 = vpop.f32.mrf.mxu0
    %v10014 = vadd.f32 0.0, %v10013
    %v10015 = vpop.f32.mrf.mxu0
    %10016 = vmatprep.mubr.bf16.mxu0 0
    %10017 = vmatmul.mubr.bf16.gmra.mxu0 %v9767
    %v10018 = vpop.f32.mrf.mxu0
    %v10019 = vadd.f32 0.0, %v10018
    %v10020 = vpop.f32.mrf.mxu0
    %v10021 = vpop.f32.mrf.mxu0
    %v10022 = vadd.f32 0.0, %v10021
    %v10023 = vpop.f32.mrf.mxu0
    %10024 = vmatprep.mubr.bf16.mxu0 0
    %10025 = vmatmul.mubr.bf16.gmra.mxu0 %v9768
    %v10026 = vpop.f32.mrf.mxu0
    %v10027 = vadd.f32 0.0, %v10026
    %v10028 = vpop.f32.mrf.mxu0
    %v10029 = vpop.f32.mrf.mxu0
    %v10030 = vadd.f32 0.0, %v10029
    %v10031 = vpop.f32.mrf.mxu0
    %10032 = vmatprep.mubr.bf16.mxu0 0
    %10033 = vmatmul.mubr.bf16.gmra.mxu0 %v9769
    %v10034 = vpop.f32.mrf.mxu0
    %v10035 = vadd.f32 0.0, %v10034
    %v10036 = vpop.f32.mrf.mxu0
    %v10037 = vpop.f32.mrf.mxu0
    %v10038 = vadd.f32 0.0, %v10037
    %v10039 = vpop.f32.mrf.mxu0
    %10040 = vmatprep.mubr.bf16.mxu0 0
    %10041 = vmatmul.mubr.bf16.gmra.mxu0 %v9770
    %v10042 = vpop.f32.mrf.mxu0
    %v10043 = vadd.f32 0.0, %v10042
    %v10044 = vpop.f32.mrf.mxu0
    %v10045 = vpop.f32.mrf.mxu0
    %v10046 = vadd.f32 0.0, %v10045
    %v10047 = vpop.f32.mrf.mxu0
    %10048 = vmatprep.mubr.bf16.mxu0 0
    %10049 = vmatmul.mubr.bf16.gmra.mxu0 %v9771
    %v10050 = vpop.f32.mrf.mxu0
    %v10051 = vadd.f32 0.0, %v10050
    %v10052 = vpop.f32.mrf.mxu0
    %v10053 = vpop.f32.mrf.mxu0
    %v10054 = vadd.f32 0.0, %v10053
    %v10055 = vpop.f32.mrf.mxu0
    %10056 = vmatprep.mubr.bf16.mxu0 0
    %10057 = vmatmul.mubr.bf16.gmra.mxu0 %v9772
    %v10058 = vpop.f32.mrf.mxu0
    %v10059 = vadd.f32 0.0, %v10058
    %v10060 = vpop.f32.mrf.mxu0
    %v10061 = vpop.f32.mrf.mxu0
    %v10062 = vadd.f32 0.0, %v10061
    %v10063 = vpop.f32.mrf.mxu0
    %10064 = vmatprep.mubr.bf16.mxu0 0
    %10065 = vmatmul.mubr.bf16.gmra.mxu0 %v9773
    %v10066 = vpop.f32.mrf.mxu0
    %v10067 = vadd.f32 0.0, %v10066
    %v10068 = vpop.f32.mrf.mxu0
    %v10069 = vpop.f32.mrf.mxu0
    %v10070 = vadd.f32 0.0, %v10069
    %v10071 = vpop.f32.mrf.mxu0
    %10072 = vmatprep.mubr.bf16.mxu0 0
    %10073 = vmatmul.mubr.bf16.gmra.mxu0 %v9774
    %v10074 = vpop.f32.mrf.mxu0
    %v10075 = vadd.f32 0.0, %v10074
    %v10076 = vpop.f32.mrf.mxu0
    %v10077 = vpop.f32.mrf.mxu0
    %v10078 = vadd.f32 0.0, %v10077
    %v10079 = vpop.f32.mrf.mxu0
    %10080 = vmatprep.mubr.bf16.mxu0 0
    %10081 = vmatmul.mubr.bf16.gmra.mxu0 %v9775
    %v10082 = vpop.f32.mrf.mxu0
    %v10083 = vadd.f32 0.0, %v10082
    %v10084 = vpop.f32.mrf.mxu0
    %v10085 = vpop.f32.mrf.mxu0
    %v10086 = vadd.f32 0.0, %v10085
    %v10087 = vpop.f32.mrf.mxu0
    %10088 = vmatprep.mubr.bf16.mxu0 0
    %10089 = vmatmul.mubr.bf16.gmra.mxu0 %v9776
    %v10090 = vpop.f32.mrf.mxu0
    %v10091 = vadd.f32 0.0, %v10090
    %v10092 = vpop.f32.mrf.mxu0
    %v10093 = vpop.f32.mrf.mxu0
    %v10094 = vadd.f32 0.0, %v10093
    %v10095 = vpop.f32.mrf.mxu0
    %10096 = vmatprep.mubr.bf16.mxu0 0
    %10097 = vmatmul.mubr.bf16.gmra.mxu0 %v9777
    %v10098 = vpop.f32.mrf.mxu0
    %v10099 = vadd.f32 0.0, %v10098
    %v10100 = vpop.f32.mrf.mxu0
    %v10101 = vpop.f32.mrf.mxu0
    %v10102 = vadd.f32 0.0, %v10101
    %v10103 = vpop.f32.mrf.mxu0
    %10104 = vmatprep.mubr.bf16.mxu0 0
    %10105 = vmatmul.mubr.bf16.gmra.mxu0 %v9778
    %v10106 = vpop.f32.mrf.mxu0
    %v10107 = vadd.f32 0.0, %v10106
    %v10108 = vpop.f32.mrf.mxu0
    %v10109 = vpop.f32.mrf.mxu0
    %v10110 = vadd.f32 0.0, %v10109
    %v10111 = vpop.f32.mrf.mxu0
    %10112 = vmatprep.mubr.bf16.mxu0 0
    %10113 = vmatmul.mubr.bf16.gmra.mxu0 %v9779
    %v10114 = vpop.f32.mrf.mxu0
    %v10115 = vadd.f32 0.0, %v10114
    %v10116 = vpop.f32.mrf.mxu0
    %v10117 = vpop.f32.mrf.mxu0
    %v10118 = vadd.f32 0.0, %v10117
    %v10119 = vpop.f32.mrf.mxu0
    %10120 = vmatprep.mubr.bf16.mxu0 0
    %10121 = vmatmul.mubr.bf16.gmra.mxu0 %v9780
    %v10122 = vpop.f32.mrf.mxu0
    %v10123 = vadd.f32 0.0, %v10122
    %v10124 = vpop.f32.mrf.mxu0
    %v10125 = vpop.f32.mrf.mxu0
    %v10126 = vadd.f32 0.0, %v10125
    %v10127 = vpop.f32.mrf.mxu0
    %10128 = vmatprep.mubr.bf16.mxu0 0
    %10129 = vmatmul.mubr.bf16.gmra.mxu0 %v9781
    %v10130 = vpop.f32.mrf.mxu0
    %v10131 = vadd.f32 0.0, %v10130
    %v10132 = vpop.f32.mrf.mxu0
    %v10133 = vpop.f32.mrf.mxu0
    %v10134 = vadd.f32 0.0, %v10133
    %v10135 = vpop.f32.mrf.mxu0
    %10136 = vmatprep.mubr.bf16.mxu0 0
    %10137 = vmatmul.mubr.bf16.gmra.mxu0 %v9782
    %v10138 = vpop.f32.mrf.mxu0
    %v10139 = vadd.f32 0.0, %v10138
    %v10140 = vpop.f32.mrf.mxu0
    %v10141 = vpop.f32.mrf.mxu0
    %v10142 = vadd.f32 0.0, %v10141
    %v10143 = vpop.f32.mrf.mxu0
    %10144 = vmatprep.mubr.bf16.mxu0 0
    %10145 = vmatmul.mubr.bf16.gmra.mxu0 %v9783
    %v10146 = vpop.f32.mrf.mxu0
    %v10147 = vadd.f32 0.0, %v10146
    %v10148 = vpop.f32.mrf.mxu0
    %v10149 = vpop.f32.mrf.mxu0
    %v10150 = vadd.f32 0.0, %v10149
    %v10151 = vpop.f32.mrf.mxu0
    %10152 = vdwg.mxu0
    %v10153 = vadd.f32 %v8744, %v9899
    %v10154 = vadd.f32 %v8745, %v9902
    %v10155 = vadd.f32 %v8746, %v9907
    %v10156 = vadd.f32 %v8747, %v9910
    %v10157 = vadd.f32 %v8748, %v9915
    %v10158 = vadd.f32 %v8749, %v9918
    %v10159 = vadd.f32 %v8750, %v9923
    %v10160 = vadd.f32 %v8751, %v9926
    %v10161 = vadd.f32 %v8752, %v9931
    %v10162 = vadd.f32 %v8753, %v9934
    %v10163 = vadd.f32 %v8754, %v9939
    %v10164 = vadd.f32 %v8755, %v9942
    %v10165 = vadd.f32 %v8756, %v9947
    %v10166 = vadd.f32 %v8757, %v9950
    %v10167 = vadd.f32 %v8758, %v9955
    %v10168 = vadd.f32 %v8759, %v9958
    %v10169 = vadd.f32 %v8760, %v9963
    %v10170 = vadd.f32 %v8761, %v9966
    %v10171 = vadd.f32 %v8762, %v9971
    %v10172 = vadd.f32 %v8763, %v9974
    %v10173 = vadd.f32 %v8764, %v9979
    %v10174 = vadd.f32 %v8765, %v9982
    %v10175 = vadd.f32 %v8766, %v9987
    %v10176 = vadd.f32 %v8767, %v9990
    %v10177 = vadd.f32 %v8768, %v9995
    %v10178 = vadd.f32 %v8769, %v9998
    %v10179 = vadd.f32 %v8770, %v10003
    %v10180 = vadd.f32 %v8771, %v10006
    %v10181 = vadd.f32 %v8772, %v10011
    %v10182 = vadd.f32 %v8773, %v10014
    %v10183 = vadd.f32 %v8774, %v10019
    %v10184 = vadd.f32 %v8775, %v10022
    %v10185 = vadd.f32 %v8776, %v10027
    %v10186 = vadd.f32 %v8777, %v10030
    %v10187 = vadd.f32 %v8778, %v10035
    %v10188 = vadd.f32 %v8779, %v10038
    %v10189 = vadd.f32 %v8780, %v10043
    %v10190 = vadd.f32 %v8781, %v10046
    %v10191 = vadd.f32 %v8782, %v10051
    %v10192 = vadd.f32 %v8783, %v10054
    %v10193 = vadd.f32 %v8784, %v10059
    %v10194 = vadd.f32 %v8785, %v10062
    %v10195 = vadd.f32 %v8786, %v10067
    %v10196 = vadd.f32 %v8787, %v10070
    %v10197 = vadd.f32 %v8788, %v10075
    %v10198 = vadd.f32 %v8789, %v10078
    %v10199 = vadd.f32 %v8790, %v10083
    %v10200 = vadd.f32 %v8791, %v10086
    %v10201 = vadd.f32 %v8792, %v10091
    %v10202 = vadd.f32 %v8793, %v10094
    %v10203 = vadd.f32 %v8794, %v10099
    %v10204 = vadd.f32 %v8795, %v10102
    %v10205 = vadd.f32 %v8796, %v10107
    %v10206 = vadd.f32 %v8797, %v10110
    %v10207 = vadd.f32 %v8798, %v10115
    %v10208 = vadd.f32 %v8799, %v10118
    %v10209 = vadd.f32 %v8800, %v10123
    %v10210 = vadd.f32 %v8801, %v10126
    %v10211 = vadd.f32 %v8802, %v10131
    %v10212 = vadd.f32 %v8803, %v10134
    %v10213 = vadd.f32 %v8804, %v10139
    %v10214 = vadd.f32 %v8805, %v10142
    %v10215 = vadd.f32 %v8806, %v10147
    %v10216 = vadd.f32 %v8807, %v10150
    %v10217 = vld [vmem:[%s8134] sm:$0xe]
    %v10218 = vld [vmem:[%s8134 + $0xc] sm:$0xe]
    %v10219 = vld [vmem:[%s8134 + $0x18] sm:$0xe]
    %v10220 = vld [vmem:[%s8134 + $0x24] sm:$0xe]
    %v10221 = vld [vmem:[%s8134 + $0x30] sm:$0xe]
    %v10222 = vld [vmem:[%s8134 + $0x3c] sm:$0xe]
    %v10223 = vld [vmem:[%s8134 + $0x48] sm:$0xe]
    %v10224 = vld [vmem:[%s8134 + $0x54] sm:$0xe]
    %v10225 = vld [vmem:[%s8134 + $0x60] sm:$0xe]
    %v10226 = vld [vmem:[%s8134 + $0x6c] sm:$0xe]
    %v10227 = vld [vmem:[%s8134 + $0x78] sm:$0xe]
    %v10228 = vld [vmem:[%s8134 + $0x84] sm:$0xe]
    %v10229 = vld [vmem:[%s8134 + $0x90] sm:$0xe]
    %v10230 = vld [vmem:[%s8134 + $0x9c] sm:$0xe]
    %v10231 = vld [vmem:[%s8134 + $0xa8] sm:$0xe]
    %v10232 = vld [vmem:[%s8134 + $0xb4] sm:$0xe]
    %v10233 = vld [vmem:[%s8134 + $0xd8] sm:$0xe]
    %v10234 = vld [vmem:[%s8134 + $0xe4] sm:$0xe]
    %v10235 = vld [vmem:[%s8134 + $0xf0] sm:$0xe]
    %v10236 = vld [vmem:[%s8134 + $0xfc] sm:$0xe]
    %v10237 = vld [vmem:[%s8134 + $0x108] sm:$0xe]
    %v10238 = vld [vmem:[%s8134 + $0x114] sm:$0xe]
    %v10239 = vld [vmem:[%s8134 + $0x120] sm:$0xe]
    %v10240 = vld [vmem:[%s8134 + $0x12c] sm:$0xe]
    %v10241 = vld [vmem:[%s8134 + $0x138] sm:$0xe]
    %v10242 = vld [vmem:[%s8134 + $0x144] sm:$0xe]
    %v10243 = vld [vmem:[%s8134 + $0x150] sm:$0xe]
    %v10244 = vld [vmem:[%s8134 + $0x15c] sm:$0xe]
    %v10245 = vld [vmem:[%s8134 + $0x168] sm:$0xe]
    %v10246 = vld [vmem:[%s8134 + $0x174] sm:$0xe]
    %v10247 = vld [vmem:[%s8134 + $0x180] sm:$0xe]
    %v10248 = vld [vmem:[%s8134 + $0x18c] sm:$0xe]
    %v10345 = vrot.slane %v10217, 5
    %v10346 = vrot.slane %v10345, 4
    %v10347 = vrot.slane %v8809, 5
    %v10348 = vsel %vm4385, %v10346, %v10347
    %v10349 = vrot.slane %v10347, 4
    %v10350 = vrot.slane %v8810, 5
    %v10351 = vsel %vm4385, %v10349, %v10350
    %v10352 = vrot.slane %v10218, 5
    %v10353 = vrot.slane %v10352, 4
    %v10354 = vrot.slane %v8812, 5
    %v10355 = vsel %vm4385, %v10353, %v10354
    %v10356 = vrot.slane %v10354, 4
    %v10357 = vrot.slane %v8813, 5
    %v10358 = vsel %vm4385, %v10356, %v10357
    %v10359 = vrot.slane %v10219, 5
    %v10360 = vrot.slane %v10359, 4
    %v10361 = vrot.slane %v8815, 5
    %v10362 = vsel %vm4385, %v10360, %v10361
    %v10363 = vrot.slane %v10361, 4
    %v10364 = vrot.slane %v8816, 5
    %v10365 = vsel %vm4385, %v10363, %v10364
    %v10366 = vrot.slane %v10220, 5
    %v10367 = vrot.slane %v10366, 4
    %v10368 = vrot.slane %v8818, 5
    %v10369 = vsel %vm4385, %v10367, %v10368
    %v10370 = vrot.slane %v10368, 4
    %v10371 = vrot.slane %v8819, 5
    %v10372 = vsel %vm4385, %v10370, %v10371
    %v10373 = vrot.slane %v10221, 5
    %v10374 = vrot.slane %v10373, 4
    %v10375 = vrot.slane %v8821, 5
    %v10376 = vsel %vm4385, %v10374, %v10375
    %v10377 = vrot.slane %v10375, 4
    %v10378 = vrot.slane %v8822, 5
    %v10379 = vsel %vm4385, %v10377, %v10378
    %v10380 = vrot.slane %v10222, 5
    %v10381 = vrot.slane %v10380, 4
    %v10382 = vrot.slane %v8824, 5
    %v10383 = vsel %vm4385, %v10381, %v10382
    %v10384 = vrot.slane %v10382, 4
    %v10385 = vrot.slane %v8825, 5
    %v10386 = vsel %vm4385, %v10384, %v10385
    %v10387 = vrot.slane %v10223, 5
    %v10388 = vrot.slane %v10387, 4
    %v10389 = vrot.slane %v8827, 5
    %v10390 = vsel %vm4385, %v10388, %v10389
    %v10391 = vrot.slane %v10389, 4
    %v10392 = vrot.slane %v8828, 5
    %v10393 = vsel %vm4385, %v10391, %v10392
    %v10394 = vrot.slane %v10224, 5
    %v10395 = vrot.slane %v10394, 4
    %v10396 = vrot.slane %v8830, 5
    %v10397 = vsel %vm4385, %v10395, %v10396
    %v10398 = vrot.slane %v10396, 4
    %v10399 = vrot.slane %v8831, 5
    %v10400 = vsel %vm4385, %v10398, %v10399
    %v10401 = vrot.slane %v10225, 5
    %v10402 = vrot.slane %v10401, 4
    %v10403 = vrot.slane %v8833, 5
    %v10404 = vsel %vm4385, %v10402, %v10403
    %v10405 = vrot.slane %v10403, 4
    %v10406 = vrot.slane %v8834, 5
    %v10407 = vsel %vm4385, %v10405, %v10406
    %v10408 = vrot.slane %v10226, 5
    %v10409 = vrot.slane %v10408, 4
    %v10410 = vrot.slane %v8836, 5
    %v10411 = vsel %vm4385, %v10409, %v10410
    %v10412 = vrot.slane %v10410, 4
    %v10413 = vrot.slane %v8837, 5
    %v10414 = vsel %vm4385, %v10412, %v10413
    %v10415 = vrot.slane %v10227, 5
    %v10416 = vrot.slane %v10415, 4
    %v10417 = vrot.slane %v8839, 5
    %v10418 = vsel %vm4385, %v10416, %v10417
    %v10419 = vrot.slane %v10417, 4
    %v10420 = vrot.slane %v8840, 5
    %v10421 = vsel %vm4385, %v10419, %v10420
    %v10422 = vrot.slane %v10228, 5
    %v10423 = vrot.slane %v10422, 4
    %v10424 = vrot.slane %v8842, 5
    %v10425 = vsel %vm4385, %v10423, %v10424
    %v10426 = vrot.slane %v10424, 4
    %v10427 = vrot.slane %v8843, 5
    %v10428 = vsel %vm4385, %v10426, %v10427
    %v10429 = vrot.slane %v10229, 5
    %v10430 = vrot.slane %v10429, 4
    %v10431 = vrot.slane %v8845, 5
    %v10432 = vsel %vm4385, %v10430, %v10431
    %v10433 = vrot.slane %v10431, 4
    %v10434 = vrot.slane %v8846, 5
    %v10435 = vsel %vm4385, %v10433, %v10434
    %v10436 = vrot.slane %v10230, 5
    %v10437 = vrot.slane %v10436, 4
    %v10438 = vrot.slane %v8848, 5
    %v10439 = vsel %vm4385, %v10437, %v10438
    %v10440 = vrot.slane %v10438, 4
    %v10441 = vrot.slane %v8849, 5
    %v10442 = vsel %vm4385, %v10440, %v10441
    %v10443 = vrot.slane %v10231, 5
    %v10444 = vrot.slane %v10443, 4
    %v10445 = vrot.slane %v8851, 5
    %v10446 = vsel %vm4385, %v10444, %v10445
    %v10447 = vrot.slane %v10445, 4
    %v10448 = vrot.slane %v8852, 5
    %v10449 = vsel %vm4385, %v10447, %v10448
    %v10450 = vrot.slane %v10232, 5
    %v10451 = vrot.slane %v10450, 4
    %v10452 = vrot.slane %v8854, 5
    %v10453 = vsel %vm4385, %v10451, %v10452
    %v10454 = vrot.slane %v10452, 4
    %v10455 = vrot.slane %v8855, 5
    %v10456 = vsel %vm4385, %v10454, %v10455
    %v10457 = vrot.slane %v10233, 5
    %v10458 = vrot.slane %v10457, 4
    %v10459 = vrot.slane %v8857, 5
    %v10460 = vsel %vm4385, %v10458, %v10459
    %v10461 = vrot.slane %v10459, 4
    %v10462 = vrot.slane %v8858, 5
    %v10463 = vsel %vm4385, %v10461, %v10462
    %v10464 = vrot.slane %v10234, 5
    %v10465 = vrot.slane %v10464, 4
    %v10466 = vrot.slane %v8860, 5
    %v10467 = vsel %vm4385, %v10465, %v10466
    %v10468 = vrot.slane %v10466, 4
    %v10469 = vrot.slane %v8861, 5
    %v10470 = vsel %vm4385, %v10468, %v10469
    %v10471 = vrot.slane %v10235, 5
    %v10472 = vrot.slane %v10471, 4
    %v10473 = vrot.slane %v8863, 5
    %v10474 = vsel %vm4385, %v10472, %v10473
    %v10475 = vrot.slane %v10473, 4
    %v10476 = vrot.slane %v8864, 5
    %v10477 = vsel %vm4385, %v10475, %v10476
    %v10478 = vrot.slane %v10236, 5
    %v10479 = vrot.slane %v10478, 4
    %v10480 = vrot.slane %v8866, 5
    %v10481 = vsel %vm4385, %v10479, %v10480
    %v10482 = vrot.slane %v10480, 4
    %v10483 = vrot.slane %v8867, 5
    %v10484 = vsel %vm4385, %v10482, %v10483
    %v10485 = vrot.slane %v10237, 5
    %v10486 = vrot.slane %v10485, 4
    %v10487 = vrot.slane %v8869, 5
    %v10488 = vsel %vm4385, %v10486, %v10487
    %v10489 = vrot.slane %v10487, 4
    %v10490 = vrot.slane %v8870, 5
    %v10491 = vsel %vm4385, %v10489, %v10490
    %v10492 = vrot.slane %v10238, 5
    %v10493 = vrot.slane %v10492, 4
    %v10494 = vrot.slane %v8872, 5
    %v10495 = vsel %vm4385, %v10493, %v10494
    %v10496 = vrot.slane %v10494, 4
    %v10497 = vrot.slane %v8873, 5
    %v10498 = vsel %vm4385, %v10496, %v10497
    %v10499 = vrot.slane %v10239, 5
    %v10500 = vrot.slane %v10499, 4
    %v10501 = vrot.slane %v8875, 5
    %v10502 = vsel %vm4385, %v10500, %v10501
    %v10503 = vrot.slane %v10501, 4
    %v10504 = vrot.slane %v8876, 5
    %v10505 = vsel %vm4385, %v10503, %v10504
    %v10506 = vrot.slane %v10240, 5
    %v10507 = vrot.slane %v10506, 4
    %v10508 = vrot.slane %v8878, 5
    %v10509 = vsel %vm4385, %v10507, %v10508
    %v10510 = vrot.slane %v10508, 4
    %v10511 = vrot.slane %v8879, 5
    %v10512 = vsel %vm4385, %v10510, %v10511
    %v10513 = vrot.slane %v10241, 5
    %v10514 = vrot.slane %v10513, 4
    %v10515 = vrot.slane %v8881, 5
    %v10516 = vsel %vm4385, %v10514, %v10515
    %v10517 = vrot.slane %v10515, 4
    %v10518 = vrot.slane %v8882, 5
    %v10519 = vsel %vm4385, %v10517, %v10518
    %v10520 = vrot.slane %v10242, 5
    %v10521 = vrot.slane %v10520, 4
    %v10522 = vrot.slane %v8884, 5
    %v10523 = vsel %vm4385, %v10521, %v10522
    %v10524 = vrot.slane %v10522, 4
    %v10525 = vrot.slane %v8885, 5
    %v10526 = vsel %vm4385, %v10524, %v10525
    %v10527 = vrot.slane %v10243, 5
    %v10528 = vrot.slane %v10527, 4
    %v10529 = vrot.slane %v8887, 5
    %v10530 = vsel %vm4385, %v10528, %v10529
    %v10531 = vrot.slane %v10529, 4
    %v10532 = vrot.slane %v8888, 5
    %v10533 = vsel %vm4385, %v10531, %v10532
    %v10534 = vrot.slane %v10244, 5
    %v10535 = vrot.slane %v10534, 4
    %v10536 = vrot.slane %v8890, 5
    %v10537 = vsel %vm4385, %v10535, %v10536
    %v10538 = vrot.slane %v10536, 4
    %v10539 = vrot.slane %v8891, 5
    %v10540 = vsel %vm4385, %v10538, %v10539
    %v10541 = vrot.slane %v10245, 5
    %v10542 = vrot.slane %v10541, 4
    %v10543 = vrot.slane %v8893, 5
    %v10544 = vsel %vm4385, %v10542, %v10543
    %v10545 = vrot.slane %v10543, 4
    %v10546 = vrot.slane %v8894, 5
    %v10547 = vsel %vm4385, %v10545, %v10546
    %v10548 = vrot.slane %v10246, 5
    %v10549 = vrot.slane %v10548, 4
    %v10550 = vrot.slane %v8896, 5
    %v10551 = vsel %vm4385, %v10549, %v10550
    %v10552 = vrot.slane %v10550, 4
    %v10553 = vrot.slane %v8897, 5
    %v10554 = vsel %vm4385, %v10552, %v10553
    %v10555 = vrot.slane %v10247, 5
    %v10556 = vrot.slane %v10555, 4
    %v10557 = vrot.slane %v8899, 5
    %v10558 = vsel %vm4385, %v10556, %v10557
    %v10559 = vrot.slane %v10557, 4
    %v10560 = vrot.slane %v8900, 5
    %v10561 = vsel %vm4385, %v10559, %v10560
    %v10562 = vrot.slane %v10248, 5
    %v10563 = vrot.slane %v10562, 4
    %v10564 = vrot.slane %v8902, 5
    %v10565 = vsel %vm4385, %v10563, %v10564
    %v10566 = vrot.slane %v10564, 4
    %v10567 = vrot.slane %v8903, 5
    %v10568 = vsel %vm4385, %v10566, %v10567
    %v10569 = vld [vmem:[#allocation8 + $0x200] sm:$0xf]
    %v10570 = vld [vmem:[#allocation8 + $0x204] sm:$0xf]
    %v10571 = vld [vmem:[#allocation8 + $0x208] sm:$0xf]
    %v10572 = vld [vmem:[#allocation8 + $0x20c] sm:$0xf]
    %v10573 = vld [vmem:[#allocation8 + $0x210] sm:$0xf]
    %v10574 = vld [vmem:[#allocation8 + $0x214] sm:$0xf]
    %v10575 = vld [vmem:[#allocation8 + $0x218] sm:$0xf]
    %v10576 = vld [vmem:[#allocation8 + $0x21c] sm:$0xf]
    %v10577 = vld [vmem:[#allocation8 + $0x220] sm:$0xf]
    %v10578 = vld [vmem:[#allocation8 + $0x224] sm:$0xf]
    %v10579 = vld [vmem:[#allocation8 + $0x228] sm:$0xf]
    %v10580 = vld [vmem:[#allocation8 + $0x22c] sm:$0xf]
    %v10581 = vld [vmem:[#allocation8 + $0x230] sm:$0xf]
    %v10582 = vld [vmem:[#allocation8 + $0x234] sm:$0xf]
    %v10583 = vld [vmem:[#allocation8 + $0x238] sm:$0xf]
    %v10584 = vld [vmem:[#allocation8 + $0x23c] sm:$0xf]
    %v10585 = vunpack.c.l.b16 %v10348
    %v10586 = vunpack.c.l.b16 %v10351
    %v10587 = vunpack.c.l.b16 %v10355
    %v10588 = vunpack.c.l.b16 %v10358
    %v10589 = vunpack.c.l.b16 %v10362
    %v10590 = vunpack.c.l.b16 %v10365
    %v10591 = vunpack.c.l.b16 %v10369
    %v10592 = vunpack.c.l.b16 %v10372
    %v10593 = vunpack.c.l.b16 %v10376
    %v10594 = vunpack.c.l.b16 %v10379
    %v10595 = vunpack.c.l.b16 %v10383
    %v10596 = vunpack.c.l.b16 %v10386
    %v10597 = vunpack.c.l.b16 %v10390
    %v10598 = vunpack.c.l.b16 %v10393
    %v10599 = vunpack.c.l.b16 %v10397
    %v10600 = vunpack.c.l.b16 %v10400
    %v10601 = vunpack.c.l.b16 %v10404
    %v10602 = vunpack.c.l.b16 %v10407
    %v10603 = vunpack.c.l.b16 %v10411
    %v10604 = vunpack.c.l.b16 %v10414
    %v10605 = vunpack.c.l.b16 %v10418
    %v10606 = vunpack.c.l.b16 %v10421
    %v10607 = vunpack.c.l.b16 %v10425
    %v10608 = vunpack.c.l.b16 %v10428
    %v10609 = vunpack.c.l.b16 %v10432
    %v10610 = vunpack.c.l.b16 %v10435
    %v10611 = vunpack.c.l.b16 %v10439
    %v10612 = vunpack.c.l.b16 %v10442
    %v10613 = vunpack.c.l.b16 %v10446
    %v10614 = vunpack.c.l.b16 %v10449
    %v10615 = vunpack.c.l.b16 %v10453
    %v10616 = vunpack.c.l.b16 %v10456
    %v10617 = vunpack.c.l.b16 %v10460
    %v10618 = vunpack.c.l.b16 %v10463
    %v10619 = vunpack.c.l.b16 %v10467
    %v10620 = vunpack.c.l.b16 %v10470
    %v10621 = vunpack.c.l.b16 %v10474
    %v10622 = vunpack.c.l.b16 %v10477
    %v10623 = vunpack.c.l.b16 %v10481
    %v10624 = vunpack.c.l.b16 %v10484
    %v10625 = vunpack.c.l.b16 %v10488
    %v10626 = vunpack.c.l.b16 %v10491
    %v10627 = vunpack.c.l.b16 %v10495
    %v10628 = vunpack.c.l.b16 %v10498
    %v10629 = vunpack.c.l.b16 %v10502
    %v10630 = vunpack.c.l.b16 %v10505
    %v10631 = vunpack.c.l.b16 %v10509
    %v10632 = vunpack.c.l.b16 %v10512
    %v10633 = vunpack.c.l.b16 %v10516
    %v10634 = vunpack.c.l.b16 %v10519
    %v10635 = vunpack.c.l.b16 %v10523
    %v10636 = vunpack.c.l.b16 %v10526
    %v10637 = vunpack.c.l.b16 %v10530
    %v10638 = vunpack.c.l.b16 %v10533
    %v10639 = vunpack.c.l.b16 %v10537
    %v10640 = vunpack.c.l.b16 %v10540
    %v10641 = vunpack.c.l.b16 %v10544
    %v10642 = vunpack.c.l.b16 %v10547
    %v10643 = vunpack.c.l.b16 %v10551
    %v10644 = vunpack.c.l.b16 %v10554
    %v10645 = vunpack.c.l.b16 %v10558
    %v10646 = vunpack.c.l.b16 %v10561
    %v10647 = vunpack.c.l.b16 %v10565
    %v10648 = vunpack.c.l.b16 %v10568
    %v10649 = vpack.c.b16 %v10586, %v10585
    %v10650 = vpack.c.b16 %v10588, %v10587
    %v10651 = vpack.c.b16 %v10590, %v10589
    %v10652 = vpack.c.b16 %v10592, %v10591
    %v10653 = vpack.c.b16 %v10594, %v10593
    %v10654 = vpack.c.b16 %v10596, %v10595
    %v10655 = vpack.c.b16 %v10598, %v10597
    %v10656 = vpack.c.b16 %v10600, %v10599
    %v10657 = vpack.c.b16 %v10602, %v10601
    %v10658 = vpack.c.b16 %v10604, %v10603
    %v10659 = vpack.c.b16 %v10606, %v10605
    %v10660 = vpack.c.b16 %v10608, %v10607
    %v10661 = vpack.c.b16 %v10610, %v10609
    %v10662 = vpack.c.b16 %v10612, %v10611
    %v10663 = vpack.c.b16 %v10614, %v10613
    %v10664 = vpack.c.b16 %v10616, %v10615
    %v10665 = vpack.c.b16 %v10618, %v10617
    %v10666 = vpack.c.b16 %v10620, %v10619
    %v10667 = vpack.c.b16 %v10622, %v10621
    %v10668 = vpack.c.b16 %v10624, %v10623
    %v10669 = vpack.c.b16 %v10626, %v10625
    %v10670 = vpack.c.b16 %v10628, %v10627
    %v10671 = vpack.c.b16 %v10630, %v10629
    %v10672 = vpack.c.b16 %v10632, %v10631
    %v10673 = vpack.c.b16 %v10634, %v10633
    %v10674 = vpack.c.b16 %v10636, %v10635
    %v10675 = vpack.c.b16 %v10638, %v10637
    %v10676 = vpack.c.b16 %v10640, %v10639
    %v10677 = vpack.c.b16 %v10642, %v10641
    %v10678 = vpack.c.b16 %v10644, %v10643
    %v10679 = vpack.c.b16 %v10646, %v10645
    %v10680 = vpack.c.b16 %v10648, %v10647
    %v10729 = vunpack.c.l.b16 %v10569
    %v10730 = vunpack.c.l.b16 %v10570
    %v10731 = vunpack.c.l.b16 %v10571
    %v10732 = vunpack.c.l.b16 %v10572
    %v10733 = vunpack.c.l.b16 %v10573
    %v10734 = vunpack.c.l.b16 %v10574
    %v10735 = vunpack.c.l.b16 %v10575
    %v10736 = vunpack.c.l.b16 %v10576
    %v10737 = vunpack.c.l.b16 %v10577
    %v10738 = vunpack.c.l.b16 %v10578
    %v10739 = vunpack.c.l.b16 %v10579
    %v10740 = vunpack.c.l.b16 %v10580
    %v10741 = vunpack.c.l.b16 %v10581
    %v10742 = vunpack.c.l.b16 %v10582
    %v10743 = vunpack.c.l.b16 %v10583
    %v10744 = vunpack.c.l.b16 %v10584
    %v10745 = vpack.c.b16 %v10730, %v10729
    %v10746 = vpack.c.b16 %v10732, %v10731
    %v10747 = vpack.c.b16 %v10734, %v10733
    %v10748 = vpack.c.b16 %v10736, %v10735
    %v10749 = vpack.c.b16 %v10738, %v10737
    %v10750 = vpack.c.b16 %v10740, %v10739
    %v10751 = vpack.c.b16 %v10742, %v10741
    %v10752 = vpack.c.b16 %v10744, %v10743
    %10761 = vmatprep.subr.bf16.mxu0 0
    %10762 = vmatpush1.bf16.msra.mxu0 %v10752
    %10763 = vmatprep.subr.bf16.mxu0 0
    %10764 = vmatpush1.bf16.msra.mxu0 %v10751
    %10765 = vmatprep.subr.bf16.mxu0 0
    %10766 = vmatpush1.bf16.msra.mxu0 %v10750
    %10767 = vmatprep.subr.bf16.mxu0 0
    %10768 = vmatpush1.bf16.msra.mxu0 %v10749
    %10769 = vmatprep.subr.bf16.mxu0 0
    %10770 = vmatpush1.bf16.msra.mxu0 %v10748
    %10771 = vmatprep.subr.bf16.mxu0 0
    %10772 = vmatpush1.bf16.msra.mxu0 %v10747
    %10773 = vmatprep.subr.bf16.mxu0 0
    %10774 = vmatpush1.bf16.msra.mxu0 %v10746
    %10775 = vmatprep.subr.bf16.mxu0 0
    %10776 = vmatpush1.bf16.msra.mxu0 %v10745
    %10777 = vmatprep.subr.bf16.mxu0 0
    %10778 = vmatpush2.bf16.msra.mxu0 0
    %10779 = vmatprep.subr.bf16.mxu0 0
    %10780 = vmatpush2.bf16.msra.mxu0 0
    %10781 = vmatprep.subr.bf16.mxu0 0
    %10782 = vmatpush2.bf16.msra.mxu0 0
    %10783 = vmatprep.subr.bf16.mxu0 0
    %10784 = vmatpush2.bf16.msra.mxu0 0
    %10785 = vmatprep.subr.bf16.mxu0 0
    %10786 = vmatpush2.bf16.msra.mxu0 0
    %10787 = vmatprep.subr.bf16.mxu0 0
    %10788 = vmatpush2.bf16.msra.mxu0 0
    %10789 = vmatprep.subr.bf16.mxu0 0
    %10790 = vmatpush2.bf16.msra.mxu0 0
    %10791 = vmatprep.subr.bf16.mxu0 0
    %10792 = vmatpush2.bf16.msra.mxu0 0
    %10793 = vmatprep.mubr.bf16.mxu0 0
    %10794 = vmatmul.mubr.bf16.gmra.mxu0 %v10649
    %v10795 = vpop.f32.mrf.mxu0
    %v10796 = vadd.f32 0.0, %v10795
    %v10797 = vpop.f32.mrf.mxu0
    %v10798 = vpop.f32.mrf.mxu0
    %v10799 = vadd.f32 0.0, %v10798
    %v10800 = vpop.f32.mrf.mxu0
    %10801 = vmatprep.mubr.bf16.mxu0 0
    %10802 = vmatmul.mubr.bf16.gmra.mxu0 %v10650
    %v10803 = vpop.f32.mrf.mxu0
    %v10804 = vadd.f32 0.0, %v10803
    %v10805 = vpop.f32.mrf.mxu0
    %v10806 = vpop.f32.mrf.mxu0
    %v10807 = vadd.f32 0.0, %v10806
    %v10808 = vpop.f32.mrf.mxu0
    %10809 = vmatprep.mubr.bf16.mxu0 0
    %10810 = vmatmul.mubr.bf16.gmra.mxu0 %v10651
    %v10811 = vpop.f32.mrf.mxu0
    %v10812 = vadd.f32 0.0, %v10811
    %v10813 = vpop.f32.mrf.mxu0
    %v10814 = vpop.f32.mrf.mxu0
    %v10815 = vadd.f32 0.0, %v10814
    %v10816 = vpop.f32.mrf.mxu0
    %10817 = vmatprep.mubr.bf16.mxu0 0
    %10818 = vmatmul.mubr.bf16.gmra.mxu0 %v10652
    %v10819 = vpop.f32.mrf.mxu0
    %v10820 = vadd.f32 0.0, %v10819
    %v10821 = vpop.f32.mrf.mxu0
    %v10822 = vpop.f32.mrf.mxu0
    %v10823 = vadd.f32 0.0, %v10822
    %v10824 = vpop.f32.mrf.mxu0
    %10825 = vmatprep.mubr.bf16.mxu0 0
    %10826 = vmatmul.mubr.bf16.gmra.mxu0 %v10653
    %v10827 = vpop.f32.mrf.mxu0
    %v10828 = vadd.f32 0.0, %v10827
    %v10829 = vpop.f32.mrf.mxu0
    %v10830 = vpop.f32.mrf.mxu0
    %v10831 = vadd.f32 0.0, %v10830
    %v10832 = vpop.f32.mrf.mxu0
    %10833 = vmatprep.mubr.bf16.mxu0 0
    %10834 = vmatmul.mubr.bf16.gmra.mxu0 %v10654
    %v10835 = vpop.f32.mrf.mxu0
    %v10836 = vadd.f32 0.0, %v10835
    %v10837 = vpop.f32.mrf.mxu0
    %v10838 = vpop.f32.mrf.mxu0
    %v10839 = vadd.f32 0.0, %v10838
    %v10840 = vpop.f32.mrf.mxu0
    %10841 = vmatprep.mubr.bf16.mxu0 0
    %10842 = vmatmul.mubr.bf16.gmra.mxu0 %v10655
    %v10843 = vpop.f32.mrf.mxu0
    %v10844 = vadd.f32 0.0, %v10843
    %v10845 = vpop.f32.mrf.mxu0
    %v10846 = vpop.f32.mrf.mxu0
    %v10847 = vadd.f32 0.0, %v10846
    %v10848 = vpop.f32.mrf.mxu0
    %10849 = vmatprep.mubr.bf16.mxu0 0
    %10850 = vmatmul.mubr.bf16.gmra.mxu0 %v10656
    %v10851 = vpop.f32.mrf.mxu0
    %v10852 = vadd.f32 0.0, %v10851
    %v10853 = vpop.f32.mrf.mxu0
    %v10854 = vpop.f32.mrf.mxu0
    %v10855 = vadd.f32 0.0, %v10854
    %v10856 = vpop.f32.mrf.mxu0
    %10857 = vmatprep.mubr.bf16.mxu0 0
    %10858 = vmatmul.mubr.bf16.gmra.mxu0 %v10657
    %v10859 = vpop.f32.mrf.mxu0
    %v10860 = vadd.f32 0.0, %v10859
    %v10861 = vpop.f32.mrf.mxu0
    %v10862 = vpop.f32.mrf.mxu0
    %v10863 = vadd.f32 0.0, %v10862
    %v10864 = vpop.f32.mrf.mxu0
    %10865 = vmatprep.mubr.bf16.mxu0 0
    %10866 = vmatmul.mubr.bf16.gmra.mxu0 %v10658
    %v10867 = vpop.f32.mrf.mxu0
    %v10868 = vadd.f32 0.0, %v10867
    %v10869 = vpop.f32.mrf.mxu0
    %v10870 = vpop.f32.mrf.mxu0
    %v10871 = vadd.f32 0.0, %v10870
    %v10872 = vpop.f32.mrf.mxu0
    %10873 = vmatprep.mubr.bf16.mxu0 0
    %10874 = vmatmul.mubr.bf16.gmra.mxu0 %v10659
    %v10875 = vpop.f32.mrf.mxu0
    %v10876 = vadd.f32 0.0, %v10875
    %v10877 = vpop.f32.mrf.mxu0
    %v10878 = vpop.f32.mrf.mxu0
    %v10879 = vadd.f32 0.0, %v10878
    %v10880 = vpop.f32.mrf.mxu0
    %10881 = vmatprep.mubr.bf16.mxu0 0
    %10882 = vmatmul.mubr.bf16.gmra.mxu0 %v10660
    %v10883 = vpop.f32.mrf.mxu0
    %v10884 = vadd.f32 0.0, %v10883
    %v10885 = vpop.f32.mrf.mxu0
    %v10886 = vpop.f32.mrf.mxu0
    %v10887 = vadd.f32 0.0, %v10886
    %v10888 = vpop.f32.mrf.mxu0
    %10889 = vmatprep.mubr.bf16.mxu0 0
    %10890 = vmatmul.mubr.bf16.gmra.mxu0 %v10661
    %v10891 = vpop.f32.mrf.mxu0
    %v10892 = vadd.f32 0.0, %v10891
    %v10893 = vpop.f32.mrf.mxu0
    %v10894 = vpop.f32.mrf.mxu0
    %v10895 = vadd.f32 0.0, %v10894
    %v10896 = vpop.f32.mrf.mxu0
    %10897 = vmatprep.mubr.bf16.mxu0 0
    %10898 = vmatmul.mubr.bf16.gmra.mxu0 %v10662
    %v10899 = vpop.f32.mrf.mxu0
    %v10900 = vadd.f32 0.0, %v10899
    %v10901 = vpop.f32.mrf.mxu0
    %v10902 = vpop.f32.mrf.mxu0
    %v10903 = vadd.f32 0.0, %v10902
    %v10904 = vpop.f32.mrf.mxu0
    %10905 = vmatprep.mubr.bf16.mxu0 0
    %10906 = vmatmul.mubr.bf16.gmra.mxu0 %v10663
    %v10907 = vpop.f32.mrf.mxu0
    %v10908 = vadd.f32 0.0, %v10907
    %v10909 = vpop.f32.mrf.mxu0
    %v10910 = vpop.f32.mrf.mxu0
    %v10911 = vadd.f32 0.0, %v10910
    %v10912 = vpop.f32.mrf.mxu0
    %10913 = vmatprep.mubr.bf16.mxu0 0
    %10914 = vmatmul.mubr.bf16.gmra.mxu0 %v10664
    %v10915 = vpop.f32.mrf.mxu0
    %v10916 = vadd.f32 0.0, %v10915
    %v10917 = vpop.f32.mrf.mxu0
    %v10918 = vpop.f32.mrf.mxu0
    %v10919 = vadd.f32 0.0, %v10918
    %v10920 = vpop.f32.mrf.mxu0
    %10921 = vmatprep.mubr.bf16.mxu0 0
    %10922 = vmatmul.mubr.bf16.gmra.mxu0 %v10665
    %v10923 = vpop.f32.mrf.mxu0
    %v10924 = vadd.f32 0.0, %v10923
    %v10925 = vpop.f32.mrf.mxu0
    %v10926 = vpop.f32.mrf.mxu0
    %v10927 = vadd.f32 0.0, %v10926
    %v10928 = vpop.f32.mrf.mxu0
    %10929 = vmatprep.mubr.bf16.mxu0 0
    %10930 = vmatmul.mubr.bf16.gmra.mxu0 %v10666
    %v10931 = vpop.f32.mrf.mxu0
    %v10932 = vadd.f32 0.0, %v10931
    %v10933 = vpop.f32.mrf.mxu0
    %v10934 = vpop.f32.mrf.mxu0
    %v10935 = vadd.f32 0.0, %v10934
    %v10936 = vpop.f32.mrf.mxu0
    %10937 = vmatprep.mubr.bf16.mxu0 0
    %10938 = vmatmul.mubr.bf16.gmra.mxu0 %v10667
    %v10939 = vpop.f32.mrf.mxu0
    %v10940 = vadd.f32 0.0, %v10939
    %v10941 = vpop.f32.mrf.mxu0
    %v10942 = vpop.f32.mrf.mxu0
    %v10943 = vadd.f32 0.0, %v10942
    %v10944 = vpop.f32.mrf.mxu0
    %10945 = vmatprep.mubr.bf16.mxu0 0
    %10946 = vmatmul.mubr.bf16.gmra.mxu0 %v10668
    %v10947 = vpop.f32.mrf.mxu0
    %v10948 = vadd.f32 0.0, %v10947
    %v10949 = vpop.f32.mrf.mxu0
    %v10950 = vpop.f32.mrf.mxu0
    %v10951 = vadd.f32 0.0, %v10950
    %v10952 = vpop.f32.mrf.mxu0
    %10953 = vmatprep.mubr.bf16.mxu0 0
    %10954 = vmatmul.mubr.bf16.gmra.mxu0 %v10669
    %v10955 = vpop.f32.mrf.mxu0
    %v10956 = vadd.f32 0.0, %v10955
    %v10957 = vpop.f32.mrf.mxu0
    %v10958 = vpop.f32.mrf.mxu0
    %v10959 = vadd.f32 0.0, %v10958
    %v10960 = vpop.f32.mrf.mxu0
    %10961 = vmatprep.mubr.bf16.mxu0 0
    %10962 = vmatmul.mubr.bf16.gmra.mxu0 %v10670
    %v10963 = vpop.f32.mrf.mxu0
    %v10964 = vadd.f32 0.0, %v10963
    %v10965 = vpop.f32.mrf.mxu0
    %v10966 = vpop.f32.mrf.mxu0
    %v10967 = vadd.f32 0.0, %v10966
    %v10968 = vpop.f32.mrf.mxu0
    %10969 = vmatprep.mubr.bf16.mxu0 0
    %10970 = vmatmul.mubr.bf16.gmra.mxu0 %v10671
    %v10971 = vpop.f32.mrf.mxu0
    %v10972 = vadd.f32 0.0, %v10971
    %v10973 = vpop.f32.mrf.mxu0
    %v10974 = vpop.f32.mrf.mxu0
    %v10975 = vadd.f32 0.0, %v10974
    %v10976 = vpop.f32.mrf.mxu0
    %10977 = vmatprep.mubr.bf16.mxu0 0
    %10978 = vmatmul.mubr.bf16.gmra.mxu0 %v10672
    %v10979 = vpop.f32.mrf.mxu0
    %v10980 = vadd.f32 0.0, %v10979
    %v10981 = vpop.f32.mrf.mxu0
    %v10982 = vpop.f32.mrf.mxu0
    %v10983 = vadd.f32 0.0, %v10982
    %v10984 = vpop.f32.mrf.mxu0
    %10985 = vmatprep.mubr.bf16.mxu0 0
    %10986 = vmatmul.mubr.bf16.gmra.mxu0 %v10673
    %v10987 = vpop.f32.mrf.mxu0
    %v10988 = vadd.f32 0.0, %v10987
    %v10989 = vpop.f32.mrf.mxu0
    %v10990 = vpop.f32.mrf.mxu0
    %v10991 = vadd.f32 0.0, %v10990
    %v10992 = vpop.f32.mrf.mxu0
    %10993 = vmatprep.mubr.bf16.mxu0 0
    %10994 = vmatmul.mubr.bf16.gmra.mxu0 %v10674
    %v10995 = vpop.f32.mrf.mxu0
    %v10996 = vadd.f32 0.0, %v10995
    %v10997 = vpop.f32.mrf.mxu0
    %v10998 = vpop.f32.mrf.mxu0
    %v10999 = vadd.f32 0.0, %v10998
    %v11000 = vpop.f32.mrf.mxu0
    %11001 = vmatprep.mubr.bf16.mxu0 0
    %11002 = vmatmul.mubr.bf16.gmra.mxu0 %v10675
    %v11003 = vpop.f32.mrf.mxu0
    %v11004 = vadd.f32 0.0, %v11003
    %v11005 = vpop.f32.mrf.mxu0
    %v11006 = vpop.f32.mrf.mxu0
    %v11007 = vadd.f32 0.0, %v11006
    %v11008 = vpop.f32.mrf.mxu0
    %11009 = vmatprep.mubr.bf16.mxu0 0
    %11010 = vmatmul.mubr.bf16.gmra.mxu0 %v10676
    %v11011 = vpop.f32.mrf.mxu0
    %v11012 = vadd.f32 0.0, %v11011
    %v11013 = vpop.f32.mrf.mxu0
    %v11014 = vpop.f32.mrf.mxu0
    %v11015 = vadd.f32 0.0, %v11014
    %v11016 = vpop.f32.mrf.mxu0
    %11017 = vmatprep.mubr.bf16.mxu0 0
    %11018 = vmatmul.mubr.bf16.gmra.mxu0 %v10677
    %v11019 = vpop.f32.mrf.mxu0
    %v11020 = vadd.f32 0.0, %v11019
    %v11021 = vpop.f32.mrf.mxu0
    %v11022 = vpop.f32.mrf.mxu0
    %v11023 = vadd.f32 0.0, %v11022
    %v11024 = vpop.f32.mrf.mxu0
    %11025 = vmatprep.mubr.bf16.mxu0 0
    %11026 = vmatmul.mubr.bf16.gmra.mxu0 %v10678
    %v11027 = vpop.f32.mrf.mxu0
    %v11028 = vadd.f32 0.0, %v11027
    %v11029 = vpop.f32.mrf.mxu0
    %v11030 = vpop.f32.mrf.mxu0
    %v11031 = vadd.f32 0.0, %v11030
    %v11032 = vpop.f32.mrf.mxu0
    %11033 = vmatprep.mubr.bf16.mxu0 0
    %11034 = vmatmul.mubr.bf16.gmra.mxu0 %v10679
    %v11035 = vpop.f32.mrf.mxu0
    %v11036 = vadd.f32 0.0, %v11035
    %v11037 = vpop.f32.mrf.mxu0
    %v11038 = vpop.f32.mrf.mxu0
    %v11039 = vadd.f32 0.0, %v11038
    %v11040 = vpop.f32.mrf.mxu0
    %11041 = vmatprep.mubr.bf16.mxu0 0
    %11042 = vmatmul.mubr.bf16.gmra.mxu0 %v10680
    %v11043 = vpop.f32.mrf.mxu0
    %v11044 = vadd.f32 0.0, %v11043
    %v11045 = vpop.f32.mrf.mxu0
    %v11046 = vpop.f32.mrf.mxu0
    %v11047 = vadd.f32 0.0, %v11046
    %v11048 = vpop.f32.mrf.mxu0
    %11049 = vdwg.mxu0
    %v11050 = vadd.f32 %v10153, %v10796
    %v11051 = vadd.f32 %v10154, %v10799
    %v11052 = vadd.f32 %v10155, %v10804
    %v11053 = vadd.f32 %v10156, %v10807
    %v11054 = vadd.f32 %v10157, %v10812
    %v11055 = vadd.f32 %v10158, %v10815
    %v11056 = vadd.f32 %v10159, %v10820
    %v11057 = vadd.f32 %v10160, %v10823
    %v11058 = vadd.f32 %v10161, %v10828
    %v11059 = vadd.f32 %v10162, %v10831
    %v11060 = vadd.f32 %v10163, %v10836
    %v11061 = vadd.f32 %v10164, %v10839
    %v11062 = vadd.f32 %v10165, %v10844
    %v11063 = vadd.f32 %v10166, %v10847
    %v11064 = vadd.f32 %v10167, %v10852
    %v11065 = vadd.f32 %v10168, %v10855
    %v11066 = vadd.f32 %v10169, %v10860
    %v11067 = vadd.f32 %v10170, %v10863
    %v11068 = vadd.f32 %v10171, %v10868
    %v11069 = vadd.f32 %v10172, %v10871
    %v11070 = vadd.f32 %v10173, %v10876
    %v11071 = vadd.f32 %v10174, %v10879
    %v11072 = vadd.f32 %v10175, %v10884
    %v11073 = vadd.f32 %v10176, %v10887
    %v11074 = vadd.f32 %v10177, %v10892
    %v11075 = vadd.f32 %v10178, %v10895
    %v11076 = vadd.f32 %v10179, %v10900
    %v11077 = vadd.f32 %v10180, %v10903
    %v11078 = vadd.f32 %v10181, %v10908
    %v11079 = vadd.f32 %v10182, %v10911
    %v11080 = vadd.f32 %v10183, %v10916
    %v11081 = vadd.f32 %v10184, %v10919
    %v11082 = vadd.f32 %v10185, %v10924
    %v11083 = vadd.f32 %v10186, %v10927
    %v11084 = vadd.f32 %v10187, %v10932
    %v11085 = vadd.f32 %v10188, %v10935
    %v11086 = vadd.f32 %v10189, %v10940
    %v11087 = vadd.f32 %v10190, %v10943
    %v11088 = vadd.f32 %v10191, %v10948
    %v11089 = vadd.f32 %v10192, %v10951
    %v11090 = vadd.f32 %v10193, %v10956
    %v11091 = vadd.f32 %v10194, %v10959
    %v11092 = vadd.f32 %v10195, %v10964
    %v11093 = vadd.f32 %v10196, %v10967
    %v11094 = vadd.f32 %v10197, %v10972
    %v11095 = vadd.f32 %v10198, %v10975
    %v11096 = vadd.f32 %v10199, %v10980
    %v11097 = vadd.f32 %v10200, %v10983
    %v11098 = vadd.f32 %v10201, %v10988
    %v11099 = vadd.f32 %v10202, %v10991
    %v11100 = vadd.f32 %v10203, %v10996
    %v11101 = vadd.f32 %v10204, %v10999
    %v11102 = vadd.f32 %v10205, %v11004
    %v11103 = vadd.f32 %v10206, %v11007
    %v11104 = vadd.f32 %v10207, %v11012
    %v11105 = vadd.f32 %v10208, %v11015
    %v11106 = vadd.f32 %v10209, %v11020
    %v11107 = vadd.f32 %v10210, %v11023
    %v11108 = vadd.f32 %v10211, %v11028
    %v11109 = vadd.f32 %v10212, %v11031
    %v11110 = vadd.f32 %v10213, %v11036
    %v11111 = vadd.f32 %v10214, %v11039
    %v11112 = vadd.f32 %v10215, %v11044
    %v11113 = vadd.f32 %v10216, %v11047
    %v11114 = vld [vmem:[%s6] sm:$0x1]
    %v11115 = vld [vmem:[%s7] sm:$0x1]
    %v11116 = vadd.f32 %v11050, %v11051
    %v11117 = vadd.f32 %v11116, %v11052
    %v11118 = vadd.f32 %v11117, %v11053
    %v11119 = vadd.f32 %v11118, %v11054
    %v11120 = vadd.f32 %v11119, %v11055
    %v11121 = vadd.f32 %v11120, %v11056
    %v11122 = vadd.f32 %v11121, %v11057
    %v11123 = vadd.f32 %v11122, %v11058
    %v11124 = vadd.f32 %v11123, %v11059
    %v11125 = vadd.f32 %v11124, %v11060
    %v11126 = vadd.f32 %v11125, %v11061
    %v11127 = vadd.f32 %v11126, %v11062
    %v11128 = vadd.f32 %v11127, %v11063
    %v11129 = vadd.f32 %v11128, %v11064
    %v11130 = vadd.f32 %v11129, %v11065
    %v11131 = vadd.f32 %v11130, %v11066
    %v11132 = vadd.f32 %v11131, %v11067
    %v11133 = vadd.f32 %v11132, %v11068
    %v11134 = vadd.f32 %v11133, %v11069
    %v11135 = vadd.f32 %v11134, %v11070
    %v11136 = vadd.f32 %v11135, %v11071
    %v11137 = vadd.f32 %v11136, %v11072
    %v11138 = vadd.f32 %v11137, %v11073
    %v11139 = vadd.f32 %v11138, %v11074
    %v11140 = vadd.f32 %v11139, %v11075
    %v11141 = vadd.f32 %v11140, %v11076
    %v11142 = vadd.f32 %v11141, %v11077
    %v11143 = vadd.f32 %v11142, %v11078
    %v11144 = vadd.f32 %v11143, %v11079
    %v11145 = vadd.f32 %v11144, %v11080
    %v11146 = vadd.f32 %v11145, %v11081
    %v11147 = vadd.f32 %v11146, %v11082
    %v11148 = vadd.f32 %v11147, %v11083
    %v11149 = vadd.f32 %v11148, %v11084
    %v11150 = vadd.f32 %v11149, %v11085
    %v11151 = vadd.f32 %v11150, %v11086
    %v11152 = vadd.f32 %v11151, %v11087
    %v11153 = vadd.f32 %v11152, %v11088
    %v11154 = vadd.f32 %v11153, %v11089
    %v11155 = vadd.f32 %v11154, %v11090
    %v11156 = vadd.f32 %v11155, %v11091
    %v11157 = vadd.f32 %v11156, %v11092
    %v11158 = vadd.f32 %v11157, %v11093
    %v11159 = vadd.f32 %v11158, %v11094
    %v11160 = vadd.f32 %v11159, %v11095
    %v11161 = vadd.f32 %v11160, %v11096
    %v11162 = vadd.f32 %v11161, %v11097
    %v11163 = vadd.f32 %v11162, %v11098
    %v11164 = vadd.f32 %v11163, %v11099
    %v11165 = vadd.f32 %v11164, %v11100
    %v11166 = vadd.f32 %v11165, %v11101
    %v11167 = vadd.f32 %v11166, %v11102
    %v11168 = vadd.f32 %v11167, %v11103
    %v11169 = vadd.f32 %v11168, %v11104
    %v11170 = vadd.f32 %v11169, %v11105
    %v11171 = vadd.f32 %v11170, %v11106
    %v11172 = vadd.f32 %v11171, %v11107
    %v11173 = vadd.f32 %v11172, %v11108
    %v11174 = vadd.f32 %v11173, %v11109
    %v11175 = vadd.f32 %v11174, %v11110
    %v11176 = vadd.f32 %v11175, %v11111
    %v11177 = vadd.f32 %v11176, %v11112
    %v11178 = vadd.f32 %v11177, %v11113
    %v11179 = vrot.slane %v11178, 4
    %v11180 = vadd.f32 %v11178, %v11179
    %v11181 = vrot.slane %v11180, 2
    %v11182 = vadd.f32 %v11180, %v11181
    %v11183 = vrot.slane %v11182, 1
    %v11184 = vadd.f32 %v11182, %v11183
    %v11185 = vmul.f32 %v11184, 0.001953125
    %v11186 = vmul.f32 %v11050, %v11050
    %v11187 = vmul.f32 %v11051, %v11051
    %v11188 = vmul.f32 %v11052, %v11052
    %v11189 = vmul.f32 %v11053, %v11053
    %v11190 = vmul.f32 %v11054, %v11054
    %v11191 = vmul.f32 %v11055, %v11055
    %v11192 = vmul.f32 %v11056, %v11056
    %v11193 = vmul.f32 %v11057, %v11057
    %v11194 = vmul.f32 %v11058, %v11058
    %v11195 = vmul.f32 %v11059, %v11059
    %v11196 = vmul.f32 %v11060, %v11060
    %v11197 = vmul.f32 %v11061, %v11061
    %v11198 = vmul.f32 %v11062, %v11062
    %v11199 = vmul.f32 %v11063, %v11063
    %v11200 = vmul.f32 %v11064, %v11064
    %v11201 = vmul.f32 %v11065, %v11065
    %v11202 = vmul.f32 %v11066, %v11066
    %v11203 = vmul.f32 %v11067, %v11067
    %v11204 = vmul.f32 %v11068, %v11068
    %v11205 = vmul.f32 %v11069, %v11069
    %v11206 = vmul.f32 %v11070, %v11070
    %v11207 = vmul.f32 %v11071, %v11071
    %v11208 = vmul.f32 %v11072, %v11072
    %v11209 = vmul.f32 %v11073, %v11073
    %v11210 = vmul.f32 %v11074, %v11074
    %v11211 = vmul.f32 %v11075, %v11075
    %v11212 = vmul.f32 %v11076, %v11076
    %v11213 = vmul.f32 %v11077, %v11077
    %v11214 = vmul.f32 %v11078, %v11078
    %v11215 = vmul.f32 %v11079, %v11079
    %v11216 = vmul.f32 %v11080, %v11080
    %v11217 = vmul.f32 %v11081, %v11081
    %v11218 = vmul.f32 %v11082, %v11082
    %v11219 = vmul.f32 %v11083, %v11083
    %v11220 = vmul.f32 %v11084, %v11084
    %v11221 = vmul.f32 %v11085, %v11085
    %v11222 = vmul.f32 %v11086, %v11086
    %v11223 = vmul.f32 %v11087, %v11087
    %v11224 = vmul.f32 %v11088, %v11088
    %v11225 = vmul.f32 %v11089, %v11089
    %v11226 = vmul.f32 %v11090, %v11090
    %v11227 = vmul.f32 %v11091, %v11091
    %v11228 = vmul.f32 %v11092, %v11092
    %v11229 = vmul.f32 %v11093, %v11093
    %v11230 = vmul.f32 %v11094, %v11094
    %v11231 = vmul.f32 %v11095, %v11095
    %v11232 = vmul.f32 %v11096, %v11096
    %v11233 = vmul.f32 %v11097, %v11097
    %v11234 = vmul.f32 %v11098, %v11098
    %v11235 = vmul.f32 %v11099, %v11099
    %v11236 = vmul.f32 %v11100, %v11100
    %v11237 = vmul.f32 %v11101, %v11101
    %v11238 = vmul.f32 %v11102, %v11102
    %v11239 = vmul.f32 %v11103, %v11103
    %v11240 = vmul.f32 %v11104, %v11104
    %v11241 = vmul.f32 %v11105, %v11105
    %v11242 = vmul.f32 %v11106, %v11106
    %v11243 = vmul.f32 %v11107, %v11107
    %v11244 = vmul.f32 %v11108, %v11108
    %v11245 = vmul.f32 %v11109, %v11109
    %v11246 = vmul.f32 %v11110, %v11110
    %v11247 = vmul.f32 %v11111, %v11111
    %v11248 = vmul.f32 %v11112, %v11112
    %v11249 = vmul.f32 %v11113, %v11113
    %v11250 = vadd.f32 %v11186, %v11187
    %v11251 = vadd.f32 %v11250, %v11188
    %v11252 = vadd.f32 %v11251, %v11189
    %v11253 = vadd.f32 %v11252, %v11190
    %v11254 = vadd.f32 %v11253, %v11191
    %v11255 = vadd.f32 %v11254, %v11192
    %v11256 = vadd.f32 %v11255, %v11193
    %v11257 = vadd.f32 %v11256, %v11194
    %v11258 = vadd.f32 %v11257, %v11195
    %v11259 = vadd.f32 %v11258, %v11196
    %v11260 = vadd.f32 %v11259, %v11197
    %v11261 = vadd.f32 %v11260, %v11198
    %v11262 = vadd.f32 %v11261, %v11199
    %v11263 = vadd.f32 %v11262, %v11200
    %v11264 = vadd.f32 %v11263, %v11201
    %v11265 = vadd.f32 %v11264, %v11202
    %v11266 = vadd.f32 %v11265, %v11203
    %v11267 = vadd.f32 %v11266, %v11204
    %v11268 = vadd.f32 %v11267, %v11205
    %v11269 = vadd.f32 %v11268, %v11206
    %v11270 = vadd.f32 %v11269, %v11207
    %v11271 = vadd.f32 %v11270, %v11208
    %v11272 = vadd.f32 %v11271, %v11209
    %v11273 = vadd.f32 %v11272, %v11210
    %v11274 = vadd.f32 %v11273, %v11211
    %v11275 = vadd.f32 %v11274, %v11212
    %v11276 = vadd.f32 %v11275, %v11213
    %v11277 = vadd.f32 %v11276, %v11214
    %v11278 = vadd.f32 %v11277, %v11215
    %v11279 = vadd.f32 %v11278, %v11216
    %v11280 = vadd.f32 %v11279, %v11217
    %v11281 = vadd.f32 %v11280, %v11218
    %v11282 = vadd.f32 %v11281, %v11219
    %v11283 = vadd.f32 %v11282, %v11220
    %v11284 = vadd.f32 %v11283, %v11221
    %v11285 = vadd.f32 %v11284, %v11222
    %v11286 = vadd.f32 %v11285, %v11223
    %v11287 = vadd.f32 %v11286, %v11224
    %v11288 = vadd.f32 %v11287, %v11225
    %v11289 = vadd.f32 %v11288, %v11226
    %v11290 = vadd.f32 %v11289, %v11227
    %v11291 = vadd.f32 %v11290, %v11228
    %v11292 = vadd.f32 %v11291, %v11229
    %v11293 = vadd.f32 %v11292, %v11230
    %v11294 = vadd.f32 %v11293, %v11231
    %v11295 = vadd.f32 %v11294, %v11232
    %v11296 = vadd.f32 %v11295, %v11233
    %v11297 = vadd.f32 %v11296, %v11234
    %v11298 = vadd.f32 %v11297, %v11235
    %v11299 = vadd.f32 %v11298, %v11236
    %v11300 = vadd.f32 %v11299, %v11237
    %v11301 = vadd.f32 %v11300, %v11238
    %v11302 = vadd.f32 %v11301, %v11239
    %v11303 = vadd.f32 %v11302, %v11240
    %v11304 = vadd.f32 %v11303, %v11241
    %v11305 = vadd.f32 %v11304, %v11242
    %v11306 = vadd.f32 %v11305, %v11243
    %v11307 = vadd.f32 %v11306, %v11244
    %v11308 = vadd.f32 %v11307, %v11245
    %v11309 = vadd.f32 %v11308, %v11246
    %v11310 = vadd.f32 %v11309, %v11247
    %v11311 = vadd.f32 %v11310, %v11248
    %v11312 = vadd.f32 %v11311, %v11249
    %v11313 = vrot.slane %v11312, 4
    %v11314 = vadd.f32 %v11312, %v11313
    %v11315 = vrot.slane %v11314, 2
    %v11316 = vadd.f32 %v11314, %v11315
    %v11317 = vrot.slane %v11316, 1
    %v11318 = vadd.f32 %v11316, %v11317
    %v11319 = vmul.f32 %v11318, 0.001953125
    %v11320 = vmul.f32 %v11185, %v11185
    %v11321 = vsub.f32 %v11319, %v11320
    %v11322 = vmax.f32 %v11321, 0.0
    %v11323 = vadd.f32 %v11322, 1e-05
    %v11324 = vrsqrt.pop %v11323
    %v11325 = vmul.f32 %v11114, %v11324
    %v11326 = vmul.f32 %v11185, %v11325
    %v11327 = vsub.f32 %v11115, %v11326
    %v11329 = vlaneseq
    %v11330 = vshrl.u32 %v11329, 7
    %v11331 = vsub.s32 0, %v11330
    %v11332 = vrot.slane %v11325, %v11331
    %v11334 = vmul.f32 %v11050, %v11332
    %v11335 = vmul.f32 %v11051, %v11332
    %v11336 = vmul.f32 %v11052, %v11332
    %v11337 = vmul.f32 %v11053, %v11332
    %v11338 = vmul.f32 %v11054, %v11332
    %v11339 = vmul.f32 %v11055, %v11332
    %v11340 = vmul.f32 %v11056, %v11332
    %v11341 = vmul.f32 %v11057, %v11332
    %v11342 = vmul.f32 %v11058, %v11332
    %v11343 = vmul.f32 %v11059, %v11332
    %v11344 = vmul.f32 %v11060, %v11332
    %v11345 = vmul.f32 %v11061, %v11332
    %v11346 = vmul.f32 %v11062, %v11332
    %v11347 = vmul.f32 %v11063, %v11332
    %v11348 = vmul.f32 %v11064, %v11332
    %v11349 = vmul.f32 %v11065, %v11332
    %v11350 = vmul.f32 %v11066, %v11332
    %v11351 = vmul.f32 %v11067, %v11332
    %v11352 = vmul.f32 %v11068, %v11332
    %v11353 = vmul.f32 %v11069, %v11332
    %v11354 = vmul.f32 %v11070, %v11332
    %v11355 = vmul.f32 %v11071, %v11332
    %v11356 = vmul.f32 %v11072, %v11332
    %v11357 = vmul.f32 %v11073, %v11332
    %v11358 = vmul.f32 %v11074, %v11332
    %v11359 = vmul.f32 %v11075, %v11332
    %v11360 = vmul.f32 %v11076, %v11332
    %v11361 = vmul.f32 %v11077, %v11332
    %v11362 = vmul.f32 %v11078, %v11332
    %v11363 = vmul.f32 %v11079, %v11332
    %v11364 = vmul.f32 %v11080, %v11332
    %v11365 = vmul.f32 %v11081, %v11332
    %v11366 = vmul.f32 %v11082, %v11332
    %v11367 = vmul.f32 %v11083, %v11332
    %v11368 = vmul.f32 %v11084, %v11332
    %v11369 = vmul.f32 %v11085, %v11332
    %v11370 = vmul.f32 %v11086, %v11332
    %v11371 = vmul.f32 %v11087, %v11332
    %v11372 = vmul.f32 %v11088, %v11332
    %v11373 = vmul.f32 %v11089, %v11332
    %v11374 = vmul.f32 %v11090, %v11332
    %v11375 = vmul.f32 %v11091, %v11332
    %v11376 = vmul.f32 %v11092, %v11332
    %v11377 = vmul.f32 %v11093, %v11332
    %v11378 = vmul.f32 %v11094, %v11332
    %v11379 = vmul.f32 %v11095, %v11332
    %v11380 = vmul.f32 %v11096, %v11332
    %v11381 = vmul.f32 %v11097, %v11332
    %v11382 = vmul.f32 %v11098, %v11332
    %v11383 = vmul.f32 %v11099, %v11332
    %v11384 = vmul.f32 %v11100, %v11332
    %v11385 = vmul.f32 %v11101, %v11332
    %v11386 = vmul.f32 %v11102, %v11332
    %v11387 = vmul.f32 %v11103, %v11332
    %v11388 = vmul.f32 %v11104, %v11332
    %v11389 = vmul.f32 %v11105, %v11332
    %v11390 = vmul.f32 %v11106, %v11332
    %v11391 = vmul.f32 %v11107, %v11332
    %v11392 = vmul.f32 %v11108, %v11332
    %v11393 = vmul.f32 %v11109, %v11332
    %v11394 = vmul.f32 %v11110, %v11332
    %v11395 = vmul.f32 %v11111, %v11332
    %v11396 = vmul.f32 %v11112, %v11332
    %v11397 = vmul.f32 %v11113, %v11332
    %v11399 = vlaneseq
    %v11400 = vshrl.u32 %v11399, 7
    %v11401 = vsub.s32 0, %v11400
    %v11402 = vrot.slane %v11327, %v11401
    %v11404 = vadd.f32 %v11334, %v11402
    %v11405 = vadd.f32 %v11335, %v11402
    %v11406 = vadd.f32 %v11336, %v11402
    %v11407 = vadd.f32 %v11337, %v11402
    %v11408 = vadd.f32 %v11338, %v11402
    %v11409 = vadd.f32 %v11339, %v11402
    %v11410 = vadd.f32 %v11340, %v11402
    %v11411 = vadd.f32 %v11341, %v11402
    %v11412 = vadd.f32 %v11342, %v11402
    %v11413 = vadd.f32 %v11343, %v11402
    %v11414 = vadd.f32 %v11344, %v11402
    %v11415 = vadd.f32 %v11345, %v11402
    %v11416 = vadd.f32 %v11346, %v11402
    %v11417 = vadd.f32 %v11347, %v11402
    %v11418 = vadd.f32 %v11348, %v11402
    %v11419 = vadd.f32 %v11349, %v11402
    %v11420 = vadd.f32 %v11350, %v11402
    %v11421 = vadd.f32 %v11351, %v11402
    %v11422 = vadd.f32 %v11352, %v11402
    %v11423 = vadd.f32 %v11353, %v11402
    %v11424 = vadd.f32 %v11354, %v11402
    %v11425 = vadd.f32 %v11355, %v11402
    %v11426 = vadd.f32 %v11356, %v11402
    %v11427 = vadd.f32 %v11357, %v11402
    %v11428 = vadd.f32 %v11358, %v11402
    %v11429 = vadd.f32 %v11359, %v11402
    %v11430 = vadd.f32 %v11360, %v11402
    %v11431 = vadd.f32 %v11361, %v11402
    %v11432 = vadd.f32 %v11362, %v11402
    %v11433 = vadd.f32 %v11363, %v11402
    %v11434 = vadd.f32 %v11364, %v11402
    %v11435 = vadd.f32 %v11365, %v11402
    %v11436 = vadd.f32 %v11366, %v11402
    %v11437 = vadd.f32 %v11367, %v11402
    %v11438 = vadd.f32 %v11368, %v11402
    %v11439 = vadd.f32 %v11369, %v11402
    %v11440 = vadd.f32 %v11370, %v11402
    %v11441 = vadd.f32 %v11371, %v11402
    %v11442 = vadd.f32 %v11372, %v11402
    %v11443 = vadd.f32 %v11373, %v11402
    %v11444 = vadd.f32 %v11374, %v11402
    %v11445 = vadd.f32 %v11375, %v11402
    %v11446 = vadd.f32 %v11376, %v11402
    %v11447 = vadd.f32 %v11377, %v11402
    %v11448 = vadd.f32 %v11378, %v11402
    %v11449 = vadd.f32 %v11379, %v11402
    %v11450 = vadd.f32 %v11380, %v11402
    %v11451 = vadd.f32 %v11381, %v11402
    %v11452 = vadd.f32 %v11382, %v11402
    %v11453 = vadd.f32 %v11383, %v11402
    %v11454 = vadd.f32 %v11384, %v11402
    %v11455 = vadd.f32 %v11385, %v11402
    %v11456 = vadd.f32 %v11386, %v11402
    %v11457 = vadd.f32 %v11387, %v11402
    %v11458 = vadd.f32 %v11388, %v11402
    %v11459 = vadd.f32 %v11389, %v11402
    %v11460 = vadd.f32 %v11390, %v11402
    %v11461 = vadd.f32 %v11391, %v11402
    %v11462 = vadd.f32 %v11392, %v11402
    %v11463 = vadd.f32 %v11393, %v11402
    %v11464 = vadd.f32 %v11394, %v11402
    %v11465 = vadd.f32 %v11395, %v11402
    %v11466 = vadd.f32 %v11396, %v11402
    %v11467 = vadd.f32 %v11397, %v11402
    %v11468 = vmax.f32 %v11404, 0.0
    %v11469 = vmax.f32 %v11405, 0.0
    %v11470 = vmax.f32 %v11406, 0.0
    %v11471 = vmax.f32 %v11407, 0.0
    %v11472 = vmax.f32 %v11408, 0.0
    %v11473 = vmax.f32 %v11409, 0.0
    %v11474 = vmax.f32 %v11410, 0.0
    %v11475 = vmax.f32 %v11411, 0.0
    %v11476 = vmax.f32 %v11412, 0.0
    %v11477 = vmax.f32 %v11413, 0.0
    %v11478 = vmax.f32 %v11414, 0.0
    %v11479 = vmax.f32 %v11415, 0.0
    %v11480 = vmax.f32 %v11416, 0.0
    %v11481 = vmax.f32 %v11417, 0.0
    %v11482 = vmax.f32 %v11418, 0.0
    %v11483 = vmax.f32 %v11419, 0.0
    %v11484 = vmax.f32 %v11420, 0.0
    %v11485 = vmax.f32 %v11421, 0.0
    %v11486 = vmax.f32 %v11422, 0.0
    %v11487 = vmax.f32 %v11423, 0.0
    %v11488 = vmax.f32 %v11424, 0.0
    %v11489 = vmax.f32 %v11425, 0.0
    %v11490 = vmax.f32 %v11426, 0.0
    %v11491 = vmax.f32 %v11427, 0.0
    %v11492 = vmax.f32 %v11428, 0.0
    %v11493 = vmax.f32 %v11429, 0.0
    %v11494 = vmax.f32 %v11430, 0.0
    %v11495 = vmax.f32 %v11431, 0.0
    %v11496 = vmax.f32 %v11432, 0.0
    %v11497 = vmax.f32 %v11433, 0.0
    %v11498 = vmax.f32 %v11434, 0.0
    %v11499 = vmax.f32 %v11435, 0.0
    %v11500 = vmax.f32 %v11436, 0.0
    %v11501 = vmax.f32 %v11437, 0.0
    %v11502 = vmax.f32 %v11438, 0.0
    %v11503 = vmax.f32 %v11439, 0.0
    %v11504 = vmax.f32 %v11440, 0.0
    %v11505 = vmax.f32 %v11441, 0.0
    %v11506 = vmax.f32 %v11442, 0.0
    %v11507 = vmax.f32 %v11443, 0.0
    %v11508 = vmax.f32 %v11444, 0.0
    %v11509 = vmax.f32 %v11445, 0.0
    %v11510 = vmax.f32 %v11446, 0.0
    %v11511 = vmax.f32 %v11447, 0.0
    %v11512 = vmax.f32 %v11448, 0.0
    %v11513 = vmax.f32 %v11449, 0.0
    %v11514 = vmax.f32 %v11450, 0.0
    %v11515 = vmax.f32 %v11451, 0.0
    %v11516 = vmax.f32 %v11452, 0.0
    %v11517 = vmax.f32 %v11453, 0.0
    %v11518 = vmax.f32 %v11454, 0.0
    %v11519 = vmax.f32 %v11455, 0.0
    %v11520 = vmax.f32 %v11456, 0.0
    %v11521 = vmax.f32 %v11457, 0.0
    %v11522 = vmax.f32 %v11458, 0.0
    %v11523 = vmax.f32 %v11459, 0.0
    %v11524 = vmax.f32 %v11460, 0.0
    %v11525 = vmax.f32 %v11461, 0.0
    %v11526 = vmax.f32 %v11462, 0.0
    %v11527 = vmax.f32 %v11463, 0.0
    %v11528 = vmax.f32 %v11464, 0.0
    %v11529 = vmax.f32 %v11465, 0.0
    %v11530 = vmax.f32 %v11466, 0.0
    %v11531 = vmax.f32 %v11467, 0.0
    %v11532 = vpack.c.bf16 %v11469, %v11468
    %v11533 = vpack.c.bf16 %v11471, %v11470
    %v11534 = vpack.c.bf16 %v11473, %v11472
    %v11535 = vpack.c.bf16 %v11475, %v11474
    %v11536 = vpack.c.bf16 %v11477, %v11476
    %v11537 = vpack.c.bf16 %v11479, %v11478
    %v11538 = vpack.c.bf16 %v11481, %v11480
    %v11539 = vpack.c.bf16 %v11483, %v11482
    %v11540 = vpack.c.bf16 %v11485, %v11484
    %v11541 = vpack.c.bf16 %v11487, %v11486
    %v11542 = vpack.c.bf16 %v11489, %v11488
    %v11543 = vpack.c.bf16 %v11491, %v11490
    %v11544 = vpack.c.bf16 %v11493, %v11492
    %v11545 = vpack.c.bf16 %v11495, %v11494
    %v11546 = vpack.c.bf16 %v11497, %v11496
    %v11547 = vpack.c.bf16 %v11499, %v11498
    %v11548 = vpack.c.bf16 %v11501, %v11500
    %v11549 = vpack.c.bf16 %v11503, %v11502
    %v11550 = vpack.c.bf16 %v11505, %v11504
    %v11551 = vpack.c.bf16 %v11507, %v11506
    %v11552 = vpack.c.bf16 %v11509, %v11508
    %v11553 = vpack.c.bf16 %v11511, %v11510
    %v11554 = vpack.c.bf16 %v11513, %v11512
    %v11555 = vpack.c.bf16 %v11515, %v11514
    %v11556 = vpack.c.bf16 %v11517, %v11516
    %v11557 = vpack.c.bf16 %v11519, %v11518
    %v11558 = vpack.c.bf16 %v11521, %v11520
    %v11559 = vpack.c.bf16 %v11523, %v11522
    %v11560 = vpack.c.bf16 %v11525, %v11524
    %v11561 = vpack.c.bf16 %v11527, %v11526
    %v11562 = vpack.c.bf16 %v11529, %v11528
    %v11563 = vpack.c.bf16 %v11531, %v11530
    %v11564 = vld [vmem:[#allocation9] sm:$0xf]
    %v11565 = vld [vmem:[#allocation9 + $0x4] sm:$0xf]
    %v11566 = vld [vmem:[#allocation9 + $0x8] sm:$0xf]
    %v11567 = vld [vmem:[#allocation9 + $0xc] sm:$0xf]
    %v11568 = vld [vmem:[#allocation9 + $0x10] sm:$0xf]
    %v11569 = vld [vmem:[#allocation9 + $0x14] sm:$0xf]
    %v11570 = vld [vmem:[#allocation9 + $0x18] sm:$0xf]
    %v11571 = vld [vmem:[#allocation9 + $0x1c] sm:$0xf]
    %v11572 = vld [vmem:[#allocation9 + $0x20] sm:$0xf]
    %v11573 = vld [vmem:[#allocation9 + $0x24] sm:$0xf]
    %v11574 = vld [vmem:[#allocation9 + $0x28] sm:$0xf]
    %v11575 = vld [vmem:[#allocation9 + $0x2c] sm:$0xf]
    %v11576 = vld [vmem:[#allocation9 + $0x30] sm:$0xf]
    %v11577 = vld [vmem:[#allocation9 + $0x34] sm:$0xf]
    %v11578 = vld [vmem:[#allocation9 + $0x38] sm:$0xf]
    %v11579 = vld [vmem:[#allocation9 + $0x3c] sm:$0xf]
    %v11596 = vunpack.c.l.b16 %v11564
    %v11597 = vunpack.c.l.b16 %v11565
    %v11598 = vunpack.c.l.b16 %v11566
    %v11599 = vunpack.c.l.b16 %v11567
    %v11600 = vunpack.c.l.b16 %v11568
    %v11601 = vunpack.c.l.b16 %v11569
    %v11602 = vunpack.c.l.b16 %v11570
    %v11603 = vunpack.c.l.b16 %v11571
    %v11604 = vunpack.c.l.b16 %v11572
    %v11605 = vunpack.c.l.b16 %v11573
    %v11606 = vunpack.c.l.b16 %v11574
    %v11607 = vunpack.c.l.b16 %v11575
    %v11608 = vunpack.c.l.b16 %v11576
    %v11609 = vunpack.c.l.b16 %v11577
    %v11610 = vunpack.c.l.b16 %v11578
    %v11611 = vunpack.c.l.b16 %v11579
    %v11612 = vpack.c.b16 %v11597, %v11596
    %v11613 = vpack.c.b16 %v11599, %v11598
    %v11614 = vpack.c.b16 %v11601, %v11600
    %v11615 = vpack.c.b16 %v11603, %v11602
    %v11616 = vpack.c.b16 %v11605, %v11604
    %v11617 = vpack.c.b16 %v11607, %v11606
    %v11618 = vpack.c.b16 %v11609, %v11608
    %v11619 = vpack.c.b16 %v11611, %v11610
    %11628 = vmatprep.subr.bf16.mxu0 0
    %11629 = vmatpush1.bf16.msra.mxu0 %v11619
    %11630 = vmatprep.subr.bf16.mxu0 0
    %11631 = vmatpush1.bf16.msra.mxu0 %v11618
    %11632 = vmatprep.subr.bf16.mxu0 0
    %11633 = vmatpush1.bf16.msra.mxu0 %v11617
    %11634 = vmatprep.subr.bf16.mxu0 0
    %11635 = vmatpush1.bf16.msra.mxu0 %v11616
    %11636 = vmatprep.subr.bf16.mxu0 0
    %11637 = vmatpush1.bf16.msra.mxu0 %v11615
    %11638 = vmatprep.subr.bf16.mxu0 0
    %11639 = vmatpush1.bf16.msra.mxu0 %v11614
    %11640 = vmatprep.subr.bf16.mxu0 0
    %11641 = vmatpush1.bf16.msra.mxu0 %v11613
    %11642 = vmatprep.subr.bf16.mxu0 0
    %11643 = vmatpush1.bf16.msra.mxu0 %v11612
    %11644 = vmatprep.subr.bf16.mxu0 0
    %11645 = vmatpush2.bf16.msra.mxu0 0
    %11646 = vmatprep.subr.bf16.mxu0 0
    %11647 = vmatpush2.bf16.msra.mxu0 0
    %11648 = vmatprep.subr.bf16.mxu0 0
    %11649 = vmatpush2.bf16.msra.mxu0 0
    %11650 = vmatprep.subr.bf16.mxu0 0
    %11651 = vmatpush2.bf16.msra.mxu0 0
    %11652 = vmatprep.subr.bf16.mxu0 0
    %11653 = vmatpush2.bf16.msra.mxu0 0
    %11654 = vmatprep.subr.bf16.mxu0 0
    %11655 = vmatpush2.bf16.msra.mxu0 0
    %11656 = vmatprep.subr.bf16.mxu0 0
    %11657 = vmatpush2.bf16.msra.mxu0 0
    %11658 = vmatprep.subr.bf16.mxu0 0
    %11659 = vmatpush2.bf16.msra.mxu0 0
    %11660 = vmatprep.mubr.bf16.mxu0 0
    %11661 = vmatmul.mubr.bf16.gmra.mxu0 %v11532
    %v11662 = vpop.f32.mrf.mxu0
    %v11663 = vadd.f32 0.0, %v11662
    %v11664 = vpop.f32.mrf.mxu0
    %v11665 = vpop.f32.mrf.mxu0
    %v11666 = vadd.f32 0.0, %v11665
    %v11667 = vpop.f32.mrf.mxu0
    %11668 = vmatprep.mubr.bf16.mxu0 0
    %11669 = vmatmul.mubr.bf16.gmra.mxu0 %v11533
    %v11670 = vpop.f32.mrf.mxu0
    %v11671 = vadd.f32 0.0, %v11670
    %v11672 = vpop.f32.mrf.mxu0
    %v11673 = vpop.f32.mrf.mxu0
    %v11674 = vadd.f32 0.0, %v11673
    %v11675 = vpop.f32.mrf.mxu0
    %11676 = vmatprep.mubr.bf16.mxu0 0
    %11677 = vmatmul.mubr.bf16.gmra.mxu0 %v11534
    %v11678 = vpop.f32.mrf.mxu0
    %v11679 = vadd.f32 0.0, %v11678
    %v11680 = vpop.f32.mrf.mxu0
    %v11681 = vpop.f32.mrf.mxu0
    %v11682 = vadd.f32 0.0, %v11681
    %v11683 = vpop.f32.mrf.mxu0
    %11684 = vmatprep.mubr.bf16.mxu0 0
    %11685 = vmatmul.mubr.bf16.gmra.mxu0 %v11535
    %v11686 = vpop.f32.mrf.mxu0
    %v11687 = vadd.f32 0.0, %v11686
    %v11688 = vpop.f32.mrf.mxu0
    %v11689 = vpop.f32.mrf.mxu0
    %v11690 = vadd.f32 0.0, %v11689
    %v11691 = vpop.f32.mrf.mxu0
    %11692 = vmatprep.mubr.bf16.mxu0 0
    %11693 = vmatmul.mubr.bf16.gmra.mxu0 %v11536
    %v11694 = vpop.f32.mrf.mxu0
    %v11695 = vadd.f32 0.0, %v11694
    %v11696 = vpop.f32.mrf.mxu0
    %v11697 = vpop.f32.mrf.mxu0
    %v11698 = vadd.f32 0.0, %v11697
    %v11699 = vpop.f32.mrf.mxu0
    %11700 = vmatprep.mubr.bf16.mxu0 0
    %11701 = vmatmul.mubr.bf16.gmra.mxu0 %v11537
    %v11702 = vpop.f32.mrf.mxu0
    %v11703 = vadd.f32 0.0, %v11702
    %v11704 = vpop.f32.mrf.mxu0
    %v11705 = vpop.f32.mrf.mxu0
    %v11706 = vadd.f32 0.0, %v11705
    %v11707 = vpop.f32.mrf.mxu0
    %11708 = vmatprep.mubr.bf16.mxu0 0
    %11709 = vmatmul.mubr.bf16.gmra.mxu0 %v11538
    %v11710 = vpop.f32.mrf.mxu0
    %v11711 = vadd.f32 0.0, %v11710
    %v11712 = vpop.f32.mrf.mxu0
    %v11713 = vpop.f32.mrf.mxu0
    %v11714 = vadd.f32 0.0, %v11713
    %v11715 = vpop.f32.mrf.mxu0
    %11716 = vmatprep.mubr.bf16.mxu0 0
    %11717 = vmatmul.mubr.bf16.gmra.mxu0 %v11539
    %v11718 = vpop.f32.mrf.mxu0
    %v11719 = vadd.f32 0.0, %v11718
    %v11720 = vpop.f32.mrf.mxu0
    %v11721 = vpop.f32.mrf.mxu0
    %v11722 = vadd.f32 0.0, %v11721
    %v11723 = vpop.f32.mrf.mxu0
    %11724 = vmatprep.mubr.bf16.mxu0 0
    %11725 = vmatmul.mubr.bf16.gmra.mxu0 %v11540
    %v11726 = vpop.f32.mrf.mxu0
    %v11727 = vadd.f32 0.0, %v11726
    %v11728 = vpop.f32.mrf.mxu0
    %v11729 = vpop.f32.mrf.mxu0
    %v11730 = vadd.f32 0.0, %v11729
    %v11731 = vpop.f32.mrf.mxu0
    %11732 = vmatprep.mubr.bf16.mxu0 0
    %11733 = vmatmul.mubr.bf16.gmra.mxu0 %v11541
    %v11734 = vpop.f32.mrf.mxu0
    %v11735 = vadd.f32 0.0, %v11734
    %v11736 = vpop.f32.mrf.mxu0
    %v11737 = vpop.f32.mrf.mxu0
    %v11738 = vadd.f32 0.0, %v11737
    %v11739 = vpop.f32.mrf.mxu0
    %11740 = vmatprep.mubr.bf16.mxu0 0
    %11741 = vmatmul.mubr.bf16.gmra.mxu0 %v11542
    %v11742 = vpop.f32.mrf.mxu0
    %v11743 = vadd.f32 0.0, %v11742
    %v11744 = vpop.f32.mrf.mxu0
    %v11745 = vpop.f32.mrf.mxu0
    %v11746 = vadd.f32 0.0, %v11745
    %v11747 = vpop.f32.mrf.mxu0
    %11748 = vmatprep.mubr.bf16.mxu0 0
    %11749 = vmatmul.mubr.bf16.gmra.mxu0 %v11543
    %v11750 = vpop.f32.mrf.mxu0
    %v11751 = vadd.f32 0.0, %v11750
    %v11752 = vpop.f32.mrf.mxu0
    %v11753 = vpop.f32.mrf.mxu0
    %v11754 = vadd.f32 0.0, %v11753
    %v11755 = vpop.f32.mrf.mxu0
    %11756 = vmatprep.mubr.bf16.mxu0 0
    %11757 = vmatmul.mubr.bf16.gmra.mxu0 %v11544
    %v11758 = vpop.f32.mrf.mxu0
    %v11759 = vadd.f32 0.0, %v11758
    %v11760 = vpop.f32.mrf.mxu0
    %v11761 = vpop.f32.mrf.mxu0
    %v11762 = vadd.f32 0.0, %v11761
    %v11763 = vpop.f32.mrf.mxu0
    %11764 = vmatprep.mubr.bf16.mxu0 0
    %11765 = vmatmul.mubr.bf16.gmra.mxu0 %v11545
    %v11766 = vpop.f32.mrf.mxu0
    %v11767 = vadd.f32 0.0, %v11766
    %v11768 = vpop.f32.mrf.mxu0
    %v11769 = vpop.f32.mrf.mxu0
    %v11770 = vadd.f32 0.0, %v11769
    %v11771 = vpop.f32.mrf.mxu0
    %11772 = vmatprep.mubr.bf16.mxu0 0
    %11773 = vmatmul.mubr.bf16.gmra.mxu0 %v11546
    %v11774 = vpop.f32.mrf.mxu0
    %v11775 = vadd.f32 0.0, %v11774
    %v11776 = vpop.f32.mrf.mxu0
    %v11777 = vpop.f32.mrf.mxu0
    %v11778 = vadd.f32 0.0, %v11777
    %v11779 = vpop.f32.mrf.mxu0
    %11780 = vmatprep.mubr.bf16.mxu0 0
    %11781 = vmatmul.mubr.bf16.gmra.mxu0 %v11547
    %v11782 = vpop.f32.mrf.mxu0
    %v11783 = vadd.f32 0.0, %v11782
    %v11784 = vpop.f32.mrf.mxu0
    %v11785 = vpop.f32.mrf.mxu0
    %v11786 = vadd.f32 0.0, %v11785
    %v11787 = vpop.f32.mrf.mxu0
    %11788 = vmatprep.mubr.bf16.mxu0 0
    %11789 = vmatmul.mubr.bf16.gmra.mxu0 %v11548
    %v11790 = vpop.f32.mrf.mxu0
    %v11791 = vadd.f32 0.0, %v11790
    %v11792 = vpop.f32.mrf.mxu0
    %v11793 = vpop.f32.mrf.mxu0
    %v11794 = vadd.f32 0.0, %v11793
    %v11795 = vpop.f32.mrf.mxu0
    %11796 = vmatprep.mubr.bf16.mxu0 0
    %11797 = vmatmul.mubr.bf16.gmra.mxu0 %v11549
    %v11798 = vpop.f32.mrf.mxu0
    %v11799 = vadd.f32 0.0, %v11798
    %v11800 = vpop.f32.mrf.mxu0
    %v11801 = vpop.f32.mrf.mxu0
    %v11802 = vadd.f32 0.0, %v11801
    %v11803 = vpop.f32.mrf.mxu0
    %11804 = vmatprep.mubr.bf16.mxu0 0
    %11805 = vmatmul.mubr.bf16.gmra.mxu0 %v11550
    %v11806 = vpop.f32.mrf.mxu0
    %v11807 = vadd.f32 0.0, %v11806
    %v11808 = vpop.f32.mrf.mxu0
    %v11809 = vpop.f32.mrf.mxu0
    %v11810 = vadd.f32 0.0, %v11809
    %v11811 = vpop.f32.mrf.mxu0
    %11812 = vmatprep.mubr.bf16.mxu0 0
    %11813 = vmatmul.mubr.bf16.gmra.mxu0 %v11551
    %v11814 = vpop.f32.mrf.mxu0
    %v11815 = vadd.f32 0.0, %v11814
    %v11816 = vpop.f32.mrf.mxu0
    %v11817 = vpop.f32.mrf.mxu0
    %v11818 = vadd.f32 0.0, %v11817
    %v11819 = vpop.f32.mrf.mxu0
    %11820 = vmatprep.mubr.bf16.mxu0 0
    %11821 = vmatmul.mubr.bf16.gmra.mxu0 %v11552
    %v11822 = vpop.f32.mrf.mxu0
    %v11823 = vadd.f32 0.0, %v11822
    %v11824 = vpop.f32.mrf.mxu0
    %v11825 = vpop.f32.mrf.mxu0
    %v11826 = vadd.f32 0.0, %v11825
    %v11827 = vpop.f32.mrf.mxu0
    %11828 = vmatprep.mubr.bf16.mxu0 0
    %11829 = vmatmul.mubr.bf16.gmra.mxu0 %v11553
    %v11830 = vpop.f32.mrf.mxu0
    %v11831 = vadd.f32 0.0, %v11830
    %v11832 = vpop.f32.mrf.mxu0
    %v11833 = vpop.f32.mrf.mxu0
    %v11834 = vadd.f32 0.0, %v11833
    %v11835 = vpop.f32.mrf.mxu0
    %11836 = vmatprep.mubr.bf16.mxu0 0
    %11837 = vmatmul.mubr.bf16.gmra.mxu0 %v11554
    %v11838 = vpop.f32.mrf.mxu0
    %v11839 = vadd.f32 0.0, %v11838
    %v11840 = vpop.f32.mrf.mxu0
    %v11841 = vpop.f32.mrf.mxu0
    %v11842 = vadd.f32 0.0, %v11841
    %v11843 = vpop.f32.mrf.mxu0
    %11844 = vmatprep.mubr.bf16.mxu0 0
    %11845 = vmatmul.mubr.bf16.gmra.mxu0 %v11555
    %v11846 = vpop.f32.mrf.mxu0
    %v11847 = vadd.f32 0.0, %v11846
    %v11848 = vpop.f32.mrf.mxu0
    %v11849 = vpop.f32.mrf.mxu0
    %v11850 = vadd.f32 0.0, %v11849
    %v11851 = vpop.f32.mrf.mxu0
    %11852 = vmatprep.mubr.bf16.mxu0 0
    %11853 = vmatmul.mubr.bf16.gmra.mxu0 %v11556
    %v11854 = vpop.f32.mrf.mxu0
    %v11855 = vadd.f32 0.0, %v11854
    %v11856 = vpop.f32.mrf.mxu0
    %v11857 = vpop.f32.mrf.mxu0
    %v11858 = vadd.f32 0.0, %v11857
    %v11859 = vpop.f32.mrf.mxu0
    %11860 = vmatprep.mubr.bf16.mxu0 0
    %11861 = vmatmul.mubr.bf16.gmra.mxu0 %v11557
    %v11862 = vpop.f32.mrf.mxu0
    %v11863 = vadd.f32 0.0, %v11862
    %v11864 = vpop.f32.mrf.mxu0
    %v11865 = vpop.f32.mrf.mxu0
    %v11866 = vadd.f32 0.0, %v11865
    %v11867 = vpop.f32.mrf.mxu0
    %11868 = vmatprep.mubr.bf16.mxu0 0
    %11869 = vmatmul.mubr.bf16.gmra.mxu0 %v11558
    %v11870 = vpop.f32.mrf.mxu0
    %v11871 = vadd.f32 0.0, %v11870
    %v11872 = vpop.f32.mrf.mxu0
    %v11873 = vpop.f32.mrf.mxu0
    %v11874 = vadd.f32 0.0, %v11873
    %v11875 = vpop.f32.mrf.mxu0
    %11876 = vmatprep.mubr.bf16.mxu0 0
    %11877 = vmatmul.mubr.bf16.gmra.mxu0 %v11559
    %v11878 = vpop.f32.mrf.mxu0
    %v11879 = vadd.f32 0.0, %v11878
    %v11880 = vpop.f32.mrf.mxu0
    %v11881 = vpop.f32.mrf.mxu0
    %v11882 = vadd.f32 0.0, %v11881
    %v11883 = vpop.f32.mrf.mxu0
    %11884 = vmatprep.mubr.bf16.mxu0 0
    %11885 = vmatmul.mubr.bf16.gmra.mxu0 %v11560
    %v11886 = vpop.f32.mrf.mxu0
    %v11887 = vadd.f32 0.0, %v11886
    %v11888 = vpop.f32.mrf.mxu0
    %v11889 = vpop.f32.mrf.mxu0
    %v11890 = vadd.f32 0.0, %v11889
    %v11891 = vpop.f32.mrf.mxu0
    %11892 = vmatprep.mubr.bf16.mxu0 0
    %11893 = vmatmul.mubr.bf16.gmra.mxu0 %v11561
    %v11894 = vpop.f32.mrf.mxu0
    %v11895 = vadd.f32 0.0, %v11894
    %v11896 = vpop.f32.mrf.mxu0
    %v11897 = vpop.f32.mrf.mxu0
    %v11898 = vadd.f32 0.0, %v11897
    %v11899 = vpop.f32.mrf.mxu0
    %11900 = vmatprep.mubr.bf16.mxu0 0
    %11901 = vmatmul.mubr.bf16.gmra.mxu0 %v11562
    %v11902 = vpop.f32.mrf.mxu0
    %v11903 = vadd.f32 0.0, %v11902
    %v11904 = vpop.f32.mrf.mxu0
    %v11905 = vpop.f32.mrf.mxu0
    %v11906 = vadd.f32 0.0, %v11905
    %v11907 = vpop.f32.mrf.mxu0
    %11908 = vmatprep.mubr.bf16.mxu0 0
    %11909 = vmatmul.mubr.bf16.gmra.mxu0 %v11563
    %v11910 = vpop.f32.mrf.mxu0
    %v11911 = vadd.f32 0.0, %v11910
    %v11912 = vpop.f32.mrf.mxu0
    %v11913 = vpop.f32.mrf.mxu0
    %v11914 = vadd.f32 0.0, %v11913
    %v11915 = vpop.f32.mrf.mxu0
    %11916 = vdwg.mxu0
    %v11917 = vld [vmem:[%s8] sm:$0x1]
    %v11918 = vld [vmem:[%s9] sm:$0x1]
    %v11919 = vadd.f32 %v11663, %v11666
    %v11920 = vadd.f32 %v11919, %v11671
    %v11921 = vadd.f32 %v11920, %v11674
    %v11922 = vadd.f32 %v11921, %v11679
    %v11923 = vadd.f32 %v11922, %v11682
    %v11924 = vadd.f32 %v11923, %v11687
    %v11925 = vadd.f32 %v11924, %v11690
    %v11926 = vadd.f32 %v11925, %v11695
    %v11927 = vadd.f32 %v11926, %v11698
    %v11928 = vadd.f32 %v11927, %v11703
    %v11929 = vadd.f32 %v11928, %v11706
    %v11930 = vadd.f32 %v11929, %v11711
    %v11931 = vadd.f32 %v11930, %v11714
    %v11932 = vadd.f32 %v11931, %v11719
    %v11933 = vadd.f32 %v11932, %v11722
    %v11934 = vadd.f32 %v11933, %v11727
    %v11935 = vadd.f32 %v11934, %v11730
    %v11936 = vadd.f32 %v11935, %v11735
    %v11937 = vadd.f32 %v11936, %v11738
    %v11938 = vadd.f32 %v11937, %v11743
    %v11939 = vadd.f32 %v11938, %v11746
    %v11940 = vadd.f32 %v11939, %v11751
    %v11941 = vadd.f32 %v11940, %v11754
    %v11942 = vadd.f32 %v11941, %v11759
    %v11943 = vadd.f32 %v11942, %v11762
    %v11944 = vadd.f32 %v11943, %v11767
    %v11945 = vadd.f32 %v11944, %v11770
    %v11946 = vadd.f32 %v11945, %v11775
    %v11947 = vadd.f32 %v11946, %v11778
    %v11948 = vadd.f32 %v11947, %v11783
    %v11949 = vadd.f32 %v11948, %v11786
    %v11950 = vadd.f32 %v11949, %v11791
    %v11951 = vadd.f32 %v11950, %v11794
    %v11952 = vadd.f32 %v11951, %v11799
    %v11953 = vadd.f32 %v11952, %v11802
    %v11954 = vadd.f32 %v11953, %v11807
    %v11955 = vadd.f32 %v11954, %v11810
    %v11956 = vadd.f32 %v11955, %v11815
    %v11957 = vadd.f32 %v11956, %v11818
    %v11958 = vadd.f32 %v11957, %v11823
    %v11959 = vadd.f32 %v11958, %v11826
    %v11960 = vadd.f32 %v11959, %v11831
    %v11961 = vadd.f32 %v11960, %v11834
    %v11962 = vadd.f32 %v11961, %v11839
    %v11963 = vadd.f32 %v11962, %v11842
    %v11964 = vadd.f32 %v11963, %v11847
    %v11965 = vadd.f32 %v11964, %v11850
    %v11966 = vadd.f32 %v11965, %v11855
    %v11967 = vadd.f32 %v11966, %v11858
    %v11968 = vadd.f32 %v11967, %v11863
    %v11969 = vadd.f32 %v11968, %v11866
    %v11970 = vadd.f32 %v11969, %v11871
    %v11971 = vadd.f32 %v11970, %v11874
    %v11972 = vadd.f32 %v11971, %v11879
    %v11973 = vadd.f32 %v11972, %v11882
    %v11974 = vadd.f32 %v11973, %v11887
    %v11975 = vadd.f32 %v11974, %v11890
    %v11976 = vadd.f32 %v11975, %v11895
    %v11977 = vadd.f32 %v11976, %v11898
    %v11978 = vadd.f32 %v11977, %v11903
    %v11979 = vadd.f32 %v11978, %v11906
    %v11980 = vadd.f32 %v11979, %v11911
    %v11981 = vadd.f32 %v11980, %v11914
    %v11982 = vrot.slane %v11981, 4
    %v11983 = vadd.f32 %v11981, %v11982
    %v11984 = vrot.slane %v11983, 2
    %v11985 = vadd.f32 %v11983, %v11984
    %v11986 = vrot.slane %v11985, 1
    %v11987 = vadd.f32 %v11985, %v11986
    %v11988 = vmul.f32 %v11987, 0.001953125
    %v11989 = vmul.f32 %v11663, %v11663
    %v11990 = vmul.f32 %v11666, %v11666
    %v11991 = vmul.f32 %v11671, %v11671
    %v11992 = vmul.f32 %v11674, %v11674
    %v11993 = vmul.f32 %v11679, %v11679
    %v11994 = vmul.f32 %v11682, %v11682
    %v11995 = vmul.f32 %v11687, %v11687
    %v11996 = vmul.f32 %v11690, %v11690
    %v11997 = vmul.f32 %v11695, %v11695
    %v11998 = vmul.f32 %v11698, %v11698
    %v11999 = vmul.f32 %v11703, %v11703
    %v12000 = vmul.f32 %v11706, %v11706
    %v12001 = vmul.f32 %v11711, %v11711
    %v12002 = vmul.f32 %v11714, %v11714
    %v12003 = vmul.f32 %v11719, %v11719
    %v12004 = vmul.f32 %v11722, %v11722
    %v12005 = vmul.f32 %v11727, %v11727
    %v12006 = vmul.f32 %v11730, %v11730
    %v12007 = vmul.f32 %v11735, %v11735
    %v12008 = vmul.f32 %v11738, %v11738
    %v12009 = vmul.f32 %v11743, %v11743
    %v12010 = vmul.f32 %v11746, %v11746
    %v12011 = vmul.f32 %v11751, %v11751
    %v12012 = vmul.f32 %v11754, %v11754
    %v12013 = vmul.f32 %v11759, %v11759
    %v12014 = vmul.f32 %v11762, %v11762
    %v12015 = vmul.f32 %v11767, %v11767
    %v12016 = vmul.f32 %v11770, %v11770
    %v12017 = vmul.f32 %v11775, %v11775
    %v12018 = vmul.f32 %v11778, %v11778
    %v12019 = vmul.f32 %v11783, %v11783
    %v12020 = vmul.f32 %v11786, %v11786
    %v12021 = vmul.f32 %v11791, %v11791
    %v12022 = vmul.f32 %v11794, %v11794
    %v12023 = vmul.f32 %v11799, %v11799
    %v12024 = vmul.f32 %v11802, %v11802
    %v12025 = vmul.f32 %v11807, %v11807
    %v12026 = vmul.f32 %v11810, %v11810
    %v12027 = vmul.f32 %v11815, %v11815
    %v12028 = vmul.f32 %v11818, %v11818
    %v12029 = vmul.f32 %v11823, %v11823
    %v12030 = vmul.f32 %v11826, %v11826
    %v12031 = vmul.f32 %v11831, %v11831
    %v12032 = vmul.f32 %v11834, %v11834
    %v12033 = vmul.f32 %v11839, %v11839
    %v12034 = vmul.f32 %v11842, %v11842
    %v12035 = vmul.f32 %v11847, %v11847
    %v12036 = vmul.f32 %v11850, %v11850
    %v12037 = vmul.f32 %v11855, %v11855
    %v12038 = vmul.f32 %v11858, %v11858
    %v12039 = vmul.f32 %v11863, %v11863
    %v12040 = vmul.f32 %v11866, %v11866
    %v12041 = vmul.f32 %v11871, %v11871
    %v12042 = vmul.f32 %v11874, %v11874
    %v12043 = vmul.f32 %v11879, %v11879
    %v12044 = vmul.f32 %v11882, %v11882
    %v12045 = vmul.f32 %v11887, %v11887
    %v12046 = vmul.f32 %v11890, %v11890
    %v12047 = vmul.f32 %v11895, %v11895
    %v12048 = vmul.f32 %v11898, %v11898
    %v12049 = vmul.f32 %v11903, %v11903
    %v12050 = vmul.f32 %v11906, %v11906
    %v12051 = vmul.f32 %v11911, %v11911
    %v12052 = vmul.f32 %v11914, %v11914
    %v12053 = vadd.f32 %v11989, %v11990
    %v12054 = vadd.f32 %v12053, %v11991
    %v12055 = vadd.f32 %v12054, %v11992
    %v12056 = vadd.f32 %v12055, %v11993
    %v12057 = vadd.f32 %v12056, %v11994
    %v12058 = vadd.f32 %v12057, %v11995
    %v12059 = vadd.f32 %v12058, %v11996
    %v12060 = vadd.f32 %v12059, %v11997
    %v12061 = vadd.f32 %v12060, %v11998
    %v12062 = vadd.f32 %v12061, %v11999
    %v12063 = vadd.f32 %v12062, %v12000
    %v12064 = vadd.f32 %v12063, %v12001
    %v12065 = vadd.f32 %v12064, %v12002
    %v12066 = vadd.f32 %v12065, %v12003
    %v12067 = vadd.f32 %v12066, %v12004
    %v12068 = vadd.f32 %v12067, %v12005
    %v12069 = vadd.f32 %v12068, %v12006
    %v12070 = vadd.f32 %v12069, %v12007
    %v12071 = vadd.f32 %v12070, %v12008
    %v12072 = vadd.f32 %v12071, %v12009
    %v12073 = vadd.f32 %v12072, %v12010
    %v12074 = vadd.f32 %v12073, %v12011
    %v12075 = vadd.f32 %v12074, %v12012
    %v12076 = vadd.f32 %v12075, %v12013
    %v12077 = vadd.f32 %v12076, %v12014
    %v12078 = vadd.f32 %v12077, %v12015
    %v12079 = vadd.f32 %v12078, %v12016
    %v12080 = vadd.f32 %v12079, %v12017
    %v12081 = vadd.f32 %v12080, %v12018
    %v12082 = vadd.f32 %v12081, %v12019
    %v12083 = vadd.f32 %v12082, %v12020
    %v12084 = vadd.f32 %v12083, %v12021
    %v12085 = vadd.f32 %v12084, %v12022
    %v12086 = vadd.f32 %v12085, %v12023
    %v12087 = vadd.f32 %v12086, %v12024
    %v12088 = vadd.f32 %v12087, %v12025
    %v12089 = vadd.f32 %v12088, %v12026
    %v12090 = vadd.f32 %v12089, %v12027
    %v12091 = vadd.f32 %v12090, %v12028
    %v12092 = vadd.f32 %v12091, %v12029
    %v12093 = vadd.f32 %v12092, %v12030
    %v12094 = vadd.f32 %v12093, %v12031
    %v12095 = vadd.f32 %v12094, %v12032
    %v12096 = vadd.f32 %v12095, %v12033
    %v12097 = vadd.f32 %v12096, %v12034
    %v12098 = vadd.f32 %v12097, %v12035
    %v12099 = vadd.f32 %v12098, %v12036
    %v12100 = vadd.f32 %v12099, %v12037
    %v12101 = vadd.f32 %v12100, %v12038
    %v12102 = vadd.f32 %v12101, %v12039
    %v12103 = vadd.f32 %v12102, %v12040
    %v12104 = vadd.f32 %v12103, %v12041
    %v12105 = vadd.f32 %v12104, %v12042
    %v12106 = vadd.f32 %v12105, %v12043
    %v12107 = vadd.f32 %v12106, %v12044
    %v12108 = vadd.f32 %v12107, %v12045
    %v12109 = vadd.f32 %v12108, %v12046
    %v12110 = vadd.f32 %v12109, %v12047
    %v12111 = vadd.f32 %v12110, %v12048
    %v12112 = vadd.f32 %v12111, %v12049
    %v12113 = vadd.f32 %v12112, %v12050
    %v12114 = vadd.f32 %v12113, %v12051
    %v12115 = vadd.f32 %v12114, %v12052
    %v12116 = vrot.slane %v12115, 4
    %v12117 = vadd.f32 %v12115, %v12116
    %v12118 = vrot.slane %v12117, 2
    %v12119 = vadd.f32 %v12117, %v12118
    %v12120 = vrot.slane %v12119, 1
    %v12121 = vadd.f32 %v12119, %v12120
    %v12122 = vmul.f32 %v12121, 0.001953125
    %v12123 = vmul.f32 %v11988, %v11988
    %v12124 = vsub.f32 %v12122, %v12123
    %v12125 = vmax.f32 %v12124, 0.0
    %v12126 = vadd.f32 %v12125, 1e-05
    %v12127 = vrsqrt.pop %v12126
    %v12128 = vmul.f32 %v11917, %v12127
    %v12129 = vmul.f32 %v11988, %v12128
    %v12130 = vsub.f32 %v11918, %v12129
    %v12131 = vld [vmem:[%s10] sm:$0x1]
    %v12132 = vld [vmem:[%s11] sm:$0x1]
    %v12133 = vadd.f32 %v487, %v491
    %v12134 = vadd.f32 %v12133, %v497
    %v12135 = vadd.f32 %v12134, %v501
    %v12136 = vadd.f32 %v12135, %v507
    %v12137 = vadd.f32 %v12136, %v511
    %v12138 = vadd.f32 %v12137, %v517
    %v12139 = vadd.f32 %v12138, %v521
    %v12140 = vadd.f32 %v12139, %v527
    %v12141 = vadd.f32 %v12140, %v531
    %v12142 = vadd.f32 %v12141, %v537
    %v12143 = vadd.f32 %v12142, %v541
    %v12144 = vadd.f32 %v12143, %v547
    %v12145 = vadd.f32 %v12144, %v551
    %v12146 = vadd.f32 %v12145, %v557
    %v12147 = vadd.f32 %v12146, %v561
    %v12148 = vadd.f32 %v12147, %v567
    %v12149 = vadd.f32 %v12148, %v571
    %v12150 = vadd.f32 %v12149, %v577
    %v12151 = vadd.f32 %v12150, %v581
    %v12152 = vadd.f32 %v12151, %v587
    %v12153 = vadd.f32 %v12152, %v591
    %v12154 = vadd.f32 %v12153, %v597
    %v12155 = vadd.f32 %v12154, %v601
    %v12156 = vadd.f32 %v12155, %v607
    %v12157 = vadd.f32 %v12156, %v611
    %v12158 = vadd.f32 %v12157, %v617
    %v12159 = vadd.f32 %v12158, %v621
    %v12160 = vadd.f32 %v12159, %v627
    %v12161 = vadd.f32 %v12160, %v631
    %v12162 = vadd.f32 %v12161, %v637
    %v12163 = vadd.f32 %v12162, %v641
    %v12164 = vadd.f32 %v12163, %v647
    %v12165 = vadd.f32 %v12164, %v651
    %v12166 = vadd.f32 %v12165, %v657
    %v12167 = vadd.f32 %v12166, %v661
    %v12168 = vadd.f32 %v12167, %v667
    %v12169 = vadd.f32 %v12168, %v671
    %v12170 = vadd.f32 %v12169, %v677
    %v12171 = vadd.f32 %v12170, %v681
    %v12172 = vadd.f32 %v12171, %v687
    %v12173 = vadd.f32 %v12172, %v691
    %v12174 = vadd.f32 %v12173, %v697
    %v12175 = vadd.f32 %v12174, %v701
    %v12176 = vadd.f32 %v12175, %v707
    %v12177 = vadd.f32 %v12176, %v711
    %v12178 = vadd.f32 %v12177, %v717
    %v12179 = vadd.f32 %v12178, %v721
    %v12180 = vadd.f32 %v12179, %v727
    %v12181 = vadd.f32 %v12180, %v731
    %v12182 = vadd.f32 %v12181, %v737
    %v12183 = vadd.f32 %v12182, %v741
    %v12184 = vadd.f32 %v12183, %v747
    %v12185 = vadd.f32 %v12184, %v751
    %v12186 = vadd.f32 %v12185, %v757
    %v12187 = vadd.f32 %v12186, %v761
    %v12188 = vadd.f32 %v12187, %v767
    %v12189 = vadd.f32 %v12188, %v771
    %v12190 = vadd.f32 %v12189, %v777
    %v12191 = vadd.f32 %v12190, %v781
    %v12192 = vadd.f32 %v12191, %v787
    %v12193 = vadd.f32 %v12192, %v791
    %v12194 = vadd.f32 %v12193, %v797
    %v12195 = vadd.f32 %v12194, %v801
    %v12196 = vrot.slane %v12195, 4
    %v12197 = vadd.f32 %v12195, %v12196
    %v12198 = vrot.slane %v12197, 2
    %v12199 = vadd.f32 %v12197, %v12198
    %v12200 = vrot.slane %v12199, 1
    %v12201 = vadd.f32 %v12199, %v12200
    %v12202 = vmul.f32 %v12201, 0.001953125
    %v12203 = vmul.f32 %v487, %v487
    %v12204 = vmul.f32 %v491, %v491
    %v12205 = vmul.f32 %v497, %v497
    %v12206 = vmul.f32 %v501, %v501
    %v12207 = vmul.f32 %v507, %v507
    %v12208 = vmul.f32 %v511, %v511
    %v12209 = vmul.f32 %v517, %v517
    %v12210 = vmul.f32 %v521, %v521
    %v12211 = vmul.f32 %v527, %v527
    %v12212 = vmul.f32 %v531, %v531
    %v12213 = vmul.f32 %v537, %v537
    %v12214 = vmul.f32 %v541, %v541
    %v12215 = vmul.f32 %v547, %v547
    %v12216 = vmul.f32 %v551, %v551
    %v12217 = vmul.f32 %v557, %v557
    %v12218 = vmul.f32 %v561, %v561
    %v12219 = vmul.f32 %v567, %v567
    %v12220 = vmul.f32 %v571, %v571
    %v12221 = vmul.f32 %v577, %v577
    %v12222 = vmul.f32 %v581, %v581
    %v12223 = vmul.f32 %v587, %v587
    %v12224 = vmul.f32 %v591, %v591
    %v12225 = vmul.f32 %v597, %v597
    %v12226 = vmul.f32 %v601, %v601
    %v12227 = vmul.f32 %v607, %v607
    %v12228 = vmul.f32 %v611, %v611
    %v12229 = vmul.f32 %v617, %v617
    %v12230 = vmul.f32 %v621, %v621
    %v12231 = vmul.f32 %v627, %v627
    %v12232 = vmul.f32 %v631, %v631
    %v12233 = vmul.f32 %v637, %v637
    %v12234 = vmul.f32 %v641, %v641
    %v12235 = vmul.f32 %v647, %v647
    %v12236 = vmul.f32 %v651, %v651
    %v12237 = vmul.f32 %v657, %v657
    %v12238 = vmul.f32 %v661, %v661
    %v12239 = vmul.f32 %v667, %v667
    %v12240 = vmul.f32 %v671, %v671
    %v12241 = vmul.f32 %v677, %v677
    %v12242 = vmul.f32 %v681, %v681
    %v12243 = vmul.f32 %v687, %v687
    %v12244 = vmul.f32 %v691, %v691
    %v12245 = vmul.f32 %v697, %v697
    %v12246 = vmul.f32 %v701, %v701
    %v12247 = vmul.f32 %v707, %v707
    %v12248 = vmul.f32 %v711, %v711
    %v12249 = vmul.f32 %v717, %v717
    %v12250 = vmul.f32 %v721, %v721
    %v12251 = vmul.f32 %v727, %v727
    %v12252 = vmul.f32 %v731, %v731
    %v12253 = vmul.f32 %v737, %v737
    %v12254 = vmul.f32 %v741, %v741
    %v12255 = vmul.f32 %v747, %v747
    %v12256 = vmul.f32 %v751, %v751
    %v12257 = vmul.f32 %v757, %v757
    %v12258 = vmul.f32 %v761, %v761
    %v12259 = vmul.f32 %v767, %v767
    %v12260 = vmul.f32 %v771, %v771
    %v12261 = vmul.f32 %v777, %v777
    %v12262 = vmul.f32 %v781, %v781
    %v12263 = vmul.f32 %v787, %v787
    %v12264 = vmul.f32 %v791, %v791
    %v12265 = vmul.f32 %v797, %v797
    %v12266 = vmul.f32 %v801, %v801
    %v12267 = vadd.f32 %v12203, %v12204
    %v12268 = vadd.f32 %v12267, %v12205
    %v12269 = vadd.f32 %v12268, %v12206
    %v12270 = vadd.f32 %v12269, %v12207
    %v12271 = vadd.f32 %v12270, %v12208
    %v12272 = vadd.f32 %v12271, %v12209
    %v12273 = vadd.f32 %v12272, %v12210
    %v12274 = vadd.f32 %v12273, %v12211
    %v12275 = vadd.f32 %v12274, %v12212
    %v12276 = vadd.f32 %v12275, %v12213
    %v12277 = vadd.f32 %v12276, %v12214
    %v12278 = vadd.f32 %v12277, %v12215
    %v12279 = vadd.f32 %v12278, %v12216
    %v12280 = vadd.f32 %v12279, %v12217
    %v12281 = vadd.f32 %v12280, %v12218
    %v12282 = vadd.f32 %v12281, %v12219
    %v12283 = vadd.f32 %v12282, %v12220
    %v12284 = vadd.f32 %v12283, %v12221
    %v12285 = vadd.f32 %v12284, %v12222
    %v12286 = vadd.f32 %v12285, %v12223
    %v12287 = vadd.f32 %v12286, %v12224
    %v12288 = vadd.f32 %v12287, %v12225
    %v12289 = vadd.f32 %v12288, %v12226
    %v12290 = vadd.f32 %v12289, %v12227
    %v12291 = vadd.f32 %v12290, %v12228
    %v12292 = vadd.f32 %v12291, %v12229
    %v12293 = vadd.f32 %v12292, %v12230
    %v12294 = vadd.f32 %v12293, %v12231
    %v12295 = vadd.f32 %v12294, %v12232
    %v12296 = vadd.f32 %v12295, %v12233
    %v12297 = vadd.f32 %v12296, %v12234
    %v12298 = vadd.f32 %v12297, %v12235
    %v12299 = vadd.f32 %v12298, %v12236
    %v12300 = vadd.f32 %v12299, %v12237
    %v12301 = vadd.f32 %v12300, %v12238
    %v12302 = vadd.f32 %v12301, %v12239
    %v12303 = vadd.f32 %v12302, %v12240
    %v12304 = vadd.f32 %v12303, %v12241
    %v12305 = vadd.f32 %v12304, %v12242
    %v12306 = vadd.f32 %v12305, %v12243
    %v12307 = vadd.f32 %v12306, %v12244
    %v12308 = vadd.f32 %v12307, %v12245
    %v12309 = vadd.f32 %v12308, %v12246
    %v12310 = vadd.f32 %v12309, %v12247
    %v12311 = vadd.f32 %v12310, %v12248
    %v12312 = vadd.f32 %v12311, %v12249
    %v12313 = vadd.f32 %v12312, %v12250
    %v12314 = vadd.f32 %v12313, %v12251
    %v12315 = vadd.f32 %v12314, %v12252
    %v12316 = vadd.f32 %v12315, %v12253
    %v12317 = vadd.f32 %v12316, %v12254
    %v12318 = vadd.f32 %v12317, %v12255
    %v12319 = vadd.f32 %v12318, %v12256
    %v12320 = vadd.f32 %v12319, %v12257
    %v12321 = vadd.f32 %v12320, %v12258
    %v12322 = vadd.f32 %v12321, %v12259
    %v12323 = vadd.f32 %v12322, %v12260
    %v12324 = vadd.f32 %v12323, %v12261
    %v12325 = vadd.f32 %v12324, %v12262
    %v12326 = vadd.f32 %v12325, %v12263
    %v12327 = vadd.f32 %v12326, %v12264
    %v12328 = vadd.f32 %v12327, %v12265
    %v12329 = vadd.f32 %v12328, %v12266
    %v12330 = vrot.slane %v12329, 4
    %v12331 = vadd.f32 %v12329, %v12330
    %v12332 = vrot.slane %v12331, 2
    %v12333 = vadd.f32 %v12331, %v12332
    %v12334 = vrot.slane %v12333, 1
    %v12335 = vadd.f32 %v12333, %v12334
    %v12336 = vmul.f32 %v12335, 0.001953125
    %v12337 = vmul.f32 %v12202, %v12202
    %v12338 = vsub.f32 %v12336, %v12337
    %v12339 = vmax.f32 %v12338, 0.0
    %v12340 = vadd.f32 %v12339, 1e-05
    %v12341 = vrsqrt.pop %v12340
    %v12342 = vmul.f32 %v12131, %v12341
    %v12343 = vmul.f32 %v12202, %v12342
    %v12344 = vsub.f32 %v12132, %v12343
    %v12346 = vlaneseq
    %v12347 = vshrl.u32 %v12346, 7
    %v12348 = vsub.s32 0, %v12347
    %v12349 = vrot.slane %v12128, %v12348
    %v12351 = vmul.f32 %v11663, %v12349
    %v12352 = vmul.f32 %v11666, %v12349
    %v12353 = vmul.f32 %v11671, %v12349
    %v12354 = vmul.f32 %v11674, %v12349
    %v12355 = vmul.f32 %v11679, %v12349
    %v12356 = vmul.f32 %v11682, %v12349
    %v12357 = vmul.f32 %v11687, %v12349
    %v12358 = vmul.f32 %v11690, %v12349
    %v12359 = vmul.f32 %v11695, %v12349
    %v12360 = vmul.f32 %v11698, %v12349
    %v12361 = vmul.f32 %v11703, %v12349
    %v12362 = vmul.f32 %v11706, %v12349
    %v12363 = vmul.f32 %v11711, %v12349
    %v12364 = vmul.f32 %v11714, %v12349
    %v12365 = vmul.f32 %v11719, %v12349
    %v12366 = vmul.f32 %v11722, %v12349
    %v12367 = vmul.f32 %v11727, %v12349
    %v12368 = vmul.f32 %v11730, %v12349
    %v12369 = vmul.f32 %v11735, %v12349
    %v12370 = vmul.f32 %v11738, %v12349
    %v12371 = vmul.f32 %v11743, %v12349
    %v12372 = vmul.f32 %v11746, %v12349
    %v12373 = vmul.f32 %v11751, %v12349
    %v12374 = vmul.f32 %v11754, %v12349
    %v12375 = vmul.f32 %v11759, %v12349
    %v12376 = vmul.f32 %v11762, %v12349
    %v12377 = vmul.f32 %v11767, %v12349
    %v12378 = vmul.f32 %v11770, %v12349
    %v12379 = vmul.f32 %v11775, %v12349
    %v12380 = vmul.f32 %v11778, %v12349
    %v12381 = vmul.f32 %v11783, %v12349
    %v12382 = vmul.f32 %v11786, %v12349
    %v12383 = vmul.f32 %v11791, %v12349
    %v12384 = vmul.f32 %v11794, %v12349
    %v12385 = vmul.f32 %v11799, %v12349
    %v12386 = vmul.f32 %v11802, %v12349
    %v12387 = vmul.f32 %v11807, %v12349
    %v12388 = vmul.f32 %v11810, %v12349
    %v12389 = vmul.f32 %v11815, %v12349
    %v12390 = vmul.f32 %v11818, %v12349
    %v12391 = vmul.f32 %v11823, %v12349
    %v12392 = vmul.f32 %v11826, %v12349
    %v12393 = vmul.f32 %v11831, %v12349
    %v12394 = vmul.f32 %v11834, %v12349
    %v12395 = vmul.f32 %v11839, %v12349
    %v12396 = vmul.f32 %v11842, %v12349
    %v12397 = vmul.f32 %v11847, %v12349
    %v12398 = vmul.f32 %v11850, %v12349
    %v12399 = vmul.f32 %v11855, %v12349
    %v12400 = vmul.f32 %v11858, %v12349
    %v12401 = vmul.f32 %v11863, %v12349
    %v12402 = vmul.f32 %v11866, %v12349
    %v12403 = vmul.f32 %v11871, %v12349
    %v12404 = vmul.f32 %v11874, %v12349
    %v12405 = vmul.f32 %v11879, %v12349
    %v12406 = vmul.f32 %v11882, %v12349
    %v12407 = vmul.f32 %v11887, %v12349
    %v12408 = vmul.f32 %v11890, %v12349
    %v12409 = vmul.f32 %v11895, %v12349
    %v12410 = vmul.f32 %v11898, %v12349
    %v12411 = vmul.f32 %v11903, %v12349
    %v12412 = vmul.f32 %v11906, %v12349
    %v12413 = vmul.f32 %v11911, %v12349
    %v12414 = vmul.f32 %v11914, %v12349
    %v12416 = vlaneseq
    %v12417 = vshrl.u32 %v12416, 7
    %v12418 = vsub.s32 0, %v12417
    %v12419 = vrot.slane %v12342, %v12418
    %v12421 = vmul.f32 %v487, %v12419
    %v12422 = vmul.f32 %v491, %v12419
    %v12423 = vmul.f32 %v497, %v12419
    %v12424 = vmul.f32 %v501, %v12419
    %v12425 = vmul.f32 %v507, %v12419
    %v12426 = vmul.f32 %v511, %v12419
    %v12427 = vmul.f32 %v517, %v12419
    %v12428 = vmul.f32 %v521, %v12419
    %v12429 = vmul.f32 %v527, %v12419
    %v12430 = vmul.f32 %v531, %v12419
    %v12431 = vmul.f32 %v537, %v12419
    %v12432 = vmul.f32 %v541, %v12419
    %v12433 = vmul.f32 %v547, %v12419
    %v12434 = vmul.f32 %v551, %v12419
    %v12435 = vmul.f32 %v557, %v12419
    %v12436 = vmul.f32 %v561, %v12419
    %v12437 = vmul.f32 %v567, %v12419
    %v12438 = vmul.f32 %v571, %v12419
    %v12439 = vmul.f32 %v577, %v12419
    %v12440 = vmul.f32 %v581, %v12419
    %v12441 = vmul.f32 %v587, %v12419
    %v12442 = vmul.f32 %v591, %v12419
    %v12443 = vmul.f32 %v597, %v12419
    %v12444 = vmul.f32 %v601, %v12419
    %v12445 = vmul.f32 %v607, %v12419
    %v12446 = vmul.f32 %v611, %v12419
    %v12447 = vmul.f32 %v617, %v12419
    %v12448 = vmul.f32 %v621, %v12419
    %v12449 = vmul.f32 %v627, %v12419
    %v12450 = vmul.f32 %v631, %v12419
    %v12451 = vmul.f32 %v637, %v12419
    %v12452 = vmul.f32 %v641, %v12419
    %v12453 = vmul.f32 %v647, %v12419
    %v12454 = vmul.f32 %v651, %v12419
    %v12455 = vmul.f32 %v657, %v12419
    %v12456 = vmul.f32 %v661, %v12419
    %v12457 = vmul.f32 %v667, %v12419
    %v12458 = vmul.f32 %v671, %v12419
    %v12459 = vmul.f32 %v677, %v12419
    %v12460 = vmul.f32 %v681, %v12419
    %v12461 = vmul.f32 %v687, %v12419
    %v12462 = vmul.f32 %v691, %v12419
    %v12463 = vmul.f32 %v697, %v12419
    %v12464 = vmul.f32 %v701, %v12419
    %v12465 = vmul.f32 %v707, %v12419
    %v12466 = vmul.f32 %v711, %v12419
    %v12467 = vmul.f32 %v717, %v12419
    %v12468 = vmul.f32 %v721, %v12419
    %v12469 = vmul.f32 %v727, %v12419
    %v12470 = vmul.f32 %v731, %v12419
    %v12471 = vmul.f32 %v737, %v12419
    %v12472 = vmul.f32 %v741, %v12419
    %v12473 = vmul.f32 %v747, %v12419
    %v12474 = vmul.f32 %v751, %v12419
    %v12475 = vmul.f32 %v757, %v12419
    %v12476 = vmul.f32 %v761, %v12419
    %v12477 = vmul.f32 %v767, %v12419
    %v12478 = vmul.f32 %v771, %v12419
    %v12479 = vmul.f32 %v777, %v12419
    %v12480 = vmul.f32 %v781, %v12419
    %v12481 = vmul.f32 %v787, %v12419
    %v12482 = vmul.f32 %v791, %v12419
    %v12483 = vmul.f32 %v797, %v12419
    %v12484 = vmul.f32 %v801, %v12419
    %v12485 = vadd.f32 %v12351, %v12421
    %v12486 = vadd.f32 %v12352, %v12422
    %v12487 = vadd.f32 %v12353, %v12423
    %v12488 = vadd.f32 %v12354, %v12424
    %v12489 = vadd.f32 %v12355, %v12425
    %v12490 = vadd.f32 %v12356, %v12426
    %v12491 = vadd.f32 %v12357, %v12427
    %v12492 = vadd.f32 %v12358, %v12428
    %v12493 = vadd.f32 %v12359, %v12429
    %v12494 = vadd.f32 %v12360, %v12430
    %v12495 = vadd.f32 %v12361, %v12431
    %v12496 = vadd.f32 %v12362, %v12432
    %v12497 = vadd.f32 %v12363, %v12433
    %v12498 = vadd.f32 %v12364, %v12434
    %v12499 = vadd.f32 %v12365, %v12435
    %v12500 = vadd.f32 %v12366, %v12436
    %v12501 = vadd.f32 %v12367, %v12437
    %v12502 = vadd.f32 %v12368, %v12438
    %v12503 = vadd.f32 %v12369, %v12439
    %v12504 = vadd.f32 %v12370, %v12440
    %v12505 = vadd.f32 %v12371, %v12441
    %v12506 = vadd.f32 %v12372, %v12442
    %v12507 = vadd.f32 %v12373, %v12443
    %v12508 = vadd.f32 %v12374, %v12444
    %v12509 = vadd.f32 %v12375, %v12445
    %v12510 = vadd.f32 %v12376, %v12446
    %v12511 = vadd.f32 %v12377, %v12447
    %v12512 = vadd.f32 %v12378, %v12448
    %v12513 = vadd.f32 %v12379, %v12449
    %v12514 = vadd.f32 %v12380, %v12450
    %v12515 = vadd.f32 %v12381, %v12451
    %v12516 = vadd.f32 %v12382, %v12452
    %v12517 = vadd.f32 %v12383, %v12453
    %v12518 = vadd.f32 %v12384, %v12454
    %v12519 = vadd.f32 %v12385, %v12455
    %v12520 = vadd.f32 %v12386, %v12456
    %v12521 = vadd.f32 %v12387, %v12457
    %v12522 = vadd.f32 %v12388, %v12458
    %v12523 = vadd.f32 %v12389, %v12459
    %v12524 = vadd.f32 %v12390, %v12460
    %v12525 = vadd.f32 %v12391, %v12461
    %v12526 = vadd.f32 %v12392, %v12462
    %v12527 = vadd.f32 %v12393, %v12463
    %v12528 = vadd.f32 %v12394, %v12464
    %v12529 = vadd.f32 %v12395, %v12465
    %v12530 = vadd.f32 %v12396, %v12466
    %v12531 = vadd.f32 %v12397, %v12467
    %v12532 = vadd.f32 %v12398, %v12468
    %v12533 = vadd.f32 %v12399, %v12469
    %v12534 = vadd.f32 %v12400, %v12470
    %v12535 = vadd.f32 %v12401, %v12471
    %v12536 = vadd.f32 %v12402, %v12472
    %v12537 = vadd.f32 %v12403, %v12473
    %v12538 = vadd.f32 %v12404, %v12474
    %v12539 = vadd.f32 %v12405, %v12475
    %v12540 = vadd.f32 %v12406, %v12476
    %v12541 = vadd.f32 %v12407, %v12477
    %v12542 = vadd.f32 %v12408, %v12478
    %v12543 = vadd.f32 %v12409, %v12479
    %v12544 = vadd.f32 %v12410, %v12480
    %v12545 = vadd.f32 %v12411, %v12481
    %v12546 = vadd.f32 %v12412, %v12482
    %v12547 = vadd.f32 %v12413, %v12483
    %v12548 = vadd.f32 %v12414, %v12484
    %v12549 = vadd.f32 %v12130, %v12344
    %v12551 = vlaneseq
    %v12552 = vshrl.u32 %v12551, 7
    %v12553 = vsub.s32 0, %v12552
    %v12554 = vrot.slane %v12549, %v12553
    %v12556 = vadd.f32 %v12485, %v12554
    %v12557 = vadd.f32 %v12486, %v12554
    %v12558 = vadd.f32 %v12487, %v12554
    %v12559 = vadd.f32 %v12488, %v12554
    %v12560 = vadd.f32 %v12489, %v12554
    %v12561 = vadd.f32 %v12490, %v12554
    %v12562 = vadd.f32 %v12491, %v12554
    %v12563 = vadd.f32 %v12492, %v12554
    %v12564 = vadd.f32 %v12493, %v12554
    %v12565 = vadd.f32 %v12494, %v12554
    %v12566 = vadd.f32 %v12495, %v12554
    %v12567 = vadd.f32 %v12496, %v12554
    %v12568 = vadd.f32 %v12497, %v12554
    %v12569 = vadd.f32 %v12498, %v12554
    %v12570 = vadd.f32 %v12499, %v12554
    %v12571 = vadd.f32 %v12500, %v12554
    %v12572 = vadd.f32 %v12501, %v12554
    %v12573 = vadd.f32 %v12502, %v12554
    %v12574 = vadd.f32 %v12503, %v12554
    %v12575 = vadd.f32 %v12504, %v12554
    %v12576 = vadd.f32 %v12505, %v12554
    %v12577 = vadd.f32 %v12506, %v12554
    %v12578 = vadd.f32 %v12507, %v12554
    %v12579 = vadd.f32 %v12508, %v12554
    %v12580 = vadd.f32 %v12509, %v12554
    %v12581 = vadd.f32 %v12510, %v12554
    %v12582 = vadd.f32 %v12511, %v12554
    %v12583 = vadd.f32 %v12512, %v12554
    %v12584 = vadd.f32 %v12513, %v12554
    %v12585 = vadd.f32 %v12514, %v12554
    %v12586 = vadd.f32 %v12515, %v12554
    %v12587 = vadd.f32 %v12516, %v12554
    %v12588 = vadd.f32 %v12517, %v12554
    %v12589 = vadd.f32 %v12518, %v12554
    %v12590 = vadd.f32 %v12519, %v12554
    %v12591 = vadd.f32 %v12520, %v12554
    %v12592 = vadd.f32 %v12521, %v12554
    %v12593 = vadd.f32 %v12522, %v12554
    %v12594 = vadd.f32 %v12523, %v12554
    %v12595 = vadd.f32 %v12524, %v12554
    %v12596 = vadd.f32 %v12525, %v12554
    %v12597 = vadd.f32 %v12526, %v12554
    %v12598 = vadd.f32 %v12527, %v12554
    %v12599 = vadd.f32 %v12528, %v12554
    %v12600 = vadd.f32 %v12529, %v12554
    %v12601 = vadd.f32 %v12530, %v12554
    %v12602 = vadd.f32 %v12531, %v12554
    %v12603 = vadd.f32 %v12532, %v12554
    %v12604 = vadd.f32 %v12533, %v12554
    %v12605 = vadd.f32 %v12534, %v12554
    %v12606 = vadd.f32 %v12535, %v12554
    %v12607 = vadd.f32 %v12536, %v12554
    %v12608 = vadd.f32 %v12537, %v12554
    %v12609 = vadd.f32 %v12538, %v12554
    %v12610 = vadd.f32 %v12539, %v12554
    %v12611 = vadd.f32 %v12540, %v12554
    %v12612 = vadd.f32 %v12541, %v12554
    %v12613 = vadd.f32 %v12542, %v12554
    %v12614 = vadd.f32 %v12543, %v12554
    %v12615 = vadd.f32 %v12544, %v12554
    %v12616 = vadd.f32 %v12545, %v12554
    %v12617 = vadd.f32 %v12546, %v12554
    %v12618 = vadd.f32 %v12547, %v12554
    %v12619 = vadd.f32 %v12548, %v12554
    %v12620 = vmax.f32 %v12556, 0.0
    %v12621 = vmax.f32 %v12557, 0.0
    %v12622 = vmax.f32 %v12558, 0.0
    %v12623 = vmax.f32 %v12559, 0.0
    %v12624 = vmax.f32 %v12560, 0.0
    %v12625 = vmax.f32 %v12561, 0.0
    %v12626 = vmax.f32 %v12562, 0.0
    %v12627 = vmax.f32 %v12563, 0.0
    %v12628 = vmax.f32 %v12564, 0.0
    %v12629 = vmax.f32 %v12565, 0.0
    %v12630 = vmax.f32 %v12566, 0.0
    %v12631 = vmax.f32 %v12567, 0.0
    %v12632 = vmax.f32 %v12568, 0.0
    %v12633 = vmax.f32 %v12569, 0.0
    %v12634 = vmax.f32 %v12570, 0.0
    %v12635 = vmax.f32 %v12571, 0.0
    %v12636 = vmax.f32 %v12572, 0.0
    %v12637 = vmax.f32 %v12573, 0.0
    %v12638 = vmax.f32 %v12574, 0.0
    %v12639 = vmax.f32 %v12575, 0.0
    %v12640 = vmax.f32 %v12576, 0.0
    %v12641 = vmax.f32 %v12577, 0.0
    %v12642 = vmax.f32 %v12578, 0.0
    %v12643 = vmax.f32 %v12579, 0.0
    %v12644 = vmax.f32 %v12580, 0.0
    %v12645 = vmax.f32 %v12581, 0.0
    %v12646 = vmax.f32 %v12582, 0.0
    %v12647 = vmax.f32 %v12583, 0.0
    %v12648 = vmax.f32 %v12584, 0.0
    %v12649 = vmax.f32 %v12585, 0.0
    %v12650 = vmax.f32 %v12586, 0.0
    %v12651 = vmax.f32 %v12587, 0.0
    %v12652 = vmax.f32 %v12588, 0.0
    %v12653 = vmax.f32 %v12589, 0.0
    %v12654 = vmax.f32 %v12590, 0.0
    %v12655 = vmax.f32 %v12591, 0.0
    %v12656 = vmax.f32 %v12592, 0.0
    %v12657 = vmax.f32 %v12593, 0.0
    %v12658 = vmax.f32 %v12594, 0.0
    %v12659 = vmax.f32 %v12595, 0.0
    %v12660 = vmax.f32 %v12596, 0.0
    %v12661 = vmax.f32 %v12597, 0.0
    %v12662 = vmax.f32 %v12598, 0.0
    %v12663 = vmax.f32 %v12599, 0.0
    %v12664 = vmax.f32 %v12600, 0.0
    %v12665 = vmax.f32 %v12601, 0.0
    %v12666 = vmax.f32 %v12602, 0.0
    %v12667 = vmax.f32 %v12603, 0.0
    %v12668 = vmax.f32 %v12604, 0.0
    %v12669 = vmax.f32 %v12605, 0.0
    %v12670 = vmax.f32 %v12606, 0.0
    %v12671 = vmax.f32 %v12607, 0.0
    %v12672 = vmax.f32 %v12608, 0.0
    %v12673 = vmax.f32 %v12609, 0.0
    %v12674 = vmax.f32 %v12610, 0.0
    %v12675 = vmax.f32 %v12611, 0.0
    %v12676 = vmax.f32 %v12612, 0.0
    %v12677 = vmax.f32 %v12613, 0.0
    %v12678 = vmax.f32 %v12614, 0.0
    %v12679 = vmax.f32 %v12615, 0.0
    %v12680 = vmax.f32 %v12616, 0.0
    %v12681 = vmax.f32 %v12617, 0.0
    %v12682 = vmax.f32 %v12618, 0.0
    %v12683 = vmax.f32 %v12619, 0.0
    %12684 = vst [vmem:[#allocation11] sm:$0xff] %v12620
    %12685 = vst [vmem:[#allocation11 + $0x8] sm:$0xff] %v12621
    %12686 = vst [vmem:[#allocation11 + $0x10] sm:$0xff] %v12622
    %12687 = vst [vmem:[#allocation11 + $0x18] sm:$0xff] %v12623
    %12688 = vst [vmem:[#allocation11 + $0x20] sm:$0xff] %v12624
    %12689 = vst [vmem:[#allocation11 + $0x28] sm:$0xff] %v12625
    %12690 = vst [vmem:[#allocation11 + $0x30] sm:$0xff] %v12626
    %12691 = vst [vmem:[#allocation11 + $0x38] sm:$0xff] %v12627
    %12692 = vst [vmem:[#allocation11 + $0x40] sm:$0xff] %v12628
    %12693 = vst [vmem:[#allocation11 + $0x48] sm:$0xff] %v12629
    %12694 = vst [vmem:[#allocation11 + $0x50] sm:$0xff] %v12630
    %12695 = vst [vmem:[#allocation11 + $0x58] sm:$0xff] %v12631
    %12696 = vst [vmem:[#allocation11 + $0x60] sm:$0xff] %v12632
    %12697 = vst [vmem:[#allocation11 + $0x68] sm:$0xff] %v12633
    %12698 = vst [vmem:[#allocation11 + $0x70] sm:$0xff] %v12634
    %12699 = vst [vmem:[#allocation11 + $0x78] sm:$0xff] %v12635
    %12700 = vst [vmem:[#allocation11 + $0x80] sm:$0xff] %v12636
    %12701 = vst [vmem:[#allocation11 + $0x88] sm:$0xff] %v12637
    %12702 = vst [vmem:[#allocation11 + $0x90] sm:$0xff] %v12638
    %12703 = vst [vmem:[#allocation11 + $0x98] sm:$0xff] %v12639
    %12704 = vst [vmem:[#allocation11 + $0xa0] sm:$0xff] %v12640
    %12705 = vst [vmem:[#allocation11 + $0xa8] sm:$0xff] %v12641
    %12706 = vst [vmem:[#allocation11 + $0xb0] sm:$0xff] %v12642
    %12707 = vst [vmem:[#allocation11 + $0xb8] sm:$0xff] %v12643
    %12708 = vst [vmem:[#allocation11 + $0xc0] sm:$0xff] %v12644
    %12709 = vst [vmem:[#allocation11 + $0xc8] sm:$0xff] %v12645
    %12710 = vst [vmem:[#allocation11 + $0xd0] sm:$0xff] %v12646
    %12711 = vst [vmem:[#allocation11 + $0xd8] sm:$0xff] %v12647
    %12712 = vst [vmem:[#allocation11 + $0xe0] sm:$0xff] %v12648
    %12713 = vst [vmem:[#allocation11 + $0xe8] sm:$0xff] %v12649
    %12714 = vst [vmem:[#allocation11 + $0xf0] sm:$0xff] %v12650
    %12715 = vst [vmem:[#allocation11 + $0xf8] sm:$0xff] %v12651
    %12716 = vst [vmem:[#allocation11 + $0x100] sm:$0xff] %v12652
    %12717 = vst [vmem:[#allocation11 + $0x108] sm:$0xff] %v12653
    %12718 = vst [vmem:[#allocation11 + $0x110] sm:$0xff] %v12654
    %12719 = vst [vmem:[#allocation11 + $0x118] sm:$0xff] %v12655
    %12720 = vst [vmem:[#allocation11 + $0x120] sm:$0xff] %v12656
    %12721 = vst [vmem:[#allocation11 + $0x128] sm:$0xff] %v12657
    %12722 = vst [vmem:[#allocation11 + $0x130] sm:$0xff] %v12658
    %12723 = vst [vmem:[#allocation11 + $0x138] sm:$0xff] %v12659
    %12724 = vst [vmem:[#allocation11 + $0x140] sm:$0xff] %v12660
    %12725 = vst [vmem:[#allocation11 + $0x148] sm:$0xff] %v12661
    %12726 = vst [vmem:[#allocation11 + $0x150] sm:$0xff] %v12662
    %12727 = vst [vmem:[#allocation11 + $0x158] sm:$0xff] %v12663
    %12728 = vst [vmem:[#allocation11 + $0x160] sm:$0xff] %v12664
    %12729 = vst [vmem:[#allocation11 + $0x168] sm:$0xff] %v12665
    %12730 = vst [vmem:[#allocation11 + $0x170] sm:$0xff] %v12666
    %12731 = vst [vmem:[#allocation11 + $0x178] sm:$0xff] %v12667
    %12732 = vst [vmem:[#allocation11 + $0x180] sm:$0xff] %v12668
    %12733 = vst [vmem:[#allocation11 + $0x188] sm:$0xff] %v12669
    %12734 = vst [vmem:[#allocation11 + $0x190] sm:$0xff] %v12670
    %12735 = vst [vmem:[#allocation11 + $0x198] sm:$0xff] %v12671
    %12736 = vst [vmem:[#allocation11 + $0x1a0] sm:$0xff] %v12672
    %12737 = vst [vmem:[#allocation11 + $0x1a8] sm:$0xff] %v12673
    %12738 = vst [vmem:[#allocation11 + $0x1b0] sm:$0xff] %v12674
    %12739 = vst [vmem:[#allocation11 + $0x1b8] sm:$0xff] %v12675
    %12740 = vst [vmem:[#allocation11 + $0x1c0] sm:$0xff] %v12676
    %12741 = vst [vmem:[#allocation11 + $0x1c8] sm:$0xff] %v12677
    %12742 = vst [vmem:[#allocation11 + $0x1d0] sm:$0xff] %v12678
    %12743 = vst [vmem:[#allocation11 + $0x1d8] sm:$0xff] %v12679
    %12744 = vst [vmem:[#allocation11 + $0x1e0] sm:$0xff] %v12680
    %12745 = vst [vmem:[#allocation11 + $0x1e8] sm:$0xff] %v12681
    %12746 = vst [vmem:[#allocation11 + $0x1f0] sm:$0xff] %v12682
    %12747 = vst [vmem:[#allocation11 + $0x1f8] sm:$0xff] %v12683
    // Predicated region
    $region66: #{tpu_custom_call.1} parent=1 // pred_check
      _
    $region67: #{tpu_custom_call.1} parent=1 // pred_check_branch
      %12749 = sbr.rel (0) target = $region69
    $region68: #{tpu_custom_call.1} parent=1 // pred_region
      %s12751 = ssub.s32 8192, 8192
      %12752 = vsyncadd [#allocation5], %s12751
      %s12753 = sshll.u32 [#allocation11], 4
      %s12754 = int_to_ptr.vmem [resolvable:$true] %s12753
      %12759 = dma.vmem_to_hbm [thread:$0]  %s12754, 8192, %s12, [#allocation5], 128, 128, 8
    $region69: #{tpu_custom_call.1} parent=1 // pred_fallthru
      _
    // Predicated region
    $region70: #{tpu_custom_call.1} parent=1 // pred_check
      _
    $region71: #{tpu_custom_call.1} parent=1 // pred_check_branch
      %12761 = sbr.rel (0) target = $region73
    $region72: #{tpu_custom_call.1} parent=1 // pred_region
      %12762 = dma.done [#allocation5], 8192
    $region73: #{tpu_custom_call.1} parent=1 // pred_fallthru
      _
    %12763 = vsyncpa [#allocation4], 1
    %12764 = vsyncpa [#allocation7], 1
    %12765 = vsyncpa [#allocation10], 1
    %12766 = vsyncpa [#allocation5], 1

</llo_original>
